<compile_context>
chip_gen: v7x
topology: tpu7x:2x2x1
jax: 0.10.0
libtpu: 0.0.40
codegen_flags: <defaults>
</compile_context>

<pallas_src>
import functools

import jax
import jax.numpy as jnp
from jax.experimental import pallas as pl
from jax.experimental.pallas import tpu as pltpu

IN_DIM = 2560          # 2048 (image feats) + 512 (question feats)
H1, H2, H3, H4 = 1024, 512, 256, 128
N_STACKS = 3
OUT_CLASSES = 5

_STACK_MACS = IN_DIM * H1 + H1 * H2 + H2 * H3 + H3 * H4          # per-stack MACs/row
_HEAD_MACS = H4 * OUT_CLASSES                                     # per-stack head MACs/row
_WEIGHT_BYTES = (N_STACKS * (_STACK_MACS + _HEAD_MACS) * 2        # bf16 weights
                 + N_STACKS * (H1 + H2 + H3 + H4) * 4             # f32 biases
                 + OUT_CLASSES * 4)                               # f32 cls bias


def _vqa_kernel(x_ref,
                w1_ref, b1_ref, w2_ref, b2_ref, w3_ref, b3_ref, w4_ref, b4_ref,
                wc_ref, bc_ref,
                out_ref):
    """Grid axis 0 iterates over the 3 parallel linstacks (weight streaming axis).

    Each step runs one full linstack (4 chained Linear layers, bf16 weights,
    f32 accumulation) and immediately folds its (B, 128) result into the
    classifier output via out += h @ wc[j].  The output block is resident in
    VMEM across the grid axis (same block index every step), so no scratch or
    lane-axis concatenate is needed.
    """
    j = pl.program_id(0)

    @pl.when(j == 0)
    def _():
        out_ref[...] = jnp.zeros_like(out_ref)

    x = x_ref[...]                                                     # (B, 2560) f32
    h = jnp.dot(x.astype(jnp.bfloat16), w1_ref[0],
                preferred_element_type=jnp.float32) + b1_ref[0]        # (B, 1024)
    h = jnp.dot(h.astype(jnp.bfloat16), w2_ref[0],
                preferred_element_type=jnp.float32) + b2_ref[0]        # (B, 512)
    h = jnp.dot(h.astype(jnp.bfloat16), w3_ref[0],
                preferred_element_type=jnp.float32) + b3_ref[0]        # (B, 256)
    h = jnp.dot(h.astype(jnp.bfloat16), w4_ref[0],
                preferred_element_type=jnp.float32) + b4_ref[0]        # (B, 128)

    # Classifier head contribution of this stack: out += h @ wc[128j:128(j+1)]
    out_ref[...] += jnp.dot(h.astype(jnp.bfloat16), wc_ref[0],
                            preferred_element_type=jnp.float32)

    @pl.when(j == pl.num_programs(0) - 1)
    def _():
        out_ref[...] += bc_ref[...]


@jax.jit
def vqa_forward(img_feats, q_feats, params):
    """img_feats: (B, 2048) f32, q_feats: (B, 512) f32 -> logits (B, 5) f32."""
    x = jnp.concatenate([img_feats, q_feats], axis=-1).astype(jnp.float32)
    b0 = x.shape[0]
    # Pad batch to a multiple of the f32 sublane tile (8).
    b = max(8, ((b0 + 7) // 8) * 8)
    if b != b0:
        x = jnp.pad(x, ((0, b - b0), (0, 0)))

    (w1, b1, w2, b2, w3, b3, w4, b4, wc, bc) = params

    stacked_spec = lambda shape: pl.BlockSpec((1,) + shape, lambda j: (j, 0, 0))
    shared_spec = lambda shape: pl.BlockSpec(shape, lambda j: (0,) * len(shape))

    grid_spec = pltpu.PrefetchScalarGridSpec(
        num_scalar_prefetch=0,
        grid=(N_STACKS,),
        in_specs=[
            shared_spec((b, IN_DIM)),                       # x (resident, shared)
            stacked_spec((IN_DIM, H1)), stacked_spec((1, H1)),
            stacked_spec((H1, H2)),     stacked_spec((1, H2)),
            stacked_spec((H2, H3)),     stacked_spec((1, H3)),
            stacked_spec((H3, H4)),     stacked_spec((1, H4)),
            stacked_spec((H4, OUT_CLASSES)),                # cls weight, pre-split per stack
            shared_spec((1, OUT_CLASSES)),                  # cls bias
        ],
        out_specs=shared_spec((b, OUT_CLASSES)),            # resident accumulator
    )

    cost = pl.CostEstimate(
        flops=2 * b * N_STACKS * (_STACK_MACS + _HEAD_MACS),
        transcendentals=0,
        bytes_accessed=_WEIGHT_BYTES + b * IN_DIM * 4 + b * OUT_CLASSES * 4,
    )

    out = pl.pallas_call(
        _vqa_kernel,
        out_shape=jax.ShapeDtypeStruct((b, OUT_CLASSES), jnp.float32),
        grid_spec=grid_spec,
        compiler_params=pltpu.CompilerParams(
            # "arbitrary": the output block is an accumulator across the stack axis.
            dimension_semantics=("arbitrary",),
            # ~13 MiB double-buffered bf16 weights + activations; valid on v7x (64 MiB).
            vmem_limit_bytes=40 * 1024 * 1024,
        ),
        cost_estimate=cost,
    )(x, w1, b1, w2, b2, w3, b3, w4, b4, wc, bc)

    return out[:b0]


def init_params(key):
    """Deterministic PyTorch-style init.

    Weights stored pre-transposed as (in, out); linstack params stacked along a
    leading axis of size 3 (linstack1/2/3).  Weight matrices are bfloat16
    (streamed halved over HBM); biases stay float32.  The classifier weight is
    pre-split into (3, 128, out_classes) so the head can be accumulated per stack.
    """
    def linear(key, fan_in, fan_out):
        bound = 1.0 / (float(fan_in) ** 0.5)
        kw, kb = jax.random.split(key)
        w = jax.random.uniform(kw, (fan_in, fan_out), jnp.float32, -bound, bound)
        b = jax.random.uniform(kb, (1, fan_out), jnp.float32, -bound, bound)
        return w, b

    dims = [(IN_DIM, H1), (H1, H2), (H2, H3), (H3, H4)]
    ws, bs = [[] for _ in dims], [[] for _ in dims]
    keys = jax.random.split(key, N_STACKS * len(dims) + 1)
    k = 0
    for _ in range(N_STACKS):
        for li, (fi, fo) in enumerate(dims):
            w, b = linear(keys[k], fi, fo); k += 1
            ws[li].append(w); bs[li].append(b)
    stacked = []
    for li in range(len(dims)):
        stacked.append(jnp.stack(ws[li], axis=0).astype(jnp.bfloat16))   # (3, in, out) bf16
        stacked.append(jnp.stack(bs[li], axis=0))                        # (3, 1, out) f32
    wc, bc = linear(keys[k], N_STACKS * H4, OUT_CLASSES)
    wc = wc.reshape(N_STACKS, H4, OUT_CLASSES).astype(jnp.bfloat16)      # (3, 128, 5) bf16
    return tuple(stacked) + (wc, bc)


def reference_forward(img_feats, q_feats, params):
    """Pure-JAX reference mirroring the kernel's bf16-weight / f32-accumulate math
    (dropout = identity at inference)."""
    (w1, b1, w2, b2, w3, b3, w4, b4, wc, bc) = params
    x = jnp.concatenate([img_feats, q_feats], axis=-1).astype(jnp.float32)
    out = jnp.zeros((x.shape[0], OUT_CLASSES), jnp.float32)
    for j in range(N_STACKS):
        h = jnp.dot(x.astype(jnp.bfloat16), w1[j], preferred_element_type=jnp.float32) + b1[j]
        h = jnp.dot(h.astype(jnp.bfloat16), w2[j], preferred_element_type=jnp.float32) + b2[j]
        h = jnp.dot(h.astype(jnp.bfloat16), w3[j], preferred_element_type=jnp.float32) + b3[j]
        h = jnp.dot(h.astype(jnp.bfloat16), w4[j], preferred_element_type=jnp.float32) + b4[j]
        out = out + jnp.dot(h.astype(jnp.bfloat16), wc[j], preferred_element_type=jnp.float32)
    return out + bc


if __name__ == "__main__":
    key = jax.random.PRNGKey(0)
    kp, ki, kq = jax.random.split(key, 3)

    B = 8
    img_feats = jax.random.normal(ki, (B, 2048), jnp.float32)
    q_feats = jax.random.normal(kq, (B, 512), jnp.float32)

    params = init_params(kp)

    out = vqa_forward(img_feats, q_feats, params)
    out = jax.block_until_ready(out)

    ref = reference_forward(img_feats, q_feats, params)
    assert out.shape == (B, OUT_CLASSES)
    assert jnp.allclose(out, ref, atol=2e-3, rtol=2e-3), "mismatch vs reference"

    print("KERNEL_OK")
</pallas_src>

<mosaic_0001>
module attributes {stable_mosaic.version = 11 : i64} {
  func.func @_vqa_kernel(%arg0: i32, %arg1: memref<8x2560xf32, #tpu.memory_space<vmem>>, %arg2: memref<1x2560x1024xbf16, #tpu.memory_space<vmem>>, %arg3: memref<1x1x1024xf32, #tpu.memory_space<vmem>>, %arg4: memref<1x1024x512xbf16, #tpu.memory_space<vmem>>, %arg5: memref<1x1x512xf32, #tpu.memory_space<vmem>>, %arg6: memref<1x512x256xbf16, #tpu.memory_space<vmem>>, %arg7: memref<1x1x256xf32, #tpu.memory_space<vmem>>, %arg8: memref<1x256x128xbf16, #tpu.memory_space<vmem>>, %arg9: memref<1x1x128xf32, #tpu.memory_space<vmem>>, %arg10: memref<1x128x5xbf16, #tpu.memory_space<vmem>>, %arg11: memref<1x5xf32, #tpu.memory_space<vmem>>, %arg12: memref<8x5xf32, #tpu.memory_space<vmem>>) attributes {dimension_semantics = [#tpu.dimension_semantics<arbitrary>], iteration_bounds = array<i64: 3>, scalar_prefetch = 0 : i64, scratch_operands = 0 : i64, tpu.core_type = #tpu.core_type<tc>, window_params = [{pipeline_mode = #tpu.pipeline_mode<synchronous>, transform_indices = @transform_0, window_bounds = array<i64: 8, 2560>}, {transform_indices = @transform_1, window_bounds = array<i64: 1, 2560, 1024>}, {transform_indices = @transform_2, window_bounds = array<i64: 1, 1, 1024>}, {transform_indices = @transform_3, window_bounds = array<i64: 1, 1024, 512>}, {transform_indices = @transform_4, window_bounds = array<i64: 1, 1, 512>}, {transform_indices = @transform_5, window_bounds = array<i64: 1, 512, 256>}, {transform_indices = @transform_6, window_bounds = array<i64: 1, 1, 256>}, {transform_indices = @transform_7, window_bounds = array<i64: 1, 256, 128>}, {transform_indices = @transform_8, window_bounds = array<i64: 1, 1, 128>}, {transform_indices = @transform_9, window_bounds = array<i64: 1, 128, 5>}, {pipeline_mode = #tpu.pipeline_mode<synchronous>, transform_indices = @transform_10, window_bounds = array<i64: 1, 5>}, {pipeline_mode = #tpu.pipeline_mode<synchronous>, transform_indices = @transform_11, window_bounds = array<i64: 8, 5>}]} {
    %c0_i32 = arith.constant 0 : i32
    %0 = arith.cmpi eq, %arg0, %c0_i32 : i32
    %1 = arith.extui %0 : i1 to i32
    %c0_i32_0 = arith.constant 0 : i32
    %2 = arith.cmpi ne, %1, %c0_i32_0 : i32
    scf.if %2 {
      %cst_38 = arith.constant 0.000000e+00 : f32
      %46 = vector.broadcast %cst_38 : f32 to vector<8x5xf32>
      %c0_39 = arith.constant 0 : index
      %c0_40 = arith.constant 0 : index
      %47 = vector.load %arg12[%c0_39, %c0_40] : memref<8x5xf32, #tpu.memory_space<vmem>>, vector<8x5xf32>
      tpu.vector_store %arg12[%c0_39, %c0_40], %46 {strides = array<i32>} : memref<8x5xf32, #tpu.memory_space<vmem>>, vector<8x5xf32>,
    } else {
    }
    %c0 = arith.constant 0 : index
    %c0_1 = arith.constant 0 : index
    %3 = vector.load %arg1[%c0, %c0_1] : memref<8x2560xf32, #tpu.memory_space<vmem>>, vector<8x2560xf32>
    %4 = arith.truncf %3 : vector<8x2560xf32> to vector<8x2560xbf16>
    %c0_2 = arith.constant 0 : index
    %c0_3 = arith.constant 0 : index
    %c0_4 = arith.constant 0 : index
    %5 = vector.load %arg2[%c0_2, %c0_3, %c0_4] : memref<1x2560x1024xbf16, #tpu.memory_space<vmem>>, vector<1x2560x1024xbf16>
    %6 = vector.shape_cast %5 : vector<1x2560x1024xbf16> to vector<2560x1024xbf16>
    %cst = arith.constant dense<0.000000e+00> : vector<8x1024xf32>
    %7 = tpu.matmul %4, %6, %cst {dimension_numbers = #tpu.dot_dimension_numbers<[1], [0], [0], [1], [0, 0, 1, 1], [], []>} : vector<8x2560xbf16>, vector<2560x1024xbf16>, vector<8x1024xf32> -> vector<8x1024xf32>
    %c0_5 = arith.constant 0 : index
    %c0_6 = arith.constant 0 : index
    %c0_7 = arith.constant 0 : index
    %8 = vector.load %arg3[%c0_5, %c0_6, %c0_7] : memref<1x1x1024xf32, #tpu.memory_space<vmem>>, vector<1x1x1024xf32>
    %9 = vector.shape_cast %8 : vector<1x1x1024xf32> to vector<1x1024xf32>
    %10 = vector.broadcast %9 : vector<1x1024xf32> to vector<8x1024xf32>
    %11 = arith.addf %7, %10 : vector<8x1024xf32>
    %12 = arith.truncf %11 : vector<8x1024xf32> to vector<8x1024xbf16>
    %c0_8 = arith.constant 0 : index
    %c0_9 = arith.constant 0 : index
    %c0_10 = arith.constant 0 : index
    %13 = vector.load %arg4[%c0_8, %c0_9, %c0_10] : memref<1x1024x512xbf16, #tpu.memory_space<vmem>>, vector<1x1024x512xbf16>
    %14 = vector.shape_cast %13 : vector<1x1024x512xbf16> to vector<1024x512xbf16>
    %cst_11 = arith.constant dense<0.000000e+00> : vector<8x512xf32>
    %15 = tpu.matmul %12, %14, %cst_11 {dimension_numbers = #tpu.dot_dimension_numbers<[1], [0], [0], [1], [0, 0, 1, 1], [], []>} : vector<8x1024xbf16>, vector<1024x512xbf16>, vector<8x512xf32> -> vector<8x512xf32>
    %c0_12 = arith.constant 0 : index
    %c0_13 = arith.constant 0 : index
    %c0_14 = arith.constant 0 : index
    %16 = vector.load %arg5[%c0_12, %c0_13, %c0_14] : memref<1x1x512xf32, #tpu.memory_space<vmem>>, vector<1x1x512xf32>
    %17 = vector.shape_cast %16 : vector<1x1x512xf32> to vector<1x512xf32>
    %18 = vector.broadcast %17 : vector<1x512xf32> to vector<8x512xf32>
    %19 = arith.addf %15, %18 : vector<8x512xf32>
    %20 = arith.truncf %19 : vector<8x512xf32> to vector<8x512xbf16>
    %c0_15 = arith.constant 0 : index
    %c0_16 = arith.constant 0 : index
    %c0_17 = arith.constant 0 : index
    %21 = vector.load %arg6[%c0_15, %c0_16, %c0_17] : memref<1x512x256xbf16, #tpu.memory_space<vmem>>, vector<1x512x256xbf16>
    %22 = vector.shape_cast %21 : vector<1x512x256xbf16> to vector<512x256xbf16>
    %cst_18 = arith.constant dense<0.000000e+00> : vector<8x256xf32>
    %23 = tpu.matmul %20, %22, %cst_18 {dimension_numbers = #tpu.dot_dimension_numbers<[1], [0], [0], [1], [0, 0, 1, 1], [], []>} : vector<8x512xbf16>, vector<512x256xbf16>, vector<8x256xf32> -> vector<8x256xf32>
    %c0_19 = arith.constant 0 : index
    %c0_20 = arith.constant 0 : index
    %c0_21 = arith.constant 0 : index
    %24 = vector.load %arg7[%c0_19, %c0_20, %c0_21] : memref<1x1x256xf32, #tpu.memory_space<vmem>>, vector<1x1x256xf32>
    %25 = vector.shape_cast %24 : vector<1x1x256xf32> to vector<1x256xf32>
    %26 = vector.broadcast %25 : vector<1x256xf32> to vector<8x256xf32>
    %27 = arith.addf %23, %26 : vector<8x256xf32>
    %28 = arith.truncf %27 : vector<8x256xf32> to vector<8x256xbf16>
    %c0_22 = arith.constant 0 : index
    %c0_23 = arith.constant 0 : index
    %c0_24 = arith.constant 0 : index
    %29 = vector.load %arg8[%c0_22, %c0_23, %c0_24] : memref<1x256x128xbf16, #tpu.memory_space<vmem>>, vector<1x256x128xbf16>
    %30 = vector.shape_cast %29 : vector<1x256x128xbf16> to vector<256x128xbf16>
    %cst_25 = arith.constant dense<0.000000e+00> : vector<8x128xf32>
    %31 = tpu.matmul %28, %30, %cst_25 {dimension_numbers = #tpu.dot_dimension_numbers<[1], [0], [0], [1], [0, 0, 1, 1], [], []>} : vector<8x256xbf16>, vector<256x128xbf16>, vector<8x128xf32> -> vector<8x128xf32>
    %c0_26 = arith.constant 0 : index
    %c0_27 = arith.constant 0 : index
    %c0_28 = arith.constant 0 : index
    %32 = vector.load %arg9[%c0_26, %c0_27, %c0_28] : memref<1x1x128xf32, #tpu.memory_space<vmem>>, vector<1x1x128xf32>
    %33 = vector.shape_cast %32 : vector<1x1x128xf32> to vector<1x128xf32>
    %34 = vector.broadcast %33 : vector<1x128xf32> to vector<8x128xf32>
    %35 = arith.addf %31, %34 : vector<8x128xf32>
    %c0_29 = arith.constant 0 : index
    %c0_30 = arith.constant 0 : index
    %36 = vector.load %arg12[%c0_29, %c0_30] : memref<8x5xf32, #tpu.memory_space<vmem>>, vector<8x5xf32>
    %37 = arith.truncf %35 : vector<8x128xf32> to vector<8x128xbf16>
    %c0_31 = arith.constant 0 : index
    %c0_32 = arith.constant 0 : index
    %c0_33 = arith.constant 0 : index
    %38 = vector.load %arg10[%c0_31, %c0_32, %c0_33] : memref<1x128x5xbf16, #tpu.memory_space<vmem>>, vector<1x128x5xbf16>
    %39 = vector.shape_cast %38 : vector<1x128x5xbf16> to vector<128x5xbf16>
    %cst_34 = arith.constant dense<0.000000e+00> : vector<8x5xf32>
    %40 = tpu.matmul %37, %39, %cst_34 {dimension_numbers = #tpu.dot_dimension_numbers<[1], [0], [0], [1], [0, 0, 1, 1], [], []>} : vector<8x128xbf16>, vector<128x5xbf16>, vector<8x5xf32> -> vector<8x5xf32>
    %41 = arith.addf %36, %40 : vector<8x5xf32>
    %c0_35 = arith.constant 0 : index
    %c0_36 = arith.constant 0 : index
    %42 = vector.load %arg12[%c0_35, %c0_36] : memref<8x5xf32, #tpu.memory_space<vmem>>, vector<8x5xf32>
    tpu.vector_store %arg12[%c0_35, %c0_36], %41 {strides = array<i32>} : memref<8x5xf32, #tpu.memory_space<vmem>>, vector<8x5xf32>,
    %c2_i32 = arith.constant 2 : i32
    %43 = arith.cmpi eq, %arg0, %c2_i32 : i32
    %44 = arith.extui %43 : i1 to i32
    %c0_i32_37 = arith.constant 0 : i32
    %45 = arith.cmpi ne, %44, %c0_i32_37 : i32
    scf.if %45 {
      %c0_38 = arith.constant 0 : index
      %c0_39 = arith.constant 0 : index
      %46 = vector.load %arg12[%c0_38, %c0_39] : memref<8x5xf32, #tpu.memory_space<vmem>>, vector<8x5xf32>
      %c0_40 = arith.constant 0 : index
      %c0_41 = arith.constant 0 : index
      %47 = vector.load %arg11[%c0_40, %c0_41] : memref<1x5xf32, #tpu.memory_space<vmem>>, vector<1x5xf32>
      %48 = vector.broadcast %47 : vector<1x5xf32> to vector<8x5xf32>
      %49 = arith.addf %46, %48 : vector<8x5xf32>
      %c0_42 = arith.constant 0 : index
      %c0_43 = arith.constant 0 : index
      %50 = vector.load %arg12[%c0_42, %c0_43] : memref<8x5xf32, #tpu.memory_space<vmem>>, vector<8x5xf32>
      tpu.vector_store %arg12[%c0_42, %c0_43], %49 {strides = array<i32>} : memref<8x5xf32, #tpu.memory_space<vmem>>, vector<8x5xf32>,
    } else {
    }
    return
  }
  func.func @transform_0(%arg0: i32) -> (i32, i32) {
    %c0_i32 = arith.constant 0 : i32
    %c0_i32_0 = arith.constant 0 : i32
    %c0_i32_1 = arith.constant 0 : i32
    return %c0_i32, %c0_i32_0 : i32, i32
  }
  func.func @transform_1(%arg0: i32) -> (i32, i32, i32) {
    %c0_i32 = arith.constant 0 : i32
    %c0_i32_0 = arith.constant 0 : i32
    %c0_i32_1 = arith.constant 0 : i32
    return %arg0, %c0_i32, %c0_i32_0 : i32, i32, i32
  }
  func.func @transform_2(%arg0: i32) -> (i32, i32, i32) {
    %c0_i32 = arith.constant 0 : i32
    %c0_i32_0 = arith.constant 0 : i32
    %c0_i32_1 = arith.constant 0 : i32
    return %arg0, %c0_i32, %c0_i32_0 : i32, i32, i32
  }
  func.func @transform_3(%arg0: i32) -> (i32, i32, i32) {
    %c0_i32 = arith.constant 0 : i32
    %c0_i32_0 = arith.constant 0 : i32
    %c0_i32_1 = arith.constant 0 : i32
    return %arg0, %c0_i32, %c0_i32_0 : i32, i32, i32
  }
  func.func @transform_4(%arg0: i32) -> (i32, i32, i32) {
    %c0_i32 = arith.constant 0 : i32
    %c0_i32_0 = arith.constant 0 : i32
    %c0_i32_1 = arith.constant 0 : i32
    return %arg0, %c0_i32, %c0_i32_0 : i32, i32, i32
  }
  func.func @transform_5(%arg0: i32) -> (i32, i32, i32) {
    %c0_i32 = arith.constant 0 : i32
    %c0_i32_0 = arith.constant 0 : i32
    %c0_i32_1 = arith.constant 0 : i32
    return %arg0, %c0_i32, %c0_i32_0 : i32, i32, i32
  }
  func.func @transform_6(%arg0: i32) -> (i32, i32, i32) {
    %c0_i32 = arith.constant 0 : i32
    %c0_i32_0 = arith.constant 0 : i32
    %c0_i32_1 = arith.constant 0 : i32
    return %arg0, %c0_i32, %c0_i32_0 : i32, i32, i32
  }
  func.func @transform_7(%arg0: i32) -> (i32, i32, i32) {
    %c0_i32 = arith.constant 0 : i32
    %c0_i32_0 = arith.constant 0 : i32
    %c0_i32_1 = arith.constant 0 : i32
    return %arg0, %c0_i32, %c0_i32_0 : i32, i32, i32
  }
  func.func @transform_8(%arg0: i32) -> (i32, i32, i32) {
    %c0_i32 = arith.constant 0 : i32
    %c0_i32_0 = arith.constant 0 : i32
    %c0_i32_1 = arith.constant 0 : i32
    return %arg0, %c0_i32, %c0_i32_0 : i32, i32, i32
  }
  func.func @transform_9(%arg0: i32) -> (i32, i32, i32) {
    %c0_i32 = arith.constant 0 : i32
    %c0_i32_0 = arith.constant 0 : i32
    %c0_i32_1 = arith.constant 0 : i32
    return %arg0, %c0_i32, %c0_i32_0 : i32, i32, i32
  }
  func.func @transform_10(%arg0: i32) -> (i32, i32) {
    %c0_i32 = arith.constant 0 : i32
    %c0_i32_0 = arith.constant 0 : i32
    %c0_i32_1 = arith.constant 0 : i32
    return %c0_i32, %c0_i32_0 : i32, i32
  }
  func.func @transform_11(%arg0: i32) -> (i32, i32) {
    %c0_i32 = arith.constant 0 : i32
    %c0_i32_0 = arith.constant 0 : i32
    %c0_i32_1 = arith.constant 0 : i32
    return %c0_i32, %c0_i32_0 : i32, i32
  }
}

</mosaic_0001>

<llo_original>
// kernel: vqa_forward.1
$region0: #{vqa_forward.1}
  #allocation0 [shape = 'u32[]', space=smem, size = 0x4, offset = 0x4, fixed_abs, tag = 'smem constant byte address 0x4 - core index']
  #allocation1 [shape = 'u32[144,128]{1,0:T(1,128)}', space=vmem, size = 0x12000, scoped, tag = 'internal scratch']
  %s0 = inlined_call_operand.vmem [shape: f32[8,2560], index: 0, kind: input, shape index: {}]
  %s1 = inlined_call_operand.hbm [shape: bf16[3,2560,1024], index: 1, kind: input, shape index: {}]
  %s2 = inlined_call_operand.hbm [shape: f32[3,1,1024], index: 2, kind: input, shape index: {}]
  %s3 = inlined_call_operand.hbm [shape: bf16[3,1024,512], index: 3, kind: input, shape index: {}]
  %s4 = inlined_call_operand.hbm [shape: f32[3,1,512], index: 4, kind: input, shape index: {}]
  %s5 = inlined_call_operand.hbm [shape: bf16[3,512,256], index: 5, kind: input, shape index: {}]
  %s6 = inlined_call_operand.hbm [shape: f32[3,1,256], index: 6, kind: input, shape index: {}]
  %s7 = inlined_call_operand.hbm [shape: bf16[3,256,128], index: 7, kind: input, shape index: {}]
  %s8 = inlined_call_operand.hbm [shape: f32[3,1,128], index: 8, kind: input, shape index: {}]
  %s9 = inlined_call_operand.vmem [shape: bf16[3,128,5], index: 9, kind: input, shape index: {}]
  %s10 = inlined_call_operand.hbm [shape: f32[1,5], index: 10, kind: input, shape index: {}]
  %s11 = inlined_call_operand.hbm [shape: f32[8,5], index: 11, kind: output, shape index: {}]
  %s12 = sld [smem:[#allocation0]]
  $region121: #{vqa_forward.1} parent=0
    _
  %s14 = ssub.s32 1, %s12
  %s15 = scalar_select 0, %s14, %s12
  $region1: #{vqa_forward.1} parent=0
    #allocation2 [shape = 'u8[10485760]{0}', space=vmem, size = 0xa00000, scoped, tag = 'input window, operand 1']
    #allocation3 [shape = 's32[2]{0}', space=sflag, size = 0x8, scoped, tag = 'scoped memory for vqa_forward.1']
    #allocation4 [shape = 's32[2]{0}', space=sflag, size = 0x8, scoped, tag = 'scoped memory for vqa_forward.1']
    #allocation5 [shape = 'u8[8192]{0}', space=vmem, size = 0x2000, scoped, tag = 'input window, operand 2']
    #allocation6 [shape = 's32[2]{0}', space=sflag, size = 0x8, scoped, tag = 'scoped memory for vqa_forward.1']
    #allocation7 [shape = 'u8[2097152]{0}', space=vmem, size = 0x200000, scoped, tag = 'input window, operand 3']
    #allocation8 [shape = 'u8[4096]{0}', space=vmem, size = 0x1000, scoped, tag = 'input window, operand 4']
    #allocation9 [shape = 's32[2]{0}', space=sflag, size = 0x8, scoped, tag = 'scoped memory for vqa_forward.1']
    #allocation10 [shape = 'u8[524288]{0}', space=vmem, size = 0x80000, scoped, tag = 'input window, operand 5']
    #allocation11 [shape = 'u8[2048]{0}', space=vmem, size = 0x800, scoped, tag = 'input window, operand 6']
    #allocation12 [shape = 's32[2]{0}', space=sflag, size = 0x8, scoped, tag = 'scoped memory for vqa_forward.1']
    #allocation13 [shape = 'u8[131072]{0}', space=vmem, size = 0x20000, scoped, tag = 'input window, operand 7']
    #allocation14 [shape = 'u8[1024]{0}', space=vmem, size = 0x400, scoped, tag = 'input window, operand 8']
    #allocation15 [shape = 's32[2]{0}', space=sflag, size = 0x8, scoped, tag = 'scoped memory for vqa_forward.1']
    #allocation16 [shape = 'u8[512]{0}', space=vmem, size = 0x400, scoped, tag = 'input window, operand 10, single buffered']
    #allocation17 [shape = 'u8[4096]{0}', space=vmem, size = 0x1000, scoped, tag = 'output window, operand 0, single buffered']
    %16 = vsyncpa [#allocation3], 0
    %s17 = scalar_lea.sflag [#allocation3], 1
    %18 = vsyncpa %s17, 0
    %19 = vsyncpa [#allocation6], 0
    %s20 = scalar_lea.sflag [#allocation6], 1
    %21 = vsyncpa %s20, 0
    %22 = vsyncpa [#allocation9], 0
    %s23 = scalar_lea.sflag [#allocation9], 1
    %24 = vsyncpa %s23, 0
    %25 = vsyncpa [#allocation12], 0
    %s26 = scalar_lea.sflag [#allocation12], 1
    %27 = vsyncpa %s26, 0
    %28 = vsyncpa [#allocation15], 0
    %s29 = scalar_lea.sflag [#allocation15], 1
    %30 = vsyncpa %s29, 0
    %31 = vsyncpa [#allocation4], 0
    loop: start=0, step=1, limit=5
    $region2: #{vqa_forward.1} parent=1 // loop_pre_header
      _
    $region3: #{vqa_forward.1} parent=1 // loop_header
      %s33 = sphi 0, %s37
      %p34 = scmp.ge.s32.totalorder %s33, 5
      %s41 = sphi 0, %s41
      %s43 = sphi 0, %s41
      %s44 = sphi 0, %s43
      %s58 = sphi 0, %s44
      %s64 = sphi 0, %s66
      %s67 = sphi 0, %s64
      %s68 = sphi 0, %s67
      %s84 = sphi 0, %s68
      %s90 = sphi 0, %s92
      %s93 = sphi 0, %s90
      %s94 = sphi 0, %s93
      %s110 = sphi 0, %s94
      %s116 = sphi 0, %s118
      %s119 = sphi 0, %s116
      %s120 = sphi 0, %s119
      %s136 = sphi 0, %s120
      %s142 = sphi 0, %s144
      %s145 = sphi 0, %s142
      %s146 = sphi 0, %s145
      %s162 = sphi 0, %s146
      %s168 = sphi 0, %s170
      %s171 = sphi 0, %s168
      %s172 = sphi 0, %s171
      %s188 = sphi 0, %s172
      %s194 = sphi 0, %s196
      %s197 = sphi 0, %s194
      %s198 = sphi 0, %s197
      %s214 = sphi 0, %s198
      %s220 = sphi 0, %s222
      %s223 = sphi 0, %s220
      %s224 = sphi 0, %s223
      %s240 = sphi 0, %s224
      %s246 = sphi 0, %s248
      %s249 = sphi 0, %s246
      %s250 = sphi 0, %s249
      %s266 = sphi 0, %s250
      %s272 = sphi 0, %s274
      %s275 = sphi 0, %s272
      %s276 = sphi 0, %s275
      %s292 = sphi 0, %s276
      %s296 = sphi 0, %s296
      %s298 = sphi 0, %s296
      %s299 = sphi 0, %s298
      %s313 = sphi 0, %s299
      %s317 = sphi 0, %s317
      %s319 = sphi 0, %s317
      %s320 = sphi 0, %s319
      %s334 = sphi 0, %s320
    $region4: #{vqa_forward.1} parent=1 // loop_header_branch
      %36 = sbr.rel (%p34) target = $region8
    $region5: #{vqa_forward.1} parent=1 // loop_body
      %s38 = ssub.s32 %s33, 1
      %s39 = ssub.s32 %s33, 2
      %s40 = sadd.s32 %s33, 1
      %s42 = sadd.s32 %s41, 1
      %p45 = scmp.eq.s32.totalorder %s33, 2
      %p46 = scmp.ne.s32.totalorder %s41, %s43
      %p47 = scmp.eq.s32.totalorder %s33, 0
      %p48 = por %p46, %p47
      %p49 = scmp.ne.s32.totalorder %s41, %s43
      %p50 = scmp.eq.s32.totalorder %s38, 2
      %p51 = por %p49, %p50
      %p52 = scmp.ne.s32.totalorder %s43, %s44
      %p53 = scmp.eq.s32.totalorder %s38, 0
      %p54 = por %p52, %p53
      %p55 = scmp.ne.s32.totalorder %s43, %s44
      %p56 = scmp.eq.s32.totalorder %s39, 2
      %p57 = por %p55, %p56
      %p59 = scmp.ne.s32.totalorder %s44, %s58
      %p60 = scmp.eq.s32.totalorder %s39, 0
      %p61 = por %p59, %p60
      %s62 = ssub.s32 %s33, %s40
      %p63 = scmp.eq.s32.totalorder %s62, 0
      %s65 = sadd.s32 %s64, 1
      %s66 = scalar_select %p63, %s64, %s65
      %p69 = pneg %p63
      %p70 = scmp.eq.s32.totalorder %s33, 2
      %p71 = por %p69, %p70
      %p72 = scmp.ne.s32.totalorder %s64, %s67
      %p73 = scmp.eq.s32.totalorder %s33, 0
      %p74 = por %p72, %p73
      %p75 = scmp.ne.s32.totalorder %s64, %s67
      %p76 = scmp.eq.s32.totalorder %s38, 2
      %p77 = por %p75, %p76
      %p78 = scmp.ne.s32.totalorder %s67, %s68
      %p79 = scmp.eq.s32.totalorder %s38, 0
      %p80 = por %p78, %p79
      %p81 = scmp.ne.s32.totalorder %s67, %s68
      %p82 = scmp.eq.s32.totalorder %s39, 2
      %p83 = por %p81, %p82
      %p85 = scmp.ne.s32.totalorder %s68, %s84
      %p86 = scmp.eq.s32.totalorder %s39, 0
      %p87 = por %p85, %p86
      %s88 = ssub.s32 %s33, %s40
      %p89 = scmp.eq.s32.totalorder %s88, 0
      %s91 = sadd.s32 %s90, 1
      %s92 = scalar_select %p89, %s90, %s91
      %p95 = pneg %p89
      %p96 = scmp.eq.s32.totalorder %s33, 2
      %p97 = por %p95, %p96
      %p98 = scmp.ne.s32.totalorder %s90, %s93
      %p99 = scmp.eq.s32.totalorder %s33, 0
      %p100 = por %p98, %p99
      %p101 = scmp.ne.s32.totalorder %s90, %s93
      %p102 = scmp.eq.s32.totalorder %s38, 2
      %p103 = por %p101, %p102
      %p104 = scmp.ne.s32.totalorder %s93, %s94
      %p105 = scmp.eq.s32.totalorder %s38, 0
      %p106 = por %p104, %p105
      %p107 = scmp.ne.s32.totalorder %s93, %s94
      %p108 = scmp.eq.s32.totalorder %s39, 2
      %p109 = por %p107, %p108
      %p111 = scmp.ne.s32.totalorder %s94, %s110
      %p112 = scmp.eq.s32.totalorder %s39, 0
      %p113 = por %p111, %p112
      %s114 = ssub.s32 %s33, %s40
      %p115 = scmp.eq.s32.totalorder %s114, 0
      %s117 = sadd.s32 %s116, 1
      %s118 = scalar_select %p115, %s116, %s117
      %p121 = pneg %p115
      %p122 = scmp.eq.s32.totalorder %s33, 2
      %p123 = por %p121, %p122
      %p124 = scmp.ne.s32.totalorder %s116, %s119
      %p125 = scmp.eq.s32.totalorder %s33, 0
      %p126 = por %p124, %p125
      %p127 = scmp.ne.s32.totalorder %s116, %s119
      %p128 = scmp.eq.s32.totalorder %s38, 2
      %p129 = por %p127, %p128
      %p130 = scmp.ne.s32.totalorder %s119, %s120
      %p131 = scmp.eq.s32.totalorder %s38, 0
      %p132 = por %p130, %p131
      %p133 = scmp.ne.s32.totalorder %s119, %s120
      %p134 = scmp.eq.s32.totalorder %s39, 2
      %p135 = por %p133, %p134
      %p137 = scmp.ne.s32.totalorder %s120, %s136
      %p138 = scmp.eq.s32.totalorder %s39, 0
      %p139 = por %p137, %p138
      %s140 = ssub.s32 %s33, %s40
      %p141 = scmp.eq.s32.totalorder %s140, 0
      %s143 = sadd.s32 %s142, 1
      %s144 = scalar_select %p141, %s142, %s143
      %p147 = pneg %p141
      %p148 = scmp.eq.s32.totalorder %s33, 2
      %p149 = por %p147, %p148
      %p150 = scmp.ne.s32.totalorder %s142, %s145
      %p151 = scmp.eq.s32.totalorder %s33, 0
      %p152 = por %p150, %p151
      %p153 = scmp.ne.s32.totalorder %s142, %s145
      %p154 = scmp.eq.s32.totalorder %s38, 2
      %p155 = por %p153, %p154
      %p156 = scmp.ne.s32.totalorder %s145, %s146
      %p157 = scmp.eq.s32.totalorder %s38, 0
      %p158 = por %p156, %p157
      %p159 = scmp.ne.s32.totalorder %s145, %s146
      %p160 = scmp.eq.s32.totalorder %s39, 2
      %p161 = por %p159, %p160
      %p163 = scmp.ne.s32.totalorder %s146, %s162
      %p164 = scmp.eq.s32.totalorder %s39, 0
      %p165 = por %p163, %p164
      %s166 = ssub.s32 %s33, %s40
      %p167 = scmp.eq.s32.totalorder %s166, 0
      %s169 = sadd.s32 %s168, 1
      %s170 = scalar_select %p167, %s168, %s169
      %p173 = pneg %p167
      %p174 = scmp.eq.s32.totalorder %s33, 2
      %p175 = por %p173, %p174
      %p176 = scmp.ne.s32.totalorder %s168, %s171
      %p177 = scmp.eq.s32.totalorder %s33, 0
      %p178 = por %p176, %p177
      %p179 = scmp.ne.s32.totalorder %s168, %s171
      %p180 = scmp.eq.s32.totalorder %s38, 2
      %p181 = por %p179, %p180
      %p182 = scmp.ne.s32.totalorder %s171, %s172
      %p183 = scmp.eq.s32.totalorder %s38, 0
      %p184 = por %p182, %p183
      %p185 = scmp.ne.s32.totalorder %s171, %s172
      %p186 = scmp.eq.s32.totalorder %s39, 2
      %p187 = por %p185, %p186
      %p189 = scmp.ne.s32.totalorder %s172, %s188
      %p190 = scmp.eq.s32.totalorder %s39, 0
      %p191 = por %p189, %p190
      %s192 = ssub.s32 %s33, %s40
      %p193 = scmp.eq.s32.totalorder %s192, 0
      %s195 = sadd.s32 %s194, 1
      %s196 = scalar_select %p193, %s194, %s195
      %p199 = pneg %p193
      %p200 = scmp.eq.s32.totalorder %s33, 2
      %p201 = por %p199, %p200
      %p202 = scmp.ne.s32.totalorder %s194, %s197
      %p203 = scmp.eq.s32.totalorder %s33, 0
      %p204 = por %p202, %p203
      %p205 = scmp.ne.s32.totalorder %s194, %s197
      %p206 = scmp.eq.s32.totalorder %s38, 2
      %p207 = por %p205, %p206
      %p208 = scmp.ne.s32.totalorder %s197, %s198
      %p209 = scmp.eq.s32.totalorder %s38, 0
      %p210 = por %p208, %p209
      %p211 = scmp.ne.s32.totalorder %s197, %s198
      %p212 = scmp.eq.s32.totalorder %s39, 2
      %p213 = por %p211, %p212
      %p215 = scmp.ne.s32.totalorder %s198, %s214
      %p216 = scmp.eq.s32.totalorder %s39, 0
      %p217 = por %p215, %p216
      %s218 = ssub.s32 %s33, %s40
      %p219 = scmp.eq.s32.totalorder %s218, 0
      %s221 = sadd.s32 %s220, 1
      %s222 = scalar_select %p219, %s220, %s221
      %p225 = pneg %p219
      %p226 = scmp.eq.s32.totalorder %s33, 2
      %p227 = por %p225, %p226
      %p228 = scmp.ne.s32.totalorder %s220, %s223
      %p229 = scmp.eq.s32.totalorder %s33, 0
      %p230 = por %p228, %p229
      %p231 = scmp.ne.s32.totalorder %s220, %s223
      %p232 = scmp.eq.s32.totalorder %s38, 2
      %p233 = por %p231, %p232
      %p234 = scmp.ne.s32.totalorder %s223, %s224
      %p235 = scmp.eq.s32.totalorder %s38, 0
      %p236 = por %p234, %p235
      %p237 = scmp.ne.s32.totalorder %s223, %s224
      %p238 = scmp.eq.s32.totalorder %s39, 2
      %p239 = por %p237, %p238
      %p241 = scmp.ne.s32.totalorder %s224, %s240
      %p242 = scmp.eq.s32.totalorder %s39, 0
      %p243 = por %p241, %p242
      %s244 = ssub.s32 %s33, %s40
      %p245 = scmp.eq.s32.totalorder %s244, 0
      %s247 = sadd.s32 %s246, 1
      %s248 = scalar_select %p245, %s246, %s247
      %p251 = pneg %p245
      %p252 = scmp.eq.s32.totalorder %s33, 2
      %p253 = por %p251, %p252
      %p254 = scmp.ne.s32.totalorder %s246, %s249
      %p255 = scmp.eq.s32.totalorder %s33, 0
      %p256 = por %p254, %p255
      %p257 = scmp.ne.s32.totalorder %s246, %s249
      %p258 = scmp.eq.s32.totalorder %s38, 2
      %p259 = por %p257, %p258
      %p260 = scmp.ne.s32.totalorder %s249, %s250
      %p261 = scmp.eq.s32.totalorder %s38, 0
      %p262 = por %p260, %p261
      %p263 = scmp.ne.s32.totalorder %s249, %s250
      %p264 = scmp.eq.s32.totalorder %s39, 2
      %p265 = por %p263, %p264
      %p267 = scmp.ne.s32.totalorder %s250, %s266
      %p268 = scmp.eq.s32.totalorder %s39, 0
      %p269 = por %p267, %p268
      %s270 = ssub.s32 %s33, %s40
      %p271 = scmp.eq.s32.totalorder %s270, 0
      %s273 = sadd.s32 %s272, 1
      %s274 = scalar_select %p271, %s272, %s273
      %p277 = pneg %p271
      %p278 = scmp.eq.s32.totalorder %s33, 2
      %p279 = por %p277, %p278
      %p280 = scmp.ne.s32.totalorder %s272, %s275
      %p281 = scmp.eq.s32.totalorder %s33, 0
      %p282 = por %p280, %p281
      %p283 = scmp.ne.s32.totalorder %s272, %s275
      %p284 = scmp.eq.s32.totalorder %s38, 2
      %p285 = por %p283, %p284
      %p286 = scmp.ne.s32.totalorder %s275, %s276
      %p287 = scmp.eq.s32.totalorder %s38, 0
      %p288 = por %p286, %p287
      %p289 = scmp.ne.s32.totalorder %s275, %s276
      %p290 = scmp.eq.s32.totalorder %s39, 2
      %p291 = por %p289, %p290
      %p293 = scmp.ne.s32.totalorder %s276, %s292
      %p294 = scmp.eq.s32.totalorder %s39, 0
      %p295 = por %p293, %p294
      %s297 = sadd.s32 %s296, 1
      %p300 = scmp.eq.s32.totalorder %s33, 2
      %p301 = scmp.ne.s32.totalorder %s296, %s298
      %p302 = scmp.eq.s32.totalorder %s33, 0
      %p303 = por %p301, %p302
      %p304 = scmp.ne.s32.totalorder %s296, %s298
      %p305 = scmp.eq.s32.totalorder %s38, 2
      %p306 = por %p304, %p305
      %p307 = scmp.ne.s32.totalorder %s298, %s299
      %p308 = scmp.eq.s32.totalorder %s38, 0
      %p309 = por %p307, %p308
      %p310 = scmp.ne.s32.totalorder %s298, %s299
      %p311 = scmp.eq.s32.totalorder %s39, 2
      %p312 = por %p310, %p311
      %p314 = scmp.ne.s32.totalorder %s299, %s313
      %p315 = scmp.eq.s32.totalorder %s39, 0
      %p316 = por %p314, %p315
      %s318 = sadd.s32 %s317, 1
      %p321 = scmp.eq.s32.totalorder %s33, 2
      %p322 = scmp.ne.s32.totalorder %s317, %s319
      %p323 = scmp.eq.s32.totalorder %s33, 0
      %p324 = por %p322, %p323
      %p325 = scmp.ne.s32.totalorder %s317, %s319
      %p326 = scmp.eq.s32.totalorder %s38, 2
      %p327 = por %p325, %p326
      %p328 = scmp.ne.s32.totalorder %s319, %s320
      %p329 = scmp.eq.s32.totalorder %s38, 0
      %p330 = por %p328, %p329
      %p331 = scmp.ne.s32.totalorder %s319, %s320
      %p332 = scmp.eq.s32.totalorder %s39, 2
      %p333 = por %p331, %p332
      %p335 = scmp.ne.s32.totalorder %s320, %s334
      %p336 = scmp.eq.s32.totalorder %s39, 0
      %p337 = por %p335, %p336
      %p338 = scmp.le.s32.totalorder 1, %s33
      %p339 = scmp.lt.s32.totalorder %s33, 4
      %p340 = pnand %p338, %p339
      %p341 = pneg %p340
      // Predicated region
      $region9: #{vqa_forward.1} parent=5 // pred_check
        _
      $region10: #{vqa_forward.1} parent=5 // pred_check_branch
        %343 = sbr.rel (%p340) target = $region12
      $region11: #{vqa_forward.1} parent=5 // pred_region
        %s344 = ssub.s32 %s33, 1
        // Predicated region
        $region13: #{vqa_forward.1} parent=11 // pred_check
          %p345 = pneg %p54
        $region14: #{vqa_forward.1} parent=11 // pred_check_branch
          %347 = sbr.rel (%p345) target = $region16
        $region15: #{vqa_forward.1} parent=11 // pred_region
          _
        $region16: #{vqa_forward.1} parent=11 // pred_fallthru
          _
        // Predicated region
        $region17: #{vqa_forward.1} parent=11 // pred_check
          %p348 = pneg %p309
        $region18: #{vqa_forward.1} parent=11 // pred_check_branch
          %350 = sbr.rel (%p348) target = $region20
        $region19: #{vqa_forward.1} parent=11 // pred_region
          %s352 = ssub.s32 16, 16
          %353 = vsyncadd [#allocation15], %s352
          %s355 = sshll.u32 [#allocation16], 4
          %s356 = int_to_ptr.vmem [resolvable:$true] %s355
          %358 = dma.hbm_to_vmem [thread:$0]  %s10, 16, %s356, [#allocation15]
        $region20: #{vqa_forward.1} parent=11 // pred_fallthru
          _
      $region12: #{vqa_forward.1} parent=5 // pred_fallthru
        _
      %p359 = scmp.lt.s32.totalorder %s33, 3
      // Predicated region
      $region21: #{vqa_forward.1} parent=5 // pred_check
        %p360 = pneg %p359
      $region22: #{vqa_forward.1} parent=5 // pred_check_branch
        %362 = sbr.rel (%p360) target = $region24
      $region23: #{vqa_forward.1} parent=5 // pred_region
        // Predicated region
        $region25: #{vqa_forward.1} parent=23 // pred_check
          %p363 = pneg %p74
        $region26: #{vqa_forward.1} parent=23 // pred_check_branch
          %365 = sbr.rel (%p363) target = $region28
        $region27: #{vqa_forward.1} parent=23 // pred_region
          %s366 = sand.u32 %s64, 1
          %s367 = scalar_lea.sflag [#allocation3], %s366
          %s368 = sand.u32 %s64, 1
          %s369 = smul.addr %s368, 10240
          %s370 = scalar_lea.vmem [#allocation2], %s369
          %s372 = ssub.s32 163840, 163840
          %373 = vsyncadd %s367, %s372
          %s374 = smul.addr %s33, 2560
          %s375 = smul.addr %s374, 64
          %s376 = scalar_lea.hbm %s1, %s375
          %s377 = sshll.u32 %s370, 4
          %s378 = int_to_ptr.vmem [resolvable:$true] %s377
          %383 = dma.hbm_to_vmem [thread:$0]  %s376, 163840, %s378, %s367, 512, 512, 32
        $region28: #{vqa_forward.1} parent=23 // pred_fallthru
          _
        // Predicated region
        $region29: #{vqa_forward.1} parent=23 // pred_check
          %p384 = pneg %p100
        $region30: #{vqa_forward.1} parent=23 // pred_check_branch
          %386 = sbr.rel (%p384) target = $region32
        $region31: #{vqa_forward.1} parent=23 // pred_region
          %s387 = sand.u32 %s33, 1
          %s388 = scalar_lea.sflag [#allocation6], %s387
          %s389 = sand.u32 %s90, 1
          %s390 = smul.addr %s389, 8
          %s391 = scalar_lea.vmem [#allocation5], %s390
          %s393 = ssub.s32 128, 128
          %394 = vsyncadd %s388, %s393
          %s395 = smul.addr %s33, 8
          %s396 = smul.addr %s395, 16
          %s397 = scalar_lea.hbm %s2, %s396
          %s399 = sshll.u32 %s391, 4
          %s400 = int_to_ptr.vmem [resolvable:$true] %s399
          %402 = dma.hbm_to_vmem [thread:$0]  %s397, 128, %s400, %s388
        $region32: #{vqa_forward.1} parent=23 // pred_fallthru
          _
        // Predicated region
        $region33: #{vqa_forward.1} parent=23 // pred_check
          %p403 = pneg %p126
        $region34: #{vqa_forward.1} parent=23 // pred_check_branch
          %405 = sbr.rel (%p403) target = $region36
        $region35: #{vqa_forward.1} parent=23 // pred_region
          %s406 = sand.u32 %s33, 1
          %s407 = scalar_lea.sflag [#allocation6], %s406
          %s408 = sand.u32 %s116, 1
          %s409 = smul.addr %s408, 2048
          %s410 = scalar_lea.vmem [#allocation7], %s409
          %s412 = ssub.s32 32768, 32768
          %413 = vsyncadd %s407, %s412
          %s414 = smul.addr %s33, 512
          %s415 = smul.addr %s414, 64
          %s416 = scalar_lea.hbm %s3, %s415
          %s417 = sshll.u32 %s410, 4
          %s418 = int_to_ptr.vmem [resolvable:$true] %s417
          %423 = dma.hbm_to_vmem [thread:$0]  %s416, 32768, %s418, %s407, 256, 256, 16
        $region36: #{vqa_forward.1} parent=23 // pred_fallthru
          _
        // Predicated region
        $region37: #{vqa_forward.1} parent=23 // pred_check
          %p424 = pneg %p152
        $region38: #{vqa_forward.1} parent=23 // pred_check_branch
          %426 = sbr.rel (%p424) target = $region40
        $region39: #{vqa_forward.1} parent=23 // pred_region
          %s427 = sand.u32 %s33, 1
          %s428 = scalar_lea.sflag [#allocation9], %s427
          %s429 = sand.u32 %s142, 1
          %s430 = smul.addr %s429, 4
          %s431 = scalar_lea.vmem [#allocation8], %s430
          %s433 = ssub.s32 64, 64
          %434 = vsyncadd %s428, %s433
          %s435 = smul.addr %s33, 4
          %s436 = smul.addr %s435, 16
          %s437 = scalar_lea.hbm %s4, %s436
          %s439 = sshll.u32 %s431, 4
          %s440 = int_to_ptr.vmem [resolvable:$true] %s439
          %442 = dma.hbm_to_vmem [thread:$0]  %s437, 64, %s440, %s428
        $region40: #{vqa_forward.1} parent=23 // pred_fallthru
          _
        // Predicated region
        $region41: #{vqa_forward.1} parent=23 // pred_check
          %p443 = pneg %p178
        $region42: #{vqa_forward.1} parent=23 // pred_check_branch
          %445 = sbr.rel (%p443) target = $region44
        $region43: #{vqa_forward.1} parent=23 // pred_region
          %s446 = sand.u32 %s33, 1
          %s447 = scalar_lea.sflag [#allocation9], %s446
          %s448 = sand.u32 %s168, 1
          %s449 = smul.addr %s448, 512
          %s450 = scalar_lea.vmem [#allocation10], %s449
          %s452 = ssub.s32 8192, 8192
          %453 = vsyncadd %s447, %s452
          %s454 = smul.addr %s33, 128
          %s455 = smul.addr %s454, 64
          %s456 = scalar_lea.hbm %s5, %s455
          %s457 = sshll.u32 %s450, 4
          %s458 = int_to_ptr.vmem [resolvable:$true] %s457
          %463 = dma.hbm_to_vmem [thread:$0]  %s456, 8192, %s458, %s447, 128, 128, 8
        $region44: #{vqa_forward.1} parent=23 // pred_fallthru
          _
        // Predicated region
        $region45: #{vqa_forward.1} parent=23 // pred_check
          %p464 = pneg %p204
        $region46: #{vqa_forward.1} parent=23 // pred_check_branch
          %466 = sbr.rel (%p464) target = $region48
        $region47: #{vqa_forward.1} parent=23 // pred_region
          %s467 = sand.u32 %s33, 1
          %s468 = scalar_lea.sflag [#allocation12], %s467
          %s469 = sand.u32 %s194, 1
          %s470 = smul.addr %s469, 2
          %s471 = scalar_lea.vmem [#allocation11], %s470
          %s473 = ssub.s32 32, 32
          %474 = vsyncadd %s468, %s473
          %s475 = smul.addr %s33, 2
          %s476 = smul.addr %s475, 16
          %s477 = scalar_lea.hbm %s6, %s476
          %s479 = sshll.u32 %s471, 4
          %s480 = int_to_ptr.vmem [resolvable:$true] %s479
          %482 = dma.hbm_to_vmem [thread:$0]  %s477, 32, %s480, %s468
        $region48: #{vqa_forward.1} parent=23 // pred_fallthru
          _
        // Predicated region
        $region49: #{vqa_forward.1} parent=23 // pred_check
          %p483 = pneg %p230
        $region50: #{vqa_forward.1} parent=23 // pred_check_branch
          %485 = sbr.rel (%p483) target = $region52
        $region51: #{vqa_forward.1} parent=23 // pred_region
          %s486 = sand.u32 %s33, 1
          %s487 = scalar_lea.sflag [#allocation12], %s486
          %s488 = sand.u32 %s220, 1
          %s489 = smul.addr %s488, 128
          %s490 = scalar_lea.vmem [#allocation13], %s489
          %s492 = ssub.s32 2048, 2048
          %493 = vsyncadd %s487, %s492
          %s494 = smul.addr %s33, 32
          %s495 = smul.addr %s494, 64
          %s496 = scalar_lea.hbm %s7, %s495
          %s497 = sshll.u32 %s490, 4
          %s498 = int_to_ptr.vmem [resolvable:$true] %s497
          %503 = dma.hbm_to_vmem [thread:$0]  %s496, 2048, %s498, %s487, 64, 64, 4
        $region52: #{vqa_forward.1} parent=23 // pred_fallthru
          _
        // Predicated region
        $region53: #{vqa_forward.1} parent=23 // pred_check
          %p504 = pneg %p256
        $region54: #{vqa_forward.1} parent=23 // pred_check_branch
          %506 = sbr.rel (%p504) target = $region56
        $region55: #{vqa_forward.1} parent=23 // pred_region
          %s507 = sand.u32 %s33, 1
          %s508 = scalar_lea.sflag [#allocation15], %s507
          %s509 = sand.u32 %s246, 1
          %s510 = scalar_lea.vmem [#allocation14], %s509
          %s512 = ssub.s32 16, 16
          %513 = vsyncadd %s508, %s512
          %s514 = smul.addr %s33, 16
          %s515 = scalar_lea.hbm %s8, %s514
          %s517 = sshll.u32 %s510, 4
          %s518 = int_to_ptr.vmem [resolvable:$true] %s517
          %520 = dma.hbm_to_vmem [thread:$0]  %s515, 16, %s518, %s508
        $region56: #{vqa_forward.1} parent=23 // pred_fallthru
          _
        // Predicated region
        $region57: #{vqa_forward.1} parent=23 // pred_check
          %p521 = pneg %p282
        $region58: #{vqa_forward.1} parent=23 // pred_check_branch
          %523 = sbr.rel (%p521) target = $region60
        $region59: #{vqa_forward.1} parent=23 // pred_region
          %p524 = scmp.lt.s32.totalorder %s33, 2
          %s525 = scalar_select %p524, %s33, 2
          %s526 = smul.addr %s525, 16
          %s527 = smul.addr %s526, 4
          %s528 = scalar_lea.vmem %s9, %s527
        $region60: #{vqa_forward.1} parent=23 // pred_fallthru
          _
      $region24: #{vqa_forward.1} parent=5 // pred_fallthru
        _
      %p529 = scmp.le.s32.totalorder 1, %s33
      %p530 = scmp.lt.s32.totalorder %s33, 4
      %p531 = pnand %p529, %p530
      %p532 = pneg %p531
      // Predicated region
      $region61: #{vqa_forward.1} parent=5 // pred_check
        _
      $region62: #{vqa_forward.1} parent=5 // pred_check_branch
        %534 = sbr.rel (%p531) target = $region64
      $region63: #{vqa_forward.1} parent=5 // pred_region
        %s535 = ssub.s32 %s33, 1
        %s536 = sand.u32 %s67, 1
        %s537 = scalar_lea.sflag [#allocation3], %s536
        %s538 = sand.u32 %s67, 1
        %s539 = smul.addr %s538, 10240
        %s540 = scalar_lea.vmem [#allocation2], %s539
        // Predicated region
        $region65: #{vqa_forward.1} parent=63 // pred_check
          %p541 = pneg %p80
        $region66: #{vqa_forward.1} parent=63 // pred_check_branch
          %543 = sbr.rel (%p541) target = $region68
        $region67: #{vqa_forward.1} parent=63 // pred_region
          %544 = dma.done %s537, 163840
        $region68: #{vqa_forward.1} parent=63 // pred_fallthru
          _
        %s545 = sand.u32 %s38, 1
        %s546 = scalar_lea.sflag [#allocation6], %s545
        %s547 = sand.u32 %s93, 1
        %s548 = smul.addr %s547, 8
        %s549 = scalar_lea.vmem [#allocation5], %s548
        // Predicated region
        $region69: #{vqa_forward.1} parent=63 // pred_check
          %p550 = pneg %p106
        $region70: #{vqa_forward.1} parent=63 // pred_check_branch
          %552 = sbr.rel (%p550) target = $region72
        $region71: #{vqa_forward.1} parent=63 // pred_region
          %553 = dma.done %s546, 128
        $region72: #{vqa_forward.1} parent=63 // pred_fallthru
          _
        %s554 = sand.u32 %s38, 1
        %s555 = scalar_lea.sflag [#allocation6], %s554
        %s556 = sand.u32 %s119, 1
        %s557 = smul.addr %s556, 2048
        %s558 = scalar_lea.vmem [#allocation7], %s557
        // Predicated region
        $region73: #{vqa_forward.1} parent=63 // pred_check
          %p559 = pneg %p132
        $region74: #{vqa_forward.1} parent=63 // pred_check_branch
          %561 = sbr.rel (%p559) target = $region76
        $region75: #{vqa_forward.1} parent=63 // pred_region
          %562 = dma.done %s555, 32768
        $region76: #{vqa_forward.1} parent=63 // pred_fallthru
          _
        %s563 = sand.u32 %s38, 1
        %s564 = scalar_lea.sflag [#allocation9], %s563
        %s565 = sand.u32 %s145, 1
        %s566 = smul.addr %s565, 4
        %s567 = scalar_lea.vmem [#allocation8], %s566
        // Predicated region
        $region77: #{vqa_forward.1} parent=63 // pred_check
          %p568 = pneg %p158
        $region78: #{vqa_forward.1} parent=63 // pred_check_branch
          %570 = sbr.rel (%p568) target = $region80
        $region79: #{vqa_forward.1} parent=63 // pred_region
          %571 = dma.done %s564, 64
        $region80: #{vqa_forward.1} parent=63 // pred_fallthru
          _
        %s572 = sand.u32 %s38, 1
        %s573 = scalar_lea.sflag [#allocation9], %s572
        %s574 = sand.u32 %s171, 1
        %s575 = smul.addr %s574, 512
        %s576 = scalar_lea.vmem [#allocation10], %s575
        // Predicated region
        $region81: #{vqa_forward.1} parent=63 // pred_check
          %p577 = pneg %p184
        $region82: #{vqa_forward.1} parent=63 // pred_check_branch
          %579 = sbr.rel (%p577) target = $region84
        $region83: #{vqa_forward.1} parent=63 // pred_region
          %580 = dma.done %s573, 8192
        $region84: #{vqa_forward.1} parent=63 // pred_fallthru
          _
        %s581 = sand.u32 %s38, 1
        %s582 = scalar_lea.sflag [#allocation12], %s581
        %s583 = sand.u32 %s197, 1
        %s584 = smul.addr %s583, 2
        %s585 = scalar_lea.vmem [#allocation11], %s584
        // Predicated region
        $region85: #{vqa_forward.1} parent=63 // pred_check
          %p586 = pneg %p210
        $region86: #{vqa_forward.1} parent=63 // pred_check_branch
          %588 = sbr.rel (%p586) target = $region88
        $region87: #{vqa_forward.1} parent=63 // pred_region
          %589 = dma.done %s582, 32
        $region88: #{vqa_forward.1} parent=63 // pred_fallthru
          _
        %s590 = sand.u32 %s38, 1
        %s591 = scalar_lea.sflag [#allocation12], %s590
        %s592 = sand.u32 %s223, 1
        %s593 = smul.addr %s592, 128
        %s594 = scalar_lea.vmem [#allocation13], %s593
        // Predicated region
        $region89: #{vqa_forward.1} parent=63 // pred_check
          %p595 = pneg %p236
        $region90: #{vqa_forward.1} parent=63 // pred_check_branch
          %597 = sbr.rel (%p595) target = $region92
        $region91: #{vqa_forward.1} parent=63 // pred_region
          %598 = dma.done %s591, 2048
        $region92: #{vqa_forward.1} parent=63 // pred_fallthru
          _
        %s599 = sand.u32 %s38, 1
        %s600 = scalar_lea.sflag [#allocation15], %s599
        %s601 = sand.u32 %s249, 1
        %s602 = scalar_lea.vmem [#allocation14], %s601
        // Predicated region
        $region93: #{vqa_forward.1} parent=63 // pred_check
          %p603 = pneg %p262
        $region94: #{vqa_forward.1} parent=63 // pred_check_branch
          %605 = sbr.rel (%p603) target = $region96
        $region95: #{vqa_forward.1} parent=63 // pred_region
          %606 = dma.done %s600, 16
        $region96: #{vqa_forward.1} parent=63 // pred_fallthru
          _
        // Predicated region
        $region97: #{vqa_forward.1} parent=63 // pred_check
          %p607 = pneg %p309
        $region98: #{vqa_forward.1} parent=63 // pred_check_branch
          %609 = sbr.rel (%p607) target = $region100
        $region99: #{vqa_forward.1} parent=63 // pred_region
          %610 = dma.done [#allocation15], 16
        $region100: #{vqa_forward.1} parent=63 // pred_fallthru
          _
        %p611 = pneg %p54
        %p612 = pneg %p51
        %s613 = sand.u32 %s67, 1
        %s614 = scalar_lea.sflag [#allocation3], %s613
        %s615 = sand.u32 %s67, 1
        %s616 = smul.addr %s615, 10240
        %s617 = scalar_lea.vmem [#allocation2], %s616
        %p618 = pneg %p80
        %p619 = pneg %p77
        %s620 = sand.u32 %s38, 1
        %s621 = scalar_lea.sflag [#allocation6], %s620
        %s622 = sand.u32 %s93, 1
        %s623 = smul.addr %s622, 8
        %s624 = scalar_lea.vmem [#allocation5], %s623
        %p625 = pneg %p106
        %p626 = pneg %p103
        %s627 = sand.u32 %s38, 1
        %s628 = scalar_lea.sflag [#allocation6], %s627
        %s629 = sand.u32 %s119, 1
        %s630 = smul.addr %s629, 2048
        %s631 = scalar_lea.vmem [#allocation7], %s630
        %p632 = pneg %p132
        %p633 = pneg %p129
        %s634 = sand.u32 %s38, 1
        %s635 = scalar_lea.sflag [#allocation9], %s634
        %s636 = sand.u32 %s145, 1
        %s637 = smul.addr %s636, 4
        %s638 = scalar_lea.vmem [#allocation8], %s637
        %p639 = pneg %p158
        %p640 = pneg %p155
        %s641 = sand.u32 %s38, 1
        %s642 = scalar_lea.sflag [#allocation9], %s641
        %s643 = sand.u32 %s171, 1
        %s644 = smul.addr %s643, 512
        %s645 = scalar_lea.vmem [#allocation10], %s644
        %p646 = pneg %p184
        %p647 = pneg %p181
        %s648 = sand.u32 %s38, 1
        %s649 = scalar_lea.sflag [#allocation12], %s648
        %s650 = sand.u32 %s197, 1
        %s651 = smul.addr %s650, 2
        %s652 = scalar_lea.vmem [#allocation11], %s651
        %p653 = pneg %p210
        %p654 = pneg %p207
        %s655 = sand.u32 %s38, 1
        %s656 = scalar_lea.sflag [#allocation12], %s655
        %s657 = sand.u32 %s223, 1
        %s658 = smul.addr %s657, 128
        %s659 = scalar_lea.vmem [#allocation13], %s658
        %p660 = pneg %p236
        %p661 = pneg %p233
        %s662 = sand.u32 %s38, 1
        %s663 = scalar_lea.sflag [#allocation15], %s662
        %s664 = sand.u32 %s249, 1
        %s665 = scalar_lea.vmem [#allocation14], %s664
        %p666 = pneg %p262
        %p667 = pneg %p259
        %p668 = scmp.lt.s32.totalorder %s38, 2
        %s669 = scalar_select %p668, %s38, 2
        %s670 = smul.addr %s669, 16
        %s671 = smul.addr %s670, 4
        %s672 = scalar_lea.vmem %s9, %s671
        %p673 = pneg %p288
        %p674 = pneg %p285
        %p675 = pneg %p309
        %p676 = pneg %p306
        %p677 = pneg %p330
        %p678 = pneg %p327
        %p679 = scmp.lt.s32.totalorder %s38, 2
        %s680 = scalar_select %p679, %s38, 2
        %s681 = smul.addr %s680, 16
        %s682 = smul.addr %s681, 4
        %s683 = scalar_lea.vmem %s9, %s682
        %p685 = scmp.eq.s32.totalorder %s38, 0
        // Predicated region
        $region101: #{vqa_forward.1} parent=63 // pred_check
          %p686 = pneg %p685
        $region102: #{vqa_forward.1} parent=63 // pred_check_branch
          %688 = sbr.rel (%p686) target = $region104
        $region103: #{vqa_forward.1} parent=63 // pred_region
          %vm689 = vcmask 39936
          %690 = vst.msk [vmem:[#allocation17] sm:$0xff] %vm689, 0.0
        $region104: #{vqa_forward.1} parent=63 // pred_fallthru
          _
        %v691 = vld [vmem:[%s0] sm:$0xff]
        %v692 = vld [vmem:[%s0 + $0x8] sm:$0xff]
        %v693 = vld [vmem:[%s0 + $0x10] sm:$0xff]
        %v694 = vld [vmem:[%s0 + $0x18] sm:$0xff]
        %v695 = vld [vmem:[%s0 + $0x20] sm:$0xff]
        %v696 = vld [vmem:[%s0 + $0x28] sm:$0xff]
        %v697 = vld [vmem:[%s0 + $0x30] sm:$0xff]
        %v698 = vld [vmem:[%s0 + $0x38] sm:$0xff]
        %v699 = vld [vmem:[%s0 + $0x40] sm:$0xff]
        %v700 = vld [vmem:[%s0 + $0x48] sm:$0xff]
        %v701 = vld [vmem:[%s0 + $0x50] sm:$0xff]
        %v702 = vld [vmem:[%s0 + $0x58] sm:$0xff]
        %v703 = vld [vmem:[%s0 + $0x60] sm:$0xff]
        %v704 = vld [vmem:[%s0 + $0x68] sm:$0xff]
        %v705 = vld [vmem:[%s0 + $0x70] sm:$0xff]
        %v706 = vld [vmem:[%s0 + $0x78] sm:$0xff]
        %v707 = vld [vmem:[%s0 + $0x80] sm:$0xff]
        %v708 = vld [vmem:[%s0 + $0x88] sm:$0xff]
        %v709 = vld [vmem:[%s0 + $0x90] sm:$0xff]
        %v710 = vld [vmem:[%s0 + $0x98] sm:$0xff]
        %v711 = vpack.c.bf16 %v691, %v691
        %v712 = vpack.c.bf16 %v692, %v692
        %v713 = vpack.c.bf16 %v693, %v693
        %v714 = vpack.c.bf16 %v694, %v694
        %v715 = vpack.c.bf16 %v695, %v695
        %v716 = vpack.c.bf16 %v696, %v696
        %v717 = vpack.c.bf16 %v697, %v697
        %v718 = vpack.c.bf16 %v698, %v698
        %v719 = vpack.c.bf16 %v699, %v699
        %v720 = vpack.c.bf16 %v700, %v700
        %v721 = vpack.c.bf16 %v701, %v701
        %v722 = vpack.c.bf16 %v702, %v702
        %v723 = vpack.c.bf16 %v703, %v703
        %v724 = vpack.c.bf16 %v704, %v704
        %v725 = vpack.c.bf16 %v705, %v705
        %v726 = vpack.c.bf16 %v706, %v706
        %v727 = vpack.c.bf16 %v707, %v707
        %v728 = vpack.c.bf16 %v708, %v708
        %v729 = vpack.c.bf16 %v709, %v709
        %v730 = vpack.c.bf16 %v710, %v710
        %v731 = vld [vmem:[%s540] sm:$0xff]
        %v732 = vld [vmem:[%s540 + $0x8] sm:$0xff]
        %v733 = vld [vmem:[%s540 + $0x10] sm:$0xff]
        %v734 = vld [vmem:[%s540 + $0x18] sm:$0xff]
        %v735 = vld [vmem:[%s540 + $0x20] sm:$0xff]
        %v736 = vld [vmem:[%s540 + $0x28] sm:$0xff]
        %v737 = vld [vmem:[%s540 + $0x30] sm:$0xff]
        %v738 = vld [vmem:[%s540 + $0x38] sm:$0xff]
        %v739 = vld [vmem:[%s540 + $0x40] sm:$0xff]
        %v740 = vld [vmem:[%s540 + $0x48] sm:$0xff]
        %v741 = vld [vmem:[%s540 + $0x50] sm:$0xff]
        %v742 = vld [vmem:[%s540 + $0x58] sm:$0xff]
        %v743 = vld [vmem:[%s540 + $0x60] sm:$0xff]
        %v744 = vld [vmem:[%s540 + $0x68] sm:$0xff]
        %v745 = vld [vmem:[%s540 + $0x70] sm:$0xff]
        %v746 = vld [vmem:[%s540 + $0x78] sm:$0xff]
        %v747 = vld [vmem:[%s540 + $0x80] sm:$0xff]
        %v748 = vld [vmem:[%s540 + $0x88] sm:$0xff]
        %v749 = vld [vmem:[%s540 + $0x90] sm:$0xff]
        %v750 = vld [vmem:[%s540 + $0x98] sm:$0xff]
        %v751 = vld [vmem:[%s540 + $0xa0] sm:$0xff]
        %v752 = vld [vmem:[%s540 + $0xa8] sm:$0xff]
        %v753 = vld [vmem:[%s540 + $0xb0] sm:$0xff]
        %v754 = vld [vmem:[%s540 + $0xb8] sm:$0xff]
        %v755 = vld [vmem:[%s540 + $0xc0] sm:$0xff]
        %v756 = vld [vmem:[%s540 + $0xc8] sm:$0xff]
        %v757 = vld [vmem:[%s540 + $0xd0] sm:$0xff]
        %v758 = vld [vmem:[%s540 + $0xd8] sm:$0xff]
        %v759 = vld [vmem:[%s540 + $0xe0] sm:$0xff]
        %v760 = vld [vmem:[%s540 + $0xe8] sm:$0xff]
        %v761 = vld [vmem:[%s540 + $0xf0] sm:$0xff]
        %v762 = vld [vmem:[%s540 + $0xf8] sm:$0xff]
        %v763 = vld [vmem:[%s540 + $0x100] sm:$0xff]
        %v764 = vld [vmem:[%s540 + $0x108] sm:$0xff]
        %v765 = vld [vmem:[%s540 + $0x110] sm:$0xff]
        %v766 = vld [vmem:[%s540 + $0x118] sm:$0xff]
        %v767 = vld [vmem:[%s540 + $0x120] sm:$0xff]
        %v768 = vld [vmem:[%s540 + $0x128] sm:$0xff]
        %v769 = vld [vmem:[%s540 + $0x130] sm:$0xff]
        %v770 = vld [vmem:[%s540 + $0x138] sm:$0xff]
        %v771 = vld [vmem:[%s540 + $0x140] sm:$0xff]
        %v772 = vld [vmem:[%s540 + $0x148] sm:$0xff]
        %v773 = vld [vmem:[%s540 + $0x150] sm:$0xff]
        %v774 = vld [vmem:[%s540 + $0x158] sm:$0xff]
        %v775 = vld [vmem:[%s540 + $0x160] sm:$0xff]
        %v776 = vld [vmem:[%s540 + $0x168] sm:$0xff]
        %v777 = vld [vmem:[%s540 + $0x170] sm:$0xff]
        %v778 = vld [vmem:[%s540 + $0x178] sm:$0xff]
        %v779 = vld [vmem:[%s540 + $0x180] sm:$0xff]
        %v780 = vld [vmem:[%s540 + $0x188] sm:$0xff]
        %v781 = vld [vmem:[%s540 + $0x190] sm:$0xff]
        %v782 = vld [vmem:[%s540 + $0x198] sm:$0xff]
        %v783 = vld [vmem:[%s540 + $0x1a0] sm:$0xff]
        %v784 = vld [vmem:[%s540 + $0x1a8] sm:$0xff]
        %v785 = vld [vmem:[%s540 + $0x1b0] sm:$0xff]
        %v786 = vld [vmem:[%s540 + $0x1b8] sm:$0xff]
        %v787 = vld [vmem:[%s540 + $0x1c0] sm:$0xff]
        %v788 = vld [vmem:[%s540 + $0x1c8] sm:$0xff]
        %v789 = vld [vmem:[%s540 + $0x1d0] sm:$0xff]
        %v790 = vld [vmem:[%s540 + $0x1d8] sm:$0xff]
        %v791 = vld [vmem:[%s540 + $0x1e0] sm:$0xff]
        %v792 = vld [vmem:[%s540 + $0x1e8] sm:$0xff]
        %v793 = vld [vmem:[%s540 + $0x1f0] sm:$0xff]
        %v794 = vld [vmem:[%s540 + $0x1f8] sm:$0xff]
        %v795 = vld [vmem:[%s540 + $0x200] sm:$0xff]
        %v796 = vld [vmem:[%s540 + $0x208] sm:$0xff]
        %v797 = vld [vmem:[%s540 + $0x210] sm:$0xff]
        %v798 = vld [vmem:[%s540 + $0x218] sm:$0xff]
        %v799 = vld [vmem:[%s540 + $0x220] sm:$0xff]
        %v800 = vld [vmem:[%s540 + $0x228] sm:$0xff]
        %v801 = vld [vmem:[%s540 + $0x230] sm:$0xff]
        %v802 = vld [vmem:[%s540 + $0x238] sm:$0xff]
        %v803 = vld [vmem:[%s540 + $0x240] sm:$0xff]
        %v804 = vld [vmem:[%s540 + $0x248] sm:$0xff]
        %v805 = vld [vmem:[%s540 + $0x250] sm:$0xff]
        %v806 = vld [vmem:[%s540 + $0x258] sm:$0xff]
        %v807 = vld [vmem:[%s540 + $0x260] sm:$0xff]
        %v808 = vld [vmem:[%s540 + $0x268] sm:$0xff]
        %v809 = vld [vmem:[%s540 + $0x270] sm:$0xff]
        %v810 = vld [vmem:[%s540 + $0x278] sm:$0xff]
        %v811 = vld [vmem:[%s540 + $0x280] sm:$0xff]
        %v812 = vld [vmem:[%s540 + $0x288] sm:$0xff]
        %v813 = vld [vmem:[%s540 + $0x290] sm:$0xff]
        %v814 = vld [vmem:[%s540 + $0x298] sm:$0xff]
        %v815 = vld [vmem:[%s540 + $0x2a0] sm:$0xff]
        %v816 = vld [vmem:[%s540 + $0x2a8] sm:$0xff]
        %v817 = vld [vmem:[%s540 + $0x2b0] sm:$0xff]
        %v818 = vld [vmem:[%s540 + $0x2b8] sm:$0xff]
        %v819 = vld [vmem:[%s540 + $0x2c0] sm:$0xff]
        %v820 = vld [vmem:[%s540 + $0x2c8] sm:$0xff]
        %v821 = vld [vmem:[%s540 + $0x2d0] sm:$0xff]
        %v822 = vld [vmem:[%s540 + $0x2d8] sm:$0xff]
        %v823 = vld [vmem:[%s540 + $0x2e0] sm:$0xff]
        %v824 = vld [vmem:[%s540 + $0x2e8] sm:$0xff]
        %v825 = vld [vmem:[%s540 + $0x2f0] sm:$0xff]
        %v826 = vld [vmem:[%s540 + $0x2f8] sm:$0xff]
        %v827 = vld [vmem:[%s540 + $0x300] sm:$0xff]
        %v828 = vld [vmem:[%s540 + $0x308] sm:$0xff]
        %v829 = vld [vmem:[%s540 + $0x310] sm:$0xff]
        %v830 = vld [vmem:[%s540 + $0x318] sm:$0xff]
        %v831 = vld [vmem:[%s540 + $0x320] sm:$0xff]
        %v832 = vld [vmem:[%s540 + $0x328] sm:$0xff]
        %v833 = vld [vmem:[%s540 + $0x330] sm:$0xff]
        %v834 = vld [vmem:[%s540 + $0x338] sm:$0xff]
        %v835 = vld [vmem:[%s540 + $0x340] sm:$0xff]
        %v836 = vld [vmem:[%s540 + $0x348] sm:$0xff]
        %v837 = vld [vmem:[%s540 + $0x350] sm:$0xff]
        %v838 = vld [vmem:[%s540 + $0x358] sm:$0xff]
        %v839 = vld [vmem:[%s540 + $0x360] sm:$0xff]
        %v840 = vld [vmem:[%s540 + $0x368] sm:$0xff]
        %v841 = vld [vmem:[%s540 + $0x370] sm:$0xff]
        %v842 = vld [vmem:[%s540 + $0x378] sm:$0xff]
        %v843 = vld [vmem:[%s540 + $0x380] sm:$0xff]
        %v844 = vld [vmem:[%s540 + $0x388] sm:$0xff]
        %v845 = vld [vmem:[%s540 + $0x390] sm:$0xff]
        %v846 = vld [vmem:[%s540 + $0x398] sm:$0xff]
        %v847 = vld [vmem:[%s540 + $0x3a0] sm:$0xff]
        %v848 = vld [vmem:[%s540 + $0x3a8] sm:$0xff]
        %v849 = vld [vmem:[%s540 + $0x3b0] sm:$0xff]
        %v850 = vld [vmem:[%s540 + $0x3b8] sm:$0xff]
        %v851 = vld [vmem:[%s540 + $0x3c0] sm:$0xff]
        %v852 = vld [vmem:[%s540 + $0x3c8] sm:$0xff]
        %v853 = vld [vmem:[%s540 + $0x3d0] sm:$0xff]
        %v854 = vld [vmem:[%s540 + $0x3d8] sm:$0xff]
        %v855 = vld [vmem:[%s540 + $0x3e0] sm:$0xff]
        %v856 = vld [vmem:[%s540 + $0x3e8] sm:$0xff]
        %v857 = vld [vmem:[%s540 + $0x3f0] sm:$0xff]
        %v858 = vld [vmem:[%s540 + $0x3f8] sm:$0xff]
        %v859 = vld [vmem:[%s540 + $0x400] sm:$0xff]
        %v860 = vld [vmem:[%s540 + $0x408] sm:$0xff]
        %v861 = vld [vmem:[%s540 + $0x410] sm:$0xff]
        %v862 = vld [vmem:[%s540 + $0x418] sm:$0xff]
        %v863 = vld [vmem:[%s540 + $0x420] sm:$0xff]
        %v864 = vld [vmem:[%s540 + $0x428] sm:$0xff]
        %v865 = vld [vmem:[%s540 + $0x430] sm:$0xff]
        %v866 = vld [vmem:[%s540 + $0x438] sm:$0xff]
        %v867 = vld [vmem:[%s540 + $0x440] sm:$0xff]
        %v868 = vld [vmem:[%s540 + $0x448] sm:$0xff]
        %v869 = vld [vmem:[%s540 + $0x450] sm:$0xff]
        %v870 = vld [vmem:[%s540 + $0x458] sm:$0xff]
        %v871 = vld [vmem:[%s540 + $0x460] sm:$0xff]
        %v872 = vld [vmem:[%s540 + $0x468] sm:$0xff]
        %v873 = vld [vmem:[%s540 + $0x470] sm:$0xff]
        %v874 = vld [vmem:[%s540 + $0x478] sm:$0xff]
        %v875 = vld [vmem:[%s540 + $0x480] sm:$0xff]
        %v876 = vld [vmem:[%s540 + $0x488] sm:$0xff]
        %v877 = vld [vmem:[%s540 + $0x490] sm:$0xff]
        %v878 = vld [vmem:[%s540 + $0x498] sm:$0xff]
        %v879 = vld [vmem:[%s540 + $0x4a0] sm:$0xff]
        %v880 = vld [vmem:[%s540 + $0x4a8] sm:$0xff]
        %v881 = vld [vmem:[%s540 + $0x4b0] sm:$0xff]
        %v882 = vld [vmem:[%s540 + $0x4b8] sm:$0xff]
        %v883 = vld [vmem:[%s540 + $0x4c0] sm:$0xff]
        %v884 = vld [vmem:[%s540 + $0x4c8] sm:$0xff]
        %v885 = vld [vmem:[%s540 + $0x4d0] sm:$0xff]
        %v886 = vld [vmem:[%s540 + $0x4d8] sm:$0xff]
        %v887 = vld [vmem:[%s540 + $0x4e0] sm:$0xff]
        %v888 = vld [vmem:[%s540 + $0x4e8] sm:$0xff]
        %v889 = vld [vmem:[%s540 + $0x4f0] sm:$0xff]
        %v890 = vld [vmem:[%s540 + $0x4f8] sm:$0xff]
        %v891 = vld [vmem:[%s540 + $0x500] sm:$0xff]
        %v892 = vld [vmem:[%s540 + $0x508] sm:$0xff]
        %v893 = vld [vmem:[%s540 + $0x510] sm:$0xff]
        %v894 = vld [vmem:[%s540 + $0x518] sm:$0xff]
        %v895 = vld [vmem:[%s540 + $0x520] sm:$0xff]
        %v896 = vld [vmem:[%s540 + $0x528] sm:$0xff]
        %v897 = vld [vmem:[%s540 + $0x530] sm:$0xff]
        %v898 = vld [vmem:[%s540 + $0x538] sm:$0xff]
        %v899 = vld [vmem:[%s540 + $0x540] sm:$0xff]
        %v900 = vld [vmem:[%s540 + $0x548] sm:$0xff]
        %v901 = vld [vmem:[%s540 + $0x550] sm:$0xff]
        %v902 = vld [vmem:[%s540 + $0x558] sm:$0xff]
        %v903 = vld [vmem:[%s540 + $0x560] sm:$0xff]
        %v904 = vld [vmem:[%s540 + $0x568] sm:$0xff]
        %v905 = vld [vmem:[%s540 + $0x570] sm:$0xff]
        %v906 = vld [vmem:[%s540 + $0x578] sm:$0xff]
        %v907 = vld [vmem:[%s540 + $0x580] sm:$0xff]
        %v908 = vld [vmem:[%s540 + $0x588] sm:$0xff]
        %v909 = vld [vmem:[%s540 + $0x590] sm:$0xff]
        %v910 = vld [vmem:[%s540 + $0x598] sm:$0xff]
        %v911 = vld [vmem:[%s540 + $0x5a0] sm:$0xff]
        %v912 = vld [vmem:[%s540 + $0x5a8] sm:$0xff]
        %v913 = vld [vmem:[%s540 + $0x5b0] sm:$0xff]
        %v914 = vld [vmem:[%s540 + $0x5b8] sm:$0xff]
        %v915 = vld [vmem:[%s540 + $0x5c0] sm:$0xff]
        %v916 = vld [vmem:[%s540 + $0x5c8] sm:$0xff]
        %v917 = vld [vmem:[%s540 + $0x5d0] sm:$0xff]
        %v918 = vld [vmem:[%s540 + $0x5d8] sm:$0xff]
        %v919 = vld [vmem:[%s540 + $0x5e0] sm:$0xff]
        %v920 = vld [vmem:[%s540 + $0x5e8] sm:$0xff]
        %v921 = vld [vmem:[%s540 + $0x5f0] sm:$0xff]
        %v922 = vld [vmem:[%s540 + $0x5f8] sm:$0xff]
        %v923 = vld [vmem:[%s540 + $0x600] sm:$0xff]
        %v924 = vld [vmem:[%s540 + $0x608] sm:$0xff]
        %v925 = vld [vmem:[%s540 + $0x610] sm:$0xff]
        %v926 = vld [vmem:[%s540 + $0x618] sm:$0xff]
        %v927 = vld [vmem:[%s540 + $0x620] sm:$0xff]
        %v928 = vld [vmem:[%s540 + $0x628] sm:$0xff]
        %v929 = vld [vmem:[%s540 + $0x630] sm:$0xff]
        %v930 = vld [vmem:[%s540 + $0x638] sm:$0xff]
        %v931 = vld [vmem:[%s540 + $0x640] sm:$0xff]
        %v932 = vld [vmem:[%s540 + $0x648] sm:$0xff]
        %v933 = vld [vmem:[%s540 + $0x650] sm:$0xff]
        %v934 = vld [vmem:[%s540 + $0x658] sm:$0xff]
        %v935 = vld [vmem:[%s540 + $0x660] sm:$0xff]
        %v936 = vld [vmem:[%s540 + $0x668] sm:$0xff]
        %v937 = vld [vmem:[%s540 + $0x670] sm:$0xff]
        %v938 = vld [vmem:[%s540 + $0x678] sm:$0xff]
        %v939 = vld [vmem:[%s540 + $0x680] sm:$0xff]
        %v940 = vld [vmem:[%s540 + $0x688] sm:$0xff]
        %v941 = vld [vmem:[%s540 + $0x690] sm:$0xff]
        %v942 = vld [vmem:[%s540 + $0x698] sm:$0xff]
        %v943 = vld [vmem:[%s540 + $0x6a0] sm:$0xff]
        %v944 = vld [vmem:[%s540 + $0x6a8] sm:$0xff]
        %v945 = vld [vmem:[%s540 + $0x6b0] sm:$0xff]
        %v946 = vld [vmem:[%s540 + $0x6b8] sm:$0xff]
        %v947 = vld [vmem:[%s540 + $0x6c0] sm:$0xff]
        %v948 = vld [vmem:[%s540 + $0x6c8] sm:$0xff]
        %v949 = vld [vmem:[%s540 + $0x6d0] sm:$0xff]
        %v950 = vld [vmem:[%s540 + $0x6d8] sm:$0xff]
        %v951 = vld [vmem:[%s540 + $0x6e0] sm:$0xff]
        %v952 = vld [vmem:[%s540 + $0x6e8] sm:$0xff]
        %v953 = vld [vmem:[%s540 + $0x6f0] sm:$0xff]
        %v954 = vld [vmem:[%s540 + $0x6f8] sm:$0xff]
        %v955 = vld [vmem:[%s540 + $0x700] sm:$0xff]
        %v956 = vld [vmem:[%s540 + $0x708] sm:$0xff]
        %v957 = vld [vmem:[%s540 + $0x710] sm:$0xff]
        %v958 = vld [vmem:[%s540 + $0x718] sm:$0xff]
        %v959 = vld [vmem:[%s540 + $0x720] sm:$0xff]
        %v960 = vld [vmem:[%s540 + $0x728] sm:$0xff]
        %v961 = vld [vmem:[%s540 + $0x730] sm:$0xff]
        %v962 = vld [vmem:[%s540 + $0x738] sm:$0xff]
        %v963 = vld [vmem:[%s540 + $0x740] sm:$0xff]
        %v964 = vld [vmem:[%s540 + $0x748] sm:$0xff]
        %v965 = vld [vmem:[%s540 + $0x750] sm:$0xff]
        %v966 = vld [vmem:[%s540 + $0x758] sm:$0xff]
        %v967 = vld [vmem:[%s540 + $0x760] sm:$0xff]
        %v968 = vld [vmem:[%s540 + $0x768] sm:$0xff]
        %v969 = vld [vmem:[%s540 + $0x770] sm:$0xff]
        %v970 = vld [vmem:[%s540 + $0x778] sm:$0xff]
        %v971 = vld [vmem:[%s540 + $0x780] sm:$0xff]
        %v972 = vld [vmem:[%s540 + $0x788] sm:$0xff]
        %v973 = vld [vmem:[%s540 + $0x790] sm:$0xff]
        %v974 = vld [vmem:[%s540 + $0x798] sm:$0xff]
        %v975 = vld [vmem:[%s540 + $0x7a0] sm:$0xff]
        %v976 = vld [vmem:[%s540 + $0x7a8] sm:$0xff]
        %v977 = vld [vmem:[%s540 + $0x7b0] sm:$0xff]
        %v978 = vld [vmem:[%s540 + $0x7b8] sm:$0xff]
        %v979 = vld [vmem:[%s540 + $0x7c0] sm:$0xff]
        %v980 = vld [vmem:[%s540 + $0x7c8] sm:$0xff]
        %v981 = vld [vmem:[%s540 + $0x7d0] sm:$0xff]
        %v982 = vld [vmem:[%s540 + $0x7d8] sm:$0xff]
        %v983 = vld [vmem:[%s540 + $0x7e0] sm:$0xff]
        %v984 = vld [vmem:[%s540 + $0x7e8] sm:$0xff]
        %v985 = vld [vmem:[%s540 + $0x7f0] sm:$0xff]
        %v986 = vld [vmem:[%s540 + $0x7f8] sm:$0xff]
        %v987 = vld [vmem:[%s540 + $0x800] sm:$0xff]
        %v988 = vld [vmem:[%s540 + $0x808] sm:$0xff]
        %v989 = vld [vmem:[%s540 + $0x810] sm:$0xff]
        %v990 = vld [vmem:[%s540 + $0x818] sm:$0xff]
        %v991 = vld [vmem:[%s540 + $0x820] sm:$0xff]
        %v992 = vld [vmem:[%s540 + $0x828] sm:$0xff]
        %v993 = vld [vmem:[%s540 + $0x830] sm:$0xff]
        %v994 = vld [vmem:[%s540 + $0x838] sm:$0xff]
        %v995 = vld [vmem:[%s540 + $0x840] sm:$0xff]
        %v996 = vld [vmem:[%s540 + $0x848] sm:$0xff]
        %v997 = vld [vmem:[%s540 + $0x850] sm:$0xff]
        %v998 = vld [vmem:[%s540 + $0x858] sm:$0xff]
        %v999 = vld [vmem:[%s540 + $0x860] sm:$0xff]
        %v1000 = vld [vmem:[%s540 + $0x868] sm:$0xff]
        %v1001 = vld [vmem:[%s540 + $0x870] sm:$0xff]
        %v1002 = vld [vmem:[%s540 + $0x878] sm:$0xff]
        %v1003 = vld [vmem:[%s540 + $0x880] sm:$0xff]
        %v1004 = vld [vmem:[%s540 + $0x888] sm:$0xff]
        %v1005 = vld [vmem:[%s540 + $0x890] sm:$0xff]
        %v1006 = vld [vmem:[%s540 + $0x898] sm:$0xff]
        %v1007 = vld [vmem:[%s540 + $0x8a0] sm:$0xff]
        %v1008 = vld [vmem:[%s540 + $0x8a8] sm:$0xff]
        %v1009 = vld [vmem:[%s540 + $0x8b0] sm:$0xff]
        %v1010 = vld [vmem:[%s540 + $0x8b8] sm:$0xff]
        %v1011 = vld [vmem:[%s540 + $0x8c0] sm:$0xff]
        %v1012 = vld [vmem:[%s540 + $0x8c8] sm:$0xff]
        %v1013 = vld [vmem:[%s540 + $0x8d0] sm:$0xff]
        %v1014 = vld [vmem:[%s540 + $0x8d8] sm:$0xff]
        %v1015 = vld [vmem:[%s540 + $0x8e0] sm:$0xff]
        %v1016 = vld [vmem:[%s540 + $0x8e8] sm:$0xff]
        %v1017 = vld [vmem:[%s540 + $0x8f0] sm:$0xff]
        %v1018 = vld [vmem:[%s540 + $0x8f8] sm:$0xff]
        %v1019 = vld [vmem:[%s540 + $0x900] sm:$0xff]
        %v1020 = vld [vmem:[%s540 + $0x908] sm:$0xff]
        %v1021 = vld [vmem:[%s540 + $0x910] sm:$0xff]
        %v1022 = vld [vmem:[%s540 + $0x918] sm:$0xff]
        %v1023 = vld [vmem:[%s540 + $0x920] sm:$0xff]
        %v1024 = vld [vmem:[%s540 + $0x928] sm:$0xff]
        %v1025 = vld [vmem:[%s540 + $0x930] sm:$0xff]
        %v1026 = vld [vmem:[%s540 + $0x938] sm:$0xff]
        %v1027 = vld [vmem:[%s540 + $0x940] sm:$0xff]
        %v1028 = vld [vmem:[%s540 + $0x948] sm:$0xff]
        %v1029 = vld [vmem:[%s540 + $0x950] sm:$0xff]
        %v1030 = vld [vmem:[%s540 + $0x958] sm:$0xff]
        %v1031 = vld [vmem:[%s540 + $0x960] sm:$0xff]
        %v1032 = vld [vmem:[%s540 + $0x968] sm:$0xff]
        %v1033 = vld [vmem:[%s540 + $0x970] sm:$0xff]
        %v1034 = vld [vmem:[%s540 + $0x978] sm:$0xff]
        %v1035 = vld [vmem:[%s540 + $0x980] sm:$0xff]
        %v1036 = vld [vmem:[%s540 + $0x988] sm:$0xff]
        %v1037 = vld [vmem:[%s540 + $0x990] sm:$0xff]
        %v1038 = vld [vmem:[%s540 + $0x998] sm:$0xff]
        %v1039 = vld [vmem:[%s540 + $0x9a0] sm:$0xff]
        %v1040 = vld [vmem:[%s540 + $0x9a8] sm:$0xff]
        %v1041 = vld [vmem:[%s540 + $0x9b0] sm:$0xff]
        %v1042 = vld [vmem:[%s540 + $0x9b8] sm:$0xff]
        %v1043 = vld [vmem:[%s540 + $0x9c0] sm:$0xff]
        %v1044 = vld [vmem:[%s540 + $0x9c8] sm:$0xff]
        %v1045 = vld [vmem:[%s540 + $0x9d0] sm:$0xff]
        %v1046 = vld [vmem:[%s540 + $0x9d8] sm:$0xff]
        %v1047 = vld [vmem:[%s540 + $0x9e0] sm:$0xff]
        %v1048 = vld [vmem:[%s540 + $0x9e8] sm:$0xff]
        %v1049 = vld [vmem:[%s540 + $0x9f0] sm:$0xff]
        %v1050 = vld [vmem:[%s540 + $0x9f8] sm:$0xff]
        %v1051 = vld [vmem:[%s540 + $0xa00] sm:$0xff]
        %v1052 = vld [vmem:[%s540 + $0xa08] sm:$0xff]
        %v1053 = vld [vmem:[%s540 + $0xa10] sm:$0xff]
        %v1054 = vld [vmem:[%s540 + $0xa18] sm:$0xff]
        %v1055 = vld [vmem:[%s540 + $0xa20] sm:$0xff]
        %v1056 = vld [vmem:[%s540 + $0xa28] sm:$0xff]
        %v1057 = vld [vmem:[%s540 + $0xa30] sm:$0xff]
        %v1058 = vld [vmem:[%s540 + $0xa38] sm:$0xff]
        %v1059 = vld [vmem:[%s540 + $0xa40] sm:$0xff]
        %v1060 = vld [vmem:[%s540 + $0xa48] sm:$0xff]
        %v1061 = vld [vmem:[%s540 + $0xa50] sm:$0xff]
        %v1062 = vld [vmem:[%s540 + $0xa58] sm:$0xff]
        %v1063 = vld [vmem:[%s540 + $0xa60] sm:$0xff]
        %v1064 = vld [vmem:[%s540 + $0xa68] sm:$0xff]
        %v1065 = vld [vmem:[%s540 + $0xa70] sm:$0xff]
        %v1066 = vld [vmem:[%s540 + $0xa78] sm:$0xff]
        %v1067 = vld [vmem:[%s540 + $0xa80] sm:$0xff]
        %v1068 = vld [vmem:[%s540 + $0xa88] sm:$0xff]
        %v1069 = vld [vmem:[%s540 + $0xa90] sm:$0xff]
        %v1070 = vld [vmem:[%s540 + $0xa98] sm:$0xff]
        %v1071 = vld [vmem:[%s540 + $0xaa0] sm:$0xff]
        %v1072 = vld [vmem:[%s540 + $0xaa8] sm:$0xff]
        %v1073 = vld [vmem:[%s540 + $0xab0] sm:$0xff]
        %v1074 = vld [vmem:[%s540 + $0xab8] sm:$0xff]
        %v1075 = vld [vmem:[%s540 + $0xac0] sm:$0xff]
        %v1076 = vld [vmem:[%s540 + $0xac8] sm:$0xff]
        %v1077 = vld [vmem:[%s540 + $0xad0] sm:$0xff]
        %v1078 = vld [vmem:[%s540 + $0xad8] sm:$0xff]
        %v1079 = vld [vmem:[%s540 + $0xae0] sm:$0xff]
        %v1080 = vld [vmem:[%s540 + $0xae8] sm:$0xff]
        %v1081 = vld [vmem:[%s540 + $0xaf0] sm:$0xff]
        %v1082 = vld [vmem:[%s540 + $0xaf8] sm:$0xff]
        %v1083 = vld [vmem:[%s540 + $0xb00] sm:$0xff]
        %v1084 = vld [vmem:[%s540 + $0xb08] sm:$0xff]
        %v1085 = vld [vmem:[%s540 + $0xb10] sm:$0xff]
        %v1086 = vld [vmem:[%s540 + $0xb18] sm:$0xff]
        %v1087 = vld [vmem:[%s540 + $0xb20] sm:$0xff]
        %v1088 = vld [vmem:[%s540 + $0xb28] sm:$0xff]
        %v1089 = vld [vmem:[%s540 + $0xb30] sm:$0xff]
        %v1090 = vld [vmem:[%s540 + $0xb38] sm:$0xff]
        %v1091 = vld [vmem:[%s540 + $0xb40] sm:$0xff]
        %v1092 = vld [vmem:[%s540 + $0xb48] sm:$0xff]
        %v1093 = vld [vmem:[%s540 + $0xb50] sm:$0xff]
        %v1094 = vld [vmem:[%s540 + $0xb58] sm:$0xff]
        %v1095 = vld [vmem:[%s540 + $0xb60] sm:$0xff]
        %v1096 = vld [vmem:[%s540 + $0xb68] sm:$0xff]
        %v1097 = vld [vmem:[%s540 + $0xb70] sm:$0xff]
        %v1098 = vld [vmem:[%s540 + $0xb78] sm:$0xff]
        %v1099 = vld [vmem:[%s540 + $0xb80] sm:$0xff]
        %v1100 = vld [vmem:[%s540 + $0xb88] sm:$0xff]
        %v1101 = vld [vmem:[%s540 + $0xb90] sm:$0xff]
        %v1102 = vld [vmem:[%s540 + $0xb98] sm:$0xff]
        %v1103 = vld [vmem:[%s540 + $0xba0] sm:$0xff]
        %v1104 = vld [vmem:[%s540 + $0xba8] sm:$0xff]
        %v1105 = vld [vmem:[%s540 + $0xbb0] sm:$0xff]
        %v1106 = vld [vmem:[%s540 + $0xbb8] sm:$0xff]
        %v1107 = vld [vmem:[%s540 + $0xbc0] sm:$0xff]
        %v1108 = vld [vmem:[%s540 + $0xbc8] sm:$0xff]
        %v1109 = vld [vmem:[%s540 + $0xbd0] sm:$0xff]
        %v1110 = vld [vmem:[%s540 + $0xbd8] sm:$0xff]
        %v1111 = vld [vmem:[%s540 + $0xbe0] sm:$0xff]
        %v1112 = vld [vmem:[%s540 + $0xbe8] sm:$0xff]
        %v1113 = vld [vmem:[%s540 + $0xbf0] sm:$0xff]
        %v1114 = vld [vmem:[%s540 + $0xbf8] sm:$0xff]
        %v1115 = vld [vmem:[%s540 + $0xc00] sm:$0xff]
        %v1116 = vld [vmem:[%s540 + $0xc08] sm:$0xff]
        %v1117 = vld [vmem:[%s540 + $0xc10] sm:$0xff]
        %v1118 = vld [vmem:[%s540 + $0xc18] sm:$0xff]
        %v1119 = vld [vmem:[%s540 + $0xc20] sm:$0xff]
        %v1120 = vld [vmem:[%s540 + $0xc28] sm:$0xff]
        %v1121 = vld [vmem:[%s540 + $0xc30] sm:$0xff]
        %v1122 = vld [vmem:[%s540 + $0xc38] sm:$0xff]
        %v1123 = vld [vmem:[%s540 + $0xc40] sm:$0xff]
        %v1124 = vld [vmem:[%s540 + $0xc48] sm:$0xff]
        %v1125 = vld [vmem:[%s540 + $0xc50] sm:$0xff]
        %v1126 = vld [vmem:[%s540 + $0xc58] sm:$0xff]
        %v1127 = vld [vmem:[%s540 + $0xc60] sm:$0xff]
        %v1128 = vld [vmem:[%s540 + $0xc68] sm:$0xff]
        %v1129 = vld [vmem:[%s540 + $0xc70] sm:$0xff]
        %v1130 = vld [vmem:[%s540 + $0xc78] sm:$0xff]
        %v1131 = vld [vmem:[%s540 + $0xc80] sm:$0xff]
        %v1132 = vld [vmem:[%s540 + $0xc88] sm:$0xff]
        %v1133 = vld [vmem:[%s540 + $0xc90] sm:$0xff]
        %v1134 = vld [vmem:[%s540 + $0xc98] sm:$0xff]
        %v1135 = vld [vmem:[%s540 + $0xca0] sm:$0xff]
        %v1136 = vld [vmem:[%s540 + $0xca8] sm:$0xff]
        %v1137 = vld [vmem:[%s540 + $0xcb0] sm:$0xff]
        %v1138 = vld [vmem:[%s540 + $0xcb8] sm:$0xff]
        %v1139 = vld [vmem:[%s540 + $0xcc0] sm:$0xff]
        %v1140 = vld [vmem:[%s540 + $0xcc8] sm:$0xff]
        %v1141 = vld [vmem:[%s540 + $0xcd0] sm:$0xff]
        %v1142 = vld [vmem:[%s540 + $0xcd8] sm:$0xff]
        %v1143 = vld [vmem:[%s540 + $0xce0] sm:$0xff]
        %v1144 = vld [vmem:[%s540 + $0xce8] sm:$0xff]
        %v1145 = vld [vmem:[%s540 + $0xcf0] sm:$0xff]
        %v1146 = vld [vmem:[%s540 + $0xcf8] sm:$0xff]
        %v1147 = vld [vmem:[%s540 + $0xd00] sm:$0xff]
        %v1148 = vld [vmem:[%s540 + $0xd08] sm:$0xff]
        %v1149 = vld [vmem:[%s540 + $0xd10] sm:$0xff]
        %v1150 = vld [vmem:[%s540 + $0xd18] sm:$0xff]
        %v1151 = vld [vmem:[%s540 + $0xd20] sm:$0xff]
        %v1152 = vld [vmem:[%s540 + $0xd28] sm:$0xff]
        %v1153 = vld [vmem:[%s540 + $0xd30] sm:$0xff]
        %v1154 = vld [vmem:[%s540 + $0xd38] sm:$0xff]
        %v1155 = vld [vmem:[%s540 + $0xd40] sm:$0xff]
        %v1156 = vld [vmem:[%s540 + $0xd48] sm:$0xff]
        %v1157 = vld [vmem:[%s540 + $0xd50] sm:$0xff]
        %v1158 = vld [vmem:[%s540 + $0xd58] sm:$0xff]
        %v1159 = vld [vmem:[%s540 + $0xd60] sm:$0xff]
        %v1160 = vld [vmem:[%s540 + $0xd68] sm:$0xff]
        %v1161 = vld [vmem:[%s540 + $0xd70] sm:$0xff]
        %v1162 = vld [vmem:[%s540 + $0xd78] sm:$0xff]
        %v1163 = vld [vmem:[%s540 + $0xd80] sm:$0xff]
        %v1164 = vld [vmem:[%s540 + $0xd88] sm:$0xff]
        %v1165 = vld [vmem:[%s540 + $0xd90] sm:$0xff]
        %v1166 = vld [vmem:[%s540 + $0xd98] sm:$0xff]
        %v1167 = vld [vmem:[%s540 + $0xda0] sm:$0xff]
        %v1168 = vld [vmem:[%s540 + $0xda8] sm:$0xff]
        %v1169 = vld [vmem:[%s540 + $0xdb0] sm:$0xff]
        %v1170 = vld [vmem:[%s540 + $0xdb8] sm:$0xff]
        %v1171 = vld [vmem:[%s540 + $0xdc0] sm:$0xff]
        %v1172 = vld [vmem:[%s540 + $0xdc8] sm:$0xff]
        %v1173 = vld [vmem:[%s540 + $0xdd0] sm:$0xff]
        %v1174 = vld [vmem:[%s540 + $0xdd8] sm:$0xff]
        %v1175 = vld [vmem:[%s540 + $0xde0] sm:$0xff]
        %v1176 = vld [vmem:[%s540 + $0xde8] sm:$0xff]
        %v1177 = vld [vmem:[%s540 + $0xdf0] sm:$0xff]
        %v1178 = vld [vmem:[%s540 + $0xdf8] sm:$0xff]
        %v1179 = vld [vmem:[%s540 + $0xe00] sm:$0xff]
        %v1180 = vld [vmem:[%s540 + $0xe08] sm:$0xff]
        %v1181 = vld [vmem:[%s540 + $0xe10] sm:$0xff]
        %v1182 = vld [vmem:[%s540 + $0xe18] sm:$0xff]
        %v1183 = vld [vmem:[%s540 + $0xe20] sm:$0xff]
        %v1184 = vld [vmem:[%s540 + $0xe28] sm:$0xff]
        %v1185 = vld [vmem:[%s540 + $0xe30] sm:$0xff]
        %v1186 = vld [vmem:[%s540 + $0xe38] sm:$0xff]
        %v1187 = vld [vmem:[%s540 + $0xe40] sm:$0xff]
        %v1188 = vld [vmem:[%s540 + $0xe48] sm:$0xff]
        %v1189 = vld [vmem:[%s540 + $0xe50] sm:$0xff]
        %v1190 = vld [vmem:[%s540 + $0xe58] sm:$0xff]
        %v1191 = vld [vmem:[%s540 + $0xe60] sm:$0xff]
        %v1192 = vld [vmem:[%s540 + $0xe68] sm:$0xff]
        %v1193 = vld [vmem:[%s540 + $0xe70] sm:$0xff]
        %v1194 = vld [vmem:[%s540 + $0xe78] sm:$0xff]
        %v1195 = vld [vmem:[%s540 + $0xe80] sm:$0xff]
        %v1196 = vld [vmem:[%s540 + $0xe88] sm:$0xff]
        %v1197 = vld [vmem:[%s540 + $0xe90] sm:$0xff]
        %v1198 = vld [vmem:[%s540 + $0xe98] sm:$0xff]
        %v1199 = vld [vmem:[%s540 + $0xea0] sm:$0xff]
        %v1200 = vld [vmem:[%s540 + $0xea8] sm:$0xff]
        %v1201 = vld [vmem:[%s540 + $0xeb0] sm:$0xff]
        %v1202 = vld [vmem:[%s540 + $0xeb8] sm:$0xff]
        %v1203 = vld [vmem:[%s540 + $0xec0] sm:$0xff]
        %v1204 = vld [vmem:[%s540 + $0xec8] sm:$0xff]
        %v1205 = vld [vmem:[%s540 + $0xed0] sm:$0xff]
        %v1206 = vld [vmem:[%s540 + $0xed8] sm:$0xff]
        %v1207 = vld [vmem:[%s540 + $0xee0] sm:$0xff]
        %v1208 = vld [vmem:[%s540 + $0xee8] sm:$0xff]
        %v1209 = vld [vmem:[%s540 + $0xef0] sm:$0xff]
        %v1210 = vld [vmem:[%s540 + $0xef8] sm:$0xff]
        %v1211 = vld [vmem:[%s540 + $0xf00] sm:$0xff]
        %v1212 = vld [vmem:[%s540 + $0xf08] sm:$0xff]
        %v1213 = vld [vmem:[%s540 + $0xf10] sm:$0xff]
        %v1214 = vld [vmem:[%s540 + $0xf18] sm:$0xff]
        %v1215 = vld [vmem:[%s540 + $0xf20] sm:$0xff]
        %v1216 = vld [vmem:[%s540 + $0xf28] sm:$0xff]
        %v1217 = vld [vmem:[%s540 + $0xf30] sm:$0xff]
        %v1218 = vld [vmem:[%s540 + $0xf38] sm:$0xff]
        %v1219 = vld [vmem:[%s540 + $0xf40] sm:$0xff]
        %v1220 = vld [vmem:[%s540 + $0xf48] sm:$0xff]
        %v1221 = vld [vmem:[%s540 + $0xf50] sm:$0xff]
        %v1222 = vld [vmem:[%s540 + $0xf58] sm:$0xff]
        %v1223 = vld [vmem:[%s540 + $0xf60] sm:$0xff]
        %v1224 = vld [vmem:[%s540 + $0xf68] sm:$0xff]
        %v1225 = vld [vmem:[%s540 + $0xf70] sm:$0xff]
        %v1226 = vld [vmem:[%s540 + $0xf78] sm:$0xff]
        %v1227 = vld [vmem:[%s540 + $0xf80] sm:$0xff]
        %v1228 = vld [vmem:[%s540 + $0xf88] sm:$0xff]
        %v1229 = vld [vmem:[%s540 + $0xf90] sm:$0xff]
        %v1230 = vld [vmem:[%s540 + $0xf98] sm:$0xff]
        %v1231 = vld [vmem:[%s540 + $0xfa0] sm:$0xff]
        %v1232 = vld [vmem:[%s540 + $0xfa8] sm:$0xff]
        %v1233 = vld [vmem:[%s540 + $0xfb0] sm:$0xff]
        %v1234 = vld [vmem:[%s540 + $0xfb8] sm:$0xff]
        %v1235 = vld [vmem:[%s540 + $0xfc0] sm:$0xff]
        %v1236 = vld [vmem:[%s540 + $0xfc8] sm:$0xff]
        %v1237 = vld [vmem:[%s540 + $0xfd0] sm:$0xff]
        %v1238 = vld [vmem:[%s540 + $0xfd8] sm:$0xff]
        %v1239 = vld [vmem:[%s540 + $0xfe0] sm:$0xff]
        %v1240 = vld [vmem:[%s540 + $0xfe8] sm:$0xff]
        %v1241 = vld [vmem:[%s540 + $0xff0] sm:$0xff]
        %v1242 = vld [vmem:[%s540 + $0xff8] sm:$0xff]
        %v1243 = vld [vmem:[%s540 + $0x1000] sm:$0xff]
        %v1244 = vld [vmem:[%s540 + $0x1008] sm:$0xff]
        %v1245 = vld [vmem:[%s540 + $0x1010] sm:$0xff]
        %v1246 = vld [vmem:[%s540 + $0x1018] sm:$0xff]
        %v1247 = vld [vmem:[%s540 + $0x1020] sm:$0xff]
        %v1248 = vld [vmem:[%s540 + $0x1028] sm:$0xff]
        %v1249 = vld [vmem:[%s540 + $0x1030] sm:$0xff]
        %v1250 = vld [vmem:[%s540 + $0x1038] sm:$0xff]
        %v1251 = vld [vmem:[%s540 + $0x1040] sm:$0xff]
        %v1252 = vld [vmem:[%s540 + $0x1048] sm:$0xff]
        %v1253 = vld [vmem:[%s540 + $0x1050] sm:$0xff]
        %v1254 = vld [vmem:[%s540 + $0x1058] sm:$0xff]
        %v1255 = vld [vmem:[%s540 + $0x1060] sm:$0xff]
        %v1256 = vld [vmem:[%s540 + $0x1068] sm:$0xff]
        %v1257 = vld [vmem:[%s540 + $0x1070] sm:$0xff]
        %v1258 = vld [vmem:[%s540 + $0x1078] sm:$0xff]
        %v1259 = vld [vmem:[%s540 + $0x1080] sm:$0xff]
        %v1260 = vld [vmem:[%s540 + $0x1088] sm:$0xff]
        %v1261 = vld [vmem:[%s540 + $0x1090] sm:$0xff]
        %v1262 = vld [vmem:[%s540 + $0x1098] sm:$0xff]
        %v1263 = vld [vmem:[%s540 + $0x10a0] sm:$0xff]
        %v1264 = vld [vmem:[%s540 + $0x10a8] sm:$0xff]
        %v1265 = vld [vmem:[%s540 + $0x10b0] sm:$0xff]
        %v1266 = vld [vmem:[%s540 + $0x10b8] sm:$0xff]
        %v1267 = vld [vmem:[%s540 + $0x10c0] sm:$0xff]
        %v1268 = vld [vmem:[%s540 + $0x10c8] sm:$0xff]
        %v1269 = vld [vmem:[%s540 + $0x10d0] sm:$0xff]
        %v1270 = vld [vmem:[%s540 + $0x10d8] sm:$0xff]
        %v1271 = vld [vmem:[%s540 + $0x10e0] sm:$0xff]
        %v1272 = vld [vmem:[%s540 + $0x10e8] sm:$0xff]
        %v1273 = vld [vmem:[%s540 + $0x10f0] sm:$0xff]
        %v1274 = vld [vmem:[%s540 + $0x10f8] sm:$0xff]
        %v1275 = vld [vmem:[%s540 + $0x1100] sm:$0xff]
        %v1276 = vld [vmem:[%s540 + $0x1108] sm:$0xff]
        %v1277 = vld [vmem:[%s540 + $0x1110] sm:$0xff]
        %v1278 = vld [vmem:[%s540 + $0x1118] sm:$0xff]
        %v1279 = vld [vmem:[%s540 + $0x1120] sm:$0xff]
        %v1280 = vld [vmem:[%s540 + $0x1128] sm:$0xff]
        %v1281 = vld [vmem:[%s540 + $0x1130] sm:$0xff]
        %v1282 = vld [vmem:[%s540 + $0x1138] sm:$0xff]
        %v1283 = vld [vmem:[%s540 + $0x1140] sm:$0xff]
        %v1284 = vld [vmem:[%s540 + $0x1148] sm:$0xff]
        %v1285 = vld [vmem:[%s540 + $0x1150] sm:$0xff]
        %v1286 = vld [vmem:[%s540 + $0x1158] sm:$0xff]
        %v1287 = vld [vmem:[%s540 + $0x1160] sm:$0xff]
        %v1288 = vld [vmem:[%s540 + $0x1168] sm:$0xff]
        %v1289 = vld [vmem:[%s540 + $0x1170] sm:$0xff]
        %v1290 = vld [vmem:[%s540 + $0x1178] sm:$0xff]
        %v1291 = vld [vmem:[%s540 + $0x1180] sm:$0xff]
        %v1292 = vld [vmem:[%s540 + $0x1188] sm:$0xff]
        %v1293 = vld [vmem:[%s540 + $0x1190] sm:$0xff]
        %v1294 = vld [vmem:[%s540 + $0x1198] sm:$0xff]
        %v1295 = vld [vmem:[%s540 + $0x11a0] sm:$0xff]
        %v1296 = vld [vmem:[%s540 + $0x11a8] sm:$0xff]
        %v1297 = vld [vmem:[%s540 + $0x11b0] sm:$0xff]
        %v1298 = vld [vmem:[%s540 + $0x11b8] sm:$0xff]
        %v1299 = vld [vmem:[%s540 + $0x11c0] sm:$0xff]
        %v1300 = vld [vmem:[%s540 + $0x11c8] sm:$0xff]
        %v1301 = vld [vmem:[%s540 + $0x11d0] sm:$0xff]
        %v1302 = vld [vmem:[%s540 + $0x11d8] sm:$0xff]
        %v1303 = vld [vmem:[%s540 + $0x11e0] sm:$0xff]
        %v1304 = vld [vmem:[%s540 + $0x11e8] sm:$0xff]
        %v1305 = vld [vmem:[%s540 + $0x11f0] sm:$0xff]
        %v1306 = vld [vmem:[%s540 + $0x11f8] sm:$0xff]
        %v1307 = vld [vmem:[%s540 + $0x1200] sm:$0xff]
        %v1308 = vld [vmem:[%s540 + $0x1208] sm:$0xff]
        %v1309 = vld [vmem:[%s540 + $0x1210] sm:$0xff]
        %v1310 = vld [vmem:[%s540 + $0x1218] sm:$0xff]
        %v1311 = vld [vmem:[%s540 + $0x1220] sm:$0xff]
        %v1312 = vld [vmem:[%s540 + $0x1228] sm:$0xff]
        %v1313 = vld [vmem:[%s540 + $0x1230] sm:$0xff]
        %v1314 = vld [vmem:[%s540 + $0x1238] sm:$0xff]
        %v1315 = vld [vmem:[%s540 + $0x1240] sm:$0xff]
        %v1316 = vld [vmem:[%s540 + $0x1248] sm:$0xff]
        %v1317 = vld [vmem:[%s540 + $0x1250] sm:$0xff]
        %v1318 = vld [vmem:[%s540 + $0x1258] sm:$0xff]
        %v1319 = vld [vmem:[%s540 + $0x1260] sm:$0xff]
        %v1320 = vld [vmem:[%s540 + $0x1268] sm:$0xff]
        %v1321 = vld [vmem:[%s540 + $0x1270] sm:$0xff]
        %v1322 = vld [vmem:[%s540 + $0x1278] sm:$0xff]
        %v1323 = vld [vmem:[%s540 + $0x1280] sm:$0xff]
        %v1324 = vld [vmem:[%s540 + $0x1288] sm:$0xff]
        %v1325 = vld [vmem:[%s540 + $0x1290] sm:$0xff]
        %v1326 = vld [vmem:[%s540 + $0x1298] sm:$0xff]
        %v1327 = vld [vmem:[%s540 + $0x12a0] sm:$0xff]
        %v1328 = vld [vmem:[%s540 + $0x12a8] sm:$0xff]
        %v1329 = vld [vmem:[%s540 + $0x12b0] sm:$0xff]
        %v1330 = vld [vmem:[%s540 + $0x12b8] sm:$0xff]
        %v1331 = vld [vmem:[%s540 + $0x12c0] sm:$0xff]
        %v1332 = vld [vmem:[%s540 + $0x12c8] sm:$0xff]
        %v1333 = vld [vmem:[%s540 + $0x12d0] sm:$0xff]
        %v1334 = vld [vmem:[%s540 + $0x12d8] sm:$0xff]
        %v1335 = vld [vmem:[%s540 + $0x12e0] sm:$0xff]
        %v1336 = vld [vmem:[%s540 + $0x12e8] sm:$0xff]
        %v1337 = vld [vmem:[%s540 + $0x12f0] sm:$0xff]
        %v1338 = vld [vmem:[%s540 + $0x12f8] sm:$0xff]
        %v1339 = vld [vmem:[%s540 + $0x1300] sm:$0xff]
        %v1340 = vld [vmem:[%s540 + $0x1308] sm:$0xff]
        %v1341 = vld [vmem:[%s540 + $0x1310] sm:$0xff]
        %v1342 = vld [vmem:[%s540 + $0x1318] sm:$0xff]
        %v1343 = vld [vmem:[%s540 + $0x1320] sm:$0xff]
        %v1344 = vld [vmem:[%s540 + $0x1328] sm:$0xff]
        %v1345 = vld [vmem:[%s540 + $0x1330] sm:$0xff]
        %v1346 = vld [vmem:[%s540 + $0x1338] sm:$0xff]
        %v1347 = vld [vmem:[%s540 + $0x1340] sm:$0xff]
        %v1348 = vld [vmem:[%s540 + $0x1348] sm:$0xff]
        %v1349 = vld [vmem:[%s540 + $0x1350] sm:$0xff]
        %v1350 = vld [vmem:[%s540 + $0x1358] sm:$0xff]
        %v1351 = vld [vmem:[%s540 + $0x1360] sm:$0xff]
        %v1352 = vld [vmem:[%s540 + $0x1368] sm:$0xff]
        %v1353 = vld [vmem:[%s540 + $0x1370] sm:$0xff]
        %v1354 = vld [vmem:[%s540 + $0x1378] sm:$0xff]
        %v1355 = vld [vmem:[%s540 + $0x1380] sm:$0xff]
        %v1356 = vld [vmem:[%s540 + $0x1388] sm:$0xff]
        %v1357 = vld [vmem:[%s540 + $0x1390] sm:$0xff]
        %v1358 = vld [vmem:[%s540 + $0x1398] sm:$0xff]
        %v1359 = vld [vmem:[%s540 + $0x13a0] sm:$0xff]
        %v1360 = vld [vmem:[%s540 + $0x13a8] sm:$0xff]
        %v1361 = vld [vmem:[%s540 + $0x13b0] sm:$0xff]
        %v1362 = vld [vmem:[%s540 + $0x13b8] sm:$0xff]
        %v1363 = vld [vmem:[%s540 + $0x13c0] sm:$0xff]
        %v1364 = vld [vmem:[%s540 + $0x13c8] sm:$0xff]
        %v1365 = vld [vmem:[%s540 + $0x13d0] sm:$0xff]
        %v1366 = vld [vmem:[%s540 + $0x13d8] sm:$0xff]
        %v1367 = vld [vmem:[%s540 + $0x13e0] sm:$0xff]
        %v1368 = vld [vmem:[%s540 + $0x13e8] sm:$0xff]
        %v1369 = vld [vmem:[%s540 + $0x13f0] sm:$0xff]
        %v1370 = vld [vmem:[%s540 + $0x13f8] sm:$0xff]
        %v1371 = vld [vmem:[%s540 + $0x1400] sm:$0xff]
        %v1372 = vld [vmem:[%s540 + $0x1408] sm:$0xff]
        %v1373 = vld [vmem:[%s540 + $0x1410] sm:$0xff]
        %v1374 = vld [vmem:[%s540 + $0x1418] sm:$0xff]
        %v1375 = vld [vmem:[%s540 + $0x1420] sm:$0xff]
        %v1376 = vld [vmem:[%s540 + $0x1428] sm:$0xff]
        %v1377 = vld [vmem:[%s540 + $0x1430] sm:$0xff]
        %v1378 = vld [vmem:[%s540 + $0x1438] sm:$0xff]
        %v1379 = vld [vmem:[%s540 + $0x1440] sm:$0xff]
        %v1380 = vld [vmem:[%s540 + $0x1448] sm:$0xff]
        %v1381 = vld [vmem:[%s540 + $0x1450] sm:$0xff]
        %v1382 = vld [vmem:[%s540 + $0x1458] sm:$0xff]
        %v1383 = vld [vmem:[%s540 + $0x1460] sm:$0xff]
        %v1384 = vld [vmem:[%s540 + $0x1468] sm:$0xff]
        %v1385 = vld [vmem:[%s540 + $0x1470] sm:$0xff]
        %v1386 = vld [vmem:[%s540 + $0x1478] sm:$0xff]
        %v1387 = vld [vmem:[%s540 + $0x1480] sm:$0xff]
        %v1388 = vld [vmem:[%s540 + $0x1488] sm:$0xff]
        %v1389 = vld [vmem:[%s540 + $0x1490] sm:$0xff]
        %v1390 = vld [vmem:[%s540 + $0x1498] sm:$0xff]
        %v1391 = vld [vmem:[%s540 + $0x14a0] sm:$0xff]
        %v1392 = vld [vmem:[%s540 + $0x14a8] sm:$0xff]
        %v1393 = vld [vmem:[%s540 + $0x14b0] sm:$0xff]
        %v1394 = vld [vmem:[%s540 + $0x14b8] sm:$0xff]
        %v1395 = vld [vmem:[%s540 + $0x14c0] sm:$0xff]
        %v1396 = vld [vmem:[%s540 + $0x14c8] sm:$0xff]
        %v1397 = vld [vmem:[%s540 + $0x14d0] sm:$0xff]
        %v1398 = vld [vmem:[%s540 + $0x14d8] sm:$0xff]
        %v1399 = vld [vmem:[%s540 + $0x14e0] sm:$0xff]
        %v1400 = vld [vmem:[%s540 + $0x14e8] sm:$0xff]
        %v1401 = vld [vmem:[%s540 + $0x14f0] sm:$0xff]
        %v1402 = vld [vmem:[%s540 + $0x14f8] sm:$0xff]
        %v1403 = vld [vmem:[%s540 + $0x1500] sm:$0xff]
        %v1404 = vld [vmem:[%s540 + $0x1508] sm:$0xff]
        %v1405 = vld [vmem:[%s540 + $0x1510] sm:$0xff]
        %v1406 = vld [vmem:[%s540 + $0x1518] sm:$0xff]
        %v1407 = vld [vmem:[%s540 + $0x1520] sm:$0xff]
        %v1408 = vld [vmem:[%s540 + $0x1528] sm:$0xff]
        %v1409 = vld [vmem:[%s540 + $0x1530] sm:$0xff]
        %v1410 = vld [vmem:[%s540 + $0x1538] sm:$0xff]
        %v1411 = vld [vmem:[%s540 + $0x1540] sm:$0xff]
        %v1412 = vld [vmem:[%s540 + $0x1548] sm:$0xff]
        %v1413 = vld [vmem:[%s540 + $0x1550] sm:$0xff]
        %v1414 = vld [vmem:[%s540 + $0x1558] sm:$0xff]
        %v1415 = vld [vmem:[%s540 + $0x1560] sm:$0xff]
        %v1416 = vld [vmem:[%s540 + $0x1568] sm:$0xff]
        %v1417 = vld [vmem:[%s540 + $0x1570] sm:$0xff]
        %v1418 = vld [vmem:[%s540 + $0x1578] sm:$0xff]
        %v1419 = vld [vmem:[%s540 + $0x1580] sm:$0xff]
        %v1420 = vld [vmem:[%s540 + $0x1588] sm:$0xff]
        %v1421 = vld [vmem:[%s540 + $0x1590] sm:$0xff]
        %v1422 = vld [vmem:[%s540 + $0x1598] sm:$0xff]
        %v1423 = vld [vmem:[%s540 + $0x15a0] sm:$0xff]
        %v1424 = vld [vmem:[%s540 + $0x15a8] sm:$0xff]
        %v1425 = vld [vmem:[%s540 + $0x15b0] sm:$0xff]
        %v1426 = vld [vmem:[%s540 + $0x15b8] sm:$0xff]
        %v1427 = vld [vmem:[%s540 + $0x15c0] sm:$0xff]
        %v1428 = vld [vmem:[%s540 + $0x15c8] sm:$0xff]
        %v1429 = vld [vmem:[%s540 + $0x15d0] sm:$0xff]
        %v1430 = vld [vmem:[%s540 + $0x15d8] sm:$0xff]
        %v1431 = vld [vmem:[%s540 + $0x15e0] sm:$0xff]
        %v1432 = vld [vmem:[%s540 + $0x15e8] sm:$0xff]
        %v1433 = vld [vmem:[%s540 + $0x15f0] sm:$0xff]
        %v1434 = vld [vmem:[%s540 + $0x15f8] sm:$0xff]
        %v1435 = vld [vmem:[%s540 + $0x1600] sm:$0xff]
        %v1436 = vld [vmem:[%s540 + $0x1608] sm:$0xff]
        %v1437 = vld [vmem:[%s540 + $0x1610] sm:$0xff]
        %v1438 = vld [vmem:[%s540 + $0x1618] sm:$0xff]
        %v1439 = vld [vmem:[%s540 + $0x1620] sm:$0xff]
        %v1440 = vld [vmem:[%s540 + $0x1628] sm:$0xff]
        %v1441 = vld [vmem:[%s540 + $0x1630] sm:$0xff]
        %v1442 = vld [vmem:[%s540 + $0x1638] sm:$0xff]
        %v1443 = vld [vmem:[%s540 + $0x1640] sm:$0xff]
        %v1444 = vld [vmem:[%s540 + $0x1648] sm:$0xff]
        %v1445 = vld [vmem:[%s540 + $0x1650] sm:$0xff]
        %v1446 = vld [vmem:[%s540 + $0x1658] sm:$0xff]
        %v1447 = vld [vmem:[%s540 + $0x1660] sm:$0xff]
        %v1448 = vld [vmem:[%s540 + $0x1668] sm:$0xff]
        %v1449 = vld [vmem:[%s540 + $0x1670] sm:$0xff]
        %v1450 = vld [vmem:[%s540 + $0x1678] sm:$0xff]
        %v1451 = vld [vmem:[%s540 + $0x1680] sm:$0xff]
        %v1452 = vld [vmem:[%s540 + $0x1688] sm:$0xff]
        %v1453 = vld [vmem:[%s540 + $0x1690] sm:$0xff]
        %v1454 = vld [vmem:[%s540 + $0x1698] sm:$0xff]
        %v1455 = vld [vmem:[%s540 + $0x16a0] sm:$0xff]
        %v1456 = vld [vmem:[%s540 + $0x16a8] sm:$0xff]
        %v1457 = vld [vmem:[%s540 + $0x16b0] sm:$0xff]
        %v1458 = vld [vmem:[%s540 + $0x16b8] sm:$0xff]
        %v1459 = vld [vmem:[%s540 + $0x16c0] sm:$0xff]
        %v1460 = vld [vmem:[%s540 + $0x16c8] sm:$0xff]
        %v1461 = vld [vmem:[%s540 + $0x16d0] sm:$0xff]
        %v1462 = vld [vmem:[%s540 + $0x16d8] sm:$0xff]
        %v1463 = vld [vmem:[%s540 + $0x16e0] sm:$0xff]
        %v1464 = vld [vmem:[%s540 + $0x16e8] sm:$0xff]
        %v1465 = vld [vmem:[%s540 + $0x16f0] sm:$0xff]
        %v1466 = vld [vmem:[%s540 + $0x16f8] sm:$0xff]
        %v1467 = vld [vmem:[%s540 + $0x1700] sm:$0xff]
        %v1468 = vld [vmem:[%s540 + $0x1708] sm:$0xff]
        %v1469 = vld [vmem:[%s540 + $0x1710] sm:$0xff]
        %v1470 = vld [vmem:[%s540 + $0x1718] sm:$0xff]
        %v1471 = vld [vmem:[%s540 + $0x1720] sm:$0xff]
        %v1472 = vld [vmem:[%s540 + $0x1728] sm:$0xff]
        %v1473 = vld [vmem:[%s540 + $0x1730] sm:$0xff]
        %v1474 = vld [vmem:[%s540 + $0x1738] sm:$0xff]
        %v1475 = vld [vmem:[%s540 + $0x1740] sm:$0xff]
        %v1476 = vld [vmem:[%s540 + $0x1748] sm:$0xff]
        %v1477 = vld [vmem:[%s540 + $0x1750] sm:$0xff]
        %v1478 = vld [vmem:[%s540 + $0x1758] sm:$0xff]
        %v1479 = vld [vmem:[%s540 + $0x1760] sm:$0xff]
        %v1480 = vld [vmem:[%s540 + $0x1768] sm:$0xff]
        %v1481 = vld [vmem:[%s540 + $0x1770] sm:$0xff]
        %v1482 = vld [vmem:[%s540 + $0x1778] sm:$0xff]
        %v1483 = vld [vmem:[%s540 + $0x1780] sm:$0xff]
        %v1484 = vld [vmem:[%s540 + $0x1788] sm:$0xff]
        %v1485 = vld [vmem:[%s540 + $0x1790] sm:$0xff]
        %v1486 = vld [vmem:[%s540 + $0x1798] sm:$0xff]
        %v1487 = vld [vmem:[%s540 + $0x17a0] sm:$0xff]
        %v1488 = vld [vmem:[%s540 + $0x17a8] sm:$0xff]
        %v1489 = vld [vmem:[%s540 + $0x17b0] sm:$0xff]
        %v1490 = vld [vmem:[%s540 + $0x17b8] sm:$0xff]
        %v1491 = vld [vmem:[%s540 + $0x17c0] sm:$0xff]
        %v1492 = vld [vmem:[%s540 + $0x17c8] sm:$0xff]
        %v1493 = vld [vmem:[%s540 + $0x17d0] sm:$0xff]
        %v1494 = vld [vmem:[%s540 + $0x17d8] sm:$0xff]
        %v1495 = vld [vmem:[%s540 + $0x17e0] sm:$0xff]
        %v1496 = vld [vmem:[%s540 + $0x17e8] sm:$0xff]
        %v1497 = vld [vmem:[%s540 + $0x17f0] sm:$0xff]
        %v1498 = vld [vmem:[%s540 + $0x17f8] sm:$0xff]
        %v1499 = vld [vmem:[%s540 + $0x1800] sm:$0xff]
        %v1500 = vld [vmem:[%s540 + $0x1808] sm:$0xff]
        %v1501 = vld [vmem:[%s540 + $0x1810] sm:$0xff]
        %v1502 = vld [vmem:[%s540 + $0x1818] sm:$0xff]
        %v1503 = vld [vmem:[%s540 + $0x1820] sm:$0xff]
        %v1504 = vld [vmem:[%s540 + $0x1828] sm:$0xff]
        %v1505 = vld [vmem:[%s540 + $0x1830] sm:$0xff]
        %v1506 = vld [vmem:[%s540 + $0x1838] sm:$0xff]
        %v1507 = vld [vmem:[%s540 + $0x1840] sm:$0xff]
        %v1508 = vld [vmem:[%s540 + $0x1848] sm:$0xff]
        %v1509 = vld [vmem:[%s540 + $0x1850] sm:$0xff]
        %v1510 = vld [vmem:[%s540 + $0x1858] sm:$0xff]
        %v1511 = vld [vmem:[%s540 + $0x1860] sm:$0xff]
        %v1512 = vld [vmem:[%s540 + $0x1868] sm:$0xff]
        %v1513 = vld [vmem:[%s540 + $0x1870] sm:$0xff]
        %v1514 = vld [vmem:[%s540 + $0x1878] sm:$0xff]
        %v1515 = vld [vmem:[%s540 + $0x1880] sm:$0xff]
        %v1516 = vld [vmem:[%s540 + $0x1888] sm:$0xff]
        %v1517 = vld [vmem:[%s540 + $0x1890] sm:$0xff]
        %v1518 = vld [vmem:[%s540 + $0x1898] sm:$0xff]
        %v1519 = vld [vmem:[%s540 + $0x18a0] sm:$0xff]
        %v1520 = vld [vmem:[%s540 + $0x18a8] sm:$0xff]
        %v1521 = vld [vmem:[%s540 + $0x18b0] sm:$0xff]
        %v1522 = vld [vmem:[%s540 + $0x18b8] sm:$0xff]
        %v1523 = vld [vmem:[%s540 + $0x18c0] sm:$0xff]
        %v1524 = vld [vmem:[%s540 + $0x18c8] sm:$0xff]
        %v1525 = vld [vmem:[%s540 + $0x18d0] sm:$0xff]
        %v1526 = vld [vmem:[%s540 + $0x18d8] sm:$0xff]
        %v1527 = vld [vmem:[%s540 + $0x18e0] sm:$0xff]
        %v1528 = vld [vmem:[%s540 + $0x18e8] sm:$0xff]
        %v1529 = vld [vmem:[%s540 + $0x18f0] sm:$0xff]
        %v1530 = vld [vmem:[%s540 + $0x18f8] sm:$0xff]
        %v1531 = vld [vmem:[%s540 + $0x1900] sm:$0xff]
        %v1532 = vld [vmem:[%s540 + $0x1908] sm:$0xff]
        %v1533 = vld [vmem:[%s540 + $0x1910] sm:$0xff]
        %v1534 = vld [vmem:[%s540 + $0x1918] sm:$0xff]
        %v1535 = vld [vmem:[%s540 + $0x1920] sm:$0xff]
        %v1536 = vld [vmem:[%s540 + $0x1928] sm:$0xff]
        %v1537 = vld [vmem:[%s540 + $0x1930] sm:$0xff]
        %v1538 = vld [vmem:[%s540 + $0x1938] sm:$0xff]
        %v1539 = vld [vmem:[%s540 + $0x1940] sm:$0xff]
        %v1540 = vld [vmem:[%s540 + $0x1948] sm:$0xff]
        %v1541 = vld [vmem:[%s540 + $0x1950] sm:$0xff]
        %v1542 = vld [vmem:[%s540 + $0x1958] sm:$0xff]
        %v1543 = vld [vmem:[%s540 + $0x1960] sm:$0xff]
        %v1544 = vld [vmem:[%s540 + $0x1968] sm:$0xff]
        %v1545 = vld [vmem:[%s540 + $0x1970] sm:$0xff]
        %v1546 = vld [vmem:[%s540 + $0x1978] sm:$0xff]
        %v1547 = vld [vmem:[%s540 + $0x1980] sm:$0xff]
        %v1548 = vld [vmem:[%s540 + $0x1988] sm:$0xff]
        %v1549 = vld [vmem:[%s540 + $0x1990] sm:$0xff]
        %v1550 = vld [vmem:[%s540 + $0x1998] sm:$0xff]
        %v1551 = vld [vmem:[%s540 + $0x19a0] sm:$0xff]
        %v1552 = vld [vmem:[%s540 + $0x19a8] sm:$0xff]
        %v1553 = vld [vmem:[%s540 + $0x19b0] sm:$0xff]
        %v1554 = vld [vmem:[%s540 + $0x19b8] sm:$0xff]
        %v1555 = vld [vmem:[%s540 + $0x19c0] sm:$0xff]
        %v1556 = vld [vmem:[%s540 + $0x19c8] sm:$0xff]
        %v1557 = vld [vmem:[%s540 + $0x19d0] sm:$0xff]
        %v1558 = vld [vmem:[%s540 + $0x19d8] sm:$0xff]
        %v1559 = vld [vmem:[%s540 + $0x19e0] sm:$0xff]
        %v1560 = vld [vmem:[%s540 + $0x19e8] sm:$0xff]
        %v1561 = vld [vmem:[%s540 + $0x19f0] sm:$0xff]
        %v1562 = vld [vmem:[%s540 + $0x19f8] sm:$0xff]
        %v1563 = vld [vmem:[%s540 + $0x1a00] sm:$0xff]
        %v1564 = vld [vmem:[%s540 + $0x1a08] sm:$0xff]
        %v1565 = vld [vmem:[%s540 + $0x1a10] sm:$0xff]
        %v1566 = vld [vmem:[%s540 + $0x1a18] sm:$0xff]
        %v1567 = vld [vmem:[%s540 + $0x1a20] sm:$0xff]
        %v1568 = vld [vmem:[%s540 + $0x1a28] sm:$0xff]
        %v1569 = vld [vmem:[%s540 + $0x1a30] sm:$0xff]
        %v1570 = vld [vmem:[%s540 + $0x1a38] sm:$0xff]
        %v1571 = vld [vmem:[%s540 + $0x1a40] sm:$0xff]
        %v1572 = vld [vmem:[%s540 + $0x1a48] sm:$0xff]
        %v1573 = vld [vmem:[%s540 + $0x1a50] sm:$0xff]
        %v1574 = vld [vmem:[%s540 + $0x1a58] sm:$0xff]
        %v1575 = vld [vmem:[%s540 + $0x1a60] sm:$0xff]
        %v1576 = vld [vmem:[%s540 + $0x1a68] sm:$0xff]
        %v1577 = vld [vmem:[%s540 + $0x1a70] sm:$0xff]
        %v1578 = vld [vmem:[%s540 + $0x1a78] sm:$0xff]
        %v1579 = vld [vmem:[%s540 + $0x1a80] sm:$0xff]
        %v1580 = vld [vmem:[%s540 + $0x1a88] sm:$0xff]
        %v1581 = vld [vmem:[%s540 + $0x1a90] sm:$0xff]
        %v1582 = vld [vmem:[%s540 + $0x1a98] sm:$0xff]
        %v1583 = vld [vmem:[%s540 + $0x1aa0] sm:$0xff]
        %v1584 = vld [vmem:[%s540 + $0x1aa8] sm:$0xff]
        %v1585 = vld [vmem:[%s540 + $0x1ab0] sm:$0xff]
        %v1586 = vld [vmem:[%s540 + $0x1ab8] sm:$0xff]
        %v1587 = vld [vmem:[%s540 + $0x1ac0] sm:$0xff]
        %v1588 = vld [vmem:[%s540 + $0x1ac8] sm:$0xff]
        %v1589 = vld [vmem:[%s540 + $0x1ad0] sm:$0xff]
        %v1590 = vld [vmem:[%s540 + $0x1ad8] sm:$0xff]
        %v1591 = vld [vmem:[%s540 + $0x1ae0] sm:$0xff]
        %v1592 = vld [vmem:[%s540 + $0x1ae8] sm:$0xff]
        %v1593 = vld [vmem:[%s540 + $0x1af0] sm:$0xff]
        %v1594 = vld [vmem:[%s540 + $0x1af8] sm:$0xff]
        %v1595 = vld [vmem:[%s540 + $0x1b00] sm:$0xff]
        %v1596 = vld [vmem:[%s540 + $0x1b08] sm:$0xff]
        %v1597 = vld [vmem:[%s540 + $0x1b10] sm:$0xff]
        %v1598 = vld [vmem:[%s540 + $0x1b18] sm:$0xff]
        %v1599 = vld [vmem:[%s540 + $0x1b20] sm:$0xff]
        %v1600 = vld [vmem:[%s540 + $0x1b28] sm:$0xff]
        %v1601 = vld [vmem:[%s540 + $0x1b30] sm:$0xff]
        %v1602 = vld [vmem:[%s540 + $0x1b38] sm:$0xff]
        %v1603 = vld [vmem:[%s540 + $0x1b40] sm:$0xff]
        %v1604 = vld [vmem:[%s540 + $0x1b48] sm:$0xff]
        %v1605 = vld [vmem:[%s540 + $0x1b50] sm:$0xff]
        %v1606 = vld [vmem:[%s540 + $0x1b58] sm:$0xff]
        %v1607 = vld [vmem:[%s540 + $0x1b60] sm:$0xff]
        %v1608 = vld [vmem:[%s540 + $0x1b68] sm:$0xff]
        %v1609 = vld [vmem:[%s540 + $0x1b70] sm:$0xff]
        %v1610 = vld [vmem:[%s540 + $0x1b78] sm:$0xff]
        %v1611 = vld [vmem:[%s540 + $0x1b80] sm:$0xff]
        %v1612 = vld [vmem:[%s540 + $0x1b88] sm:$0xff]
        %v1613 = vld [vmem:[%s540 + $0x1b90] sm:$0xff]
        %v1614 = vld [vmem:[%s540 + $0x1b98] sm:$0xff]
        %v1615 = vld [vmem:[%s540 + $0x1ba0] sm:$0xff]
        %v1616 = vld [vmem:[%s540 + $0x1ba8] sm:$0xff]
        %v1617 = vld [vmem:[%s540 + $0x1bb0] sm:$0xff]
        %v1618 = vld [vmem:[%s540 + $0x1bb8] sm:$0xff]
        %v1619 = vld [vmem:[%s540 + $0x1bc0] sm:$0xff]
        %v1620 = vld [vmem:[%s540 + $0x1bc8] sm:$0xff]
        %v1621 = vld [vmem:[%s540 + $0x1bd0] sm:$0xff]
        %v1622 = vld [vmem:[%s540 + $0x1bd8] sm:$0xff]
        %v1623 = vld [vmem:[%s540 + $0x1be0] sm:$0xff]
        %v1624 = vld [vmem:[%s540 + $0x1be8] sm:$0xff]
        %v1625 = vld [vmem:[%s540 + $0x1bf0] sm:$0xff]
        %v1626 = vld [vmem:[%s540 + $0x1bf8] sm:$0xff]
        %v1627 = vld [vmem:[%s540 + $0x1c00] sm:$0xff]
        %v1628 = vld [vmem:[%s540 + $0x1c08] sm:$0xff]
        %v1629 = vld [vmem:[%s540 + $0x1c10] sm:$0xff]
        %v1630 = vld [vmem:[%s540 + $0x1c18] sm:$0xff]
        %v1631 = vld [vmem:[%s540 + $0x1c20] sm:$0xff]
        %v1632 = vld [vmem:[%s540 + $0x1c28] sm:$0xff]
        %v1633 = vld [vmem:[%s540 + $0x1c30] sm:$0xff]
        %v1634 = vld [vmem:[%s540 + $0x1c38] sm:$0xff]
        %v1635 = vld [vmem:[%s540 + $0x1c40] sm:$0xff]
        %v1636 = vld [vmem:[%s540 + $0x1c48] sm:$0xff]
        %v1637 = vld [vmem:[%s540 + $0x1c50] sm:$0xff]
        %v1638 = vld [vmem:[%s540 + $0x1c58] sm:$0xff]
        %v1639 = vld [vmem:[%s540 + $0x1c60] sm:$0xff]
        %v1640 = vld [vmem:[%s540 + $0x1c68] sm:$0xff]
        %v1641 = vld [vmem:[%s540 + $0x1c70] sm:$0xff]
        %v1642 = vld [vmem:[%s540 + $0x1c78] sm:$0xff]
        %v1643 = vld [vmem:[%s540 + $0x1c80] sm:$0xff]
        %v1644 = vld [vmem:[%s540 + $0x1c88] sm:$0xff]
        %v1645 = vld [vmem:[%s540 + $0x1c90] sm:$0xff]
        %v1646 = vld [vmem:[%s540 + $0x1c98] sm:$0xff]
        %v1647 = vld [vmem:[%s540 + $0x1ca0] sm:$0xff]
        %v1648 = vld [vmem:[%s540 + $0x1ca8] sm:$0xff]
        %v1649 = vld [vmem:[%s540 + $0x1cb0] sm:$0xff]
        %v1650 = vld [vmem:[%s540 + $0x1cb8] sm:$0xff]
        %v1651 = vld [vmem:[%s540 + $0x1cc0] sm:$0xff]
        %v1652 = vld [vmem:[%s540 + $0x1cc8] sm:$0xff]
        %v1653 = vld [vmem:[%s540 + $0x1cd0] sm:$0xff]
        %v1654 = vld [vmem:[%s540 + $0x1cd8] sm:$0xff]
        %v1655 = vld [vmem:[%s540 + $0x1ce0] sm:$0xff]
        %v1656 = vld [vmem:[%s540 + $0x1ce8] sm:$0xff]
        %v1657 = vld [vmem:[%s540 + $0x1cf0] sm:$0xff]
        %v1658 = vld [vmem:[%s540 + $0x1cf8] sm:$0xff]
        %v1659 = vld [vmem:[%s540 + $0x1d00] sm:$0xff]
        %v1660 = vld [vmem:[%s540 + $0x1d08] sm:$0xff]
        %v1661 = vld [vmem:[%s540 + $0x1d10] sm:$0xff]
        %v1662 = vld [vmem:[%s540 + $0x1d18] sm:$0xff]
        %v1663 = vld [vmem:[%s540 + $0x1d20] sm:$0xff]
        %v1664 = vld [vmem:[%s540 + $0x1d28] sm:$0xff]
        %v1665 = vld [vmem:[%s540 + $0x1d30] sm:$0xff]
        %v1666 = vld [vmem:[%s540 + $0x1d38] sm:$0xff]
        %v1667 = vld [vmem:[%s540 + $0x1d40] sm:$0xff]
        %v1668 = vld [vmem:[%s540 + $0x1d48] sm:$0xff]
        %v1669 = vld [vmem:[%s540 + $0x1d50] sm:$0xff]
        %v1670 = vld [vmem:[%s540 + $0x1d58] sm:$0xff]
        %v1671 = vld [vmem:[%s540 + $0x1d60] sm:$0xff]
        %v1672 = vld [vmem:[%s540 + $0x1d68] sm:$0xff]
        %v1673 = vld [vmem:[%s540 + $0x1d70] sm:$0xff]
        %v1674 = vld [vmem:[%s540 + $0x1d78] sm:$0xff]
        %v1675 = vld [vmem:[%s540 + $0x1d80] sm:$0xff]
        %v1676 = vld [vmem:[%s540 + $0x1d88] sm:$0xff]
        %v1677 = vld [vmem:[%s540 + $0x1d90] sm:$0xff]
        %v1678 = vld [vmem:[%s540 + $0x1d98] sm:$0xff]
        %v1679 = vld [vmem:[%s540 + $0x1da0] sm:$0xff]
        %v1680 = vld [vmem:[%s540 + $0x1da8] sm:$0xff]
        %v1681 = vld [vmem:[%s540 + $0x1db0] sm:$0xff]
        %v1682 = vld [vmem:[%s540 + $0x1db8] sm:$0xff]
        %v1683 = vld [vmem:[%s540 + $0x1dc0] sm:$0xff]
        %v1684 = vld [vmem:[%s540 + $0x1dc8] sm:$0xff]
        %v1685 = vld [vmem:[%s540 + $0x1dd0] sm:$0xff]
        %v1686 = vld [vmem:[%s540 + $0x1dd8] sm:$0xff]
        %v1687 = vld [vmem:[%s540 + $0x1de0] sm:$0xff]
        %v1688 = vld [vmem:[%s540 + $0x1de8] sm:$0xff]
        %v1689 = vld [vmem:[%s540 + $0x1df0] sm:$0xff]
        %v1690 = vld [vmem:[%s540 + $0x1df8] sm:$0xff]
        %v1691 = vld [vmem:[%s540 + $0x1e00] sm:$0xff]
        %v1692 = vld [vmem:[%s540 + $0x1e08] sm:$0xff]
        %v1693 = vld [vmem:[%s540 + $0x1e10] sm:$0xff]
        %v1694 = vld [vmem:[%s540 + $0x1e18] sm:$0xff]
        %v1695 = vld [vmem:[%s540 + $0x1e20] sm:$0xff]
        %v1696 = vld [vmem:[%s540 + $0x1e28] sm:$0xff]
        %v1697 = vld [vmem:[%s540 + $0x1e30] sm:$0xff]
        %v1698 = vld [vmem:[%s540 + $0x1e38] sm:$0xff]
        %v1699 = vld [vmem:[%s540 + $0x1e40] sm:$0xff]
        %v1700 = vld [vmem:[%s540 + $0x1e48] sm:$0xff]
        %v1701 = vld [vmem:[%s540 + $0x1e50] sm:$0xff]
        %v1702 = vld [vmem:[%s540 + $0x1e58] sm:$0xff]
        %v1703 = vld [vmem:[%s540 + $0x1e60] sm:$0xff]
        %v1704 = vld [vmem:[%s540 + $0x1e68] sm:$0xff]
        %v1705 = vld [vmem:[%s540 + $0x1e70] sm:$0xff]
        %v1706 = vld [vmem:[%s540 + $0x1e78] sm:$0xff]
        %v1707 = vld [vmem:[%s540 + $0x1e80] sm:$0xff]
        %v1708 = vld [vmem:[%s540 + $0x1e88] sm:$0xff]
        %v1709 = vld [vmem:[%s540 + $0x1e90] sm:$0xff]
        %v1710 = vld [vmem:[%s540 + $0x1e98] sm:$0xff]
        %v1711 = vld [vmem:[%s540 + $0x1ea0] sm:$0xff]
        %v1712 = vld [vmem:[%s540 + $0x1ea8] sm:$0xff]
        %v1713 = vld [vmem:[%s540 + $0x1eb0] sm:$0xff]
        %v1714 = vld [vmem:[%s540 + $0x1eb8] sm:$0xff]
        %v1715 = vld [vmem:[%s540 + $0x1ec0] sm:$0xff]
        %v1716 = vld [vmem:[%s540 + $0x1ec8] sm:$0xff]
        %v1717 = vld [vmem:[%s540 + $0x1ed0] sm:$0xff]
        %v1718 = vld [vmem:[%s540 + $0x1ed8] sm:$0xff]
        %v1719 = vld [vmem:[%s540 + $0x1ee0] sm:$0xff]
        %v1720 = vld [vmem:[%s540 + $0x1ee8] sm:$0xff]
        %v1721 = vld [vmem:[%s540 + $0x1ef0] sm:$0xff]
        %v1722 = vld [vmem:[%s540 + $0x1ef8] sm:$0xff]
        %v1723 = vld [vmem:[%s540 + $0x1f00] sm:$0xff]
        %v1724 = vld [vmem:[%s540 + $0x1f08] sm:$0xff]
        %v1725 = vld [vmem:[%s540 + $0x1f10] sm:$0xff]
        %v1726 = vld [vmem:[%s540 + $0x1f18] sm:$0xff]
        %v1727 = vld [vmem:[%s540 + $0x1f20] sm:$0xff]
        %v1728 = vld [vmem:[%s540 + $0x1f28] sm:$0xff]
        %v1729 = vld [vmem:[%s540 + $0x1f30] sm:$0xff]
        %v1730 = vld [vmem:[%s540 + $0x1f38] sm:$0xff]
        %v1731 = vld [vmem:[%s540 + $0x1f40] sm:$0xff]
        %v1732 = vld [vmem:[%s540 + $0x1f48] sm:$0xff]
        %v1733 = vld [vmem:[%s540 + $0x1f50] sm:$0xff]
        %v1734 = vld [vmem:[%s540 + $0x1f58] sm:$0xff]
        %v1735 = vld [vmem:[%s540 + $0x1f60] sm:$0xff]
        %v1736 = vld [vmem:[%s540 + $0x1f68] sm:$0xff]
        %v1737 = vld [vmem:[%s540 + $0x1f70] sm:$0xff]
        %v1738 = vld [vmem:[%s540 + $0x1f78] sm:$0xff]
        %v1739 = vld [vmem:[%s540 + $0x1f80] sm:$0xff]
        %v1740 = vld [vmem:[%s540 + $0x1f88] sm:$0xff]
        %v1741 = vld [vmem:[%s540 + $0x1f90] sm:$0xff]
        %v1742 = vld [vmem:[%s540 + $0x1f98] sm:$0xff]
        %v1743 = vld [vmem:[%s540 + $0x1fa0] sm:$0xff]
        %v1744 = vld [vmem:[%s540 + $0x1fa8] sm:$0xff]
        %v1745 = vld [vmem:[%s540 + $0x1fb0] sm:$0xff]
        %v1746 = vld [vmem:[%s540 + $0x1fb8] sm:$0xff]
        %v1747 = vld [vmem:[%s540 + $0x1fc0] sm:$0xff]
        %v1748 = vld [vmem:[%s540 + $0x1fc8] sm:$0xff]
        %v1749 = vld [vmem:[%s540 + $0x1fd0] sm:$0xff]
        %v1750 = vld [vmem:[%s540 + $0x1fd8] sm:$0xff]
        %v1751 = vld [vmem:[%s540 + $0x1fe0] sm:$0xff]
        %v1752 = vld [vmem:[%s540 + $0x1fe8] sm:$0xff]
        %v1753 = vld [vmem:[%s540 + $0x1ff0] sm:$0xff]
        %v1754 = vld [vmem:[%s540 + $0x1ff8] sm:$0xff]
        %v1755 = vld [vmem:[%s540 + $0x2000] sm:$0xff]
        %v1756 = vld [vmem:[%s540 + $0x2008] sm:$0xff]
        %v1757 = vld [vmem:[%s540 + $0x2010] sm:$0xff]
        %v1758 = vld [vmem:[%s540 + $0x2018] sm:$0xff]
        %v1759 = vld [vmem:[%s540 + $0x2020] sm:$0xff]
        %v1760 = vld [vmem:[%s540 + $0x2028] sm:$0xff]
        %v1761 = vld [vmem:[%s540 + $0x2030] sm:$0xff]
        %v1762 = vld [vmem:[%s540 + $0x2038] sm:$0xff]
        %v1763 = vld [vmem:[%s540 + $0x2040] sm:$0xff]
        %v1764 = vld [vmem:[%s540 + $0x2048] sm:$0xff]
        %v1765 = vld [vmem:[%s540 + $0x2050] sm:$0xff]
        %v1766 = vld [vmem:[%s540 + $0x2058] sm:$0xff]
        %v1767 = vld [vmem:[%s540 + $0x2060] sm:$0xff]
        %v1768 = vld [vmem:[%s540 + $0x2068] sm:$0xff]
        %v1769 = vld [vmem:[%s540 + $0x2070] sm:$0xff]
        %v1770 = vld [vmem:[%s540 + $0x2078] sm:$0xff]
        %v1771 = vld [vmem:[%s540 + $0x2080] sm:$0xff]
        %v1772 = vld [vmem:[%s540 + $0x2088] sm:$0xff]
        %v1773 = vld [vmem:[%s540 + $0x2090] sm:$0xff]
        %v1774 = vld [vmem:[%s540 + $0x2098] sm:$0xff]
        %v1775 = vld [vmem:[%s540 + $0x20a0] sm:$0xff]
        %v1776 = vld [vmem:[%s540 + $0x20a8] sm:$0xff]
        %v1777 = vld [vmem:[%s540 + $0x20b0] sm:$0xff]
        %v1778 = vld [vmem:[%s540 + $0x20b8] sm:$0xff]
        %v1779 = vld [vmem:[%s540 + $0x20c0] sm:$0xff]
        %v1780 = vld [vmem:[%s540 + $0x20c8] sm:$0xff]
        %v1781 = vld [vmem:[%s540 + $0x20d0] sm:$0xff]
        %v1782 = vld [vmem:[%s540 + $0x20d8] sm:$0xff]
        %v1783 = vld [vmem:[%s540 + $0x20e0] sm:$0xff]
        %v1784 = vld [vmem:[%s540 + $0x20e8] sm:$0xff]
        %v1785 = vld [vmem:[%s540 + $0x20f0] sm:$0xff]
        %v1786 = vld [vmem:[%s540 + $0x20f8] sm:$0xff]
        %v1787 = vld [vmem:[%s540 + $0x2100] sm:$0xff]
        %v1788 = vld [vmem:[%s540 + $0x2108] sm:$0xff]
        %v1789 = vld [vmem:[%s540 + $0x2110] sm:$0xff]
        %v1790 = vld [vmem:[%s540 + $0x2118] sm:$0xff]
        %v1791 = vld [vmem:[%s540 + $0x2120] sm:$0xff]
        %v1792 = vld [vmem:[%s540 + $0x2128] sm:$0xff]
        %v1793 = vld [vmem:[%s540 + $0x2130] sm:$0xff]
        %v1794 = vld [vmem:[%s540 + $0x2138] sm:$0xff]
        %v1795 = vld [vmem:[%s540 + $0x2140] sm:$0xff]
        %v1796 = vld [vmem:[%s540 + $0x2148] sm:$0xff]
        %v1797 = vld [vmem:[%s540 + $0x2150] sm:$0xff]
        %v1798 = vld [vmem:[%s540 + $0x2158] sm:$0xff]
        %v1799 = vld [vmem:[%s540 + $0x2160] sm:$0xff]
        %v1800 = vld [vmem:[%s540 + $0x2168] sm:$0xff]
        %v1801 = vld [vmem:[%s540 + $0x2170] sm:$0xff]
        %v1802 = vld [vmem:[%s540 + $0x2178] sm:$0xff]
        %v1803 = vld [vmem:[%s540 + $0x2180] sm:$0xff]
        %v1804 = vld [vmem:[%s540 + $0x2188] sm:$0xff]
        %v1805 = vld [vmem:[%s540 + $0x2190] sm:$0xff]
        %v1806 = vld [vmem:[%s540 + $0x2198] sm:$0xff]
        %v1807 = vld [vmem:[%s540 + $0x21a0] sm:$0xff]
        %v1808 = vld [vmem:[%s540 + $0x21a8] sm:$0xff]
        %v1809 = vld [vmem:[%s540 + $0x21b0] sm:$0xff]
        %v1810 = vld [vmem:[%s540 + $0x21b8] sm:$0xff]
        %v1811 = vld [vmem:[%s540 + $0x21c0] sm:$0xff]
        %v1812 = vld [vmem:[%s540 + $0x21c8] sm:$0xff]
        %v1813 = vld [vmem:[%s540 + $0x21d0] sm:$0xff]
        %v1814 = vld [vmem:[%s540 + $0x21d8] sm:$0xff]
        %v1815 = vld [vmem:[%s540 + $0x21e0] sm:$0xff]
        %v1816 = vld [vmem:[%s540 + $0x21e8] sm:$0xff]
        %v1817 = vld [vmem:[%s540 + $0x21f0] sm:$0xff]
        %v1818 = vld [vmem:[%s540 + $0x21f8] sm:$0xff]
        %v1819 = vld [vmem:[%s540 + $0x2200] sm:$0xff]
        %v1820 = vld [vmem:[%s540 + $0x2208] sm:$0xff]
        %v1821 = vld [vmem:[%s540 + $0x2210] sm:$0xff]
        %v1822 = vld [vmem:[%s540 + $0x2218] sm:$0xff]
        %v1823 = vld [vmem:[%s540 + $0x2220] sm:$0xff]
        %v1824 = vld [vmem:[%s540 + $0x2228] sm:$0xff]
        %v1825 = vld [vmem:[%s540 + $0x2230] sm:$0xff]
        %v1826 = vld [vmem:[%s540 + $0x2238] sm:$0xff]
        %v1827 = vld [vmem:[%s540 + $0x2240] sm:$0xff]
        %v1828 = vld [vmem:[%s540 + $0x2248] sm:$0xff]
        %v1829 = vld [vmem:[%s540 + $0x2250] sm:$0xff]
        %v1830 = vld [vmem:[%s540 + $0x2258] sm:$0xff]
        %v1831 = vld [vmem:[%s540 + $0x2260] sm:$0xff]
        %v1832 = vld [vmem:[%s540 + $0x2268] sm:$0xff]
        %v1833 = vld [vmem:[%s540 + $0x2270] sm:$0xff]
        %v1834 = vld [vmem:[%s540 + $0x2278] sm:$0xff]
        %v1835 = vld [vmem:[%s540 + $0x2280] sm:$0xff]
        %v1836 = vld [vmem:[%s540 + $0x2288] sm:$0xff]
        %v1837 = vld [vmem:[%s540 + $0x2290] sm:$0xff]
        %v1838 = vld [vmem:[%s540 + $0x2298] sm:$0xff]
        %v1839 = vld [vmem:[%s540 + $0x22a0] sm:$0xff]
        %v1840 = vld [vmem:[%s540 + $0x22a8] sm:$0xff]
        %v1841 = vld [vmem:[%s540 + $0x22b0] sm:$0xff]
        %v1842 = vld [vmem:[%s540 + $0x22b8] sm:$0xff]
        %v1843 = vld [vmem:[%s540 + $0x22c0] sm:$0xff]
        %v1844 = vld [vmem:[%s540 + $0x22c8] sm:$0xff]
        %v1845 = vld [vmem:[%s540 + $0x22d0] sm:$0xff]
        %v1846 = vld [vmem:[%s540 + $0x22d8] sm:$0xff]
        %v1847 = vld [vmem:[%s540 + $0x22e0] sm:$0xff]
        %v1848 = vld [vmem:[%s540 + $0x22e8] sm:$0xff]
        %v1849 = vld [vmem:[%s540 + $0x22f0] sm:$0xff]
        %v1850 = vld [vmem:[%s540 + $0x22f8] sm:$0xff]
        %v1851 = vld [vmem:[%s540 + $0x2300] sm:$0xff]
        %v1852 = vld [vmem:[%s540 + $0x2308] sm:$0xff]
        %v1853 = vld [vmem:[%s540 + $0x2310] sm:$0xff]
        %v1854 = vld [vmem:[%s540 + $0x2318] sm:$0xff]
        %v1855 = vld [vmem:[%s540 + $0x2320] sm:$0xff]
        %v1856 = vld [vmem:[%s540 + $0x2328] sm:$0xff]
        %v1857 = vld [vmem:[%s540 + $0x2330] sm:$0xff]
        %v1858 = vld [vmem:[%s540 + $0x2338] sm:$0xff]
        %v1859 = vld [vmem:[%s540 + $0x2340] sm:$0xff]
        %v1860 = vld [vmem:[%s540 + $0x2348] sm:$0xff]
        %v1861 = vld [vmem:[%s540 + $0x2350] sm:$0xff]
        %v1862 = vld [vmem:[%s540 + $0x2358] sm:$0xff]
        %v1863 = vld [vmem:[%s540 + $0x2360] sm:$0xff]
        %v1864 = vld [vmem:[%s540 + $0x2368] sm:$0xff]
        %v1865 = vld [vmem:[%s540 + $0x2370] sm:$0xff]
        %v1866 = vld [vmem:[%s540 + $0x2378] sm:$0xff]
        %v1867 = vld [vmem:[%s540 + $0x2380] sm:$0xff]
        %v1868 = vld [vmem:[%s540 + $0x2388] sm:$0xff]
        %v1869 = vld [vmem:[%s540 + $0x2390] sm:$0xff]
        %v1870 = vld [vmem:[%s540 + $0x2398] sm:$0xff]
        %v1871 = vld [vmem:[%s540 + $0x23a0] sm:$0xff]
        %v1872 = vld [vmem:[%s540 + $0x23a8] sm:$0xff]
        %v1873 = vld [vmem:[%s540 + $0x23b0] sm:$0xff]
        %v1874 = vld [vmem:[%s540 + $0x23b8] sm:$0xff]
        %v1875 = vld [vmem:[%s540 + $0x23c0] sm:$0xff]
        %v1876 = vld [vmem:[%s540 + $0x23c8] sm:$0xff]
        %v1877 = vld [vmem:[%s540 + $0x23d0] sm:$0xff]
        %v1878 = vld [vmem:[%s540 + $0x23d8] sm:$0xff]
        %v1879 = vld [vmem:[%s540 + $0x23e0] sm:$0xff]
        %v1880 = vld [vmem:[%s540 + $0x23e8] sm:$0xff]
        %v1881 = vld [vmem:[%s540 + $0x23f0] sm:$0xff]
        %v1882 = vld [vmem:[%s540 + $0x23f8] sm:$0xff]
        %v1883 = vld [vmem:[%s540 + $0x2400] sm:$0xff]
        %v1884 = vld [vmem:[%s540 + $0x2408] sm:$0xff]
        %v1885 = vld [vmem:[%s540 + $0x2410] sm:$0xff]
        %v1886 = vld [vmem:[%s540 + $0x2418] sm:$0xff]
        %v1887 = vld [vmem:[%s540 + $0x2420] sm:$0xff]
        %v1888 = vld [vmem:[%s540 + $0x2428] sm:$0xff]
        %v1889 = vld [vmem:[%s540 + $0x2430] sm:$0xff]
        %v1890 = vld [vmem:[%s540 + $0x2438] sm:$0xff]
        %v1891 = vld [vmem:[%s540 + $0x2440] sm:$0xff]
        %v1892 = vld [vmem:[%s540 + $0x2448] sm:$0xff]
        %v1893 = vld [vmem:[%s540 + $0x2450] sm:$0xff]
        %v1894 = vld [vmem:[%s540 + $0x2458] sm:$0xff]
        %v1895 = vld [vmem:[%s540 + $0x2460] sm:$0xff]
        %v1896 = vld [vmem:[%s540 + $0x2468] sm:$0xff]
        %v1897 = vld [vmem:[%s540 + $0x2470] sm:$0xff]
        %v1898 = vld [vmem:[%s540 + $0x2478] sm:$0xff]
        %v1899 = vld [vmem:[%s540 + $0x2480] sm:$0xff]
        %v1900 = vld [vmem:[%s540 + $0x2488] sm:$0xff]
        %v1901 = vld [vmem:[%s540 + $0x2490] sm:$0xff]
        %v1902 = vld [vmem:[%s540 + $0x2498] sm:$0xff]
        %v1903 = vld [vmem:[%s540 + $0x24a0] sm:$0xff]
        %v1904 = vld [vmem:[%s540 + $0x24a8] sm:$0xff]
        %v1905 = vld [vmem:[%s540 + $0x24b0] sm:$0xff]
        %v1906 = vld [vmem:[%s540 + $0x24b8] sm:$0xff]
        %v1907 = vld [vmem:[%s540 + $0x24c0] sm:$0xff]
        %v1908 = vld [vmem:[%s540 + $0x24c8] sm:$0xff]
        %v1909 = vld [vmem:[%s540 + $0x24d0] sm:$0xff]
        %v1910 = vld [vmem:[%s540 + $0x24d8] sm:$0xff]
        %v1911 = vld [vmem:[%s540 + $0x24e0] sm:$0xff]
        %v1912 = vld [vmem:[%s540 + $0x24e8] sm:$0xff]
        %v1913 = vld [vmem:[%s540 + $0x24f0] sm:$0xff]
        %v1914 = vld [vmem:[%s540 + $0x24f8] sm:$0xff]
        %v1915 = vld [vmem:[%s540 + $0x2500] sm:$0xff]
        %v1916 = vld [vmem:[%s540 + $0x2508] sm:$0xff]
        %v1917 = vld [vmem:[%s540 + $0x2510] sm:$0xff]
        %v1918 = vld [vmem:[%s540 + $0x2518] sm:$0xff]
        %v1919 = vld [vmem:[%s540 + $0x2520] sm:$0xff]
        %v1920 = vld [vmem:[%s540 + $0x2528] sm:$0xff]
        %v1921 = vld [vmem:[%s540 + $0x2530] sm:$0xff]
        %v1922 = vld [vmem:[%s540 + $0x2538] sm:$0xff]
        %v1923 = vld [vmem:[%s540 + $0x2540] sm:$0xff]
        %v1924 = vld [vmem:[%s540 + $0x2548] sm:$0xff]
        %v1925 = vld [vmem:[%s540 + $0x2550] sm:$0xff]
        %v1926 = vld [vmem:[%s540 + $0x2558] sm:$0xff]
        %v1927 = vld [vmem:[%s540 + $0x2560] sm:$0xff]
        %v1928 = vld [vmem:[%s540 + $0x2568] sm:$0xff]
        %v1929 = vld [vmem:[%s540 + $0x2570] sm:$0xff]
        %v1930 = vld [vmem:[%s540 + $0x2578] sm:$0xff]
        %v1931 = vld [vmem:[%s540 + $0x2580] sm:$0xff]
        %v1932 = vld [vmem:[%s540 + $0x2588] sm:$0xff]
        %v1933 = vld [vmem:[%s540 + $0x2590] sm:$0xff]
        %v1934 = vld [vmem:[%s540 + $0x2598] sm:$0xff]
        %v1935 = vld [vmem:[%s540 + $0x25a0] sm:$0xff]
        %v1936 = vld [vmem:[%s540 + $0x25a8] sm:$0xff]
        %v1937 = vld [vmem:[%s540 + $0x25b0] sm:$0xff]
        %v1938 = vld [vmem:[%s540 + $0x25b8] sm:$0xff]
        %v1939 = vld [vmem:[%s540 + $0x25c0] sm:$0xff]
        %v1940 = vld [vmem:[%s540 + $0x25c8] sm:$0xff]
        %v1941 = vld [vmem:[%s540 + $0x25d0] sm:$0xff]
        %v1942 = vld [vmem:[%s540 + $0x25d8] sm:$0xff]
        %v1943 = vld [vmem:[%s540 + $0x25e0] sm:$0xff]
        %v1944 = vld [vmem:[%s540 + $0x25e8] sm:$0xff]
        %v1945 = vld [vmem:[%s540 + $0x25f0] sm:$0xff]
        %v1946 = vld [vmem:[%s540 + $0x25f8] sm:$0xff]
        %v1947 = vld [vmem:[%s540 + $0x2600] sm:$0xff]
        %v1948 = vld [vmem:[%s540 + $0x2608] sm:$0xff]
        %v1949 = vld [vmem:[%s540 + $0x2610] sm:$0xff]
        %v1950 = vld [vmem:[%s540 + $0x2618] sm:$0xff]
        %v1951 = vld [vmem:[%s540 + $0x2620] sm:$0xff]
        %v1952 = vld [vmem:[%s540 + $0x2628] sm:$0xff]
        %v1953 = vld [vmem:[%s540 + $0x2630] sm:$0xff]
        %v1954 = vld [vmem:[%s540 + $0x2638] sm:$0xff]
        %v1955 = vld [vmem:[%s540 + $0x2640] sm:$0xff]
        %v1956 = vld [vmem:[%s540 + $0x2648] sm:$0xff]
        %v1957 = vld [vmem:[%s540 + $0x2650] sm:$0xff]
        %v1958 = vld [vmem:[%s540 + $0x2658] sm:$0xff]
        %v1959 = vld [vmem:[%s540 + $0x2660] sm:$0xff]
        %v1960 = vld [vmem:[%s540 + $0x2668] sm:$0xff]
        %v1961 = vld [vmem:[%s540 + $0x2670] sm:$0xff]
        %v1962 = vld [vmem:[%s540 + $0x2678] sm:$0xff]
        %v1963 = vld [vmem:[%s540 + $0x2680] sm:$0xff]
        %v1964 = vld [vmem:[%s540 + $0x2688] sm:$0xff]
        %v1965 = vld [vmem:[%s540 + $0x2690] sm:$0xff]
        %v1966 = vld [vmem:[%s540 + $0x2698] sm:$0xff]
        %v1967 = vld [vmem:[%s540 + $0x26a0] sm:$0xff]
        %v1968 = vld [vmem:[%s540 + $0x26a8] sm:$0xff]
        %v1969 = vld [vmem:[%s540 + $0x26b0] sm:$0xff]
        %v1970 = vld [vmem:[%s540 + $0x26b8] sm:$0xff]
        %v1971 = vld [vmem:[%s540 + $0x26c0] sm:$0xff]
        %v1972 = vld [vmem:[%s540 + $0x26c8] sm:$0xff]
        %v1973 = vld [vmem:[%s540 + $0x26d0] sm:$0xff]
        %v1974 = vld [vmem:[%s540 + $0x26d8] sm:$0xff]
        %v1975 = vld [vmem:[%s540 + $0x26e0] sm:$0xff]
        %v1976 = vld [vmem:[%s540 + $0x26e8] sm:$0xff]
        %v1977 = vld [vmem:[%s540 + $0x26f0] sm:$0xff]
        %v1978 = vld [vmem:[%s540 + $0x26f8] sm:$0xff]
        %v1979 = vld [vmem:[%s540 + $0x2700] sm:$0xff]
        %v1980 = vld [vmem:[%s540 + $0x2708] sm:$0xff]
        %v1981 = vld [vmem:[%s540 + $0x2710] sm:$0xff]
        %v1982 = vld [vmem:[%s540 + $0x2718] sm:$0xff]
        %v1983 = vld [vmem:[%s540 + $0x2720] sm:$0xff]
        %v1984 = vld [vmem:[%s540 + $0x2728] sm:$0xff]
        %v1985 = vld [vmem:[%s540 + $0x2730] sm:$0xff]
        %v1986 = vld [vmem:[%s540 + $0x2738] sm:$0xff]
        %v1987 = vld [vmem:[%s540 + $0x2740] sm:$0xff]
        %v1988 = vld [vmem:[%s540 + $0x2748] sm:$0xff]
        %v1989 = vld [vmem:[%s540 + $0x2750] sm:$0xff]
        %v1990 = vld [vmem:[%s540 + $0x2758] sm:$0xff]
        %v1991 = vld [vmem:[%s540 + $0x2760] sm:$0xff]
        %v1992 = vld [vmem:[%s540 + $0x2768] sm:$0xff]
        %v1993 = vld [vmem:[%s540 + $0x2770] sm:$0xff]
        %v1994 = vld [vmem:[%s540 + $0x2778] sm:$0xff]
        %v1995 = vld [vmem:[%s540 + $0x2780] sm:$0xff]
        %v1996 = vld [vmem:[%s540 + $0x2788] sm:$0xff]
        %v1997 = vld [vmem:[%s540 + $0x2790] sm:$0xff]
        %v1998 = vld [vmem:[%s540 + $0x2798] sm:$0xff]
        %v1999 = vld [vmem:[%s540 + $0x27a0] sm:$0xff]
        %v2000 = vld [vmem:[%s540 + $0x27a8] sm:$0xff]
        %v2001 = vld [vmem:[%s540 + $0x27b0] sm:$0xff]
        %v2002 = vld [vmem:[%s540 + $0x27b8] sm:$0xff]
        %v2003 = vld [vmem:[%s540 + $0x27c0] sm:$0xff]
        %v2004 = vld [vmem:[%s540 + $0x27c8] sm:$0xff]
        %v2005 = vld [vmem:[%s540 + $0x27d0] sm:$0xff]
        %v2006 = vld [vmem:[%s540 + $0x27d8] sm:$0xff]
        %v2007 = vld [vmem:[%s540 + $0x27e0] sm:$0xff]
        %v2008 = vld [vmem:[%s540 + $0x27e8] sm:$0xff]
        %v2009 = vld [vmem:[%s540 + $0x27f0] sm:$0xff]
        %v2010 = vld [vmem:[%s540 + $0x27f8] sm:$0xff]
        %v2011 = vld [vmem:[%s549] sm:$0xff]
        %v2013 = vlaneseq
        %v2014 = vshrl.u32 %v2013, 7
        %v2015 = vsub.s32 0, %v2014
        %v2016 = vrot.slane %v2011, %v2015
        %v2017 = vlaneseq
        %v2018 = vshrl.u32 %v2017, 7
        %v2019 = vsub.s32 1, %v2018
        %v2020 = vrot.slane %v2011, %v2019
        %v2021 = vlaneseq
        %v2022 = vshrl.u32 %v2021, 7
        %v2023 = vsub.s32 2, %v2022
        %v2024 = vrot.slane %v2011, %v2023
        %v2025 = vlaneseq
        %v2026 = vshrl.u32 %v2025, 7
        %v2027 = vsub.s32 3, %v2026
        %v2028 = vrot.slane %v2011, %v2027
        %v2029 = vlaneseq
        %v2030 = vshrl.u32 %v2029, 7
        %v2031 = vsub.s32 4, %v2030
        %v2032 = vrot.slane %v2011, %v2031
        %v2033 = vlaneseq
        %v2034 = vshrl.u32 %v2033, 7
        %v2035 = vsub.s32 5, %v2034
        %v2036 = vrot.slane %v2011, %v2035
        %v2037 = vlaneseq
        %v2038 = vshrl.u32 %v2037, 7
        %v2039 = vsub.s32 6, %v2038
        %v2040 = vrot.slane %v2011, %v2039
        %v2041 = vlaneseq
        %v2042 = vshrl.u32 %v2041, 7
        %v2043 = vsub.s32 7, %v2042
        %v2044 = vrot.slane %v2011, %v2043
        %v3333 = vunpack.c.l.b16 %v731
        %v3334 = vunpack.c.h.b16 %v731
        %v3335 = vunpack.c.l.b16 %v732
        %v3336 = vunpack.c.h.b16 %v732
        %v3337 = vunpack.c.l.b16 %v733
        %v3338 = vunpack.c.h.b16 %v733
        %v3339 = vunpack.c.l.b16 %v734
        %v3340 = vunpack.c.h.b16 %v734
        %v3341 = vunpack.c.l.b16 %v735
        %v3342 = vunpack.c.h.b16 %v735
        %v3343 = vunpack.c.l.b16 %v736
        %v3344 = vunpack.c.h.b16 %v736
        %v3345 = vunpack.c.l.b16 %v737
        %v3346 = vunpack.c.h.b16 %v737
        %v3347 = vunpack.c.l.b16 %v738
        %v3348 = vunpack.c.h.b16 %v738
        %v3349 = vunpack.c.l.b16 %v739
        %v3350 = vunpack.c.h.b16 %v739
        %v3351 = vunpack.c.l.b16 %v740
        %v3352 = vunpack.c.h.b16 %v740
        %v3353 = vunpack.c.l.b16 %v741
        %v3354 = vunpack.c.h.b16 %v741
        %v3355 = vunpack.c.l.b16 %v742
        %v3356 = vunpack.c.h.b16 %v742
        %v3357 = vunpack.c.l.b16 %v743
        %v3358 = vunpack.c.h.b16 %v743
        %v3359 = vunpack.c.l.b16 %v744
        %v3360 = vunpack.c.h.b16 %v744
        %v3361 = vunpack.c.l.b16 %v745
        %v3362 = vunpack.c.h.b16 %v745
        %v3363 = vunpack.c.l.b16 %v746
        %v3364 = vunpack.c.h.b16 %v746
        %v3365 = vunpack.c.l.b16 %v747
        %v3366 = vunpack.c.h.b16 %v747
        %v3367 = vunpack.c.l.b16 %v748
        %v3368 = vunpack.c.h.b16 %v748
        %v3369 = vunpack.c.l.b16 %v749
        %v3370 = vunpack.c.h.b16 %v749
        %v3371 = vunpack.c.l.b16 %v750
        %v3372 = vunpack.c.h.b16 %v750
        %v3373 = vunpack.c.l.b16 %v751
        %v3374 = vunpack.c.h.b16 %v751
        %v3375 = vunpack.c.l.b16 %v752
        %v3376 = vunpack.c.h.b16 %v752
        %v3377 = vunpack.c.l.b16 %v753
        %v3378 = vunpack.c.h.b16 %v753
        %v3379 = vunpack.c.l.b16 %v754
        %v3380 = vunpack.c.h.b16 %v754
        %v3381 = vunpack.c.l.b16 %v755
        %v3382 = vunpack.c.h.b16 %v755
        %v3383 = vunpack.c.l.b16 %v756
        %v3384 = vunpack.c.h.b16 %v756
        %v3385 = vunpack.c.l.b16 %v757
        %v3386 = vunpack.c.h.b16 %v757
        %v3387 = vunpack.c.l.b16 %v758
        %v3388 = vunpack.c.h.b16 %v758
        %v3389 = vunpack.c.l.b16 %v759
        %v3390 = vunpack.c.h.b16 %v759
        %v3391 = vunpack.c.l.b16 %v760
        %v3392 = vunpack.c.h.b16 %v760
        %v3393 = vunpack.c.l.b16 %v761
        %v3394 = vunpack.c.h.b16 %v761
        %v3395 = vunpack.c.l.b16 %v762
        %v3396 = vunpack.c.h.b16 %v762
        %v3397 = vunpack.c.l.b16 %v763
        %v3398 = vunpack.c.h.b16 %v763
        %v3399 = vunpack.c.l.b16 %v764
        %v3400 = vunpack.c.h.b16 %v764
        %v3401 = vunpack.c.l.b16 %v765
        %v3402 = vunpack.c.h.b16 %v765
        %v3403 = vunpack.c.l.b16 %v766
        %v3404 = vunpack.c.h.b16 %v766
        %v3405 = vunpack.c.l.b16 %v767
        %v3406 = vunpack.c.h.b16 %v767
        %v3407 = vunpack.c.l.b16 %v768
        %v3408 = vunpack.c.h.b16 %v768
        %v3409 = vunpack.c.l.b16 %v769
        %v3410 = vunpack.c.h.b16 %v769
        %v3411 = vunpack.c.l.b16 %v770
        %v3412 = vunpack.c.h.b16 %v770
        %v3413 = vunpack.c.l.b16 %v771
        %v3414 = vunpack.c.h.b16 %v771
        %v3415 = vunpack.c.l.b16 %v772
        %v3416 = vunpack.c.h.b16 %v772
        %v3417 = vunpack.c.l.b16 %v773
        %v3418 = vunpack.c.h.b16 %v773
        %v3419 = vunpack.c.l.b16 %v774
        %v3420 = vunpack.c.h.b16 %v774
        %v3421 = vunpack.c.l.b16 %v775
        %v3422 = vunpack.c.h.b16 %v775
        %v3423 = vunpack.c.l.b16 %v776
        %v3424 = vunpack.c.h.b16 %v776
        %v3425 = vunpack.c.l.b16 %v777
        %v3426 = vunpack.c.h.b16 %v777
        %v3427 = vunpack.c.l.b16 %v778
        %v3428 = vunpack.c.h.b16 %v778
        %v3429 = vunpack.c.l.b16 %v779
        %v3430 = vunpack.c.h.b16 %v779
        %v3431 = vunpack.c.l.b16 %v780
        %v3432 = vunpack.c.h.b16 %v780
        %v3433 = vunpack.c.l.b16 %v781
        %v3434 = vunpack.c.h.b16 %v781
        %v3435 = vunpack.c.l.b16 %v782
        %v3436 = vunpack.c.h.b16 %v782
        %v3437 = vunpack.c.l.b16 %v783
        %v3438 = vunpack.c.h.b16 %v783
        %v3439 = vunpack.c.l.b16 %v784
        %v3440 = vunpack.c.h.b16 %v784
        %v3441 = vunpack.c.l.b16 %v785
        %v3442 = vunpack.c.h.b16 %v785
        %v3443 = vunpack.c.l.b16 %v786
        %v3444 = vunpack.c.h.b16 %v786
        %v3445 = vunpack.c.l.b16 %v787
        %v3446 = vunpack.c.h.b16 %v787
        %v3447 = vunpack.c.l.b16 %v788
        %v3448 = vunpack.c.h.b16 %v788
        %v3449 = vunpack.c.l.b16 %v789
        %v3450 = vunpack.c.h.b16 %v789
        %v3451 = vunpack.c.l.b16 %v790
        %v3452 = vunpack.c.h.b16 %v790
        %v3453 = vunpack.c.l.b16 %v791
        %v3454 = vunpack.c.h.b16 %v791
        %v3455 = vunpack.c.l.b16 %v792
        %v3456 = vunpack.c.h.b16 %v792
        %v3457 = vunpack.c.l.b16 %v793
        %v3458 = vunpack.c.h.b16 %v793
        %v3459 = vunpack.c.l.b16 %v794
        %v3460 = vunpack.c.h.b16 %v794
        %v3461 = vunpack.c.l.b16 %v795
        %v3462 = vunpack.c.h.b16 %v795
        %v3463 = vunpack.c.l.b16 %v796
        %v3464 = vunpack.c.h.b16 %v796
        %v3465 = vunpack.c.l.b16 %v797
        %v3466 = vunpack.c.h.b16 %v797
        %v3467 = vunpack.c.l.b16 %v798
        %v3468 = vunpack.c.h.b16 %v798
        %v3469 = vunpack.c.l.b16 %v799
        %v3470 = vunpack.c.h.b16 %v799
        %v3471 = vunpack.c.l.b16 %v800
        %v3472 = vunpack.c.h.b16 %v800
        %v3473 = vunpack.c.l.b16 %v801
        %v3474 = vunpack.c.h.b16 %v801
        %v3475 = vunpack.c.l.b16 %v802
        %v3476 = vunpack.c.h.b16 %v802
        %v3477 = vunpack.c.l.b16 %v803
        %v3478 = vunpack.c.h.b16 %v803
        %v3479 = vunpack.c.l.b16 %v804
        %v3480 = vunpack.c.h.b16 %v804
        %v3481 = vunpack.c.l.b16 %v805
        %v3482 = vunpack.c.h.b16 %v805
        %v3483 = vunpack.c.l.b16 %v806
        %v3484 = vunpack.c.h.b16 %v806
        %v3485 = vunpack.c.l.b16 %v807
        %v3486 = vunpack.c.h.b16 %v807
        %v3487 = vunpack.c.l.b16 %v808
        %v3488 = vunpack.c.h.b16 %v808
        %v3489 = vunpack.c.l.b16 %v809
        %v3490 = vunpack.c.h.b16 %v809
        %v3491 = vunpack.c.l.b16 %v810
        %v3492 = vunpack.c.h.b16 %v810
        %v3493 = vunpack.c.l.b16 %v811
        %v3494 = vunpack.c.h.b16 %v811
        %v3495 = vunpack.c.l.b16 %v812
        %v3496 = vunpack.c.h.b16 %v812
        %v3497 = vunpack.c.l.b16 %v813
        %v3498 = vunpack.c.h.b16 %v813
        %v3499 = vunpack.c.l.b16 %v814
        %v3500 = vunpack.c.h.b16 %v814
        %v3501 = vunpack.c.l.b16 %v815
        %v3502 = vunpack.c.h.b16 %v815
        %v3503 = vunpack.c.l.b16 %v816
        %v3504 = vunpack.c.h.b16 %v816
        %v3505 = vunpack.c.l.b16 %v817
        %v3506 = vunpack.c.h.b16 %v817
        %v3507 = vunpack.c.l.b16 %v818
        %v3508 = vunpack.c.h.b16 %v818
        %v3509 = vunpack.c.l.b16 %v819
        %v3510 = vunpack.c.h.b16 %v819
        %v3511 = vunpack.c.l.b16 %v820
        %v3512 = vunpack.c.h.b16 %v820
        %v3513 = vunpack.c.l.b16 %v821
        %v3514 = vunpack.c.h.b16 %v821
        %v3515 = vunpack.c.l.b16 %v822
        %v3516 = vunpack.c.h.b16 %v822
        %v3517 = vunpack.c.l.b16 %v823
        %v3518 = vunpack.c.h.b16 %v823
        %v3519 = vunpack.c.l.b16 %v824
        %v3520 = vunpack.c.h.b16 %v824
        %v3521 = vunpack.c.l.b16 %v825
        %v3522 = vunpack.c.h.b16 %v825
        %v3523 = vunpack.c.l.b16 %v826
        %v3524 = vunpack.c.h.b16 %v826
        %v3525 = vunpack.c.l.b16 %v827
        %v3526 = vunpack.c.h.b16 %v827
        %v3527 = vunpack.c.l.b16 %v828
        %v3528 = vunpack.c.h.b16 %v828
        %v3529 = vunpack.c.l.b16 %v829
        %v3530 = vunpack.c.h.b16 %v829
        %v3531 = vunpack.c.l.b16 %v830
        %v3532 = vunpack.c.h.b16 %v830
        %v3533 = vunpack.c.l.b16 %v831
        %v3534 = vunpack.c.h.b16 %v831
        %v3535 = vunpack.c.l.b16 %v832
        %v3536 = vunpack.c.h.b16 %v832
        %v3537 = vunpack.c.l.b16 %v833
        %v3538 = vunpack.c.h.b16 %v833
        %v3539 = vunpack.c.l.b16 %v834
        %v3540 = vunpack.c.h.b16 %v834
        %v3541 = vunpack.c.l.b16 %v835
        %v3542 = vunpack.c.h.b16 %v835
        %v3543 = vunpack.c.l.b16 %v836
        %v3544 = vunpack.c.h.b16 %v836
        %v3545 = vunpack.c.l.b16 %v837
        %v3546 = vunpack.c.h.b16 %v837
        %v3547 = vunpack.c.l.b16 %v838
        %v3548 = vunpack.c.h.b16 %v838
        %v3549 = vunpack.c.l.b16 %v839
        %v3550 = vunpack.c.h.b16 %v839
        %v3551 = vunpack.c.l.b16 %v840
        %v3552 = vunpack.c.h.b16 %v840
        %v3553 = vunpack.c.l.b16 %v841
        %v3554 = vunpack.c.h.b16 %v841
        %v3555 = vunpack.c.l.b16 %v842
        %v3556 = vunpack.c.h.b16 %v842
        %v3557 = vunpack.c.l.b16 %v843
        %v3558 = vunpack.c.h.b16 %v843
        %v3559 = vunpack.c.l.b16 %v844
        %v3560 = vunpack.c.h.b16 %v844
        %v3561 = vunpack.c.l.b16 %v845
        %v3562 = vunpack.c.h.b16 %v845
        %v3563 = vunpack.c.l.b16 %v846
        %v3564 = vunpack.c.h.b16 %v846
        %v3565 = vunpack.c.l.b16 %v847
        %v3566 = vunpack.c.h.b16 %v847
        %v3567 = vunpack.c.l.b16 %v848
        %v3568 = vunpack.c.h.b16 %v848
        %v3569 = vunpack.c.l.b16 %v849
        %v3570 = vunpack.c.h.b16 %v849
        %v3571 = vunpack.c.l.b16 %v850
        %v3572 = vunpack.c.h.b16 %v850
        %v3573 = vunpack.c.l.b16 %v851
        %v3574 = vunpack.c.h.b16 %v851
        %v3575 = vunpack.c.l.b16 %v852
        %v3576 = vunpack.c.h.b16 %v852
        %v3577 = vunpack.c.l.b16 %v853
        %v3578 = vunpack.c.h.b16 %v853
        %v3579 = vunpack.c.l.b16 %v854
        %v3580 = vunpack.c.h.b16 %v854
        %v3581 = vunpack.c.l.b16 %v855
        %v3582 = vunpack.c.h.b16 %v855
        %v3583 = vunpack.c.l.b16 %v856
        %v3584 = vunpack.c.h.b16 %v856
        %v3585 = vunpack.c.l.b16 %v857
        %v3586 = vunpack.c.h.b16 %v857
        %v3587 = vunpack.c.l.b16 %v858
        %v3588 = vunpack.c.h.b16 %v858
        %v3589 = vunpack.c.l.b16 %v859
        %v3590 = vunpack.c.h.b16 %v859
        %v3591 = vunpack.c.l.b16 %v860
        %v3592 = vunpack.c.h.b16 %v860
        %v3593 = vunpack.c.l.b16 %v861
        %v3594 = vunpack.c.h.b16 %v861
        %v3595 = vunpack.c.l.b16 %v862
        %v3596 = vunpack.c.h.b16 %v862
        %v3597 = vunpack.c.l.b16 %v863
        %v3598 = vunpack.c.h.b16 %v863
        %v3599 = vunpack.c.l.b16 %v864
        %v3600 = vunpack.c.h.b16 %v864
        %v3601 = vunpack.c.l.b16 %v865
        %v3602 = vunpack.c.h.b16 %v865
        %v3603 = vunpack.c.l.b16 %v866
        %v3604 = vunpack.c.h.b16 %v866
        %v3605 = vunpack.c.l.b16 %v867
        %v3606 = vunpack.c.h.b16 %v867
        %v3607 = vunpack.c.l.b16 %v868
        %v3608 = vunpack.c.h.b16 %v868
        %v3609 = vunpack.c.l.b16 %v869
        %v3610 = vunpack.c.h.b16 %v869
        %v3611 = vunpack.c.l.b16 %v870
        %v3612 = vunpack.c.h.b16 %v870
        %v3613 = vunpack.c.l.b16 %v871
        %v3614 = vunpack.c.h.b16 %v871
        %v3615 = vunpack.c.l.b16 %v872
        %v3616 = vunpack.c.h.b16 %v872
        %v3617 = vunpack.c.l.b16 %v873
        %v3618 = vunpack.c.h.b16 %v873
        %v3619 = vunpack.c.l.b16 %v874
        %v3620 = vunpack.c.h.b16 %v874
        %v3621 = vunpack.c.l.b16 %v875
        %v3622 = vunpack.c.h.b16 %v875
        %v3623 = vunpack.c.l.b16 %v876
        %v3624 = vunpack.c.h.b16 %v876
        %v3625 = vunpack.c.l.b16 %v877
        %v3626 = vunpack.c.h.b16 %v877
        %v3627 = vunpack.c.l.b16 %v878
        %v3628 = vunpack.c.h.b16 %v878
        %v3629 = vunpack.c.l.b16 %v879
        %v3630 = vunpack.c.h.b16 %v879
        %v3631 = vunpack.c.l.b16 %v880
        %v3632 = vunpack.c.h.b16 %v880
        %v3633 = vunpack.c.l.b16 %v881
        %v3634 = vunpack.c.h.b16 %v881
        %v3635 = vunpack.c.l.b16 %v882
        %v3636 = vunpack.c.h.b16 %v882
        %v3637 = vunpack.c.l.b16 %v883
        %v3638 = vunpack.c.h.b16 %v883
        %v3639 = vunpack.c.l.b16 %v884
        %v3640 = vunpack.c.h.b16 %v884
        %v3641 = vunpack.c.l.b16 %v885
        %v3642 = vunpack.c.h.b16 %v885
        %v3643 = vunpack.c.l.b16 %v886
        %v3644 = vunpack.c.h.b16 %v886
        %v3645 = vunpack.c.l.b16 %v887
        %v3646 = vunpack.c.h.b16 %v887
        %v3647 = vunpack.c.l.b16 %v888
        %v3648 = vunpack.c.h.b16 %v888
        %v3649 = vunpack.c.l.b16 %v889
        %v3650 = vunpack.c.h.b16 %v889
        %v3651 = vunpack.c.l.b16 %v890
        %v3652 = vunpack.c.h.b16 %v890
        %v3653 = vunpack.c.l.b16 %v891
        %v3654 = vunpack.c.h.b16 %v891
        %v3655 = vunpack.c.l.b16 %v892
        %v3656 = vunpack.c.h.b16 %v892
        %v3657 = vunpack.c.l.b16 %v893
        %v3658 = vunpack.c.h.b16 %v893
        %v3659 = vunpack.c.l.b16 %v894
        %v3660 = vunpack.c.h.b16 %v894
        %v3661 = vunpack.c.l.b16 %v895
        %v3662 = vunpack.c.h.b16 %v895
        %v3663 = vunpack.c.l.b16 %v896
        %v3664 = vunpack.c.h.b16 %v896
        %v3665 = vunpack.c.l.b16 %v897
        %v3666 = vunpack.c.h.b16 %v897
        %v3667 = vunpack.c.l.b16 %v898
        %v3668 = vunpack.c.h.b16 %v898
        %v3669 = vunpack.c.l.b16 %v899
        %v3670 = vunpack.c.h.b16 %v899
        %v3671 = vunpack.c.l.b16 %v900
        %v3672 = vunpack.c.h.b16 %v900
        %v3673 = vunpack.c.l.b16 %v901
        %v3674 = vunpack.c.h.b16 %v901
        %v3675 = vunpack.c.l.b16 %v902
        %v3676 = vunpack.c.h.b16 %v902
        %v3677 = vunpack.c.l.b16 %v903
        %v3678 = vunpack.c.h.b16 %v903
        %v3679 = vunpack.c.l.b16 %v904
        %v3680 = vunpack.c.h.b16 %v904
        %v3681 = vunpack.c.l.b16 %v905
        %v3682 = vunpack.c.h.b16 %v905
        %v3683 = vunpack.c.l.b16 %v906
        %v3684 = vunpack.c.h.b16 %v906
        %v3685 = vunpack.c.l.b16 %v907
        %v3686 = vunpack.c.h.b16 %v907
        %v3687 = vunpack.c.l.b16 %v908
        %v3688 = vunpack.c.h.b16 %v908
        %v3689 = vunpack.c.l.b16 %v909
        %v3690 = vunpack.c.h.b16 %v909
        %v3691 = vunpack.c.l.b16 %v910
        %v3692 = vunpack.c.h.b16 %v910
        %v3693 = vunpack.c.l.b16 %v911
        %v3694 = vunpack.c.h.b16 %v911
        %v3695 = vunpack.c.l.b16 %v912
        %v3696 = vunpack.c.h.b16 %v912
        %v3697 = vunpack.c.l.b16 %v913
        %v3698 = vunpack.c.h.b16 %v913
        %v3699 = vunpack.c.l.b16 %v914
        %v3700 = vunpack.c.h.b16 %v914
        %v3701 = vunpack.c.l.b16 %v915
        %v3702 = vunpack.c.h.b16 %v915
        %v3703 = vunpack.c.l.b16 %v916
        %v3704 = vunpack.c.h.b16 %v916
        %v3705 = vunpack.c.l.b16 %v917
        %v3706 = vunpack.c.h.b16 %v917
        %v3707 = vunpack.c.l.b16 %v918
        %v3708 = vunpack.c.h.b16 %v918
        %v3709 = vunpack.c.l.b16 %v919
        %v3710 = vunpack.c.h.b16 %v919
        %v3711 = vunpack.c.l.b16 %v920
        %v3712 = vunpack.c.h.b16 %v920
        %v3713 = vunpack.c.l.b16 %v921
        %v3714 = vunpack.c.h.b16 %v921
        %v3715 = vunpack.c.l.b16 %v922
        %v3716 = vunpack.c.h.b16 %v922
        %v3717 = vunpack.c.l.b16 %v923
        %v3718 = vunpack.c.h.b16 %v923
        %v3719 = vunpack.c.l.b16 %v924
        %v3720 = vunpack.c.h.b16 %v924
        %v3721 = vunpack.c.l.b16 %v925
        %v3722 = vunpack.c.h.b16 %v925
        %v3723 = vunpack.c.l.b16 %v926
        %v3724 = vunpack.c.h.b16 %v926
        %v3725 = vunpack.c.l.b16 %v927
        %v3726 = vunpack.c.h.b16 %v927
        %v3727 = vunpack.c.l.b16 %v928
        %v3728 = vunpack.c.h.b16 %v928
        %v3729 = vunpack.c.l.b16 %v929
        %v3730 = vunpack.c.h.b16 %v929
        %v3731 = vunpack.c.l.b16 %v930
        %v3732 = vunpack.c.h.b16 %v930
        %v3733 = vunpack.c.l.b16 %v931
        %v3734 = vunpack.c.h.b16 %v931
        %v3735 = vunpack.c.l.b16 %v932
        %v3736 = vunpack.c.h.b16 %v932
        %v3737 = vunpack.c.l.b16 %v933
        %v3738 = vunpack.c.h.b16 %v933
        %v3739 = vunpack.c.l.b16 %v934
        %v3740 = vunpack.c.h.b16 %v934
        %v3741 = vunpack.c.l.b16 %v935
        %v3742 = vunpack.c.h.b16 %v935
        %v3743 = vunpack.c.l.b16 %v936
        %v3744 = vunpack.c.h.b16 %v936
        %v3745 = vunpack.c.l.b16 %v937
        %v3746 = vunpack.c.h.b16 %v937
        %v3747 = vunpack.c.l.b16 %v938
        %v3748 = vunpack.c.h.b16 %v938
        %v3749 = vunpack.c.l.b16 %v939
        %v3750 = vunpack.c.h.b16 %v939
        %v3751 = vunpack.c.l.b16 %v940
        %v3752 = vunpack.c.h.b16 %v940
        %v3753 = vunpack.c.l.b16 %v941
        %v3754 = vunpack.c.h.b16 %v941
        %v3755 = vunpack.c.l.b16 %v942
        %v3756 = vunpack.c.h.b16 %v942
        %v3757 = vunpack.c.l.b16 %v943
        %v3758 = vunpack.c.h.b16 %v943
        %v3759 = vunpack.c.l.b16 %v944
        %v3760 = vunpack.c.h.b16 %v944
        %v3761 = vunpack.c.l.b16 %v945
        %v3762 = vunpack.c.h.b16 %v945
        %v3763 = vunpack.c.l.b16 %v946
        %v3764 = vunpack.c.h.b16 %v946
        %v3765 = vunpack.c.l.b16 %v947
        %v3766 = vunpack.c.h.b16 %v947
        %v3767 = vunpack.c.l.b16 %v948
        %v3768 = vunpack.c.h.b16 %v948
        %v3769 = vunpack.c.l.b16 %v949
        %v3770 = vunpack.c.h.b16 %v949
        %v3771 = vunpack.c.l.b16 %v950
        %v3772 = vunpack.c.h.b16 %v950
        %v3773 = vunpack.c.l.b16 %v951
        %v3774 = vunpack.c.h.b16 %v951
        %v3775 = vunpack.c.l.b16 %v952
        %v3776 = vunpack.c.h.b16 %v952
        %v3777 = vunpack.c.l.b16 %v953
        %v3778 = vunpack.c.h.b16 %v953
        %v3779 = vunpack.c.l.b16 %v954
        %v3780 = vunpack.c.h.b16 %v954
        %v3781 = vunpack.c.l.b16 %v955
        %v3782 = vunpack.c.h.b16 %v955
        %v3783 = vunpack.c.l.b16 %v956
        %v3784 = vunpack.c.h.b16 %v956
        %v3785 = vunpack.c.l.b16 %v957
        %v3786 = vunpack.c.h.b16 %v957
        %v3787 = vunpack.c.l.b16 %v958
        %v3788 = vunpack.c.h.b16 %v958
        %v3789 = vunpack.c.l.b16 %v959
        %v3790 = vunpack.c.h.b16 %v959
        %v3791 = vunpack.c.l.b16 %v960
        %v3792 = vunpack.c.h.b16 %v960
        %v3793 = vunpack.c.l.b16 %v961
        %v3794 = vunpack.c.h.b16 %v961
        %v3795 = vunpack.c.l.b16 %v962
        %v3796 = vunpack.c.h.b16 %v962
        %v3797 = vunpack.c.l.b16 %v963
        %v3798 = vunpack.c.h.b16 %v963
        %v3799 = vunpack.c.l.b16 %v964
        %v3800 = vunpack.c.h.b16 %v964
        %v3801 = vunpack.c.l.b16 %v965
        %v3802 = vunpack.c.h.b16 %v965
        %v3803 = vunpack.c.l.b16 %v966
        %v3804 = vunpack.c.h.b16 %v966
        %v3805 = vunpack.c.l.b16 %v967
        %v3806 = vunpack.c.h.b16 %v967
        %v3807 = vunpack.c.l.b16 %v968
        %v3808 = vunpack.c.h.b16 %v968
        %v3809 = vunpack.c.l.b16 %v969
        %v3810 = vunpack.c.h.b16 %v969
        %v3811 = vunpack.c.l.b16 %v970
        %v3812 = vunpack.c.h.b16 %v970
        %v3813 = vunpack.c.l.b16 %v971
        %v3814 = vunpack.c.h.b16 %v971
        %v3815 = vunpack.c.l.b16 %v972
        %v3816 = vunpack.c.h.b16 %v972
        %v3817 = vunpack.c.l.b16 %v973
        %v3818 = vunpack.c.h.b16 %v973
        %v3819 = vunpack.c.l.b16 %v974
        %v3820 = vunpack.c.h.b16 %v974
        %v3821 = vunpack.c.l.b16 %v975
        %v3822 = vunpack.c.h.b16 %v975
        %v3823 = vunpack.c.l.b16 %v976
        %v3824 = vunpack.c.h.b16 %v976
        %v3825 = vunpack.c.l.b16 %v977
        %v3826 = vunpack.c.h.b16 %v977
        %v3827 = vunpack.c.l.b16 %v978
        %v3828 = vunpack.c.h.b16 %v978
        %v3829 = vunpack.c.l.b16 %v979
        %v3830 = vunpack.c.h.b16 %v979
        %v3831 = vunpack.c.l.b16 %v980
        %v3832 = vunpack.c.h.b16 %v980
        %v3833 = vunpack.c.l.b16 %v981
        %v3834 = vunpack.c.h.b16 %v981
        %v3835 = vunpack.c.l.b16 %v982
        %v3836 = vunpack.c.h.b16 %v982
        %v3837 = vunpack.c.l.b16 %v983
        %v3838 = vunpack.c.h.b16 %v983
        %v3839 = vunpack.c.l.b16 %v984
        %v3840 = vunpack.c.h.b16 %v984
        %v3841 = vunpack.c.l.b16 %v985
        %v3842 = vunpack.c.h.b16 %v985
        %v3843 = vunpack.c.l.b16 %v986
        %v3844 = vunpack.c.h.b16 %v986
        %v3845 = vunpack.c.l.b16 %v987
        %v3846 = vunpack.c.h.b16 %v987
        %v3847 = vunpack.c.l.b16 %v988
        %v3848 = vunpack.c.h.b16 %v988
        %v3849 = vunpack.c.l.b16 %v989
        %v3850 = vunpack.c.h.b16 %v989
        %v3851 = vunpack.c.l.b16 %v990
        %v3852 = vunpack.c.h.b16 %v990
        %v3853 = vunpack.c.l.b16 %v991
        %v3854 = vunpack.c.h.b16 %v991
        %v3855 = vunpack.c.l.b16 %v992
        %v3856 = vunpack.c.h.b16 %v992
        %v3857 = vunpack.c.l.b16 %v993
        %v3858 = vunpack.c.h.b16 %v993
        %v3859 = vunpack.c.l.b16 %v994
        %v3860 = vunpack.c.h.b16 %v994
        %v3861 = vunpack.c.l.b16 %v995
        %v3862 = vunpack.c.h.b16 %v995
        %v3863 = vunpack.c.l.b16 %v996
        %v3864 = vunpack.c.h.b16 %v996
        %v3865 = vunpack.c.l.b16 %v997
        %v3866 = vunpack.c.h.b16 %v997
        %v3867 = vunpack.c.l.b16 %v998
        %v3868 = vunpack.c.h.b16 %v998
        %v3869 = vunpack.c.l.b16 %v999
        %v3870 = vunpack.c.h.b16 %v999
        %v3871 = vunpack.c.l.b16 %v1000
        %v3872 = vunpack.c.h.b16 %v1000
        %v3873 = vunpack.c.l.b16 %v1001
        %v3874 = vunpack.c.h.b16 %v1001
        %v3875 = vunpack.c.l.b16 %v1002
        %v3876 = vunpack.c.h.b16 %v1002
        %v3877 = vunpack.c.l.b16 %v1003
        %v3878 = vunpack.c.h.b16 %v1003
        %v3879 = vunpack.c.l.b16 %v1004
        %v3880 = vunpack.c.h.b16 %v1004
        %v3881 = vunpack.c.l.b16 %v1005
        %v3882 = vunpack.c.h.b16 %v1005
        %v3883 = vunpack.c.l.b16 %v1006
        %v3884 = vunpack.c.h.b16 %v1006
        %v3885 = vunpack.c.l.b16 %v1007
        %v3886 = vunpack.c.h.b16 %v1007
        %v3887 = vunpack.c.l.b16 %v1008
        %v3888 = vunpack.c.h.b16 %v1008
        %v3889 = vunpack.c.l.b16 %v1009
        %v3890 = vunpack.c.h.b16 %v1009
        %v3891 = vunpack.c.l.b16 %v1010
        %v3892 = vunpack.c.h.b16 %v1010
        %v3893 = vunpack.c.l.b16 %v1011
        %v3894 = vunpack.c.h.b16 %v1011
        %v3895 = vunpack.c.l.b16 %v1012
        %v3896 = vunpack.c.h.b16 %v1012
        %v3897 = vunpack.c.l.b16 %v1013
        %v3898 = vunpack.c.h.b16 %v1013
        %v3899 = vunpack.c.l.b16 %v1014
        %v3900 = vunpack.c.h.b16 %v1014
        %v3901 = vunpack.c.l.b16 %v1015
        %v3902 = vunpack.c.h.b16 %v1015
        %v3903 = vunpack.c.l.b16 %v1016
        %v3904 = vunpack.c.h.b16 %v1016
        %v3905 = vunpack.c.l.b16 %v1017
        %v3906 = vunpack.c.h.b16 %v1017
        %v3907 = vunpack.c.l.b16 %v1018
        %v3908 = vunpack.c.h.b16 %v1018
        %v3909 = vunpack.c.l.b16 %v1019
        %v3910 = vunpack.c.h.b16 %v1019
        %v3911 = vunpack.c.l.b16 %v1020
        %v3912 = vunpack.c.h.b16 %v1020
        %v3913 = vunpack.c.l.b16 %v1021
        %v3914 = vunpack.c.h.b16 %v1021
        %v3915 = vunpack.c.l.b16 %v1022
        %v3916 = vunpack.c.h.b16 %v1022
        %v3917 = vunpack.c.l.b16 %v1023
        %v3918 = vunpack.c.h.b16 %v1023
        %v3919 = vunpack.c.l.b16 %v1024
        %v3920 = vunpack.c.h.b16 %v1024
        %v3921 = vunpack.c.l.b16 %v1025
        %v3922 = vunpack.c.h.b16 %v1025
        %v3923 = vunpack.c.l.b16 %v1026
        %v3924 = vunpack.c.h.b16 %v1026
        %v3925 = vunpack.c.l.b16 %v1027
        %v3926 = vunpack.c.h.b16 %v1027
        %v3927 = vunpack.c.l.b16 %v1028
        %v3928 = vunpack.c.h.b16 %v1028
        %v3929 = vunpack.c.l.b16 %v1029
        %v3930 = vunpack.c.h.b16 %v1029
        %v3931 = vunpack.c.l.b16 %v1030
        %v3932 = vunpack.c.h.b16 %v1030
        %v3933 = vunpack.c.l.b16 %v1031
        %v3934 = vunpack.c.h.b16 %v1031
        %v3935 = vunpack.c.l.b16 %v1032
        %v3936 = vunpack.c.h.b16 %v1032
        %v3937 = vunpack.c.l.b16 %v1033
        %v3938 = vunpack.c.h.b16 %v1033
        %v3939 = vunpack.c.l.b16 %v1034
        %v3940 = vunpack.c.h.b16 %v1034
        %v3941 = vunpack.c.l.b16 %v1035
        %v3942 = vunpack.c.h.b16 %v1035
        %v3943 = vunpack.c.l.b16 %v1036
        %v3944 = vunpack.c.h.b16 %v1036
        %v3945 = vunpack.c.l.b16 %v1037
        %v3946 = vunpack.c.h.b16 %v1037
        %v3947 = vunpack.c.l.b16 %v1038
        %v3948 = vunpack.c.h.b16 %v1038
        %v3949 = vunpack.c.l.b16 %v1039
        %v3950 = vunpack.c.h.b16 %v1039
        %v3951 = vunpack.c.l.b16 %v1040
        %v3952 = vunpack.c.h.b16 %v1040
        %v3953 = vunpack.c.l.b16 %v1041
        %v3954 = vunpack.c.h.b16 %v1041
        %v3955 = vunpack.c.l.b16 %v1042
        %v3956 = vunpack.c.h.b16 %v1042
        %v3957 = vunpack.c.l.b16 %v1043
        %v3958 = vunpack.c.h.b16 %v1043
        %v3959 = vunpack.c.l.b16 %v1044
        %v3960 = vunpack.c.h.b16 %v1044
        %v3961 = vunpack.c.l.b16 %v1045
        %v3962 = vunpack.c.h.b16 %v1045
        %v3963 = vunpack.c.l.b16 %v1046
        %v3964 = vunpack.c.h.b16 %v1046
        %v3965 = vunpack.c.l.b16 %v1047
        %v3966 = vunpack.c.h.b16 %v1047
        %v3967 = vunpack.c.l.b16 %v1048
        %v3968 = vunpack.c.h.b16 %v1048
        %v3969 = vunpack.c.l.b16 %v1049
        %v3970 = vunpack.c.h.b16 %v1049
        %v3971 = vunpack.c.l.b16 %v1050
        %v3972 = vunpack.c.h.b16 %v1050
        %v3973 = vunpack.c.l.b16 %v1051
        %v3974 = vunpack.c.h.b16 %v1051
        %v3975 = vunpack.c.l.b16 %v1052
        %v3976 = vunpack.c.h.b16 %v1052
        %v3977 = vunpack.c.l.b16 %v1053
        %v3978 = vunpack.c.h.b16 %v1053
        %v3979 = vunpack.c.l.b16 %v1054
        %v3980 = vunpack.c.h.b16 %v1054
        %v3981 = vunpack.c.l.b16 %v1055
        %v3982 = vunpack.c.h.b16 %v1055
        %v3983 = vunpack.c.l.b16 %v1056
        %v3984 = vunpack.c.h.b16 %v1056
        %v3985 = vunpack.c.l.b16 %v1057
        %v3986 = vunpack.c.h.b16 %v1057
        %v3987 = vunpack.c.l.b16 %v1058
        %v3988 = vunpack.c.h.b16 %v1058
        %v3989 = vunpack.c.l.b16 %v1059
        %v3990 = vunpack.c.h.b16 %v1059
        %v3991 = vunpack.c.l.b16 %v1060
        %v3992 = vunpack.c.h.b16 %v1060
        %v3993 = vunpack.c.l.b16 %v1061
        %v3994 = vunpack.c.h.b16 %v1061
        %v3995 = vunpack.c.l.b16 %v1062
        %v3996 = vunpack.c.h.b16 %v1062
        %v3997 = vunpack.c.l.b16 %v1063
        %v3998 = vunpack.c.h.b16 %v1063
        %v3999 = vunpack.c.l.b16 %v1064
        %v4000 = vunpack.c.h.b16 %v1064
        %v4001 = vunpack.c.l.b16 %v1065
        %v4002 = vunpack.c.h.b16 %v1065
        %v4003 = vunpack.c.l.b16 %v1066
        %v4004 = vunpack.c.h.b16 %v1066
        %v4005 = vunpack.c.l.b16 %v1067
        %v4006 = vunpack.c.h.b16 %v1067
        %v4007 = vunpack.c.l.b16 %v1068
        %v4008 = vunpack.c.h.b16 %v1068
        %v4009 = vunpack.c.l.b16 %v1069
        %v4010 = vunpack.c.h.b16 %v1069
        %v4011 = vunpack.c.l.b16 %v1070
        %v4012 = vunpack.c.h.b16 %v1070
        %v4013 = vunpack.c.l.b16 %v1071
        %v4014 = vunpack.c.h.b16 %v1071
        %v4015 = vunpack.c.l.b16 %v1072
        %v4016 = vunpack.c.h.b16 %v1072
        %v4017 = vunpack.c.l.b16 %v1073
        %v4018 = vunpack.c.h.b16 %v1073
        %v4019 = vunpack.c.l.b16 %v1074
        %v4020 = vunpack.c.h.b16 %v1074
        %v4021 = vunpack.c.l.b16 %v1075
        %v4022 = vunpack.c.h.b16 %v1075
        %v4023 = vunpack.c.l.b16 %v1076
        %v4024 = vunpack.c.h.b16 %v1076
        %v4025 = vunpack.c.l.b16 %v1077
        %v4026 = vunpack.c.h.b16 %v1077
        %v4027 = vunpack.c.l.b16 %v1078
        %v4028 = vunpack.c.h.b16 %v1078
        %v4029 = vunpack.c.l.b16 %v1079
        %v4030 = vunpack.c.h.b16 %v1079
        %v4031 = vunpack.c.l.b16 %v1080
        %v4032 = vunpack.c.h.b16 %v1080
        %v4033 = vunpack.c.l.b16 %v1081
        %v4034 = vunpack.c.h.b16 %v1081
        %v4035 = vunpack.c.l.b16 %v1082
        %v4036 = vunpack.c.h.b16 %v1082
        %v4037 = vunpack.c.l.b16 %v1083
        %v4038 = vunpack.c.h.b16 %v1083
        %v4039 = vunpack.c.l.b16 %v1084
        %v4040 = vunpack.c.h.b16 %v1084
        %v4041 = vunpack.c.l.b16 %v1085
        %v4042 = vunpack.c.h.b16 %v1085
        %v4043 = vunpack.c.l.b16 %v1086
        %v4044 = vunpack.c.h.b16 %v1086
        %v4045 = vunpack.c.l.b16 %v1087
        %v4046 = vunpack.c.h.b16 %v1087
        %v4047 = vunpack.c.l.b16 %v1088
        %v4048 = vunpack.c.h.b16 %v1088
        %v4049 = vunpack.c.l.b16 %v1089
        %v4050 = vunpack.c.h.b16 %v1089
        %v4051 = vunpack.c.l.b16 %v1090
        %v4052 = vunpack.c.h.b16 %v1090
        %v4053 = vunpack.c.l.b16 %v1091
        %v4054 = vunpack.c.h.b16 %v1091
        %v4055 = vunpack.c.l.b16 %v1092
        %v4056 = vunpack.c.h.b16 %v1092
        %v4057 = vunpack.c.l.b16 %v1093
        %v4058 = vunpack.c.h.b16 %v1093
        %v4059 = vunpack.c.l.b16 %v1094
        %v4060 = vunpack.c.h.b16 %v1094
        %v4061 = vunpack.c.l.b16 %v1095
        %v4062 = vunpack.c.h.b16 %v1095
        %v4063 = vunpack.c.l.b16 %v1096
        %v4064 = vunpack.c.h.b16 %v1096
        %v4065 = vunpack.c.l.b16 %v1097
        %v4066 = vunpack.c.h.b16 %v1097
        %v4067 = vunpack.c.l.b16 %v1098
        %v4068 = vunpack.c.h.b16 %v1098
        %v4069 = vunpack.c.l.b16 %v1099
        %v4070 = vunpack.c.h.b16 %v1099
        %v4071 = vunpack.c.l.b16 %v1100
        %v4072 = vunpack.c.h.b16 %v1100
        %v4073 = vunpack.c.l.b16 %v1101
        %v4074 = vunpack.c.h.b16 %v1101
        %v4075 = vunpack.c.l.b16 %v1102
        %v4076 = vunpack.c.h.b16 %v1102
        %v4077 = vunpack.c.l.b16 %v1103
        %v4078 = vunpack.c.h.b16 %v1103
        %v4079 = vunpack.c.l.b16 %v1104
        %v4080 = vunpack.c.h.b16 %v1104
        %v4081 = vunpack.c.l.b16 %v1105
        %v4082 = vunpack.c.h.b16 %v1105
        %v4083 = vunpack.c.l.b16 %v1106
        %v4084 = vunpack.c.h.b16 %v1106
        %v4085 = vunpack.c.l.b16 %v1107
        %v4086 = vunpack.c.h.b16 %v1107
        %v4087 = vunpack.c.l.b16 %v1108
        %v4088 = vunpack.c.h.b16 %v1108
        %v4089 = vunpack.c.l.b16 %v1109
        %v4090 = vunpack.c.h.b16 %v1109
        %v4091 = vunpack.c.l.b16 %v1110
        %v4092 = vunpack.c.h.b16 %v1110
        %v4093 = vunpack.c.l.b16 %v1111
        %v4094 = vunpack.c.h.b16 %v1111
        %v4095 = vunpack.c.l.b16 %v1112
        %v4096 = vunpack.c.h.b16 %v1112
        %v4097 = vunpack.c.l.b16 %v1113
        %v4098 = vunpack.c.h.b16 %v1113
        %v4099 = vunpack.c.l.b16 %v1114
        %v4100 = vunpack.c.h.b16 %v1114
        %v4101 = vunpack.c.l.b16 %v1115
        %v4102 = vunpack.c.h.b16 %v1115
        %v4103 = vunpack.c.l.b16 %v1116
        %v4104 = vunpack.c.h.b16 %v1116
        %v4105 = vunpack.c.l.b16 %v1117
        %v4106 = vunpack.c.h.b16 %v1117
        %v4107 = vunpack.c.l.b16 %v1118
        %v4108 = vunpack.c.h.b16 %v1118
        %v4109 = vunpack.c.l.b16 %v1119
        %v4110 = vunpack.c.h.b16 %v1119
        %v4111 = vunpack.c.l.b16 %v1120
        %v4112 = vunpack.c.h.b16 %v1120
        %v4113 = vunpack.c.l.b16 %v1121
        %v4114 = vunpack.c.h.b16 %v1121
        %v4115 = vunpack.c.l.b16 %v1122
        %v4116 = vunpack.c.h.b16 %v1122
        %v4117 = vunpack.c.l.b16 %v1123
        %v4118 = vunpack.c.h.b16 %v1123
        %v4119 = vunpack.c.l.b16 %v1124
        %v4120 = vunpack.c.h.b16 %v1124
        %v4121 = vunpack.c.l.b16 %v1125
        %v4122 = vunpack.c.h.b16 %v1125
        %v4123 = vunpack.c.l.b16 %v1126
        %v4124 = vunpack.c.h.b16 %v1126
        %v4125 = vunpack.c.l.b16 %v1127
        %v4126 = vunpack.c.h.b16 %v1127
        %v4127 = vunpack.c.l.b16 %v1128
        %v4128 = vunpack.c.h.b16 %v1128
        %v4129 = vunpack.c.l.b16 %v1129
        %v4130 = vunpack.c.h.b16 %v1129
        %v4131 = vunpack.c.l.b16 %v1130
        %v4132 = vunpack.c.h.b16 %v1130
        %v4133 = vunpack.c.l.b16 %v1131
        %v4134 = vunpack.c.h.b16 %v1131
        %v4135 = vunpack.c.l.b16 %v1132
        %v4136 = vunpack.c.h.b16 %v1132
        %v4137 = vunpack.c.l.b16 %v1133
        %v4138 = vunpack.c.h.b16 %v1133
        %v4139 = vunpack.c.l.b16 %v1134
        %v4140 = vunpack.c.h.b16 %v1134
        %v4141 = vunpack.c.l.b16 %v1135
        %v4142 = vunpack.c.h.b16 %v1135
        %v4143 = vunpack.c.l.b16 %v1136
        %v4144 = vunpack.c.h.b16 %v1136
        %v4145 = vunpack.c.l.b16 %v1137
        %v4146 = vunpack.c.h.b16 %v1137
        %v4147 = vunpack.c.l.b16 %v1138
        %v4148 = vunpack.c.h.b16 %v1138
        %v4149 = vunpack.c.l.b16 %v1139
        %v4150 = vunpack.c.h.b16 %v1139
        %v4151 = vunpack.c.l.b16 %v1140
        %v4152 = vunpack.c.h.b16 %v1140
        %v4153 = vunpack.c.l.b16 %v1141
        %v4154 = vunpack.c.h.b16 %v1141
        %v4155 = vunpack.c.l.b16 %v1142
        %v4156 = vunpack.c.h.b16 %v1142
        %v4157 = vunpack.c.l.b16 %v1143
        %v4158 = vunpack.c.h.b16 %v1143
        %v4159 = vunpack.c.l.b16 %v1144
        %v4160 = vunpack.c.h.b16 %v1144
        %v4161 = vunpack.c.l.b16 %v1145
        %v4162 = vunpack.c.h.b16 %v1145
        %v4163 = vunpack.c.l.b16 %v1146
        %v4164 = vunpack.c.h.b16 %v1146
        %v4165 = vunpack.c.l.b16 %v1147
        %v4166 = vunpack.c.h.b16 %v1147
        %v4167 = vunpack.c.l.b16 %v1148
        %v4168 = vunpack.c.h.b16 %v1148
        %v4169 = vunpack.c.l.b16 %v1149
        %v4170 = vunpack.c.h.b16 %v1149
        %v4171 = vunpack.c.l.b16 %v1150
        %v4172 = vunpack.c.h.b16 %v1150
        %v4173 = vunpack.c.l.b16 %v1151
        %v4174 = vunpack.c.h.b16 %v1151
        %v4175 = vunpack.c.l.b16 %v1152
        %v4176 = vunpack.c.h.b16 %v1152
        %v4177 = vunpack.c.l.b16 %v1153
        %v4178 = vunpack.c.h.b16 %v1153
        %v4179 = vunpack.c.l.b16 %v1154
        %v4180 = vunpack.c.h.b16 %v1154
        %v4181 = vunpack.c.l.b16 %v1155
        %v4182 = vunpack.c.h.b16 %v1155
        %v4183 = vunpack.c.l.b16 %v1156
        %v4184 = vunpack.c.h.b16 %v1156
        %v4185 = vunpack.c.l.b16 %v1157
        %v4186 = vunpack.c.h.b16 %v1157
        %v4187 = vunpack.c.l.b16 %v1158
        %v4188 = vunpack.c.h.b16 %v1158
        %v4189 = vunpack.c.l.b16 %v1159
        %v4190 = vunpack.c.h.b16 %v1159
        %v4191 = vunpack.c.l.b16 %v1160
        %v4192 = vunpack.c.h.b16 %v1160
        %v4193 = vunpack.c.l.b16 %v1161
        %v4194 = vunpack.c.h.b16 %v1161
        %v4195 = vunpack.c.l.b16 %v1162
        %v4196 = vunpack.c.h.b16 %v1162
        %v4197 = vunpack.c.l.b16 %v1163
        %v4198 = vunpack.c.h.b16 %v1163
        %v4199 = vunpack.c.l.b16 %v1164
        %v4200 = vunpack.c.h.b16 %v1164
        %v4201 = vunpack.c.l.b16 %v1165
        %v4202 = vunpack.c.h.b16 %v1165
        %v4203 = vunpack.c.l.b16 %v1166
        %v4204 = vunpack.c.h.b16 %v1166
        %v4205 = vunpack.c.l.b16 %v1167
        %v4206 = vunpack.c.h.b16 %v1167
        %v4207 = vunpack.c.l.b16 %v1168
        %v4208 = vunpack.c.h.b16 %v1168
        %v4209 = vunpack.c.l.b16 %v1169
        %v4210 = vunpack.c.h.b16 %v1169
        %v4211 = vunpack.c.l.b16 %v1170
        %v4212 = vunpack.c.h.b16 %v1170
        %v4213 = vunpack.c.l.b16 %v1171
        %v4214 = vunpack.c.h.b16 %v1171
        %v4215 = vunpack.c.l.b16 %v1172
        %v4216 = vunpack.c.h.b16 %v1172
        %v4217 = vunpack.c.l.b16 %v1173
        %v4218 = vunpack.c.h.b16 %v1173
        %v4219 = vunpack.c.l.b16 %v1174
        %v4220 = vunpack.c.h.b16 %v1174
        %v4221 = vunpack.c.l.b16 %v1175
        %v4222 = vunpack.c.h.b16 %v1175
        %v4223 = vunpack.c.l.b16 %v1176
        %v4224 = vunpack.c.h.b16 %v1176
        %v4225 = vunpack.c.l.b16 %v1177
        %v4226 = vunpack.c.h.b16 %v1177
        %v4227 = vunpack.c.l.b16 %v1178
        %v4228 = vunpack.c.h.b16 %v1178
        %v4229 = vunpack.c.l.b16 %v1179
        %v4230 = vunpack.c.h.b16 %v1179
        %v4231 = vunpack.c.l.b16 %v1180
        %v4232 = vunpack.c.h.b16 %v1180
        %v4233 = vunpack.c.l.b16 %v1181
        %v4234 = vunpack.c.h.b16 %v1181
        %v4235 = vunpack.c.l.b16 %v1182
        %v4236 = vunpack.c.h.b16 %v1182
        %v4237 = vunpack.c.l.b16 %v1183
        %v4238 = vunpack.c.h.b16 %v1183
        %v4239 = vunpack.c.l.b16 %v1184
        %v4240 = vunpack.c.h.b16 %v1184
        %v4241 = vunpack.c.l.b16 %v1185
        %v4242 = vunpack.c.h.b16 %v1185
        %v4243 = vunpack.c.l.b16 %v1186
        %v4244 = vunpack.c.h.b16 %v1186
        %v4245 = vunpack.c.l.b16 %v1187
        %v4246 = vunpack.c.h.b16 %v1187
        %v4247 = vunpack.c.l.b16 %v1188
        %v4248 = vunpack.c.h.b16 %v1188
        %v4249 = vunpack.c.l.b16 %v1189
        %v4250 = vunpack.c.h.b16 %v1189
        %v4251 = vunpack.c.l.b16 %v1190
        %v4252 = vunpack.c.h.b16 %v1190
        %v4253 = vunpack.c.l.b16 %v1191
        %v4254 = vunpack.c.h.b16 %v1191
        %v4255 = vunpack.c.l.b16 %v1192
        %v4256 = vunpack.c.h.b16 %v1192
        %v4257 = vunpack.c.l.b16 %v1193
        %v4258 = vunpack.c.h.b16 %v1193
        %v4259 = vunpack.c.l.b16 %v1194
        %v4260 = vunpack.c.h.b16 %v1194
        %v4261 = vunpack.c.l.b16 %v1195
        %v4262 = vunpack.c.h.b16 %v1195
        %v4263 = vunpack.c.l.b16 %v1196
        %v4264 = vunpack.c.h.b16 %v1196
        %v4265 = vunpack.c.l.b16 %v1197
        %v4266 = vunpack.c.h.b16 %v1197
        %v4267 = vunpack.c.l.b16 %v1198
        %v4268 = vunpack.c.h.b16 %v1198
        %v4269 = vunpack.c.l.b16 %v1199
        %v4270 = vunpack.c.h.b16 %v1199
        %v4271 = vunpack.c.l.b16 %v1200
        %v4272 = vunpack.c.h.b16 %v1200
        %v4273 = vunpack.c.l.b16 %v1201
        %v4274 = vunpack.c.h.b16 %v1201
        %v4275 = vunpack.c.l.b16 %v1202
        %v4276 = vunpack.c.h.b16 %v1202
        %v4277 = vunpack.c.l.b16 %v1203
        %v4278 = vunpack.c.h.b16 %v1203
        %v4279 = vunpack.c.l.b16 %v1204
        %v4280 = vunpack.c.h.b16 %v1204
        %v4281 = vunpack.c.l.b16 %v1205
        %v4282 = vunpack.c.h.b16 %v1205
        %v4283 = vunpack.c.l.b16 %v1206
        %v4284 = vunpack.c.h.b16 %v1206
        %v4285 = vunpack.c.l.b16 %v1207
        %v4286 = vunpack.c.h.b16 %v1207
        %v4287 = vunpack.c.l.b16 %v1208
        %v4288 = vunpack.c.h.b16 %v1208
        %v4289 = vunpack.c.l.b16 %v1209
        %v4290 = vunpack.c.h.b16 %v1209
        %v4291 = vunpack.c.l.b16 %v1210
        %v4292 = vunpack.c.h.b16 %v1210
        %v4293 = vunpack.c.l.b16 %v1211
        %v4294 = vunpack.c.h.b16 %v1211
        %v4295 = vunpack.c.l.b16 %v1212
        %v4296 = vunpack.c.h.b16 %v1212
        %v4297 = vunpack.c.l.b16 %v1213
        %v4298 = vunpack.c.h.b16 %v1213
        %v4299 = vunpack.c.l.b16 %v1214
        %v4300 = vunpack.c.h.b16 %v1214
        %v4301 = vunpack.c.l.b16 %v1215
        %v4302 = vunpack.c.h.b16 %v1215
        %v4303 = vunpack.c.l.b16 %v1216
        %v4304 = vunpack.c.h.b16 %v1216
        %v4305 = vunpack.c.l.b16 %v1217
        %v4306 = vunpack.c.h.b16 %v1217
        %v4307 = vunpack.c.l.b16 %v1218
        %v4308 = vunpack.c.h.b16 %v1218
        %v4309 = vunpack.c.l.b16 %v1219
        %v4310 = vunpack.c.h.b16 %v1219
        %v4311 = vunpack.c.l.b16 %v1220
        %v4312 = vunpack.c.h.b16 %v1220
        %v4313 = vunpack.c.l.b16 %v1221
        %v4314 = vunpack.c.h.b16 %v1221
        %v4315 = vunpack.c.l.b16 %v1222
        %v4316 = vunpack.c.h.b16 %v1222
        %v4317 = vunpack.c.l.b16 %v1223
        %v4318 = vunpack.c.h.b16 %v1223
        %v4319 = vunpack.c.l.b16 %v1224
        %v4320 = vunpack.c.h.b16 %v1224
        %v4321 = vunpack.c.l.b16 %v1225
        %v4322 = vunpack.c.h.b16 %v1225
        %v4323 = vunpack.c.l.b16 %v1226
        %v4324 = vunpack.c.h.b16 %v1226
        %v4325 = vunpack.c.l.b16 %v1227
        %v4326 = vunpack.c.h.b16 %v1227
        %v4327 = vunpack.c.l.b16 %v1228
        %v4328 = vunpack.c.h.b16 %v1228
        %v4329 = vunpack.c.l.b16 %v1229
        %v4330 = vunpack.c.h.b16 %v1229
        %v4331 = vunpack.c.l.b16 %v1230
        %v4332 = vunpack.c.h.b16 %v1230
        %v4333 = vunpack.c.l.b16 %v1231
        %v4334 = vunpack.c.h.b16 %v1231
        %v4335 = vunpack.c.l.b16 %v1232
        %v4336 = vunpack.c.h.b16 %v1232
        %v4337 = vunpack.c.l.b16 %v1233
        %v4338 = vunpack.c.h.b16 %v1233
        %v4339 = vunpack.c.l.b16 %v1234
        %v4340 = vunpack.c.h.b16 %v1234
        %v4341 = vunpack.c.l.b16 %v1235
        %v4342 = vunpack.c.h.b16 %v1235
        %v4343 = vunpack.c.l.b16 %v1236
        %v4344 = vunpack.c.h.b16 %v1236
        %v4345 = vunpack.c.l.b16 %v1237
        %v4346 = vunpack.c.h.b16 %v1237
        %v4347 = vunpack.c.l.b16 %v1238
        %v4348 = vunpack.c.h.b16 %v1238
        %v4349 = vunpack.c.l.b16 %v1239
        %v4350 = vunpack.c.h.b16 %v1239
        %v4351 = vunpack.c.l.b16 %v1240
        %v4352 = vunpack.c.h.b16 %v1240
        %v4353 = vunpack.c.l.b16 %v1241
        %v4354 = vunpack.c.h.b16 %v1241
        %v4355 = vunpack.c.l.b16 %v1242
        %v4356 = vunpack.c.h.b16 %v1242
        %v4357 = vunpack.c.l.b16 %v1243
        %v4358 = vunpack.c.h.b16 %v1243
        %v4359 = vunpack.c.l.b16 %v1244
        %v4360 = vunpack.c.h.b16 %v1244
        %v4361 = vunpack.c.l.b16 %v1245
        %v4362 = vunpack.c.h.b16 %v1245
        %v4363 = vunpack.c.l.b16 %v1246
        %v4364 = vunpack.c.h.b16 %v1246
        %v4365 = vunpack.c.l.b16 %v1247
        %v4366 = vunpack.c.h.b16 %v1247
        %v4367 = vunpack.c.l.b16 %v1248
        %v4368 = vunpack.c.h.b16 %v1248
        %v4369 = vunpack.c.l.b16 %v1249
        %v4370 = vunpack.c.h.b16 %v1249
        %v4371 = vunpack.c.l.b16 %v1250
        %v4372 = vunpack.c.h.b16 %v1250
        %v4373 = vunpack.c.l.b16 %v1251
        %v4374 = vunpack.c.h.b16 %v1251
        %v4375 = vunpack.c.l.b16 %v1252
        %v4376 = vunpack.c.h.b16 %v1252
        %v4377 = vunpack.c.l.b16 %v1253
        %v4378 = vunpack.c.h.b16 %v1253
        %v4379 = vunpack.c.l.b16 %v1254
        %v4380 = vunpack.c.h.b16 %v1254
        %v4381 = vunpack.c.l.b16 %v1255
        %v4382 = vunpack.c.h.b16 %v1255
        %v4383 = vunpack.c.l.b16 %v1256
        %v4384 = vunpack.c.h.b16 %v1256
        %v4385 = vunpack.c.l.b16 %v1257
        %v4386 = vunpack.c.h.b16 %v1257
        %v4387 = vunpack.c.l.b16 %v1258
        %v4388 = vunpack.c.h.b16 %v1258
        %v4389 = vunpack.c.l.b16 %v1259
        %v4390 = vunpack.c.h.b16 %v1259
        %v4391 = vunpack.c.l.b16 %v1260
        %v4392 = vunpack.c.h.b16 %v1260
        %v4393 = vunpack.c.l.b16 %v1261
        %v4394 = vunpack.c.h.b16 %v1261
        %v4395 = vunpack.c.l.b16 %v1262
        %v4396 = vunpack.c.h.b16 %v1262
        %v4397 = vunpack.c.l.b16 %v1263
        %v4398 = vunpack.c.h.b16 %v1263
        %v4399 = vunpack.c.l.b16 %v1264
        %v4400 = vunpack.c.h.b16 %v1264
        %v4401 = vunpack.c.l.b16 %v1265
        %v4402 = vunpack.c.h.b16 %v1265
        %v4403 = vunpack.c.l.b16 %v1266
        %v4404 = vunpack.c.h.b16 %v1266
        %v4405 = vunpack.c.l.b16 %v1267
        %v4406 = vunpack.c.h.b16 %v1267
        %v4407 = vunpack.c.l.b16 %v1268
        %v4408 = vunpack.c.h.b16 %v1268
        %v4409 = vunpack.c.l.b16 %v1269
        %v4410 = vunpack.c.h.b16 %v1269
        %v4411 = vunpack.c.l.b16 %v1270
        %v4412 = vunpack.c.h.b16 %v1270
        %v4413 = vunpack.c.l.b16 %v1271
        %v4414 = vunpack.c.h.b16 %v1271
        %v4415 = vunpack.c.l.b16 %v1272
        %v4416 = vunpack.c.h.b16 %v1272
        %v4417 = vunpack.c.l.b16 %v1273
        %v4418 = vunpack.c.h.b16 %v1273
        %v4419 = vunpack.c.l.b16 %v1274
        %v4420 = vunpack.c.h.b16 %v1274
        %v4421 = vunpack.c.l.b16 %v1275
        %v4422 = vunpack.c.h.b16 %v1275
        %v4423 = vunpack.c.l.b16 %v1276
        %v4424 = vunpack.c.h.b16 %v1276
        %v4425 = vunpack.c.l.b16 %v1277
        %v4426 = vunpack.c.h.b16 %v1277
        %v4427 = vunpack.c.l.b16 %v1278
        %v4428 = vunpack.c.h.b16 %v1278
        %v4429 = vunpack.c.l.b16 %v1279
        %v4430 = vunpack.c.h.b16 %v1279
        %v4431 = vunpack.c.l.b16 %v1280
        %v4432 = vunpack.c.h.b16 %v1280
        %v4433 = vunpack.c.l.b16 %v1281
        %v4434 = vunpack.c.h.b16 %v1281
        %v4435 = vunpack.c.l.b16 %v1282
        %v4436 = vunpack.c.h.b16 %v1282
        %v4437 = vunpack.c.l.b16 %v1283
        %v4438 = vunpack.c.h.b16 %v1283
        %v4439 = vunpack.c.l.b16 %v1284
        %v4440 = vunpack.c.h.b16 %v1284
        %v4441 = vunpack.c.l.b16 %v1285
        %v4442 = vunpack.c.h.b16 %v1285
        %v4443 = vunpack.c.l.b16 %v1286
        %v4444 = vunpack.c.h.b16 %v1286
        %v4445 = vunpack.c.l.b16 %v1287
        %v4446 = vunpack.c.h.b16 %v1287
        %v4447 = vunpack.c.l.b16 %v1288
        %v4448 = vunpack.c.h.b16 %v1288
        %v4449 = vunpack.c.l.b16 %v1289
        %v4450 = vunpack.c.h.b16 %v1289
        %v4451 = vunpack.c.l.b16 %v1290
        %v4452 = vunpack.c.h.b16 %v1290
        %v4453 = vunpack.c.l.b16 %v1291
        %v4454 = vunpack.c.h.b16 %v1291
        %v4455 = vunpack.c.l.b16 %v1292
        %v4456 = vunpack.c.h.b16 %v1292
        %v4457 = vunpack.c.l.b16 %v1293
        %v4458 = vunpack.c.h.b16 %v1293
        %v4459 = vunpack.c.l.b16 %v1294
        %v4460 = vunpack.c.h.b16 %v1294
        %v4461 = vunpack.c.l.b16 %v1295
        %v4462 = vunpack.c.h.b16 %v1295
        %v4463 = vunpack.c.l.b16 %v1296
        %v4464 = vunpack.c.h.b16 %v1296
        %v4465 = vunpack.c.l.b16 %v1297
        %v4466 = vunpack.c.h.b16 %v1297
        %v4467 = vunpack.c.l.b16 %v1298
        %v4468 = vunpack.c.h.b16 %v1298
        %v4469 = vunpack.c.l.b16 %v1299
        %v4470 = vunpack.c.h.b16 %v1299
        %v4471 = vunpack.c.l.b16 %v1300
        %v4472 = vunpack.c.h.b16 %v1300
        %v4473 = vunpack.c.l.b16 %v1301
        %v4474 = vunpack.c.h.b16 %v1301
        %v4475 = vunpack.c.l.b16 %v1302
        %v4476 = vunpack.c.h.b16 %v1302
        %v4477 = vunpack.c.l.b16 %v1303
        %v4478 = vunpack.c.h.b16 %v1303
        %v4479 = vunpack.c.l.b16 %v1304
        %v4480 = vunpack.c.h.b16 %v1304
        %v4481 = vunpack.c.l.b16 %v1305
        %v4482 = vunpack.c.h.b16 %v1305
        %v4483 = vunpack.c.l.b16 %v1306
        %v4484 = vunpack.c.h.b16 %v1306
        %v4485 = vunpack.c.l.b16 %v1307
        %v4486 = vunpack.c.h.b16 %v1307
        %v4487 = vunpack.c.l.b16 %v1308
        %v4488 = vunpack.c.h.b16 %v1308
        %v4489 = vunpack.c.l.b16 %v1309
        %v4490 = vunpack.c.h.b16 %v1309
        %v4491 = vunpack.c.l.b16 %v1310
        %v4492 = vunpack.c.h.b16 %v1310
        %v4493 = vunpack.c.l.b16 %v1311
        %v4494 = vunpack.c.h.b16 %v1311
        %v4495 = vunpack.c.l.b16 %v1312
        %v4496 = vunpack.c.h.b16 %v1312
        %v4497 = vunpack.c.l.b16 %v1313
        %v4498 = vunpack.c.h.b16 %v1313
        %v4499 = vunpack.c.l.b16 %v1314
        %v4500 = vunpack.c.h.b16 %v1314
        %v4501 = vunpack.c.l.b16 %v1315
        %v4502 = vunpack.c.h.b16 %v1315
        %v4503 = vunpack.c.l.b16 %v1316
        %v4504 = vunpack.c.h.b16 %v1316
        %v4505 = vunpack.c.l.b16 %v1317
        %v4506 = vunpack.c.h.b16 %v1317
        %v4507 = vunpack.c.l.b16 %v1318
        %v4508 = vunpack.c.h.b16 %v1318
        %v4509 = vunpack.c.l.b16 %v1319
        %v4510 = vunpack.c.h.b16 %v1319
        %v4511 = vunpack.c.l.b16 %v1320
        %v4512 = vunpack.c.h.b16 %v1320
        %v4513 = vunpack.c.l.b16 %v1321
        %v4514 = vunpack.c.h.b16 %v1321
        %v4515 = vunpack.c.l.b16 %v1322
        %v4516 = vunpack.c.h.b16 %v1322
        %v4517 = vunpack.c.l.b16 %v1323
        %v4518 = vunpack.c.h.b16 %v1323
        %v4519 = vunpack.c.l.b16 %v1324
        %v4520 = vunpack.c.h.b16 %v1324
        %v4521 = vunpack.c.l.b16 %v1325
        %v4522 = vunpack.c.h.b16 %v1325
        %v4523 = vunpack.c.l.b16 %v1326
        %v4524 = vunpack.c.h.b16 %v1326
        %v4525 = vunpack.c.l.b16 %v1327
        %v4526 = vunpack.c.h.b16 %v1327
        %v4527 = vunpack.c.l.b16 %v1328
        %v4528 = vunpack.c.h.b16 %v1328
        %v4529 = vunpack.c.l.b16 %v1329
        %v4530 = vunpack.c.h.b16 %v1329
        %v4531 = vunpack.c.l.b16 %v1330
        %v4532 = vunpack.c.h.b16 %v1330
        %v4533 = vunpack.c.l.b16 %v1331
        %v4534 = vunpack.c.h.b16 %v1331
        %v4535 = vunpack.c.l.b16 %v1332
        %v4536 = vunpack.c.h.b16 %v1332
        %v4537 = vunpack.c.l.b16 %v1333
        %v4538 = vunpack.c.h.b16 %v1333
        %v4539 = vunpack.c.l.b16 %v1334
        %v4540 = vunpack.c.h.b16 %v1334
        %v4541 = vunpack.c.l.b16 %v1335
        %v4542 = vunpack.c.h.b16 %v1335
        %v4543 = vunpack.c.l.b16 %v1336
        %v4544 = vunpack.c.h.b16 %v1336
        %v4545 = vunpack.c.l.b16 %v1337
        %v4546 = vunpack.c.h.b16 %v1337
        %v4547 = vunpack.c.l.b16 %v1338
        %v4548 = vunpack.c.h.b16 %v1338
        %v4549 = vunpack.c.l.b16 %v1339
        %v4550 = vunpack.c.h.b16 %v1339
        %v4551 = vunpack.c.l.b16 %v1340
        %v4552 = vunpack.c.h.b16 %v1340
        %v4553 = vunpack.c.l.b16 %v1341
        %v4554 = vunpack.c.h.b16 %v1341
        %v4555 = vunpack.c.l.b16 %v1342
        %v4556 = vunpack.c.h.b16 %v1342
        %v4557 = vunpack.c.l.b16 %v1343
        %v4558 = vunpack.c.h.b16 %v1343
        %v4559 = vunpack.c.l.b16 %v1344
        %v4560 = vunpack.c.h.b16 %v1344
        %v4561 = vunpack.c.l.b16 %v1345
        %v4562 = vunpack.c.h.b16 %v1345
        %v4563 = vunpack.c.l.b16 %v1346
        %v4564 = vunpack.c.h.b16 %v1346
        %v4565 = vunpack.c.l.b16 %v1347
        %v4566 = vunpack.c.h.b16 %v1347
        %v4567 = vunpack.c.l.b16 %v1348
        %v4568 = vunpack.c.h.b16 %v1348
        %v4569 = vunpack.c.l.b16 %v1349
        %v4570 = vunpack.c.h.b16 %v1349
        %v4571 = vunpack.c.l.b16 %v1350
        %v4572 = vunpack.c.h.b16 %v1350
        %v4573 = vunpack.c.l.b16 %v1351
        %v4574 = vunpack.c.h.b16 %v1351
        %v4575 = vunpack.c.l.b16 %v1352
        %v4576 = vunpack.c.h.b16 %v1352
        %v4577 = vunpack.c.l.b16 %v1353
        %v4578 = vunpack.c.h.b16 %v1353
        %v4579 = vunpack.c.l.b16 %v1354
        %v4580 = vunpack.c.h.b16 %v1354
        %v4581 = vunpack.c.l.b16 %v1355
        %v4582 = vunpack.c.h.b16 %v1355
        %v4583 = vunpack.c.l.b16 %v1356
        %v4584 = vunpack.c.h.b16 %v1356
        %v4585 = vunpack.c.l.b16 %v1357
        %v4586 = vunpack.c.h.b16 %v1357
        %v4587 = vunpack.c.l.b16 %v1358
        %v4588 = vunpack.c.h.b16 %v1358
        %v4589 = vunpack.c.l.b16 %v1359
        %v4590 = vunpack.c.h.b16 %v1359
        %v4591 = vunpack.c.l.b16 %v1360
        %v4592 = vunpack.c.h.b16 %v1360
        %v4593 = vunpack.c.l.b16 %v1361
        %v4594 = vunpack.c.h.b16 %v1361
        %v4595 = vunpack.c.l.b16 %v1362
        %v4596 = vunpack.c.h.b16 %v1362
        %v4597 = vunpack.c.l.b16 %v1363
        %v4598 = vunpack.c.h.b16 %v1363
        %v4599 = vunpack.c.l.b16 %v1364
        %v4600 = vunpack.c.h.b16 %v1364
        %v4601 = vunpack.c.l.b16 %v1365
        %v4602 = vunpack.c.h.b16 %v1365
        %v4603 = vunpack.c.l.b16 %v1366
        %v4604 = vunpack.c.h.b16 %v1366
        %v4605 = vunpack.c.l.b16 %v1367
        %v4606 = vunpack.c.h.b16 %v1367
        %v4607 = vunpack.c.l.b16 %v1368
        %v4608 = vunpack.c.h.b16 %v1368
        %v4609 = vunpack.c.l.b16 %v1369
        %v4610 = vunpack.c.h.b16 %v1369
        %v4611 = vunpack.c.l.b16 %v1370
        %v4612 = vunpack.c.h.b16 %v1370
        %v4613 = vunpack.c.l.b16 %v1371
        %v4614 = vunpack.c.h.b16 %v1371
        %v4615 = vunpack.c.l.b16 %v1372
        %v4616 = vunpack.c.h.b16 %v1372
        %v4617 = vunpack.c.l.b16 %v1373
        %v4618 = vunpack.c.h.b16 %v1373
        %v4619 = vunpack.c.l.b16 %v1374
        %v4620 = vunpack.c.h.b16 %v1374
        %v4621 = vunpack.c.l.b16 %v1375
        %v4622 = vunpack.c.h.b16 %v1375
        %v4623 = vunpack.c.l.b16 %v1376
        %v4624 = vunpack.c.h.b16 %v1376
        %v4625 = vunpack.c.l.b16 %v1377
        %v4626 = vunpack.c.h.b16 %v1377
        %v4627 = vunpack.c.l.b16 %v1378
        %v4628 = vunpack.c.h.b16 %v1378
        %v4629 = vunpack.c.l.b16 %v1379
        %v4630 = vunpack.c.h.b16 %v1379
        %v4631 = vunpack.c.l.b16 %v1380
        %v4632 = vunpack.c.h.b16 %v1380
        %v4633 = vunpack.c.l.b16 %v1381
        %v4634 = vunpack.c.h.b16 %v1381
        %v4635 = vunpack.c.l.b16 %v1382
        %v4636 = vunpack.c.h.b16 %v1382
        %v4637 = vunpack.c.l.b16 %v1383
        %v4638 = vunpack.c.h.b16 %v1383
        %v4639 = vunpack.c.l.b16 %v1384
        %v4640 = vunpack.c.h.b16 %v1384
        %v4641 = vunpack.c.l.b16 %v1385
        %v4642 = vunpack.c.h.b16 %v1385
        %v4643 = vunpack.c.l.b16 %v1386
        %v4644 = vunpack.c.h.b16 %v1386
        %v4645 = vunpack.c.l.b16 %v1387
        %v4646 = vunpack.c.h.b16 %v1387
        %v4647 = vunpack.c.l.b16 %v1388
        %v4648 = vunpack.c.h.b16 %v1388
        %v4649 = vunpack.c.l.b16 %v1389
        %v4650 = vunpack.c.h.b16 %v1389
        %v4651 = vunpack.c.l.b16 %v1390
        %v4652 = vunpack.c.h.b16 %v1390
        %v4653 = vunpack.c.l.b16 %v1391
        %v4654 = vunpack.c.h.b16 %v1391
        %v4655 = vunpack.c.l.b16 %v1392
        %v4656 = vunpack.c.h.b16 %v1392
        %v4657 = vunpack.c.l.b16 %v1393
        %v4658 = vunpack.c.h.b16 %v1393
        %v4659 = vunpack.c.l.b16 %v1394
        %v4660 = vunpack.c.h.b16 %v1394
        %v4661 = vunpack.c.l.b16 %v1395
        %v4662 = vunpack.c.h.b16 %v1395
        %v4663 = vunpack.c.l.b16 %v1396
        %v4664 = vunpack.c.h.b16 %v1396
        %v4665 = vunpack.c.l.b16 %v1397
        %v4666 = vunpack.c.h.b16 %v1397
        %v4667 = vunpack.c.l.b16 %v1398
        %v4668 = vunpack.c.h.b16 %v1398
        %v4669 = vunpack.c.l.b16 %v1399
        %v4670 = vunpack.c.h.b16 %v1399
        %v4671 = vunpack.c.l.b16 %v1400
        %v4672 = vunpack.c.h.b16 %v1400
        %v4673 = vunpack.c.l.b16 %v1401
        %v4674 = vunpack.c.h.b16 %v1401
        %v4675 = vunpack.c.l.b16 %v1402
        %v4676 = vunpack.c.h.b16 %v1402
        %v4677 = vunpack.c.l.b16 %v1403
        %v4678 = vunpack.c.h.b16 %v1403
        %v4679 = vunpack.c.l.b16 %v1404
        %v4680 = vunpack.c.h.b16 %v1404
        %v4681 = vunpack.c.l.b16 %v1405
        %v4682 = vunpack.c.h.b16 %v1405
        %v4683 = vunpack.c.l.b16 %v1406
        %v4684 = vunpack.c.h.b16 %v1406
        %v4685 = vunpack.c.l.b16 %v1407
        %v4686 = vunpack.c.h.b16 %v1407
        %v4687 = vunpack.c.l.b16 %v1408
        %v4688 = vunpack.c.h.b16 %v1408
        %v4689 = vunpack.c.l.b16 %v1409
        %v4690 = vunpack.c.h.b16 %v1409
        %v4691 = vunpack.c.l.b16 %v1410
        %v4692 = vunpack.c.h.b16 %v1410
        %v4693 = vunpack.c.l.b16 %v1411
        %v4694 = vunpack.c.h.b16 %v1411
        %v4695 = vunpack.c.l.b16 %v1412
        %v4696 = vunpack.c.h.b16 %v1412
        %v4697 = vunpack.c.l.b16 %v1413
        %v4698 = vunpack.c.h.b16 %v1413
        %v4699 = vunpack.c.l.b16 %v1414
        %v4700 = vunpack.c.h.b16 %v1414
        %v4701 = vunpack.c.l.b16 %v1415
        %v4702 = vunpack.c.h.b16 %v1415
        %v4703 = vunpack.c.l.b16 %v1416
        %v4704 = vunpack.c.h.b16 %v1416
        %v4705 = vunpack.c.l.b16 %v1417
        %v4706 = vunpack.c.h.b16 %v1417
        %v4707 = vunpack.c.l.b16 %v1418
        %v4708 = vunpack.c.h.b16 %v1418
        %v4709 = vunpack.c.l.b16 %v1419
        %v4710 = vunpack.c.h.b16 %v1419
        %v4711 = vunpack.c.l.b16 %v1420
        %v4712 = vunpack.c.h.b16 %v1420
        %v4713 = vunpack.c.l.b16 %v1421
        %v4714 = vunpack.c.h.b16 %v1421
        %v4715 = vunpack.c.l.b16 %v1422
        %v4716 = vunpack.c.h.b16 %v1422
        %v4717 = vunpack.c.l.b16 %v1423
        %v4718 = vunpack.c.h.b16 %v1423
        %v4719 = vunpack.c.l.b16 %v1424
        %v4720 = vunpack.c.h.b16 %v1424
        %v4721 = vunpack.c.l.b16 %v1425
        %v4722 = vunpack.c.h.b16 %v1425
        %v4723 = vunpack.c.l.b16 %v1426
        %v4724 = vunpack.c.h.b16 %v1426
        %v4725 = vunpack.c.l.b16 %v1427
        %v4726 = vunpack.c.h.b16 %v1427
        %v4727 = vunpack.c.l.b16 %v1428
        %v4728 = vunpack.c.h.b16 %v1428
        %v4729 = vunpack.c.l.b16 %v1429
        %v4730 = vunpack.c.h.b16 %v1429
        %v4731 = vunpack.c.l.b16 %v1430
        %v4732 = vunpack.c.h.b16 %v1430
        %v4733 = vunpack.c.l.b16 %v1431
        %v4734 = vunpack.c.h.b16 %v1431
        %v4735 = vunpack.c.l.b16 %v1432
        %v4736 = vunpack.c.h.b16 %v1432
        %v4737 = vunpack.c.l.b16 %v1433
        %v4738 = vunpack.c.h.b16 %v1433
        %v4739 = vunpack.c.l.b16 %v1434
        %v4740 = vunpack.c.h.b16 %v1434
        %v4741 = vunpack.c.l.b16 %v1435
        %v4742 = vunpack.c.h.b16 %v1435
        %v4743 = vunpack.c.l.b16 %v1436
        %v4744 = vunpack.c.h.b16 %v1436
        %v4745 = vunpack.c.l.b16 %v1437
        %v4746 = vunpack.c.h.b16 %v1437
        %v4747 = vunpack.c.l.b16 %v1438
        %v4748 = vunpack.c.h.b16 %v1438
        %v4749 = vunpack.c.l.b16 %v1439
        %v4750 = vunpack.c.h.b16 %v1439
        %v4751 = vunpack.c.l.b16 %v1440
        %v4752 = vunpack.c.h.b16 %v1440
        %v4753 = vunpack.c.l.b16 %v1441
        %v4754 = vunpack.c.h.b16 %v1441
        %v4755 = vunpack.c.l.b16 %v1442
        %v4756 = vunpack.c.h.b16 %v1442
        %v4757 = vunpack.c.l.b16 %v1443
        %v4758 = vunpack.c.h.b16 %v1443
        %v4759 = vunpack.c.l.b16 %v1444
        %v4760 = vunpack.c.h.b16 %v1444
        %v4761 = vunpack.c.l.b16 %v1445
        %v4762 = vunpack.c.h.b16 %v1445
        %v4763 = vunpack.c.l.b16 %v1446
        %v4764 = vunpack.c.h.b16 %v1446
        %v4765 = vunpack.c.l.b16 %v1447
        %v4766 = vunpack.c.h.b16 %v1447
        %v4767 = vunpack.c.l.b16 %v1448
        %v4768 = vunpack.c.h.b16 %v1448
        %v4769 = vunpack.c.l.b16 %v1449
        %v4770 = vunpack.c.h.b16 %v1449
        %v4771 = vunpack.c.l.b16 %v1450
        %v4772 = vunpack.c.h.b16 %v1450
        %v4773 = vunpack.c.l.b16 %v1451
        %v4774 = vunpack.c.h.b16 %v1451
        %v4775 = vunpack.c.l.b16 %v1452
        %v4776 = vunpack.c.h.b16 %v1452
        %v4777 = vunpack.c.l.b16 %v1453
        %v4778 = vunpack.c.h.b16 %v1453
        %v4779 = vunpack.c.l.b16 %v1454
        %v4780 = vunpack.c.h.b16 %v1454
        %v4781 = vunpack.c.l.b16 %v1455
        %v4782 = vunpack.c.h.b16 %v1455
        %v4783 = vunpack.c.l.b16 %v1456
        %v4784 = vunpack.c.h.b16 %v1456
        %v4785 = vunpack.c.l.b16 %v1457
        %v4786 = vunpack.c.h.b16 %v1457
        %v4787 = vunpack.c.l.b16 %v1458
        %v4788 = vunpack.c.h.b16 %v1458
        %v4789 = vunpack.c.l.b16 %v1459
        %v4790 = vunpack.c.h.b16 %v1459
        %v4791 = vunpack.c.l.b16 %v1460
        %v4792 = vunpack.c.h.b16 %v1460
        %v4793 = vunpack.c.l.b16 %v1461
        %v4794 = vunpack.c.h.b16 %v1461
        %v4795 = vunpack.c.l.b16 %v1462
        %v4796 = vunpack.c.h.b16 %v1462
        %v4797 = vunpack.c.l.b16 %v1463
        %v4798 = vunpack.c.h.b16 %v1463
        %v4799 = vunpack.c.l.b16 %v1464
        %v4800 = vunpack.c.h.b16 %v1464
        %v4801 = vunpack.c.l.b16 %v1465
        %v4802 = vunpack.c.h.b16 %v1465
        %v4803 = vunpack.c.l.b16 %v1466
        %v4804 = vunpack.c.h.b16 %v1466
        %v4805 = vunpack.c.l.b16 %v1467
        %v4806 = vunpack.c.h.b16 %v1467
        %v4807 = vunpack.c.l.b16 %v1468
        %v4808 = vunpack.c.h.b16 %v1468
        %v4809 = vunpack.c.l.b16 %v1469
        %v4810 = vunpack.c.h.b16 %v1469
        %v4811 = vunpack.c.l.b16 %v1470
        %v4812 = vunpack.c.h.b16 %v1470
        %v4813 = vunpack.c.l.b16 %v1471
        %v4814 = vunpack.c.h.b16 %v1471
        %v4815 = vunpack.c.l.b16 %v1472
        %v4816 = vunpack.c.h.b16 %v1472
        %v4817 = vunpack.c.l.b16 %v1473
        %v4818 = vunpack.c.h.b16 %v1473
        %v4819 = vunpack.c.l.b16 %v1474
        %v4820 = vunpack.c.h.b16 %v1474
        %v4821 = vunpack.c.l.b16 %v1475
        %v4822 = vunpack.c.h.b16 %v1475
        %v4823 = vunpack.c.l.b16 %v1476
        %v4824 = vunpack.c.h.b16 %v1476
        %v4825 = vunpack.c.l.b16 %v1477
        %v4826 = vunpack.c.h.b16 %v1477
        %v4827 = vunpack.c.l.b16 %v1478
        %v4828 = vunpack.c.h.b16 %v1478
        %v4829 = vunpack.c.l.b16 %v1479
        %v4830 = vunpack.c.h.b16 %v1479
        %v4831 = vunpack.c.l.b16 %v1480
        %v4832 = vunpack.c.h.b16 %v1480
        %v4833 = vunpack.c.l.b16 %v1481
        %v4834 = vunpack.c.h.b16 %v1481
        %v4835 = vunpack.c.l.b16 %v1482
        %v4836 = vunpack.c.h.b16 %v1482
        %v4837 = vunpack.c.l.b16 %v1483
        %v4838 = vunpack.c.h.b16 %v1483
        %v4839 = vunpack.c.l.b16 %v1484
        %v4840 = vunpack.c.h.b16 %v1484
        %v4841 = vunpack.c.l.b16 %v1485
        %v4842 = vunpack.c.h.b16 %v1485
        %v4843 = vunpack.c.l.b16 %v1486
        %v4844 = vunpack.c.h.b16 %v1486
        %v4845 = vunpack.c.l.b16 %v1487
        %v4846 = vunpack.c.h.b16 %v1487
        %v4847 = vunpack.c.l.b16 %v1488
        %v4848 = vunpack.c.h.b16 %v1488
        %v4849 = vunpack.c.l.b16 %v1489
        %v4850 = vunpack.c.h.b16 %v1489
        %v4851 = vunpack.c.l.b16 %v1490
        %v4852 = vunpack.c.h.b16 %v1490
        %v4853 = vunpack.c.l.b16 %v1491
        %v4854 = vunpack.c.h.b16 %v1491
        %v4855 = vunpack.c.l.b16 %v1492
        %v4856 = vunpack.c.h.b16 %v1492
        %v4857 = vunpack.c.l.b16 %v1493
        %v4858 = vunpack.c.h.b16 %v1493
        %v4859 = vunpack.c.l.b16 %v1494
        %v4860 = vunpack.c.h.b16 %v1494
        %v4861 = vunpack.c.l.b16 %v1495
        %v4862 = vunpack.c.h.b16 %v1495
        %v4863 = vunpack.c.l.b16 %v1496
        %v4864 = vunpack.c.h.b16 %v1496
        %v4865 = vunpack.c.l.b16 %v1497
        %v4866 = vunpack.c.h.b16 %v1497
        %v4867 = vunpack.c.l.b16 %v1498
        %v4868 = vunpack.c.h.b16 %v1498
        %v4869 = vunpack.c.l.b16 %v1499
        %v4870 = vunpack.c.h.b16 %v1499
        %v4871 = vunpack.c.l.b16 %v1500
        %v4872 = vunpack.c.h.b16 %v1500
        %v4873 = vunpack.c.l.b16 %v1501
        %v4874 = vunpack.c.h.b16 %v1501
        %v4875 = vunpack.c.l.b16 %v1502
        %v4876 = vunpack.c.h.b16 %v1502
        %v4877 = vunpack.c.l.b16 %v1503
        %v4878 = vunpack.c.h.b16 %v1503
        %v4879 = vunpack.c.l.b16 %v1504
        %v4880 = vunpack.c.h.b16 %v1504
        %v4881 = vunpack.c.l.b16 %v1505
        %v4882 = vunpack.c.h.b16 %v1505
        %v4883 = vunpack.c.l.b16 %v1506
        %v4884 = vunpack.c.h.b16 %v1506
        %v4885 = vunpack.c.l.b16 %v1507
        %v4886 = vunpack.c.h.b16 %v1507
        %v4887 = vunpack.c.l.b16 %v1508
        %v4888 = vunpack.c.h.b16 %v1508
        %v4889 = vunpack.c.l.b16 %v1509
        %v4890 = vunpack.c.h.b16 %v1509
        %v4891 = vunpack.c.l.b16 %v1510
        %v4892 = vunpack.c.h.b16 %v1510
        %v4893 = vunpack.c.l.b16 %v1511
        %v4894 = vunpack.c.h.b16 %v1511
        %v4895 = vunpack.c.l.b16 %v1512
        %v4896 = vunpack.c.h.b16 %v1512
        %v4897 = vunpack.c.l.b16 %v1513
        %v4898 = vunpack.c.h.b16 %v1513
        %v4899 = vunpack.c.l.b16 %v1514
        %v4900 = vunpack.c.h.b16 %v1514
        %v4901 = vunpack.c.l.b16 %v1515
        %v4902 = vunpack.c.h.b16 %v1515
        %v4903 = vunpack.c.l.b16 %v1516
        %v4904 = vunpack.c.h.b16 %v1516
        %v4905 = vunpack.c.l.b16 %v1517
        %v4906 = vunpack.c.h.b16 %v1517
        %v4907 = vunpack.c.l.b16 %v1518
        %v4908 = vunpack.c.h.b16 %v1518
        %v4909 = vunpack.c.l.b16 %v1519
        %v4910 = vunpack.c.h.b16 %v1519
        %v4911 = vunpack.c.l.b16 %v1520
        %v4912 = vunpack.c.h.b16 %v1520
        %v4913 = vunpack.c.l.b16 %v1521
        %v4914 = vunpack.c.h.b16 %v1521
        %v4915 = vunpack.c.l.b16 %v1522
        %v4916 = vunpack.c.h.b16 %v1522
        %v4917 = vunpack.c.l.b16 %v1523
        %v4918 = vunpack.c.h.b16 %v1523
        %v4919 = vunpack.c.l.b16 %v1524
        %v4920 = vunpack.c.h.b16 %v1524
        %v4921 = vunpack.c.l.b16 %v1525
        %v4922 = vunpack.c.h.b16 %v1525
        %v4923 = vunpack.c.l.b16 %v1526
        %v4924 = vunpack.c.h.b16 %v1526
        %v4925 = vunpack.c.l.b16 %v1527
        %v4926 = vunpack.c.h.b16 %v1527
        %v4927 = vunpack.c.l.b16 %v1528
        %v4928 = vunpack.c.h.b16 %v1528
        %v4929 = vunpack.c.l.b16 %v1529
        %v4930 = vunpack.c.h.b16 %v1529
        %v4931 = vunpack.c.l.b16 %v1530
        %v4932 = vunpack.c.h.b16 %v1530
        %v4933 = vunpack.c.l.b16 %v1531
        %v4934 = vunpack.c.h.b16 %v1531
        %v4935 = vunpack.c.l.b16 %v1532
        %v4936 = vunpack.c.h.b16 %v1532
        %v4937 = vunpack.c.l.b16 %v1533
        %v4938 = vunpack.c.h.b16 %v1533
        %v4939 = vunpack.c.l.b16 %v1534
        %v4940 = vunpack.c.h.b16 %v1534
        %v4941 = vunpack.c.l.b16 %v1535
        %v4942 = vunpack.c.h.b16 %v1535
        %v4943 = vunpack.c.l.b16 %v1536
        %v4944 = vunpack.c.h.b16 %v1536
        %v4945 = vunpack.c.l.b16 %v1537
        %v4946 = vunpack.c.h.b16 %v1537
        %v4947 = vunpack.c.l.b16 %v1538
        %v4948 = vunpack.c.h.b16 %v1538
        %v4949 = vunpack.c.l.b16 %v1539
        %v4950 = vunpack.c.h.b16 %v1539
        %v4951 = vunpack.c.l.b16 %v1540
        %v4952 = vunpack.c.h.b16 %v1540
        %v4953 = vunpack.c.l.b16 %v1541
        %v4954 = vunpack.c.h.b16 %v1541
        %v4955 = vunpack.c.l.b16 %v1542
        %v4956 = vunpack.c.h.b16 %v1542
        %v4957 = vunpack.c.l.b16 %v1543
        %v4958 = vunpack.c.h.b16 %v1543
        %v4959 = vunpack.c.l.b16 %v1544
        %v4960 = vunpack.c.h.b16 %v1544
        %v4961 = vunpack.c.l.b16 %v1545
        %v4962 = vunpack.c.h.b16 %v1545
        %v4963 = vunpack.c.l.b16 %v1546
        %v4964 = vunpack.c.h.b16 %v1546
        %v4965 = vunpack.c.l.b16 %v1547
        %v4966 = vunpack.c.h.b16 %v1547
        %v4967 = vunpack.c.l.b16 %v1548
        %v4968 = vunpack.c.h.b16 %v1548
        %v4969 = vunpack.c.l.b16 %v1549
        %v4970 = vunpack.c.h.b16 %v1549
        %v4971 = vunpack.c.l.b16 %v1550
        %v4972 = vunpack.c.h.b16 %v1550
        %v4973 = vunpack.c.l.b16 %v1551
        %v4974 = vunpack.c.h.b16 %v1551
        %v4975 = vunpack.c.l.b16 %v1552
        %v4976 = vunpack.c.h.b16 %v1552
        %v4977 = vunpack.c.l.b16 %v1553
        %v4978 = vunpack.c.h.b16 %v1553
        %v4979 = vunpack.c.l.b16 %v1554
        %v4980 = vunpack.c.h.b16 %v1554
        %v4981 = vunpack.c.l.b16 %v1555
        %v4982 = vunpack.c.h.b16 %v1555
        %v4983 = vunpack.c.l.b16 %v1556
        %v4984 = vunpack.c.h.b16 %v1556
        %v4985 = vunpack.c.l.b16 %v1557
        %v4986 = vunpack.c.h.b16 %v1557
        %v4987 = vunpack.c.l.b16 %v1558
        %v4988 = vunpack.c.h.b16 %v1558
        %v4989 = vunpack.c.l.b16 %v1559
        %v4990 = vunpack.c.h.b16 %v1559
        %v4991 = vunpack.c.l.b16 %v1560
        %v4992 = vunpack.c.h.b16 %v1560
        %v4993 = vunpack.c.l.b16 %v1561
        %v4994 = vunpack.c.h.b16 %v1561
        %v4995 = vunpack.c.l.b16 %v1562
        %v4996 = vunpack.c.h.b16 %v1562
        %v4997 = vunpack.c.l.b16 %v1563
        %v4998 = vunpack.c.h.b16 %v1563
        %v4999 = vunpack.c.l.b16 %v1564
        %v5000 = vunpack.c.h.b16 %v1564
        %v5001 = vunpack.c.l.b16 %v1565
        %v5002 = vunpack.c.h.b16 %v1565
        %v5003 = vunpack.c.l.b16 %v1566
        %v5004 = vunpack.c.h.b16 %v1566
        %v5005 = vunpack.c.l.b16 %v1567
        %v5006 = vunpack.c.h.b16 %v1567
        %v5007 = vunpack.c.l.b16 %v1568
        %v5008 = vunpack.c.h.b16 %v1568
        %v5009 = vunpack.c.l.b16 %v1569
        %v5010 = vunpack.c.h.b16 %v1569
        %v5011 = vunpack.c.l.b16 %v1570
        %v5012 = vunpack.c.h.b16 %v1570
        %v5013 = vunpack.c.l.b16 %v1571
        %v5014 = vunpack.c.h.b16 %v1571
        %v5015 = vunpack.c.l.b16 %v1572
        %v5016 = vunpack.c.h.b16 %v1572
        %v5017 = vunpack.c.l.b16 %v1573
        %v5018 = vunpack.c.h.b16 %v1573
        %v5019 = vunpack.c.l.b16 %v1574
        %v5020 = vunpack.c.h.b16 %v1574
        %v5021 = vunpack.c.l.b16 %v1575
        %v5022 = vunpack.c.h.b16 %v1575
        %v5023 = vunpack.c.l.b16 %v1576
        %v5024 = vunpack.c.h.b16 %v1576
        %v5025 = vunpack.c.l.b16 %v1577
        %v5026 = vunpack.c.h.b16 %v1577
        %v5027 = vunpack.c.l.b16 %v1578
        %v5028 = vunpack.c.h.b16 %v1578
        %v5029 = vunpack.c.l.b16 %v1579
        %v5030 = vunpack.c.h.b16 %v1579
        %v5031 = vunpack.c.l.b16 %v1580
        %v5032 = vunpack.c.h.b16 %v1580
        %v5033 = vunpack.c.l.b16 %v1581
        %v5034 = vunpack.c.h.b16 %v1581
        %v5035 = vunpack.c.l.b16 %v1582
        %v5036 = vunpack.c.h.b16 %v1582
        %v5037 = vunpack.c.l.b16 %v1583
        %v5038 = vunpack.c.h.b16 %v1583
        %v5039 = vunpack.c.l.b16 %v1584
        %v5040 = vunpack.c.h.b16 %v1584
        %v5041 = vunpack.c.l.b16 %v1585
        %v5042 = vunpack.c.h.b16 %v1585
        %v5043 = vunpack.c.l.b16 %v1586
        %v5044 = vunpack.c.h.b16 %v1586
        %v5045 = vunpack.c.l.b16 %v1587
        %v5046 = vunpack.c.h.b16 %v1587
        %v5047 = vunpack.c.l.b16 %v1588
        %v5048 = vunpack.c.h.b16 %v1588
        %v5049 = vunpack.c.l.b16 %v1589
        %v5050 = vunpack.c.h.b16 %v1589
        %v5051 = vunpack.c.l.b16 %v1590
        %v5052 = vunpack.c.h.b16 %v1590
        %v5053 = vunpack.c.l.b16 %v1591
        %v5054 = vunpack.c.h.b16 %v1591
        %v5055 = vunpack.c.l.b16 %v1592
        %v5056 = vunpack.c.h.b16 %v1592
        %v5057 = vunpack.c.l.b16 %v1593
        %v5058 = vunpack.c.h.b16 %v1593
        %v5059 = vunpack.c.l.b16 %v1594
        %v5060 = vunpack.c.h.b16 %v1594
        %v5061 = vunpack.c.l.b16 %v1595
        %v5062 = vunpack.c.h.b16 %v1595
        %v5063 = vunpack.c.l.b16 %v1596
        %v5064 = vunpack.c.h.b16 %v1596
        %v5065 = vunpack.c.l.b16 %v1597
        %v5066 = vunpack.c.h.b16 %v1597
        %v5067 = vunpack.c.l.b16 %v1598
        %v5068 = vunpack.c.h.b16 %v1598
        %v5069 = vunpack.c.l.b16 %v1599
        %v5070 = vunpack.c.h.b16 %v1599
        %v5071 = vunpack.c.l.b16 %v1600
        %v5072 = vunpack.c.h.b16 %v1600
        %v5073 = vunpack.c.l.b16 %v1601
        %v5074 = vunpack.c.h.b16 %v1601
        %v5075 = vunpack.c.l.b16 %v1602
        %v5076 = vunpack.c.h.b16 %v1602
        %v5077 = vunpack.c.l.b16 %v1603
        %v5078 = vunpack.c.h.b16 %v1603
        %v5079 = vunpack.c.l.b16 %v1604
        %v5080 = vunpack.c.h.b16 %v1604
        %v5081 = vunpack.c.l.b16 %v1605
        %v5082 = vunpack.c.h.b16 %v1605
        %v5083 = vunpack.c.l.b16 %v1606
        %v5084 = vunpack.c.h.b16 %v1606
        %v5085 = vunpack.c.l.b16 %v1607
        %v5086 = vunpack.c.h.b16 %v1607
        %v5087 = vunpack.c.l.b16 %v1608
        %v5088 = vunpack.c.h.b16 %v1608
        %v5089 = vunpack.c.l.b16 %v1609
        %v5090 = vunpack.c.h.b16 %v1609
        %v5091 = vunpack.c.l.b16 %v1610
        %v5092 = vunpack.c.h.b16 %v1610
        %v5093 = vunpack.c.l.b16 %v1611
        %v5094 = vunpack.c.h.b16 %v1611
        %v5095 = vunpack.c.l.b16 %v1612
        %v5096 = vunpack.c.h.b16 %v1612
        %v5097 = vunpack.c.l.b16 %v1613
        %v5098 = vunpack.c.h.b16 %v1613
        %v5099 = vunpack.c.l.b16 %v1614
        %v5100 = vunpack.c.h.b16 %v1614
        %v5101 = vunpack.c.l.b16 %v1615
        %v5102 = vunpack.c.h.b16 %v1615
        %v5103 = vunpack.c.l.b16 %v1616
        %v5104 = vunpack.c.h.b16 %v1616
        %v5105 = vunpack.c.l.b16 %v1617
        %v5106 = vunpack.c.h.b16 %v1617
        %v5107 = vunpack.c.l.b16 %v1618
        %v5108 = vunpack.c.h.b16 %v1618
        %v5109 = vunpack.c.l.b16 %v1619
        %v5110 = vunpack.c.h.b16 %v1619
        %v5111 = vunpack.c.l.b16 %v1620
        %v5112 = vunpack.c.h.b16 %v1620
        %v5113 = vunpack.c.l.b16 %v1621
        %v5114 = vunpack.c.h.b16 %v1621
        %v5115 = vunpack.c.l.b16 %v1622
        %v5116 = vunpack.c.h.b16 %v1622
        %v5117 = vunpack.c.l.b16 %v1623
        %v5118 = vunpack.c.h.b16 %v1623
        %v5119 = vunpack.c.l.b16 %v1624
        %v5120 = vunpack.c.h.b16 %v1624
        %v5121 = vunpack.c.l.b16 %v1625
        %v5122 = vunpack.c.h.b16 %v1625
        %v5123 = vunpack.c.l.b16 %v1626
        %v5124 = vunpack.c.h.b16 %v1626
        %v5125 = vunpack.c.l.b16 %v1627
        %v5126 = vunpack.c.h.b16 %v1627
        %v5127 = vunpack.c.l.b16 %v1628
        %v5128 = vunpack.c.h.b16 %v1628
        %v5129 = vunpack.c.l.b16 %v1629
        %v5130 = vunpack.c.h.b16 %v1629
        %v5131 = vunpack.c.l.b16 %v1630
        %v5132 = vunpack.c.h.b16 %v1630
        %v5133 = vunpack.c.l.b16 %v1631
        %v5134 = vunpack.c.h.b16 %v1631
        %v5135 = vunpack.c.l.b16 %v1632
        %v5136 = vunpack.c.h.b16 %v1632
        %v5137 = vunpack.c.l.b16 %v1633
        %v5138 = vunpack.c.h.b16 %v1633
        %v5139 = vunpack.c.l.b16 %v1634
        %v5140 = vunpack.c.h.b16 %v1634
        %v5141 = vunpack.c.l.b16 %v1635
        %v5142 = vunpack.c.h.b16 %v1635
        %v5143 = vunpack.c.l.b16 %v1636
        %v5144 = vunpack.c.h.b16 %v1636
        %v5145 = vunpack.c.l.b16 %v1637
        %v5146 = vunpack.c.h.b16 %v1637
        %v5147 = vunpack.c.l.b16 %v1638
        %v5148 = vunpack.c.h.b16 %v1638
        %v5149 = vunpack.c.l.b16 %v1639
        %v5150 = vunpack.c.h.b16 %v1639
        %v5151 = vunpack.c.l.b16 %v1640
        %v5152 = vunpack.c.h.b16 %v1640
        %v5153 = vunpack.c.l.b16 %v1641
        %v5154 = vunpack.c.h.b16 %v1641
        %v5155 = vunpack.c.l.b16 %v1642
        %v5156 = vunpack.c.h.b16 %v1642
        %v5157 = vunpack.c.l.b16 %v1643
        %v5158 = vunpack.c.h.b16 %v1643
        %v5159 = vunpack.c.l.b16 %v1644
        %v5160 = vunpack.c.h.b16 %v1644
        %v5161 = vunpack.c.l.b16 %v1645
        %v5162 = vunpack.c.h.b16 %v1645
        %v5163 = vunpack.c.l.b16 %v1646
        %v5164 = vunpack.c.h.b16 %v1646
        %v5165 = vunpack.c.l.b16 %v1647
        %v5166 = vunpack.c.h.b16 %v1647
        %v5167 = vunpack.c.l.b16 %v1648
        %v5168 = vunpack.c.h.b16 %v1648
        %v5169 = vunpack.c.l.b16 %v1649
        %v5170 = vunpack.c.h.b16 %v1649
        %v5171 = vunpack.c.l.b16 %v1650
        %v5172 = vunpack.c.h.b16 %v1650
        %v5173 = vunpack.c.l.b16 %v1651
        %v5174 = vunpack.c.h.b16 %v1651
        %v5175 = vunpack.c.l.b16 %v1652
        %v5176 = vunpack.c.h.b16 %v1652
        %v5177 = vunpack.c.l.b16 %v1653
        %v5178 = vunpack.c.h.b16 %v1653
        %v5179 = vunpack.c.l.b16 %v1654
        %v5180 = vunpack.c.h.b16 %v1654
        %v5181 = vunpack.c.l.b16 %v1655
        %v5182 = vunpack.c.h.b16 %v1655
        %v5183 = vunpack.c.l.b16 %v1656
        %v5184 = vunpack.c.h.b16 %v1656
        %v5185 = vunpack.c.l.b16 %v1657
        %v5186 = vunpack.c.h.b16 %v1657
        %v5187 = vunpack.c.l.b16 %v1658
        %v5188 = vunpack.c.h.b16 %v1658
        %v5189 = vunpack.c.l.b16 %v1659
        %v5190 = vunpack.c.h.b16 %v1659
        %v5191 = vunpack.c.l.b16 %v1660
        %v5192 = vunpack.c.h.b16 %v1660
        %v5193 = vunpack.c.l.b16 %v1661
        %v5194 = vunpack.c.h.b16 %v1661
        %v5195 = vunpack.c.l.b16 %v1662
        %v5196 = vunpack.c.h.b16 %v1662
        %v5197 = vunpack.c.l.b16 %v1663
        %v5198 = vunpack.c.h.b16 %v1663
        %v5199 = vunpack.c.l.b16 %v1664
        %v5200 = vunpack.c.h.b16 %v1664
        %v5201 = vunpack.c.l.b16 %v1665
        %v5202 = vunpack.c.h.b16 %v1665
        %v5203 = vunpack.c.l.b16 %v1666
        %v5204 = vunpack.c.h.b16 %v1666
        %v5205 = vunpack.c.l.b16 %v1667
        %v5206 = vunpack.c.h.b16 %v1667
        %v5207 = vunpack.c.l.b16 %v1668
        %v5208 = vunpack.c.h.b16 %v1668
        %v5209 = vunpack.c.l.b16 %v1669
        %v5210 = vunpack.c.h.b16 %v1669
        %v5211 = vunpack.c.l.b16 %v1670
        %v5212 = vunpack.c.h.b16 %v1670
        %v5213 = vunpack.c.l.b16 %v1671
        %v5214 = vunpack.c.h.b16 %v1671
        %v5215 = vunpack.c.l.b16 %v1672
        %v5216 = vunpack.c.h.b16 %v1672
        %v5217 = vunpack.c.l.b16 %v1673
        %v5218 = vunpack.c.h.b16 %v1673
        %v5219 = vunpack.c.l.b16 %v1674
        %v5220 = vunpack.c.h.b16 %v1674
        %v5221 = vunpack.c.l.b16 %v1675
        %v5222 = vunpack.c.h.b16 %v1675
        %v5223 = vunpack.c.l.b16 %v1676
        %v5224 = vunpack.c.h.b16 %v1676
        %v5225 = vunpack.c.l.b16 %v1677
        %v5226 = vunpack.c.h.b16 %v1677
        %v5227 = vunpack.c.l.b16 %v1678
        %v5228 = vunpack.c.h.b16 %v1678
        %v5229 = vunpack.c.l.b16 %v1679
        %v5230 = vunpack.c.h.b16 %v1679
        %v5231 = vunpack.c.l.b16 %v1680
        %v5232 = vunpack.c.h.b16 %v1680
        %v5233 = vunpack.c.l.b16 %v1681
        %v5234 = vunpack.c.h.b16 %v1681
        %v5235 = vunpack.c.l.b16 %v1682
        %v5236 = vunpack.c.h.b16 %v1682
        %v5237 = vunpack.c.l.b16 %v1683
        %v5238 = vunpack.c.h.b16 %v1683
        %v5239 = vunpack.c.l.b16 %v1684
        %v5240 = vunpack.c.h.b16 %v1684
        %v5241 = vunpack.c.l.b16 %v1685
        %v5242 = vunpack.c.h.b16 %v1685
        %v5243 = vunpack.c.l.b16 %v1686
        %v5244 = vunpack.c.h.b16 %v1686
        %v5245 = vunpack.c.l.b16 %v1687
        %v5246 = vunpack.c.h.b16 %v1687
        %v5247 = vunpack.c.l.b16 %v1688
        %v5248 = vunpack.c.h.b16 %v1688
        %v5249 = vunpack.c.l.b16 %v1689
        %v5250 = vunpack.c.h.b16 %v1689
        %v5251 = vunpack.c.l.b16 %v1690
        %v5252 = vunpack.c.h.b16 %v1690
        %v5253 = vunpack.c.l.b16 %v1691
        %v5254 = vunpack.c.h.b16 %v1691
        %v5255 = vunpack.c.l.b16 %v1692
        %v5256 = vunpack.c.h.b16 %v1692
        %v5257 = vunpack.c.l.b16 %v1693
        %v5258 = vunpack.c.h.b16 %v1693
        %v5259 = vunpack.c.l.b16 %v1694
        %v5260 = vunpack.c.h.b16 %v1694
        %v5261 = vunpack.c.l.b16 %v1695
        %v5262 = vunpack.c.h.b16 %v1695
        %v5263 = vunpack.c.l.b16 %v1696
        %v5264 = vunpack.c.h.b16 %v1696
        %v5265 = vunpack.c.l.b16 %v1697
        %v5266 = vunpack.c.h.b16 %v1697
        %v5267 = vunpack.c.l.b16 %v1698
        %v5268 = vunpack.c.h.b16 %v1698
        %v5269 = vunpack.c.l.b16 %v1699
        %v5270 = vunpack.c.h.b16 %v1699
        %v5271 = vunpack.c.l.b16 %v1700
        %v5272 = vunpack.c.h.b16 %v1700
        %v5273 = vunpack.c.l.b16 %v1701
        %v5274 = vunpack.c.h.b16 %v1701
        %v5275 = vunpack.c.l.b16 %v1702
        %v5276 = vunpack.c.h.b16 %v1702
        %v5277 = vunpack.c.l.b16 %v1703
        %v5278 = vunpack.c.h.b16 %v1703
        %v5279 = vunpack.c.l.b16 %v1704
        %v5280 = vunpack.c.h.b16 %v1704
        %v5281 = vunpack.c.l.b16 %v1705
        %v5282 = vunpack.c.h.b16 %v1705
        %v5283 = vunpack.c.l.b16 %v1706
        %v5284 = vunpack.c.h.b16 %v1706
        %v5285 = vunpack.c.l.b16 %v1707
        %v5286 = vunpack.c.h.b16 %v1707
        %v5287 = vunpack.c.l.b16 %v1708
        %v5288 = vunpack.c.h.b16 %v1708
        %v5289 = vunpack.c.l.b16 %v1709
        %v5290 = vunpack.c.h.b16 %v1709
        %v5291 = vunpack.c.l.b16 %v1710
        %v5292 = vunpack.c.h.b16 %v1710
        %v5293 = vunpack.c.l.b16 %v1711
        %v5294 = vunpack.c.h.b16 %v1711
        %v5295 = vunpack.c.l.b16 %v1712
        %v5296 = vunpack.c.h.b16 %v1712
        %v5297 = vunpack.c.l.b16 %v1713
        %v5298 = vunpack.c.h.b16 %v1713
        %v5299 = vunpack.c.l.b16 %v1714
        %v5300 = vunpack.c.h.b16 %v1714
        %v5301 = vunpack.c.l.b16 %v1715
        %v5302 = vunpack.c.h.b16 %v1715
        %v5303 = vunpack.c.l.b16 %v1716
        %v5304 = vunpack.c.h.b16 %v1716
        %v5305 = vunpack.c.l.b16 %v1717
        %v5306 = vunpack.c.h.b16 %v1717
        %v5307 = vunpack.c.l.b16 %v1718
        %v5308 = vunpack.c.h.b16 %v1718
        %v5309 = vunpack.c.l.b16 %v1719
        %v5310 = vunpack.c.h.b16 %v1719
        %v5311 = vunpack.c.l.b16 %v1720
        %v5312 = vunpack.c.h.b16 %v1720
        %v5313 = vunpack.c.l.b16 %v1721
        %v5314 = vunpack.c.h.b16 %v1721
        %v5315 = vunpack.c.l.b16 %v1722
        %v5316 = vunpack.c.h.b16 %v1722
        %v5317 = vunpack.c.l.b16 %v1723
        %v5318 = vunpack.c.h.b16 %v1723
        %v5319 = vunpack.c.l.b16 %v1724
        %v5320 = vunpack.c.h.b16 %v1724
        %v5321 = vunpack.c.l.b16 %v1725
        %v5322 = vunpack.c.h.b16 %v1725
        %v5323 = vunpack.c.l.b16 %v1726
        %v5324 = vunpack.c.h.b16 %v1726
        %v5325 = vunpack.c.l.b16 %v1727
        %v5326 = vunpack.c.h.b16 %v1727
        %v5327 = vunpack.c.l.b16 %v1728
        %v5328 = vunpack.c.h.b16 %v1728
        %v5329 = vunpack.c.l.b16 %v1729
        %v5330 = vunpack.c.h.b16 %v1729
        %v5331 = vunpack.c.l.b16 %v1730
        %v5332 = vunpack.c.h.b16 %v1730
        %v5333 = vunpack.c.l.b16 %v1731
        %v5334 = vunpack.c.h.b16 %v1731
        %v5335 = vunpack.c.l.b16 %v1732
        %v5336 = vunpack.c.h.b16 %v1732
        %v5337 = vunpack.c.l.b16 %v1733
        %v5338 = vunpack.c.h.b16 %v1733
        %v5339 = vunpack.c.l.b16 %v1734
        %v5340 = vunpack.c.h.b16 %v1734
        %v5341 = vunpack.c.l.b16 %v1735
        %v5342 = vunpack.c.h.b16 %v1735
        %v5343 = vunpack.c.l.b16 %v1736
        %v5344 = vunpack.c.h.b16 %v1736
        %v5345 = vunpack.c.l.b16 %v1737
        %v5346 = vunpack.c.h.b16 %v1737
        %v5347 = vunpack.c.l.b16 %v1738
        %v5348 = vunpack.c.h.b16 %v1738
        %v5349 = vunpack.c.l.b16 %v1739
        %v5350 = vunpack.c.h.b16 %v1739
        %v5351 = vunpack.c.l.b16 %v1740
        %v5352 = vunpack.c.h.b16 %v1740
        %v5353 = vunpack.c.l.b16 %v1741
        %v5354 = vunpack.c.h.b16 %v1741
        %v5355 = vunpack.c.l.b16 %v1742
        %v5356 = vunpack.c.h.b16 %v1742
        %v5357 = vunpack.c.l.b16 %v1743
        %v5358 = vunpack.c.h.b16 %v1743
        %v5359 = vunpack.c.l.b16 %v1744
        %v5360 = vunpack.c.h.b16 %v1744
        %v5361 = vunpack.c.l.b16 %v1745
        %v5362 = vunpack.c.h.b16 %v1745
        %v5363 = vunpack.c.l.b16 %v1746
        %v5364 = vunpack.c.h.b16 %v1746
        %v5365 = vunpack.c.l.b16 %v1747
        %v5366 = vunpack.c.h.b16 %v1747
        %v5367 = vunpack.c.l.b16 %v1748
        %v5368 = vunpack.c.h.b16 %v1748
        %v5369 = vunpack.c.l.b16 %v1749
        %v5370 = vunpack.c.h.b16 %v1749
        %v5371 = vunpack.c.l.b16 %v1750
        %v5372 = vunpack.c.h.b16 %v1750
        %v5373 = vunpack.c.l.b16 %v1751
        %v5374 = vunpack.c.h.b16 %v1751
        %v5375 = vunpack.c.l.b16 %v1752
        %v5376 = vunpack.c.h.b16 %v1752
        %v5377 = vunpack.c.l.b16 %v1753
        %v5378 = vunpack.c.h.b16 %v1753
        %v5379 = vunpack.c.l.b16 %v1754
        %v5380 = vunpack.c.h.b16 %v1754
        %v5381 = vunpack.c.l.b16 %v1755
        %v5382 = vunpack.c.h.b16 %v1755
        %v5383 = vunpack.c.l.b16 %v1756
        %v5384 = vunpack.c.h.b16 %v1756
        %v5385 = vunpack.c.l.b16 %v1757
        %v5386 = vunpack.c.h.b16 %v1757
        %v5387 = vunpack.c.l.b16 %v1758
        %v5388 = vunpack.c.h.b16 %v1758
        %v5389 = vunpack.c.l.b16 %v1759
        %v5390 = vunpack.c.h.b16 %v1759
        %v5391 = vunpack.c.l.b16 %v1760
        %v5392 = vunpack.c.h.b16 %v1760
        %v5393 = vunpack.c.l.b16 %v1761
        %v5394 = vunpack.c.h.b16 %v1761
        %v5395 = vunpack.c.l.b16 %v1762
        %v5396 = vunpack.c.h.b16 %v1762
        %v5397 = vunpack.c.l.b16 %v1763
        %v5398 = vunpack.c.h.b16 %v1763
        %v5399 = vunpack.c.l.b16 %v1764
        %v5400 = vunpack.c.h.b16 %v1764
        %v5401 = vunpack.c.l.b16 %v1765
        %v5402 = vunpack.c.h.b16 %v1765
        %v5403 = vunpack.c.l.b16 %v1766
        %v5404 = vunpack.c.h.b16 %v1766
        %v5405 = vunpack.c.l.b16 %v1767
        %v5406 = vunpack.c.h.b16 %v1767
        %v5407 = vunpack.c.l.b16 %v1768
        %v5408 = vunpack.c.h.b16 %v1768
        %v5409 = vunpack.c.l.b16 %v1769
        %v5410 = vunpack.c.h.b16 %v1769
        %v5411 = vunpack.c.l.b16 %v1770
        %v5412 = vunpack.c.h.b16 %v1770
        %v5413 = vunpack.c.l.b16 %v1771
        %v5414 = vunpack.c.h.b16 %v1771
        %v5415 = vunpack.c.l.b16 %v1772
        %v5416 = vunpack.c.h.b16 %v1772
        %v5417 = vunpack.c.l.b16 %v1773
        %v5418 = vunpack.c.h.b16 %v1773
        %v5419 = vunpack.c.l.b16 %v1774
        %v5420 = vunpack.c.h.b16 %v1774
        %v5421 = vunpack.c.l.b16 %v1775
        %v5422 = vunpack.c.h.b16 %v1775
        %v5423 = vunpack.c.l.b16 %v1776
        %v5424 = vunpack.c.h.b16 %v1776
        %v5425 = vunpack.c.l.b16 %v1777
        %v5426 = vunpack.c.h.b16 %v1777
        %v5427 = vunpack.c.l.b16 %v1778
        %v5428 = vunpack.c.h.b16 %v1778
        %v5429 = vunpack.c.l.b16 %v1779
        %v5430 = vunpack.c.h.b16 %v1779
        %v5431 = vunpack.c.l.b16 %v1780
        %v5432 = vunpack.c.h.b16 %v1780
        %v5433 = vunpack.c.l.b16 %v1781
        %v5434 = vunpack.c.h.b16 %v1781
        %v5435 = vunpack.c.l.b16 %v1782
        %v5436 = vunpack.c.h.b16 %v1782
        %v5437 = vunpack.c.l.b16 %v1783
        %v5438 = vunpack.c.h.b16 %v1783
        %v5439 = vunpack.c.l.b16 %v1784
        %v5440 = vunpack.c.h.b16 %v1784
        %v5441 = vunpack.c.l.b16 %v1785
        %v5442 = vunpack.c.h.b16 %v1785
        %v5443 = vunpack.c.l.b16 %v1786
        %v5444 = vunpack.c.h.b16 %v1786
        %v5445 = vunpack.c.l.b16 %v1787
        %v5446 = vunpack.c.h.b16 %v1787
        %v5447 = vunpack.c.l.b16 %v1788
        %v5448 = vunpack.c.h.b16 %v1788
        %v5449 = vunpack.c.l.b16 %v1789
        %v5450 = vunpack.c.h.b16 %v1789
        %v5451 = vunpack.c.l.b16 %v1790
        %v5452 = vunpack.c.h.b16 %v1790
        %v5453 = vunpack.c.l.b16 %v1791
        %v5454 = vunpack.c.h.b16 %v1791
        %v5455 = vunpack.c.l.b16 %v1792
        %v5456 = vunpack.c.h.b16 %v1792
        %v5457 = vunpack.c.l.b16 %v1793
        %v5458 = vunpack.c.h.b16 %v1793
        %v5459 = vunpack.c.l.b16 %v1794
        %v5460 = vunpack.c.h.b16 %v1794
        %v5461 = vunpack.c.l.b16 %v1795
        %v5462 = vunpack.c.h.b16 %v1795
        %v5463 = vunpack.c.l.b16 %v1796
        %v5464 = vunpack.c.h.b16 %v1796
        %v5465 = vunpack.c.l.b16 %v1797
        %v5466 = vunpack.c.h.b16 %v1797
        %v5467 = vunpack.c.l.b16 %v1798
        %v5468 = vunpack.c.h.b16 %v1798
        %v5469 = vunpack.c.l.b16 %v1799
        %v5470 = vunpack.c.h.b16 %v1799
        %v5471 = vunpack.c.l.b16 %v1800
        %v5472 = vunpack.c.h.b16 %v1800
        %v5473 = vunpack.c.l.b16 %v1801
        %v5474 = vunpack.c.h.b16 %v1801
        %v5475 = vunpack.c.l.b16 %v1802
        %v5476 = vunpack.c.h.b16 %v1802
        %v5477 = vunpack.c.l.b16 %v1803
        %v5478 = vunpack.c.h.b16 %v1803
        %v5479 = vunpack.c.l.b16 %v1804
        %v5480 = vunpack.c.h.b16 %v1804
        %v5481 = vunpack.c.l.b16 %v1805
        %v5482 = vunpack.c.h.b16 %v1805
        %v5483 = vunpack.c.l.b16 %v1806
        %v5484 = vunpack.c.h.b16 %v1806
        %v5485 = vunpack.c.l.b16 %v1807
        %v5486 = vunpack.c.h.b16 %v1807
        %v5487 = vunpack.c.l.b16 %v1808
        %v5488 = vunpack.c.h.b16 %v1808
        %v5489 = vunpack.c.l.b16 %v1809
        %v5490 = vunpack.c.h.b16 %v1809
        %v5491 = vunpack.c.l.b16 %v1810
        %v5492 = vunpack.c.h.b16 %v1810
        %v5493 = vunpack.c.l.b16 %v1811
        %v5494 = vunpack.c.h.b16 %v1811
        %v5495 = vunpack.c.l.b16 %v1812
        %v5496 = vunpack.c.h.b16 %v1812
        %v5497 = vunpack.c.l.b16 %v1813
        %v5498 = vunpack.c.h.b16 %v1813
        %v5499 = vunpack.c.l.b16 %v1814
        %v5500 = vunpack.c.h.b16 %v1814
        %v5501 = vunpack.c.l.b16 %v1815
        %v5502 = vunpack.c.h.b16 %v1815
        %v5503 = vunpack.c.l.b16 %v1816
        %v5504 = vunpack.c.h.b16 %v1816
        %v5505 = vunpack.c.l.b16 %v1817
        %v5506 = vunpack.c.h.b16 %v1817
        %v5507 = vunpack.c.l.b16 %v1818
        %v5508 = vunpack.c.h.b16 %v1818
        %v5509 = vunpack.c.l.b16 %v1819
        %v5510 = vunpack.c.h.b16 %v1819
        %v5511 = vunpack.c.l.b16 %v1820
        %v5512 = vunpack.c.h.b16 %v1820
        %v5513 = vunpack.c.l.b16 %v1821
        %v5514 = vunpack.c.h.b16 %v1821
        %v5515 = vunpack.c.l.b16 %v1822
        %v5516 = vunpack.c.h.b16 %v1822
        %v5517 = vunpack.c.l.b16 %v1823
        %v5518 = vunpack.c.h.b16 %v1823
        %v5519 = vunpack.c.l.b16 %v1824
        %v5520 = vunpack.c.h.b16 %v1824
        %v5521 = vunpack.c.l.b16 %v1825
        %v5522 = vunpack.c.h.b16 %v1825
        %v5523 = vunpack.c.l.b16 %v1826
        %v5524 = vunpack.c.h.b16 %v1826
        %v5525 = vunpack.c.l.b16 %v1827
        %v5526 = vunpack.c.h.b16 %v1827
        %v5527 = vunpack.c.l.b16 %v1828
        %v5528 = vunpack.c.h.b16 %v1828
        %v5529 = vunpack.c.l.b16 %v1829
        %v5530 = vunpack.c.h.b16 %v1829
        %v5531 = vunpack.c.l.b16 %v1830
        %v5532 = vunpack.c.h.b16 %v1830
        %v5533 = vunpack.c.l.b16 %v1831
        %v5534 = vunpack.c.h.b16 %v1831
        %v5535 = vunpack.c.l.b16 %v1832
        %v5536 = vunpack.c.h.b16 %v1832
        %v5537 = vunpack.c.l.b16 %v1833
        %v5538 = vunpack.c.h.b16 %v1833
        %v5539 = vunpack.c.l.b16 %v1834
        %v5540 = vunpack.c.h.b16 %v1834
        %v5541 = vunpack.c.l.b16 %v1835
        %v5542 = vunpack.c.h.b16 %v1835
        %v5543 = vunpack.c.l.b16 %v1836
        %v5544 = vunpack.c.h.b16 %v1836
        %v5545 = vunpack.c.l.b16 %v1837
        %v5546 = vunpack.c.h.b16 %v1837
        %v5547 = vunpack.c.l.b16 %v1838
        %v5548 = vunpack.c.h.b16 %v1838
        %v5549 = vunpack.c.l.b16 %v1839
        %v5550 = vunpack.c.h.b16 %v1839
        %v5551 = vunpack.c.l.b16 %v1840
        %v5552 = vunpack.c.h.b16 %v1840
        %v5553 = vunpack.c.l.b16 %v1841
        %v5554 = vunpack.c.h.b16 %v1841
        %v5555 = vunpack.c.l.b16 %v1842
        %v5556 = vunpack.c.h.b16 %v1842
        %v5557 = vunpack.c.l.b16 %v1843
        %v5558 = vunpack.c.h.b16 %v1843
        %v5559 = vunpack.c.l.b16 %v1844
        %v5560 = vunpack.c.h.b16 %v1844
        %v5561 = vunpack.c.l.b16 %v1845
        %v5562 = vunpack.c.h.b16 %v1845
        %v5563 = vunpack.c.l.b16 %v1846
        %v5564 = vunpack.c.h.b16 %v1846
        %v5565 = vunpack.c.l.b16 %v1847
        %v5566 = vunpack.c.h.b16 %v1847
        %v5567 = vunpack.c.l.b16 %v1848
        %v5568 = vunpack.c.h.b16 %v1848
        %v5569 = vunpack.c.l.b16 %v1849
        %v5570 = vunpack.c.h.b16 %v1849
        %v5571 = vunpack.c.l.b16 %v1850
        %v5572 = vunpack.c.h.b16 %v1850
        %v5573 = vunpack.c.l.b16 %v1851
        %v5574 = vunpack.c.h.b16 %v1851
        %v5575 = vunpack.c.l.b16 %v1852
        %v5576 = vunpack.c.h.b16 %v1852
        %v5577 = vunpack.c.l.b16 %v1853
        %v5578 = vunpack.c.h.b16 %v1853
        %v5579 = vunpack.c.l.b16 %v1854
        %v5580 = vunpack.c.h.b16 %v1854
        %v5581 = vunpack.c.l.b16 %v1855
        %v5582 = vunpack.c.h.b16 %v1855
        %v5583 = vunpack.c.l.b16 %v1856
        %v5584 = vunpack.c.h.b16 %v1856
        %v5585 = vunpack.c.l.b16 %v1857
        %v5586 = vunpack.c.h.b16 %v1857
        %v5587 = vunpack.c.l.b16 %v1858
        %v5588 = vunpack.c.h.b16 %v1858
        %v5589 = vunpack.c.l.b16 %v1859
        %v5590 = vunpack.c.h.b16 %v1859
        %v5591 = vunpack.c.l.b16 %v1860
        %v5592 = vunpack.c.h.b16 %v1860
        %v5593 = vunpack.c.l.b16 %v1861
        %v5594 = vunpack.c.h.b16 %v1861
        %v5595 = vunpack.c.l.b16 %v1862
        %v5596 = vunpack.c.h.b16 %v1862
        %v5597 = vunpack.c.l.b16 %v1863
        %v5598 = vunpack.c.h.b16 %v1863
        %v5599 = vunpack.c.l.b16 %v1864
        %v5600 = vunpack.c.h.b16 %v1864
        %v5601 = vunpack.c.l.b16 %v1865
        %v5602 = vunpack.c.h.b16 %v1865
        %v5603 = vunpack.c.l.b16 %v1866
        %v5604 = vunpack.c.h.b16 %v1866
        %v5605 = vunpack.c.l.b16 %v1867
        %v5606 = vunpack.c.h.b16 %v1867
        %v5607 = vunpack.c.l.b16 %v1868
        %v5608 = vunpack.c.h.b16 %v1868
        %v5609 = vunpack.c.l.b16 %v1869
        %v5610 = vunpack.c.h.b16 %v1869
        %v5611 = vunpack.c.l.b16 %v1870
        %v5612 = vunpack.c.h.b16 %v1870
        %v5613 = vunpack.c.l.b16 %v1871
        %v5614 = vunpack.c.h.b16 %v1871
        %v5615 = vunpack.c.l.b16 %v1872
        %v5616 = vunpack.c.h.b16 %v1872
        %v5617 = vunpack.c.l.b16 %v1873
        %v5618 = vunpack.c.h.b16 %v1873
        %v5619 = vunpack.c.l.b16 %v1874
        %v5620 = vunpack.c.h.b16 %v1874
        %v5621 = vunpack.c.l.b16 %v1875
        %v5622 = vunpack.c.h.b16 %v1875
        %v5623 = vunpack.c.l.b16 %v1876
        %v5624 = vunpack.c.h.b16 %v1876
        %v5625 = vunpack.c.l.b16 %v1877
        %v5626 = vunpack.c.h.b16 %v1877
        %v5627 = vunpack.c.l.b16 %v1878
        %v5628 = vunpack.c.h.b16 %v1878
        %v5629 = vunpack.c.l.b16 %v1879
        %v5630 = vunpack.c.h.b16 %v1879
        %v5631 = vunpack.c.l.b16 %v1880
        %v5632 = vunpack.c.h.b16 %v1880
        %v5633 = vunpack.c.l.b16 %v1881
        %v5634 = vunpack.c.h.b16 %v1881
        %v5635 = vunpack.c.l.b16 %v1882
        %v5636 = vunpack.c.h.b16 %v1882
        %v5637 = vunpack.c.l.b16 %v1883
        %v5638 = vunpack.c.h.b16 %v1883
        %v5639 = vunpack.c.l.b16 %v1884
        %v5640 = vunpack.c.h.b16 %v1884
        %v5641 = vunpack.c.l.b16 %v1885
        %v5642 = vunpack.c.h.b16 %v1885
        %v5643 = vunpack.c.l.b16 %v1886
        %v5644 = vunpack.c.h.b16 %v1886
        %v5645 = vunpack.c.l.b16 %v1887
        %v5646 = vunpack.c.h.b16 %v1887
        %v5647 = vunpack.c.l.b16 %v1888
        %v5648 = vunpack.c.h.b16 %v1888
        %v5649 = vunpack.c.l.b16 %v1889
        %v5650 = vunpack.c.h.b16 %v1889
        %v5651 = vunpack.c.l.b16 %v1890
        %v5652 = vunpack.c.h.b16 %v1890
        %v5653 = vunpack.c.l.b16 %v1891
        %v5654 = vunpack.c.h.b16 %v1891
        %v5655 = vunpack.c.l.b16 %v1892
        %v5656 = vunpack.c.h.b16 %v1892
        %v5657 = vunpack.c.l.b16 %v1893
        %v5658 = vunpack.c.h.b16 %v1893
        %v5659 = vunpack.c.l.b16 %v1894
        %v5660 = vunpack.c.h.b16 %v1894
        %v5661 = vunpack.c.l.b16 %v1895
        %v5662 = vunpack.c.h.b16 %v1895
        %v5663 = vunpack.c.l.b16 %v1896
        %v5664 = vunpack.c.h.b16 %v1896
        %v5665 = vunpack.c.l.b16 %v1897
        %v5666 = vunpack.c.h.b16 %v1897
        %v5667 = vunpack.c.l.b16 %v1898
        %v5668 = vunpack.c.h.b16 %v1898
        %v5669 = vunpack.c.l.b16 %v1899
        %v5670 = vunpack.c.h.b16 %v1899
        %v5671 = vunpack.c.l.b16 %v1900
        %v5672 = vunpack.c.h.b16 %v1900
        %v5673 = vunpack.c.l.b16 %v1901
        %v5674 = vunpack.c.h.b16 %v1901
        %v5675 = vunpack.c.l.b16 %v1902
        %v5676 = vunpack.c.h.b16 %v1902
        %v5677 = vunpack.c.l.b16 %v1903
        %v5678 = vunpack.c.h.b16 %v1903
        %v5679 = vunpack.c.l.b16 %v1904
        %v5680 = vunpack.c.h.b16 %v1904
        %v5681 = vunpack.c.l.b16 %v1905
        %v5682 = vunpack.c.h.b16 %v1905
        %v5683 = vunpack.c.l.b16 %v1906
        %v5684 = vunpack.c.h.b16 %v1906
        %v5685 = vunpack.c.l.b16 %v1907
        %v5686 = vunpack.c.h.b16 %v1907
        %v5687 = vunpack.c.l.b16 %v1908
        %v5688 = vunpack.c.h.b16 %v1908
        %v5689 = vunpack.c.l.b16 %v1909
        %v5690 = vunpack.c.h.b16 %v1909
        %v5691 = vunpack.c.l.b16 %v1910
        %v5692 = vunpack.c.h.b16 %v1910
        %v5693 = vunpack.c.l.b16 %v1911
        %v5694 = vunpack.c.h.b16 %v1911
        %v5695 = vunpack.c.l.b16 %v1912
        %v5696 = vunpack.c.h.b16 %v1912
        %v5697 = vunpack.c.l.b16 %v1913
        %v5698 = vunpack.c.h.b16 %v1913
        %v5699 = vunpack.c.l.b16 %v1914
        %v5700 = vunpack.c.h.b16 %v1914
        %v5701 = vunpack.c.l.b16 %v1915
        %v5702 = vunpack.c.h.b16 %v1915
        %v5703 = vunpack.c.l.b16 %v1916
        %v5704 = vunpack.c.h.b16 %v1916
        %v5705 = vunpack.c.l.b16 %v1917
        %v5706 = vunpack.c.h.b16 %v1917
        %v5707 = vunpack.c.l.b16 %v1918
        %v5708 = vunpack.c.h.b16 %v1918
        %v5709 = vunpack.c.l.b16 %v1919
        %v5710 = vunpack.c.h.b16 %v1919
        %v5711 = vunpack.c.l.b16 %v1920
        %v5712 = vunpack.c.h.b16 %v1920
        %v5713 = vunpack.c.l.b16 %v1921
        %v5714 = vunpack.c.h.b16 %v1921
        %v5715 = vunpack.c.l.b16 %v1922
        %v5716 = vunpack.c.h.b16 %v1922
        %v5717 = vunpack.c.l.b16 %v1923
        %v5718 = vunpack.c.h.b16 %v1923
        %v5719 = vunpack.c.l.b16 %v1924
        %v5720 = vunpack.c.h.b16 %v1924
        %v5721 = vunpack.c.l.b16 %v1925
        %v5722 = vunpack.c.h.b16 %v1925
        %v5723 = vunpack.c.l.b16 %v1926
        %v5724 = vunpack.c.h.b16 %v1926
        %v5725 = vunpack.c.l.b16 %v1927
        %v5726 = vunpack.c.h.b16 %v1927
        %v5727 = vunpack.c.l.b16 %v1928
        %v5728 = vunpack.c.h.b16 %v1928
        %v5729 = vunpack.c.l.b16 %v1929
        %v5730 = vunpack.c.h.b16 %v1929
        %v5731 = vunpack.c.l.b16 %v1930
        %v5732 = vunpack.c.h.b16 %v1930
        %v5733 = vunpack.c.l.b16 %v1931
        %v5734 = vunpack.c.h.b16 %v1931
        %v5735 = vunpack.c.l.b16 %v1932
        %v5736 = vunpack.c.h.b16 %v1932
        %v5737 = vunpack.c.l.b16 %v1933
        %v5738 = vunpack.c.h.b16 %v1933
        %v5739 = vunpack.c.l.b16 %v1934
        %v5740 = vunpack.c.h.b16 %v1934
        %v5741 = vunpack.c.l.b16 %v1935
        %v5742 = vunpack.c.h.b16 %v1935
        %v5743 = vunpack.c.l.b16 %v1936
        %v5744 = vunpack.c.h.b16 %v1936
        %v5745 = vunpack.c.l.b16 %v1937
        %v5746 = vunpack.c.h.b16 %v1937
        %v5747 = vunpack.c.l.b16 %v1938
        %v5748 = vunpack.c.h.b16 %v1938
        %v5749 = vunpack.c.l.b16 %v1939
        %v5750 = vunpack.c.h.b16 %v1939
        %v5751 = vunpack.c.l.b16 %v1940
        %v5752 = vunpack.c.h.b16 %v1940
        %v5753 = vunpack.c.l.b16 %v1941
        %v5754 = vunpack.c.h.b16 %v1941
        %v5755 = vunpack.c.l.b16 %v1942
        %v5756 = vunpack.c.h.b16 %v1942
        %v5757 = vunpack.c.l.b16 %v1943
        %v5758 = vunpack.c.h.b16 %v1943
        %v5759 = vunpack.c.l.b16 %v1944
        %v5760 = vunpack.c.h.b16 %v1944
        %v5761 = vunpack.c.l.b16 %v1945
        %v5762 = vunpack.c.h.b16 %v1945
        %v5763 = vunpack.c.l.b16 %v1946
        %v5764 = vunpack.c.h.b16 %v1946
        %v5765 = vunpack.c.l.b16 %v1947
        %v5766 = vunpack.c.h.b16 %v1947
        %v5767 = vunpack.c.l.b16 %v1948
        %v5768 = vunpack.c.h.b16 %v1948
        %v5769 = vunpack.c.l.b16 %v1949
        %v5770 = vunpack.c.h.b16 %v1949
        %v5771 = vunpack.c.l.b16 %v1950
        %v5772 = vunpack.c.h.b16 %v1950
        %v5773 = vunpack.c.l.b16 %v1951
        %v5774 = vunpack.c.h.b16 %v1951
        %v5775 = vunpack.c.l.b16 %v1952
        %v5776 = vunpack.c.h.b16 %v1952
        %v5777 = vunpack.c.l.b16 %v1953
        %v5778 = vunpack.c.h.b16 %v1953
        %v5779 = vunpack.c.l.b16 %v1954
        %v5780 = vunpack.c.h.b16 %v1954
        %v5781 = vunpack.c.l.b16 %v1955
        %v5782 = vunpack.c.h.b16 %v1955
        %v5783 = vunpack.c.l.b16 %v1956
        %v5784 = vunpack.c.h.b16 %v1956
        %v5785 = vunpack.c.l.b16 %v1957
        %v5786 = vunpack.c.h.b16 %v1957
        %v5787 = vunpack.c.l.b16 %v1958
        %v5788 = vunpack.c.h.b16 %v1958
        %v5789 = vunpack.c.l.b16 %v1959
        %v5790 = vunpack.c.h.b16 %v1959
        %v5791 = vunpack.c.l.b16 %v1960
        %v5792 = vunpack.c.h.b16 %v1960
        %v5793 = vunpack.c.l.b16 %v1961
        %v5794 = vunpack.c.h.b16 %v1961
        %v5795 = vunpack.c.l.b16 %v1962
        %v5796 = vunpack.c.h.b16 %v1962
        %v5797 = vunpack.c.l.b16 %v1963
        %v5798 = vunpack.c.h.b16 %v1963
        %v5799 = vunpack.c.l.b16 %v1964
        %v5800 = vunpack.c.h.b16 %v1964
        %v5801 = vunpack.c.l.b16 %v1965
        %v5802 = vunpack.c.h.b16 %v1965
        %v5803 = vunpack.c.l.b16 %v1966
        %v5804 = vunpack.c.h.b16 %v1966
        %v5805 = vunpack.c.l.b16 %v1967
        %v5806 = vunpack.c.h.b16 %v1967
        %v5807 = vunpack.c.l.b16 %v1968
        %v5808 = vunpack.c.h.b16 %v1968
        %v5809 = vunpack.c.l.b16 %v1969
        %v5810 = vunpack.c.h.b16 %v1969
        %v5811 = vunpack.c.l.b16 %v1970
        %v5812 = vunpack.c.h.b16 %v1970
        %v5813 = vunpack.c.l.b16 %v1971
        %v5814 = vunpack.c.h.b16 %v1971
        %v5815 = vunpack.c.l.b16 %v1972
        %v5816 = vunpack.c.h.b16 %v1972
        %v5817 = vunpack.c.l.b16 %v1973
        %v5818 = vunpack.c.h.b16 %v1973
        %v5819 = vunpack.c.l.b16 %v1974
        %v5820 = vunpack.c.h.b16 %v1974
        %v5821 = vunpack.c.l.b16 %v1975
        %v5822 = vunpack.c.h.b16 %v1975
        %v5823 = vunpack.c.l.b16 %v1976
        %v5824 = vunpack.c.h.b16 %v1976
        %v5825 = vunpack.c.l.b16 %v1977
        %v5826 = vunpack.c.h.b16 %v1977
        %v5827 = vunpack.c.l.b16 %v1978
        %v5828 = vunpack.c.h.b16 %v1978
        %v5829 = vunpack.c.l.b16 %v1979
        %v5830 = vunpack.c.h.b16 %v1979
        %v5831 = vunpack.c.l.b16 %v1980
        %v5832 = vunpack.c.h.b16 %v1980
        %v5833 = vunpack.c.l.b16 %v1981
        %v5834 = vunpack.c.h.b16 %v1981
        %v5835 = vunpack.c.l.b16 %v1982
        %v5836 = vunpack.c.h.b16 %v1982
        %v5837 = vunpack.c.l.b16 %v1983
        %v5838 = vunpack.c.h.b16 %v1983
        %v5839 = vunpack.c.l.b16 %v1984
        %v5840 = vunpack.c.h.b16 %v1984
        %v5841 = vunpack.c.l.b16 %v1985
        %v5842 = vunpack.c.h.b16 %v1985
        %v5843 = vunpack.c.l.b16 %v1986
        %v5844 = vunpack.c.h.b16 %v1986
        %v5845 = vunpack.c.l.b16 %v1987
        %v5846 = vunpack.c.h.b16 %v1987
        %v5847 = vunpack.c.l.b16 %v1988
        %v5848 = vunpack.c.h.b16 %v1988
        %v5849 = vunpack.c.l.b16 %v1989
        %v5850 = vunpack.c.h.b16 %v1989
        %v5851 = vunpack.c.l.b16 %v1990
        %v5852 = vunpack.c.h.b16 %v1990
        %v5853 = vunpack.c.l.b16 %v1991
        %v5854 = vunpack.c.h.b16 %v1991
        %v5855 = vunpack.c.l.b16 %v1992
        %v5856 = vunpack.c.h.b16 %v1992
        %v5857 = vunpack.c.l.b16 %v1993
        %v5858 = vunpack.c.h.b16 %v1993
        %v5859 = vunpack.c.l.b16 %v1994
        %v5860 = vunpack.c.h.b16 %v1994
        %v5861 = vunpack.c.l.b16 %v1995
        %v5862 = vunpack.c.h.b16 %v1995
        %v5863 = vunpack.c.l.b16 %v1996
        %v5864 = vunpack.c.h.b16 %v1996
        %v5865 = vunpack.c.l.b16 %v1997
        %v5866 = vunpack.c.h.b16 %v1997
        %v5867 = vunpack.c.l.b16 %v1998
        %v5868 = vunpack.c.h.b16 %v1998
        %v5869 = vunpack.c.l.b16 %v1999
        %v5870 = vunpack.c.h.b16 %v1999
        %v5871 = vunpack.c.l.b16 %v2000
        %v5872 = vunpack.c.h.b16 %v2000
        %v5873 = vunpack.c.l.b16 %v2001
        %v5874 = vunpack.c.h.b16 %v2001
        %v5875 = vunpack.c.l.b16 %v2002
        %v5876 = vunpack.c.h.b16 %v2002
        %v5877 = vunpack.c.l.b16 %v2003
        %v5878 = vunpack.c.h.b16 %v2003
        %v5879 = vunpack.c.l.b16 %v2004
        %v5880 = vunpack.c.h.b16 %v2004
        %v5881 = vunpack.c.l.b16 %v2005
        %v5882 = vunpack.c.h.b16 %v2005
        %v5883 = vunpack.c.l.b16 %v2006
        %v5884 = vunpack.c.h.b16 %v2006
        %v5885 = vunpack.c.l.b16 %v2007
        %v5886 = vunpack.c.h.b16 %v2007
        %v5887 = vunpack.c.l.b16 %v2008
        %v5888 = vunpack.c.h.b16 %v2008
        %v5889 = vunpack.c.l.b16 %v2009
        %v5890 = vunpack.c.h.b16 %v2009
        %v5891 = vunpack.c.l.b16 %v2010
        %v5892 = vunpack.c.h.b16 %v2010
        %v5893 = vpack.c.b16 %v3341, %v3333
        %v5894 = vpack.c.b16 %v3342, %v3334
        %v5895 = vpack.c.b16 %v3343, %v3335
        %v5896 = vpack.c.b16 %v3344, %v3336
        %v5897 = vpack.c.b16 %v3345, %v3337
        %v5898 = vpack.c.b16 %v3346, %v3338
        %v5899 = vpack.c.b16 %v3347, %v3339
        %v5900 = vpack.c.b16 %v3348, %v3340
        %v5901 = vpack.c.b16 %v3357, %v3349
        %v5902 = vpack.c.b16 %v3358, %v3350
        %v5903 = vpack.c.b16 %v3359, %v3351
        %v5904 = vpack.c.b16 %v3360, %v3352
        %v5905 = vpack.c.b16 %v3361, %v3353
        %v5906 = vpack.c.b16 %v3362, %v3354
        %v5907 = vpack.c.b16 %v3363, %v3355
        %v5908 = vpack.c.b16 %v3364, %v3356
        %v5909 = vpack.c.b16 %v3373, %v3365
        %v5910 = vpack.c.b16 %v3374, %v3366
        %v5911 = vpack.c.b16 %v3375, %v3367
        %v5912 = vpack.c.b16 %v3376, %v3368
        %v5913 = vpack.c.b16 %v3377, %v3369
        %v5914 = vpack.c.b16 %v3378, %v3370
        %v5915 = vpack.c.b16 %v3379, %v3371
        %v5916 = vpack.c.b16 %v3380, %v3372
        %v5917 = vpack.c.b16 %v3389, %v3381
        %v5918 = vpack.c.b16 %v3390, %v3382
        %v5919 = vpack.c.b16 %v3391, %v3383
        %v5920 = vpack.c.b16 %v3392, %v3384
        %v5921 = vpack.c.b16 %v3393, %v3385
        %v5922 = vpack.c.b16 %v3394, %v3386
        %v5923 = vpack.c.b16 %v3395, %v3387
        %v5924 = vpack.c.b16 %v3396, %v3388
        %v5925 = vpack.c.b16 %v3405, %v3397
        %v5926 = vpack.c.b16 %v3406, %v3398
        %v5927 = vpack.c.b16 %v3407, %v3399
        %v5928 = vpack.c.b16 %v3408, %v3400
        %v5929 = vpack.c.b16 %v3409, %v3401
        %v5930 = vpack.c.b16 %v3410, %v3402
        %v5931 = vpack.c.b16 %v3411, %v3403
        %v5932 = vpack.c.b16 %v3412, %v3404
        %v5933 = vpack.c.b16 %v3421, %v3413
        %v5934 = vpack.c.b16 %v3422, %v3414
        %v5935 = vpack.c.b16 %v3423, %v3415
        %v5936 = vpack.c.b16 %v3424, %v3416
        %v5937 = vpack.c.b16 %v3425, %v3417
        %v5938 = vpack.c.b16 %v3426, %v3418
        %v5939 = vpack.c.b16 %v3427, %v3419
        %v5940 = vpack.c.b16 %v3428, %v3420
        %v5941 = vpack.c.b16 %v3437, %v3429
        %v5942 = vpack.c.b16 %v3438, %v3430
        %v5943 = vpack.c.b16 %v3439, %v3431
        %v5944 = vpack.c.b16 %v3440, %v3432
        %v5945 = vpack.c.b16 %v3441, %v3433
        %v5946 = vpack.c.b16 %v3442, %v3434
        %v5947 = vpack.c.b16 %v3443, %v3435
        %v5948 = vpack.c.b16 %v3444, %v3436
        %v5949 = vpack.c.b16 %v3453, %v3445
        %v5950 = vpack.c.b16 %v3454, %v3446
        %v5951 = vpack.c.b16 %v3455, %v3447
        %v5952 = vpack.c.b16 %v3456, %v3448
        %v5953 = vpack.c.b16 %v3457, %v3449
        %v5954 = vpack.c.b16 %v3458, %v3450
        %v5955 = vpack.c.b16 %v3459, %v3451
        %v5956 = vpack.c.b16 %v3460, %v3452
        %v5957 = vpack.c.b16 %v3469, %v3461
        %v5958 = vpack.c.b16 %v3470, %v3462
        %v5959 = vpack.c.b16 %v3471, %v3463
        %v5960 = vpack.c.b16 %v3472, %v3464
        %v5961 = vpack.c.b16 %v3473, %v3465
        %v5962 = vpack.c.b16 %v3474, %v3466
        %v5963 = vpack.c.b16 %v3475, %v3467
        %v5964 = vpack.c.b16 %v3476, %v3468
        %v5965 = vpack.c.b16 %v3485, %v3477
        %v5966 = vpack.c.b16 %v3486, %v3478
        %v5967 = vpack.c.b16 %v3487, %v3479
        %v5968 = vpack.c.b16 %v3488, %v3480
        %v5969 = vpack.c.b16 %v3489, %v3481
        %v5970 = vpack.c.b16 %v3490, %v3482
        %v5971 = vpack.c.b16 %v3491, %v3483
        %v5972 = vpack.c.b16 %v3492, %v3484
        %v5973 = vpack.c.b16 %v3501, %v3493
        %v5974 = vpack.c.b16 %v3502, %v3494
        %v5975 = vpack.c.b16 %v3503, %v3495
        %v5976 = vpack.c.b16 %v3504, %v3496
        %v5977 = vpack.c.b16 %v3505, %v3497
        %v5978 = vpack.c.b16 %v3506, %v3498
        %v5979 = vpack.c.b16 %v3507, %v3499
        %v5980 = vpack.c.b16 %v3508, %v3500
        %v5981 = vpack.c.b16 %v3517, %v3509
        %v5982 = vpack.c.b16 %v3518, %v3510
        %v5983 = vpack.c.b16 %v3519, %v3511
        %v5984 = vpack.c.b16 %v3520, %v3512
        %v5985 = vpack.c.b16 %v3521, %v3513
        %v5986 = vpack.c.b16 %v3522, %v3514
        %v5987 = vpack.c.b16 %v3523, %v3515
        %v5988 = vpack.c.b16 %v3524, %v3516
        %v5989 = vpack.c.b16 %v3533, %v3525
        %v5990 = vpack.c.b16 %v3534, %v3526
        %v5991 = vpack.c.b16 %v3535, %v3527
        %v5992 = vpack.c.b16 %v3536, %v3528
        %v5993 = vpack.c.b16 %v3537, %v3529
        %v5994 = vpack.c.b16 %v3538, %v3530
        %v5995 = vpack.c.b16 %v3539, %v3531
        %v5996 = vpack.c.b16 %v3540, %v3532
        %v5997 = vpack.c.b16 %v3549, %v3541
        %v5998 = vpack.c.b16 %v3550, %v3542
        %v5999 = vpack.c.b16 %v3551, %v3543
        %v6000 = vpack.c.b16 %v3552, %v3544
        %v6001 = vpack.c.b16 %v3553, %v3545
        %v6002 = vpack.c.b16 %v3554, %v3546
        %v6003 = vpack.c.b16 %v3555, %v3547
        %v6004 = vpack.c.b16 %v3556, %v3548
        %v6005 = vpack.c.b16 %v3565, %v3557
        %v6006 = vpack.c.b16 %v3566, %v3558
        %v6007 = vpack.c.b16 %v3567, %v3559
        %v6008 = vpack.c.b16 %v3568, %v3560
        %v6009 = vpack.c.b16 %v3569, %v3561
        %v6010 = vpack.c.b16 %v3570, %v3562
        %v6011 = vpack.c.b16 %v3571, %v3563
        %v6012 = vpack.c.b16 %v3572, %v3564
        %v6013 = vpack.c.b16 %v3581, %v3573
        %v6014 = vpack.c.b16 %v3582, %v3574
        %v6015 = vpack.c.b16 %v3583, %v3575
        %v6016 = vpack.c.b16 %v3584, %v3576
        %v6017 = vpack.c.b16 %v3585, %v3577
        %v6018 = vpack.c.b16 %v3586, %v3578
        %v6019 = vpack.c.b16 %v3587, %v3579
        %v6020 = vpack.c.b16 %v3588, %v3580
        %v6021 = vpack.c.b16 %v3597, %v3589
        %v6022 = vpack.c.b16 %v3598, %v3590
        %v6023 = vpack.c.b16 %v3599, %v3591
        %v6024 = vpack.c.b16 %v3600, %v3592
        %v6025 = vpack.c.b16 %v3601, %v3593
        %v6026 = vpack.c.b16 %v3602, %v3594
        %v6027 = vpack.c.b16 %v3603, %v3595
        %v6028 = vpack.c.b16 %v3604, %v3596
        %v6029 = vpack.c.b16 %v3613, %v3605
        %v6030 = vpack.c.b16 %v3614, %v3606
        %v6031 = vpack.c.b16 %v3615, %v3607
        %v6032 = vpack.c.b16 %v3616, %v3608
        %v6033 = vpack.c.b16 %v3617, %v3609
        %v6034 = vpack.c.b16 %v3618, %v3610
        %v6035 = vpack.c.b16 %v3619, %v3611
        %v6036 = vpack.c.b16 %v3620, %v3612
        %v6037 = vpack.c.b16 %v3629, %v3621
        %v6038 = vpack.c.b16 %v3630, %v3622
        %v6039 = vpack.c.b16 %v3631, %v3623
        %v6040 = vpack.c.b16 %v3632, %v3624
        %v6041 = vpack.c.b16 %v3633, %v3625
        %v6042 = vpack.c.b16 %v3634, %v3626
        %v6043 = vpack.c.b16 %v3635, %v3627
        %v6044 = vpack.c.b16 %v3636, %v3628
        %v6045 = vpack.c.b16 %v3645, %v3637
        %v6046 = vpack.c.b16 %v3646, %v3638
        %v6047 = vpack.c.b16 %v3647, %v3639
        %v6048 = vpack.c.b16 %v3648, %v3640
        %v6049 = vpack.c.b16 %v3649, %v3641
        %v6050 = vpack.c.b16 %v3650, %v3642
        %v6051 = vpack.c.b16 %v3651, %v3643
        %v6052 = vpack.c.b16 %v3652, %v3644
        %v6053 = vpack.c.b16 %v3661, %v3653
        %v6054 = vpack.c.b16 %v3662, %v3654
        %v6055 = vpack.c.b16 %v3663, %v3655
        %v6056 = vpack.c.b16 %v3664, %v3656
        %v6057 = vpack.c.b16 %v3665, %v3657
        %v6058 = vpack.c.b16 %v3666, %v3658
        %v6059 = vpack.c.b16 %v3667, %v3659
        %v6060 = vpack.c.b16 %v3668, %v3660
        %v6061 = vpack.c.b16 %v3677, %v3669
        %v6062 = vpack.c.b16 %v3678, %v3670
        %v6063 = vpack.c.b16 %v3679, %v3671
        %v6064 = vpack.c.b16 %v3680, %v3672
        %v6065 = vpack.c.b16 %v3681, %v3673
        %v6066 = vpack.c.b16 %v3682, %v3674
        %v6067 = vpack.c.b16 %v3683, %v3675
        %v6068 = vpack.c.b16 %v3684, %v3676
        %v6069 = vpack.c.b16 %v3693, %v3685
        %v6070 = vpack.c.b16 %v3694, %v3686
        %v6071 = vpack.c.b16 %v3695, %v3687
        %v6072 = vpack.c.b16 %v3696, %v3688
        %v6073 = vpack.c.b16 %v3697, %v3689
        %v6074 = vpack.c.b16 %v3698, %v3690
        %v6075 = vpack.c.b16 %v3699, %v3691
        %v6076 = vpack.c.b16 %v3700, %v3692
        %v6077 = vpack.c.b16 %v3709, %v3701
        %v6078 = vpack.c.b16 %v3710, %v3702
        %v6079 = vpack.c.b16 %v3711, %v3703
        %v6080 = vpack.c.b16 %v3712, %v3704
        %v6081 = vpack.c.b16 %v3713, %v3705
        %v6082 = vpack.c.b16 %v3714, %v3706
        %v6083 = vpack.c.b16 %v3715, %v3707
        %v6084 = vpack.c.b16 %v3716, %v3708
        %v6085 = vpack.c.b16 %v3725, %v3717
        %v6086 = vpack.c.b16 %v3726, %v3718
        %v6087 = vpack.c.b16 %v3727, %v3719
        %v6088 = vpack.c.b16 %v3728, %v3720
        %v6089 = vpack.c.b16 %v3729, %v3721
        %v6090 = vpack.c.b16 %v3730, %v3722
        %v6091 = vpack.c.b16 %v3731, %v3723
        %v6092 = vpack.c.b16 %v3732, %v3724
        %v6093 = vpack.c.b16 %v3741, %v3733
        %v6094 = vpack.c.b16 %v3742, %v3734
        %v6095 = vpack.c.b16 %v3743, %v3735
        %v6096 = vpack.c.b16 %v3744, %v3736
        %v6097 = vpack.c.b16 %v3745, %v3737
        %v6098 = vpack.c.b16 %v3746, %v3738
        %v6099 = vpack.c.b16 %v3747, %v3739
        %v6100 = vpack.c.b16 %v3748, %v3740
        %v6101 = vpack.c.b16 %v3757, %v3749
        %v6102 = vpack.c.b16 %v3758, %v3750
        %v6103 = vpack.c.b16 %v3759, %v3751
        %v6104 = vpack.c.b16 %v3760, %v3752
        %v6105 = vpack.c.b16 %v3761, %v3753
        %v6106 = vpack.c.b16 %v3762, %v3754
        %v6107 = vpack.c.b16 %v3763, %v3755
        %v6108 = vpack.c.b16 %v3764, %v3756
        %v6109 = vpack.c.b16 %v3773, %v3765
        %v6110 = vpack.c.b16 %v3774, %v3766
        %v6111 = vpack.c.b16 %v3775, %v3767
        %v6112 = vpack.c.b16 %v3776, %v3768
        %v6113 = vpack.c.b16 %v3777, %v3769
        %v6114 = vpack.c.b16 %v3778, %v3770
        %v6115 = vpack.c.b16 %v3779, %v3771
        %v6116 = vpack.c.b16 %v3780, %v3772
        %v6117 = vpack.c.b16 %v3789, %v3781
        %v6118 = vpack.c.b16 %v3790, %v3782
        %v6119 = vpack.c.b16 %v3791, %v3783
        %v6120 = vpack.c.b16 %v3792, %v3784
        %v6121 = vpack.c.b16 %v3793, %v3785
        %v6122 = vpack.c.b16 %v3794, %v3786
        %v6123 = vpack.c.b16 %v3795, %v3787
        %v6124 = vpack.c.b16 %v3796, %v3788
        %v6125 = vpack.c.b16 %v3805, %v3797
        %v6126 = vpack.c.b16 %v3806, %v3798
        %v6127 = vpack.c.b16 %v3807, %v3799
        %v6128 = vpack.c.b16 %v3808, %v3800
        %v6129 = vpack.c.b16 %v3809, %v3801
        %v6130 = vpack.c.b16 %v3810, %v3802
        %v6131 = vpack.c.b16 %v3811, %v3803
        %v6132 = vpack.c.b16 %v3812, %v3804
        %v6133 = vpack.c.b16 %v3821, %v3813
        %v6134 = vpack.c.b16 %v3822, %v3814
        %v6135 = vpack.c.b16 %v3823, %v3815
        %v6136 = vpack.c.b16 %v3824, %v3816
        %v6137 = vpack.c.b16 %v3825, %v3817
        %v6138 = vpack.c.b16 %v3826, %v3818
        %v6139 = vpack.c.b16 %v3827, %v3819
        %v6140 = vpack.c.b16 %v3828, %v3820
        %v6141 = vpack.c.b16 %v3837, %v3829
        %v6142 = vpack.c.b16 %v3838, %v3830
        %v6143 = vpack.c.b16 %v3839, %v3831
        %v6144 = vpack.c.b16 %v3840, %v3832
        %v6145 = vpack.c.b16 %v3841, %v3833
        %v6146 = vpack.c.b16 %v3842, %v3834
        %v6147 = vpack.c.b16 %v3843, %v3835
        %v6148 = vpack.c.b16 %v3844, %v3836
        %v6149 = vpack.c.b16 %v3853, %v3845
        %v6150 = vpack.c.b16 %v3854, %v3846
        %v6151 = vpack.c.b16 %v3855, %v3847
        %v6152 = vpack.c.b16 %v3856, %v3848
        %v6153 = vpack.c.b16 %v3857, %v3849
        %v6154 = vpack.c.b16 %v3858, %v3850
        %v6155 = vpack.c.b16 %v3859, %v3851
        %v6156 = vpack.c.b16 %v3860, %v3852
        %v6157 = vpack.c.b16 %v3869, %v3861
        %v6158 = vpack.c.b16 %v3870, %v3862
        %v6159 = vpack.c.b16 %v3871, %v3863
        %v6160 = vpack.c.b16 %v3872, %v3864
        %v6161 = vpack.c.b16 %v3873, %v3865
        %v6162 = vpack.c.b16 %v3874, %v3866
        %v6163 = vpack.c.b16 %v3875, %v3867
        %v6164 = vpack.c.b16 %v3876, %v3868
        %v6165 = vpack.c.b16 %v3885, %v3877
        %v6166 = vpack.c.b16 %v3886, %v3878
        %v6167 = vpack.c.b16 %v3887, %v3879
        %v6168 = vpack.c.b16 %v3888, %v3880
        %v6169 = vpack.c.b16 %v3889, %v3881
        %v6170 = vpack.c.b16 %v3890, %v3882
        %v6171 = vpack.c.b16 %v3891, %v3883
        %v6172 = vpack.c.b16 %v3892, %v3884
        %v6173 = vpack.c.b16 %v3901, %v3893
        %v6174 = vpack.c.b16 %v3902, %v3894
        %v6175 = vpack.c.b16 %v3903, %v3895
        %v6176 = vpack.c.b16 %v3904, %v3896
        %v6177 = vpack.c.b16 %v3905, %v3897
        %v6178 = vpack.c.b16 %v3906, %v3898
        %v6179 = vpack.c.b16 %v3907, %v3899
        %v6180 = vpack.c.b16 %v3908, %v3900
        %v6181 = vpack.c.b16 %v3917, %v3909
        %v6182 = vpack.c.b16 %v3918, %v3910
        %v6183 = vpack.c.b16 %v3919, %v3911
        %v6184 = vpack.c.b16 %v3920, %v3912
        %v6185 = vpack.c.b16 %v3921, %v3913
        %v6186 = vpack.c.b16 %v3922, %v3914
        %v6187 = vpack.c.b16 %v3923, %v3915
        %v6188 = vpack.c.b16 %v3924, %v3916
        %v6189 = vpack.c.b16 %v3933, %v3925
        %v6190 = vpack.c.b16 %v3934, %v3926
        %v6191 = vpack.c.b16 %v3935, %v3927
        %v6192 = vpack.c.b16 %v3936, %v3928
        %v6193 = vpack.c.b16 %v3937, %v3929
        %v6194 = vpack.c.b16 %v3938, %v3930
        %v6195 = vpack.c.b16 %v3939, %v3931
        %v6196 = vpack.c.b16 %v3940, %v3932
        %v6197 = vpack.c.b16 %v3949, %v3941
        %v6198 = vpack.c.b16 %v3950, %v3942
        %v6199 = vpack.c.b16 %v3951, %v3943
        %v6200 = vpack.c.b16 %v3952, %v3944
        %v6201 = vpack.c.b16 %v3953, %v3945
        %v6202 = vpack.c.b16 %v3954, %v3946
        %v6203 = vpack.c.b16 %v3955, %v3947
        %v6204 = vpack.c.b16 %v3956, %v3948
        %v6205 = vpack.c.b16 %v3965, %v3957
        %v6206 = vpack.c.b16 %v3966, %v3958
        %v6207 = vpack.c.b16 %v3967, %v3959
        %v6208 = vpack.c.b16 %v3968, %v3960
        %v6209 = vpack.c.b16 %v3969, %v3961
        %v6210 = vpack.c.b16 %v3970, %v3962
        %v6211 = vpack.c.b16 %v3971, %v3963
        %v6212 = vpack.c.b16 %v3972, %v3964
        %v6213 = vpack.c.b16 %v3981, %v3973
        %v6214 = vpack.c.b16 %v3982, %v3974
        %v6215 = vpack.c.b16 %v3983, %v3975
        %v6216 = vpack.c.b16 %v3984, %v3976
        %v6217 = vpack.c.b16 %v3985, %v3977
        %v6218 = vpack.c.b16 %v3986, %v3978
        %v6219 = vpack.c.b16 %v3987, %v3979
        %v6220 = vpack.c.b16 %v3988, %v3980
        %v6221 = vpack.c.b16 %v3997, %v3989
        %v6222 = vpack.c.b16 %v3998, %v3990
        %v6223 = vpack.c.b16 %v3999, %v3991
        %v6224 = vpack.c.b16 %v4000, %v3992
        %v6225 = vpack.c.b16 %v4001, %v3993
        %v6226 = vpack.c.b16 %v4002, %v3994
        %v6227 = vpack.c.b16 %v4003, %v3995
        %v6228 = vpack.c.b16 %v4004, %v3996
        %v6229 = vpack.c.b16 %v4013, %v4005
        %v6230 = vpack.c.b16 %v4014, %v4006
        %v6231 = vpack.c.b16 %v4015, %v4007
        %v6232 = vpack.c.b16 %v4016, %v4008
        %v6233 = vpack.c.b16 %v4017, %v4009
        %v6234 = vpack.c.b16 %v4018, %v4010
        %v6235 = vpack.c.b16 %v4019, %v4011
        %v6236 = vpack.c.b16 %v4020, %v4012
        %v6237 = vpack.c.b16 %v4029, %v4021
        %v6238 = vpack.c.b16 %v4030, %v4022
        %v6239 = vpack.c.b16 %v4031, %v4023
        %v6240 = vpack.c.b16 %v4032, %v4024
        %v6241 = vpack.c.b16 %v4033, %v4025
        %v6242 = vpack.c.b16 %v4034, %v4026
        %v6243 = vpack.c.b16 %v4035, %v4027
        %v6244 = vpack.c.b16 %v4036, %v4028
        %v6245 = vpack.c.b16 %v4045, %v4037
        %v6246 = vpack.c.b16 %v4046, %v4038
        %v6247 = vpack.c.b16 %v4047, %v4039
        %v6248 = vpack.c.b16 %v4048, %v4040
        %v6249 = vpack.c.b16 %v4049, %v4041
        %v6250 = vpack.c.b16 %v4050, %v4042
        %v6251 = vpack.c.b16 %v4051, %v4043
        %v6252 = vpack.c.b16 %v4052, %v4044
        %v6253 = vpack.c.b16 %v4061, %v4053
        %v6254 = vpack.c.b16 %v4062, %v4054
        %v6255 = vpack.c.b16 %v4063, %v4055
        %v6256 = vpack.c.b16 %v4064, %v4056
        %v6257 = vpack.c.b16 %v4065, %v4057
        %v6258 = vpack.c.b16 %v4066, %v4058
        %v6259 = vpack.c.b16 %v4067, %v4059
        %v6260 = vpack.c.b16 %v4068, %v4060
        %v6261 = vpack.c.b16 %v4077, %v4069
        %v6262 = vpack.c.b16 %v4078, %v4070
        %v6263 = vpack.c.b16 %v4079, %v4071
        %v6264 = vpack.c.b16 %v4080, %v4072
        %v6265 = vpack.c.b16 %v4081, %v4073
        %v6266 = vpack.c.b16 %v4082, %v4074
        %v6267 = vpack.c.b16 %v4083, %v4075
        %v6268 = vpack.c.b16 %v4084, %v4076
        %v6269 = vpack.c.b16 %v4093, %v4085
        %v6270 = vpack.c.b16 %v4094, %v4086
        %v6271 = vpack.c.b16 %v4095, %v4087
        %v6272 = vpack.c.b16 %v4096, %v4088
        %v6273 = vpack.c.b16 %v4097, %v4089
        %v6274 = vpack.c.b16 %v4098, %v4090
        %v6275 = vpack.c.b16 %v4099, %v4091
        %v6276 = vpack.c.b16 %v4100, %v4092
        %v6277 = vpack.c.b16 %v4109, %v4101
        %v6278 = vpack.c.b16 %v4110, %v4102
        %v6279 = vpack.c.b16 %v4111, %v4103
        %v6280 = vpack.c.b16 %v4112, %v4104
        %v6281 = vpack.c.b16 %v4113, %v4105
        %v6282 = vpack.c.b16 %v4114, %v4106
        %v6283 = vpack.c.b16 %v4115, %v4107
        %v6284 = vpack.c.b16 %v4116, %v4108
        %v6285 = vpack.c.b16 %v4125, %v4117
        %v6286 = vpack.c.b16 %v4126, %v4118
        %v6287 = vpack.c.b16 %v4127, %v4119
        %v6288 = vpack.c.b16 %v4128, %v4120
        %v6289 = vpack.c.b16 %v4129, %v4121
        %v6290 = vpack.c.b16 %v4130, %v4122
        %v6291 = vpack.c.b16 %v4131, %v4123
        %v6292 = vpack.c.b16 %v4132, %v4124
        %v6293 = vpack.c.b16 %v4141, %v4133
        %v6294 = vpack.c.b16 %v4142, %v4134
        %v6295 = vpack.c.b16 %v4143, %v4135
        %v6296 = vpack.c.b16 %v4144, %v4136
        %v6297 = vpack.c.b16 %v4145, %v4137
        %v6298 = vpack.c.b16 %v4146, %v4138
        %v6299 = vpack.c.b16 %v4147, %v4139
        %v6300 = vpack.c.b16 %v4148, %v4140
        %v6301 = vpack.c.b16 %v4157, %v4149
        %v6302 = vpack.c.b16 %v4158, %v4150
        %v6303 = vpack.c.b16 %v4159, %v4151
        %v6304 = vpack.c.b16 %v4160, %v4152
        %v6305 = vpack.c.b16 %v4161, %v4153
        %v6306 = vpack.c.b16 %v4162, %v4154
        %v6307 = vpack.c.b16 %v4163, %v4155
        %v6308 = vpack.c.b16 %v4164, %v4156
        %v6309 = vpack.c.b16 %v4173, %v4165
        %v6310 = vpack.c.b16 %v4174, %v4166
        %v6311 = vpack.c.b16 %v4175, %v4167
        %v6312 = vpack.c.b16 %v4176, %v4168
        %v6313 = vpack.c.b16 %v4177, %v4169
        %v6314 = vpack.c.b16 %v4178, %v4170
        %v6315 = vpack.c.b16 %v4179, %v4171
        %v6316 = vpack.c.b16 %v4180, %v4172
        %v6317 = vpack.c.b16 %v4189, %v4181
        %v6318 = vpack.c.b16 %v4190, %v4182
        %v6319 = vpack.c.b16 %v4191, %v4183
        %v6320 = vpack.c.b16 %v4192, %v4184
        %v6321 = vpack.c.b16 %v4193, %v4185
        %v6322 = vpack.c.b16 %v4194, %v4186
        %v6323 = vpack.c.b16 %v4195, %v4187
        %v6324 = vpack.c.b16 %v4196, %v4188
        %v6325 = vpack.c.b16 %v4205, %v4197
        %v6326 = vpack.c.b16 %v4206, %v4198
        %v6327 = vpack.c.b16 %v4207, %v4199
        %v6328 = vpack.c.b16 %v4208, %v4200
        %v6329 = vpack.c.b16 %v4209, %v4201
        %v6330 = vpack.c.b16 %v4210, %v4202
        %v6331 = vpack.c.b16 %v4211, %v4203
        %v6332 = vpack.c.b16 %v4212, %v4204
        %v6333 = vpack.c.b16 %v4221, %v4213
        %v6334 = vpack.c.b16 %v4222, %v4214
        %v6335 = vpack.c.b16 %v4223, %v4215
        %v6336 = vpack.c.b16 %v4224, %v4216
        %v6337 = vpack.c.b16 %v4225, %v4217
        %v6338 = vpack.c.b16 %v4226, %v4218
        %v6339 = vpack.c.b16 %v4227, %v4219
        %v6340 = vpack.c.b16 %v4228, %v4220
        %v6341 = vpack.c.b16 %v4237, %v4229
        %v6342 = vpack.c.b16 %v4238, %v4230
        %v6343 = vpack.c.b16 %v4239, %v4231
        %v6344 = vpack.c.b16 %v4240, %v4232
        %v6345 = vpack.c.b16 %v4241, %v4233
        %v6346 = vpack.c.b16 %v4242, %v4234
        %v6347 = vpack.c.b16 %v4243, %v4235
        %v6348 = vpack.c.b16 %v4244, %v4236
        %v6349 = vpack.c.b16 %v4253, %v4245
        %v6350 = vpack.c.b16 %v4254, %v4246
        %v6351 = vpack.c.b16 %v4255, %v4247
        %v6352 = vpack.c.b16 %v4256, %v4248
        %v6353 = vpack.c.b16 %v4257, %v4249
        %v6354 = vpack.c.b16 %v4258, %v4250
        %v6355 = vpack.c.b16 %v4259, %v4251
        %v6356 = vpack.c.b16 %v4260, %v4252
        %v6357 = vpack.c.b16 %v4269, %v4261
        %v6358 = vpack.c.b16 %v4270, %v4262
        %v6359 = vpack.c.b16 %v4271, %v4263
        %v6360 = vpack.c.b16 %v4272, %v4264
        %v6361 = vpack.c.b16 %v4273, %v4265
        %v6362 = vpack.c.b16 %v4274, %v4266
        %v6363 = vpack.c.b16 %v4275, %v4267
        %v6364 = vpack.c.b16 %v4276, %v4268
        %v6365 = vpack.c.b16 %v4285, %v4277
        %v6366 = vpack.c.b16 %v4286, %v4278
        %v6367 = vpack.c.b16 %v4287, %v4279
        %v6368 = vpack.c.b16 %v4288, %v4280
        %v6369 = vpack.c.b16 %v4289, %v4281
        %v6370 = vpack.c.b16 %v4290, %v4282
        %v6371 = vpack.c.b16 %v4291, %v4283
        %v6372 = vpack.c.b16 %v4292, %v4284
        %v6373 = vpack.c.b16 %v4301, %v4293
        %v6374 = vpack.c.b16 %v4302, %v4294
        %v6375 = vpack.c.b16 %v4303, %v4295
        %v6376 = vpack.c.b16 %v4304, %v4296
        %v6377 = vpack.c.b16 %v4305, %v4297
        %v6378 = vpack.c.b16 %v4306, %v4298
        %v6379 = vpack.c.b16 %v4307, %v4299
        %v6380 = vpack.c.b16 %v4308, %v4300
        %v6381 = vpack.c.b16 %v4317, %v4309
        %v6382 = vpack.c.b16 %v4318, %v4310
        %v6383 = vpack.c.b16 %v4319, %v4311
        %v6384 = vpack.c.b16 %v4320, %v4312
        %v6385 = vpack.c.b16 %v4321, %v4313
        %v6386 = vpack.c.b16 %v4322, %v4314
        %v6387 = vpack.c.b16 %v4323, %v4315
        %v6388 = vpack.c.b16 %v4324, %v4316
        %v6389 = vpack.c.b16 %v4333, %v4325
        %v6390 = vpack.c.b16 %v4334, %v4326
        %v6391 = vpack.c.b16 %v4335, %v4327
        %v6392 = vpack.c.b16 %v4336, %v4328
        %v6393 = vpack.c.b16 %v4337, %v4329
        %v6394 = vpack.c.b16 %v4338, %v4330
        %v6395 = vpack.c.b16 %v4339, %v4331
        %v6396 = vpack.c.b16 %v4340, %v4332
        %v6397 = vpack.c.b16 %v4349, %v4341
        %v6398 = vpack.c.b16 %v4350, %v4342
        %v6399 = vpack.c.b16 %v4351, %v4343
        %v6400 = vpack.c.b16 %v4352, %v4344
        %v6401 = vpack.c.b16 %v4353, %v4345
        %v6402 = vpack.c.b16 %v4354, %v4346
        %v6403 = vpack.c.b16 %v4355, %v4347
        %v6404 = vpack.c.b16 %v4356, %v4348
        %v6405 = vpack.c.b16 %v4365, %v4357
        %v6406 = vpack.c.b16 %v4366, %v4358
        %v6407 = vpack.c.b16 %v4367, %v4359
        %v6408 = vpack.c.b16 %v4368, %v4360
        %v6409 = vpack.c.b16 %v4369, %v4361
        %v6410 = vpack.c.b16 %v4370, %v4362
        %v6411 = vpack.c.b16 %v4371, %v4363
        %v6412 = vpack.c.b16 %v4372, %v4364
        %v6413 = vpack.c.b16 %v4381, %v4373
        %v6414 = vpack.c.b16 %v4382, %v4374
        %v6415 = vpack.c.b16 %v4383, %v4375
        %v6416 = vpack.c.b16 %v4384, %v4376
        %v6417 = vpack.c.b16 %v4385, %v4377
        %v6418 = vpack.c.b16 %v4386, %v4378
        %v6419 = vpack.c.b16 %v4387, %v4379
        %v6420 = vpack.c.b16 %v4388, %v4380
        %v6421 = vpack.c.b16 %v4397, %v4389
        %v6422 = vpack.c.b16 %v4398, %v4390
        %v6423 = vpack.c.b16 %v4399, %v4391
        %v6424 = vpack.c.b16 %v4400, %v4392
        %v6425 = vpack.c.b16 %v4401, %v4393
        %v6426 = vpack.c.b16 %v4402, %v4394
        %v6427 = vpack.c.b16 %v4403, %v4395
        %v6428 = vpack.c.b16 %v4404, %v4396
        %v6429 = vpack.c.b16 %v4413, %v4405
        %v6430 = vpack.c.b16 %v4414, %v4406
        %v6431 = vpack.c.b16 %v4415, %v4407
        %v6432 = vpack.c.b16 %v4416, %v4408
        %v6433 = vpack.c.b16 %v4417, %v4409
        %v6434 = vpack.c.b16 %v4418, %v4410
        %v6435 = vpack.c.b16 %v4419, %v4411
        %v6436 = vpack.c.b16 %v4420, %v4412
        %v6437 = vpack.c.b16 %v4429, %v4421
        %v6438 = vpack.c.b16 %v4430, %v4422
        %v6439 = vpack.c.b16 %v4431, %v4423
        %v6440 = vpack.c.b16 %v4432, %v4424
        %v6441 = vpack.c.b16 %v4433, %v4425
        %v6442 = vpack.c.b16 %v4434, %v4426
        %v6443 = vpack.c.b16 %v4435, %v4427
        %v6444 = vpack.c.b16 %v4436, %v4428
        %v6445 = vpack.c.b16 %v4445, %v4437
        %v6446 = vpack.c.b16 %v4446, %v4438
        %v6447 = vpack.c.b16 %v4447, %v4439
        %v6448 = vpack.c.b16 %v4448, %v4440
        %v6449 = vpack.c.b16 %v4449, %v4441
        %v6450 = vpack.c.b16 %v4450, %v4442
        %v6451 = vpack.c.b16 %v4451, %v4443
        %v6452 = vpack.c.b16 %v4452, %v4444
        %v6453 = vpack.c.b16 %v4461, %v4453
        %v6454 = vpack.c.b16 %v4462, %v4454
        %v6455 = vpack.c.b16 %v4463, %v4455
        %v6456 = vpack.c.b16 %v4464, %v4456
        %v6457 = vpack.c.b16 %v4465, %v4457
        %v6458 = vpack.c.b16 %v4466, %v4458
        %v6459 = vpack.c.b16 %v4467, %v4459
        %v6460 = vpack.c.b16 %v4468, %v4460
        %v6461 = vpack.c.b16 %v4477, %v4469
        %v6462 = vpack.c.b16 %v4478, %v4470
        %v6463 = vpack.c.b16 %v4479, %v4471
        %v6464 = vpack.c.b16 %v4480, %v4472
        %v6465 = vpack.c.b16 %v4481, %v4473
        %v6466 = vpack.c.b16 %v4482, %v4474
        %v6467 = vpack.c.b16 %v4483, %v4475
        %v6468 = vpack.c.b16 %v4484, %v4476
        %v6469 = vpack.c.b16 %v4493, %v4485
        %v6470 = vpack.c.b16 %v4494, %v4486
        %v6471 = vpack.c.b16 %v4495, %v4487
        %v6472 = vpack.c.b16 %v4496, %v4488
        %v6473 = vpack.c.b16 %v4497, %v4489
        %v6474 = vpack.c.b16 %v4498, %v4490
        %v6475 = vpack.c.b16 %v4499, %v4491
        %v6476 = vpack.c.b16 %v4500, %v4492
        %v6477 = vpack.c.b16 %v4509, %v4501
        %v6478 = vpack.c.b16 %v4510, %v4502
        %v6479 = vpack.c.b16 %v4511, %v4503
        %v6480 = vpack.c.b16 %v4512, %v4504
        %v6481 = vpack.c.b16 %v4513, %v4505
        %v6482 = vpack.c.b16 %v4514, %v4506
        %v6483 = vpack.c.b16 %v4515, %v4507
        %v6484 = vpack.c.b16 %v4516, %v4508
        %v6485 = vpack.c.b16 %v4525, %v4517
        %v6486 = vpack.c.b16 %v4526, %v4518
        %v6487 = vpack.c.b16 %v4527, %v4519
        %v6488 = vpack.c.b16 %v4528, %v4520
        %v6489 = vpack.c.b16 %v4529, %v4521
        %v6490 = vpack.c.b16 %v4530, %v4522
        %v6491 = vpack.c.b16 %v4531, %v4523
        %v6492 = vpack.c.b16 %v4532, %v4524
        %v6493 = vpack.c.b16 %v4541, %v4533
        %v6494 = vpack.c.b16 %v4542, %v4534
        %v6495 = vpack.c.b16 %v4543, %v4535
        %v6496 = vpack.c.b16 %v4544, %v4536
        %v6497 = vpack.c.b16 %v4545, %v4537
        %v6498 = vpack.c.b16 %v4546, %v4538
        %v6499 = vpack.c.b16 %v4547, %v4539
        %v6500 = vpack.c.b16 %v4548, %v4540
        %v6501 = vpack.c.b16 %v4557, %v4549
        %v6502 = vpack.c.b16 %v4558, %v4550
        %v6503 = vpack.c.b16 %v4559, %v4551
        %v6504 = vpack.c.b16 %v4560, %v4552
        %v6505 = vpack.c.b16 %v4561, %v4553
        %v6506 = vpack.c.b16 %v4562, %v4554
        %v6507 = vpack.c.b16 %v4563, %v4555
        %v6508 = vpack.c.b16 %v4564, %v4556
        %v6509 = vpack.c.b16 %v4573, %v4565
        %v6510 = vpack.c.b16 %v4574, %v4566
        %v6511 = vpack.c.b16 %v4575, %v4567
        %v6512 = vpack.c.b16 %v4576, %v4568
        %v6513 = vpack.c.b16 %v4577, %v4569
        %v6514 = vpack.c.b16 %v4578, %v4570
        %v6515 = vpack.c.b16 %v4579, %v4571
        %v6516 = vpack.c.b16 %v4580, %v4572
        %v6517 = vpack.c.b16 %v4589, %v4581
        %v6518 = vpack.c.b16 %v4590, %v4582
        %v6519 = vpack.c.b16 %v4591, %v4583
        %v6520 = vpack.c.b16 %v4592, %v4584
        %v6521 = vpack.c.b16 %v4593, %v4585
        %v6522 = vpack.c.b16 %v4594, %v4586
        %v6523 = vpack.c.b16 %v4595, %v4587
        %v6524 = vpack.c.b16 %v4596, %v4588
        %v6525 = vpack.c.b16 %v4605, %v4597
        %v6526 = vpack.c.b16 %v4606, %v4598
        %v6527 = vpack.c.b16 %v4607, %v4599
        %v6528 = vpack.c.b16 %v4608, %v4600
        %v6529 = vpack.c.b16 %v4609, %v4601
        %v6530 = vpack.c.b16 %v4610, %v4602
        %v6531 = vpack.c.b16 %v4611, %v4603
        %v6532 = vpack.c.b16 %v4612, %v4604
        %v6533 = vpack.c.b16 %v4621, %v4613
        %v6534 = vpack.c.b16 %v4622, %v4614
        %v6535 = vpack.c.b16 %v4623, %v4615
        %v6536 = vpack.c.b16 %v4624, %v4616
        %v6537 = vpack.c.b16 %v4625, %v4617
        %v6538 = vpack.c.b16 %v4626, %v4618
        %v6539 = vpack.c.b16 %v4627, %v4619
        %v6540 = vpack.c.b16 %v4628, %v4620
        %v6541 = vpack.c.b16 %v4637, %v4629
        %v6542 = vpack.c.b16 %v4638, %v4630
        %v6543 = vpack.c.b16 %v4639, %v4631
        %v6544 = vpack.c.b16 %v4640, %v4632
        %v6545 = vpack.c.b16 %v4641, %v4633
        %v6546 = vpack.c.b16 %v4642, %v4634
        %v6547 = vpack.c.b16 %v4643, %v4635
        %v6548 = vpack.c.b16 %v4644, %v4636
        %v6549 = vpack.c.b16 %v4653, %v4645
        %v6550 = vpack.c.b16 %v4654, %v4646
        %v6551 = vpack.c.b16 %v4655, %v4647
        %v6552 = vpack.c.b16 %v4656, %v4648
        %v6553 = vpack.c.b16 %v4657, %v4649
        %v6554 = vpack.c.b16 %v4658, %v4650
        %v6555 = vpack.c.b16 %v4659, %v4651
        %v6556 = vpack.c.b16 %v4660, %v4652
        %v6557 = vpack.c.b16 %v4669, %v4661
        %v6558 = vpack.c.b16 %v4670, %v4662
        %v6559 = vpack.c.b16 %v4671, %v4663
        %v6560 = vpack.c.b16 %v4672, %v4664
        %v6561 = vpack.c.b16 %v4673, %v4665
        %v6562 = vpack.c.b16 %v4674, %v4666
        %v6563 = vpack.c.b16 %v4675, %v4667
        %v6564 = vpack.c.b16 %v4676, %v4668
        %v6565 = vpack.c.b16 %v4685, %v4677
        %v6566 = vpack.c.b16 %v4686, %v4678
        %v6567 = vpack.c.b16 %v4687, %v4679
        %v6568 = vpack.c.b16 %v4688, %v4680
        %v6569 = vpack.c.b16 %v4689, %v4681
        %v6570 = vpack.c.b16 %v4690, %v4682
        %v6571 = vpack.c.b16 %v4691, %v4683
        %v6572 = vpack.c.b16 %v4692, %v4684
        %v6573 = vpack.c.b16 %v4701, %v4693
        %v6574 = vpack.c.b16 %v4702, %v4694
        %v6575 = vpack.c.b16 %v4703, %v4695
        %v6576 = vpack.c.b16 %v4704, %v4696
        %v6577 = vpack.c.b16 %v4705, %v4697
        %v6578 = vpack.c.b16 %v4706, %v4698
        %v6579 = vpack.c.b16 %v4707, %v4699
        %v6580 = vpack.c.b16 %v4708, %v4700
        %v6581 = vpack.c.b16 %v4717, %v4709
        %v6582 = vpack.c.b16 %v4718, %v4710
        %v6583 = vpack.c.b16 %v4719, %v4711
        %v6584 = vpack.c.b16 %v4720, %v4712
        %v6585 = vpack.c.b16 %v4721, %v4713
        %v6586 = vpack.c.b16 %v4722, %v4714
        %v6587 = vpack.c.b16 %v4723, %v4715
        %v6588 = vpack.c.b16 %v4724, %v4716
        %v6589 = vpack.c.b16 %v4733, %v4725
        %v6590 = vpack.c.b16 %v4734, %v4726
        %v6591 = vpack.c.b16 %v4735, %v4727
        %v6592 = vpack.c.b16 %v4736, %v4728
        %v6593 = vpack.c.b16 %v4737, %v4729
        %v6594 = vpack.c.b16 %v4738, %v4730
        %v6595 = vpack.c.b16 %v4739, %v4731
        %v6596 = vpack.c.b16 %v4740, %v4732
        %v6597 = vpack.c.b16 %v4749, %v4741
        %v6598 = vpack.c.b16 %v4750, %v4742
        %v6599 = vpack.c.b16 %v4751, %v4743
        %v6600 = vpack.c.b16 %v4752, %v4744
        %v6601 = vpack.c.b16 %v4753, %v4745
        %v6602 = vpack.c.b16 %v4754, %v4746
        %v6603 = vpack.c.b16 %v4755, %v4747
        %v6604 = vpack.c.b16 %v4756, %v4748
        %v6605 = vpack.c.b16 %v4765, %v4757
        %v6606 = vpack.c.b16 %v4766, %v4758
        %v6607 = vpack.c.b16 %v4767, %v4759
        %v6608 = vpack.c.b16 %v4768, %v4760
        %v6609 = vpack.c.b16 %v4769, %v4761
        %v6610 = vpack.c.b16 %v4770, %v4762
        %v6611 = vpack.c.b16 %v4771, %v4763
        %v6612 = vpack.c.b16 %v4772, %v4764
        %v6613 = vpack.c.b16 %v4781, %v4773
        %v6614 = vpack.c.b16 %v4782, %v4774
        %v6615 = vpack.c.b16 %v4783, %v4775
        %v6616 = vpack.c.b16 %v4784, %v4776
        %v6617 = vpack.c.b16 %v4785, %v4777
        %v6618 = vpack.c.b16 %v4786, %v4778
        %v6619 = vpack.c.b16 %v4787, %v4779
        %v6620 = vpack.c.b16 %v4788, %v4780
        %v6621 = vpack.c.b16 %v4797, %v4789
        %v6622 = vpack.c.b16 %v4798, %v4790
        %v6623 = vpack.c.b16 %v4799, %v4791
        %v6624 = vpack.c.b16 %v4800, %v4792
        %v6625 = vpack.c.b16 %v4801, %v4793
        %v6626 = vpack.c.b16 %v4802, %v4794
        %v6627 = vpack.c.b16 %v4803, %v4795
        %v6628 = vpack.c.b16 %v4804, %v4796
        %v6629 = vpack.c.b16 %v4813, %v4805
        %v6630 = vpack.c.b16 %v4814, %v4806
        %v6631 = vpack.c.b16 %v4815, %v4807
        %v6632 = vpack.c.b16 %v4816, %v4808
        %v6633 = vpack.c.b16 %v4817, %v4809
        %v6634 = vpack.c.b16 %v4818, %v4810
        %v6635 = vpack.c.b16 %v4819, %v4811
        %v6636 = vpack.c.b16 %v4820, %v4812
        %v6637 = vpack.c.b16 %v4829, %v4821
        %v6638 = vpack.c.b16 %v4830, %v4822
        %v6639 = vpack.c.b16 %v4831, %v4823
        %v6640 = vpack.c.b16 %v4832, %v4824
        %v6641 = vpack.c.b16 %v4833, %v4825
        %v6642 = vpack.c.b16 %v4834, %v4826
        %v6643 = vpack.c.b16 %v4835, %v4827
        %v6644 = vpack.c.b16 %v4836, %v4828
        %v6645 = vpack.c.b16 %v4845, %v4837
        %v6646 = vpack.c.b16 %v4846, %v4838
        %v6647 = vpack.c.b16 %v4847, %v4839
        %v6648 = vpack.c.b16 %v4848, %v4840
        %v6649 = vpack.c.b16 %v4849, %v4841
        %v6650 = vpack.c.b16 %v4850, %v4842
        %v6651 = vpack.c.b16 %v4851, %v4843
        %v6652 = vpack.c.b16 %v4852, %v4844
        %v6653 = vpack.c.b16 %v4861, %v4853
        %v6654 = vpack.c.b16 %v4862, %v4854
        %v6655 = vpack.c.b16 %v4863, %v4855
        %v6656 = vpack.c.b16 %v4864, %v4856
        %v6657 = vpack.c.b16 %v4865, %v4857
        %v6658 = vpack.c.b16 %v4866, %v4858
        %v6659 = vpack.c.b16 %v4867, %v4859
        %v6660 = vpack.c.b16 %v4868, %v4860
        %v6661 = vpack.c.b16 %v4877, %v4869
        %v6662 = vpack.c.b16 %v4878, %v4870
        %v6663 = vpack.c.b16 %v4879, %v4871
        %v6664 = vpack.c.b16 %v4880, %v4872
        %v6665 = vpack.c.b16 %v4881, %v4873
        %v6666 = vpack.c.b16 %v4882, %v4874
        %v6667 = vpack.c.b16 %v4883, %v4875
        %v6668 = vpack.c.b16 %v4884, %v4876
        %v6669 = vpack.c.b16 %v4893, %v4885
        %v6670 = vpack.c.b16 %v4894, %v4886
        %v6671 = vpack.c.b16 %v4895, %v4887
        %v6672 = vpack.c.b16 %v4896, %v4888
        %v6673 = vpack.c.b16 %v4897, %v4889
        %v6674 = vpack.c.b16 %v4898, %v4890
        %v6675 = vpack.c.b16 %v4899, %v4891
        %v6676 = vpack.c.b16 %v4900, %v4892
        %v6677 = vpack.c.b16 %v4909, %v4901
        %v6678 = vpack.c.b16 %v4910, %v4902
        %v6679 = vpack.c.b16 %v4911, %v4903
        %v6680 = vpack.c.b16 %v4912, %v4904
        %v6681 = vpack.c.b16 %v4913, %v4905
        %v6682 = vpack.c.b16 %v4914, %v4906
        %v6683 = vpack.c.b16 %v4915, %v4907
        %v6684 = vpack.c.b16 %v4916, %v4908
        %v6685 = vpack.c.b16 %v4925, %v4917
        %v6686 = vpack.c.b16 %v4926, %v4918
        %v6687 = vpack.c.b16 %v4927, %v4919
        %v6688 = vpack.c.b16 %v4928, %v4920
        %v6689 = vpack.c.b16 %v4929, %v4921
        %v6690 = vpack.c.b16 %v4930, %v4922
        %v6691 = vpack.c.b16 %v4931, %v4923
        %v6692 = vpack.c.b16 %v4932, %v4924
        %v6693 = vpack.c.b16 %v4941, %v4933
        %v6694 = vpack.c.b16 %v4942, %v4934
        %v6695 = vpack.c.b16 %v4943, %v4935
        %v6696 = vpack.c.b16 %v4944, %v4936
        %v6697 = vpack.c.b16 %v4945, %v4937
        %v6698 = vpack.c.b16 %v4946, %v4938
        %v6699 = vpack.c.b16 %v4947, %v4939
        %v6700 = vpack.c.b16 %v4948, %v4940
        %v6701 = vpack.c.b16 %v4957, %v4949
        %v6702 = vpack.c.b16 %v4958, %v4950
        %v6703 = vpack.c.b16 %v4959, %v4951
        %v6704 = vpack.c.b16 %v4960, %v4952
        %v6705 = vpack.c.b16 %v4961, %v4953
        %v6706 = vpack.c.b16 %v4962, %v4954
        %v6707 = vpack.c.b16 %v4963, %v4955
        %v6708 = vpack.c.b16 %v4964, %v4956
        %v6709 = vpack.c.b16 %v4973, %v4965
        %v6710 = vpack.c.b16 %v4974, %v4966
        %v6711 = vpack.c.b16 %v4975, %v4967
        %v6712 = vpack.c.b16 %v4976, %v4968
        %v6713 = vpack.c.b16 %v4977, %v4969
        %v6714 = vpack.c.b16 %v4978, %v4970
        %v6715 = vpack.c.b16 %v4979, %v4971
        %v6716 = vpack.c.b16 %v4980, %v4972
        %v6717 = vpack.c.b16 %v4989, %v4981
        %v6718 = vpack.c.b16 %v4990, %v4982
        %v6719 = vpack.c.b16 %v4991, %v4983
        %v6720 = vpack.c.b16 %v4992, %v4984
        %v6721 = vpack.c.b16 %v4993, %v4985
        %v6722 = vpack.c.b16 %v4994, %v4986
        %v6723 = vpack.c.b16 %v4995, %v4987
        %v6724 = vpack.c.b16 %v4996, %v4988
        %v6725 = vpack.c.b16 %v5005, %v4997
        %v6726 = vpack.c.b16 %v5006, %v4998
        %v6727 = vpack.c.b16 %v5007, %v4999
        %v6728 = vpack.c.b16 %v5008, %v5000
        %v6729 = vpack.c.b16 %v5009, %v5001
        %v6730 = vpack.c.b16 %v5010, %v5002
        %v6731 = vpack.c.b16 %v5011, %v5003
        %v6732 = vpack.c.b16 %v5012, %v5004
        %v6733 = vpack.c.b16 %v5021, %v5013
        %v6734 = vpack.c.b16 %v5022, %v5014
        %v6735 = vpack.c.b16 %v5023, %v5015
        %v6736 = vpack.c.b16 %v5024, %v5016
        %v6737 = vpack.c.b16 %v5025, %v5017
        %v6738 = vpack.c.b16 %v5026, %v5018
        %v6739 = vpack.c.b16 %v5027, %v5019
        %v6740 = vpack.c.b16 %v5028, %v5020
        %v6741 = vpack.c.b16 %v5037, %v5029
        %v6742 = vpack.c.b16 %v5038, %v5030
        %v6743 = vpack.c.b16 %v5039, %v5031
        %v6744 = vpack.c.b16 %v5040, %v5032
        %v6745 = vpack.c.b16 %v5041, %v5033
        %v6746 = vpack.c.b16 %v5042, %v5034
        %v6747 = vpack.c.b16 %v5043, %v5035
        %v6748 = vpack.c.b16 %v5044, %v5036
        %v6749 = vpack.c.b16 %v5053, %v5045
        %v6750 = vpack.c.b16 %v5054, %v5046
        %v6751 = vpack.c.b16 %v5055, %v5047
        %v6752 = vpack.c.b16 %v5056, %v5048
        %v6753 = vpack.c.b16 %v5057, %v5049
        %v6754 = vpack.c.b16 %v5058, %v5050
        %v6755 = vpack.c.b16 %v5059, %v5051
        %v6756 = vpack.c.b16 %v5060, %v5052
        %v6757 = vpack.c.b16 %v5069, %v5061
        %v6758 = vpack.c.b16 %v5070, %v5062
        %v6759 = vpack.c.b16 %v5071, %v5063
        %v6760 = vpack.c.b16 %v5072, %v5064
        %v6761 = vpack.c.b16 %v5073, %v5065
        %v6762 = vpack.c.b16 %v5074, %v5066
        %v6763 = vpack.c.b16 %v5075, %v5067
        %v6764 = vpack.c.b16 %v5076, %v5068
        %v6765 = vpack.c.b16 %v5085, %v5077
        %v6766 = vpack.c.b16 %v5086, %v5078
        %v6767 = vpack.c.b16 %v5087, %v5079
        %v6768 = vpack.c.b16 %v5088, %v5080
        %v6769 = vpack.c.b16 %v5089, %v5081
        %v6770 = vpack.c.b16 %v5090, %v5082
        %v6771 = vpack.c.b16 %v5091, %v5083
        %v6772 = vpack.c.b16 %v5092, %v5084
        %v6773 = vpack.c.b16 %v5101, %v5093
        %v6774 = vpack.c.b16 %v5102, %v5094
        %v6775 = vpack.c.b16 %v5103, %v5095
        %v6776 = vpack.c.b16 %v5104, %v5096
        %v6777 = vpack.c.b16 %v5105, %v5097
        %v6778 = vpack.c.b16 %v5106, %v5098
        %v6779 = vpack.c.b16 %v5107, %v5099
        %v6780 = vpack.c.b16 %v5108, %v5100
        %v6781 = vpack.c.b16 %v5117, %v5109
        %v6782 = vpack.c.b16 %v5118, %v5110
        %v6783 = vpack.c.b16 %v5119, %v5111
        %v6784 = vpack.c.b16 %v5120, %v5112
        %v6785 = vpack.c.b16 %v5121, %v5113
        %v6786 = vpack.c.b16 %v5122, %v5114
        %v6787 = vpack.c.b16 %v5123, %v5115
        %v6788 = vpack.c.b16 %v5124, %v5116
        %v6789 = vpack.c.b16 %v5133, %v5125
        %v6790 = vpack.c.b16 %v5134, %v5126
        %v6791 = vpack.c.b16 %v5135, %v5127
        %v6792 = vpack.c.b16 %v5136, %v5128
        %v6793 = vpack.c.b16 %v5137, %v5129
        %v6794 = vpack.c.b16 %v5138, %v5130
        %v6795 = vpack.c.b16 %v5139, %v5131
        %v6796 = vpack.c.b16 %v5140, %v5132
        %v6797 = vpack.c.b16 %v5149, %v5141
        %v6798 = vpack.c.b16 %v5150, %v5142
        %v6799 = vpack.c.b16 %v5151, %v5143
        %v6800 = vpack.c.b16 %v5152, %v5144
        %v6801 = vpack.c.b16 %v5153, %v5145
        %v6802 = vpack.c.b16 %v5154, %v5146
        %v6803 = vpack.c.b16 %v5155, %v5147
        %v6804 = vpack.c.b16 %v5156, %v5148
        %v6805 = vpack.c.b16 %v5165, %v5157
        %v6806 = vpack.c.b16 %v5166, %v5158
        %v6807 = vpack.c.b16 %v5167, %v5159
        %v6808 = vpack.c.b16 %v5168, %v5160
        %v6809 = vpack.c.b16 %v5169, %v5161
        %v6810 = vpack.c.b16 %v5170, %v5162
        %v6811 = vpack.c.b16 %v5171, %v5163
        %v6812 = vpack.c.b16 %v5172, %v5164
        %v6813 = vpack.c.b16 %v5181, %v5173
        %v6814 = vpack.c.b16 %v5182, %v5174
        %v6815 = vpack.c.b16 %v5183, %v5175
        %v6816 = vpack.c.b16 %v5184, %v5176
        %v6817 = vpack.c.b16 %v5185, %v5177
        %v6818 = vpack.c.b16 %v5186, %v5178
        %v6819 = vpack.c.b16 %v5187, %v5179
        %v6820 = vpack.c.b16 %v5188, %v5180
        %v6821 = vpack.c.b16 %v5197, %v5189
        %v6822 = vpack.c.b16 %v5198, %v5190
        %v6823 = vpack.c.b16 %v5199, %v5191
        %v6824 = vpack.c.b16 %v5200, %v5192
        %v6825 = vpack.c.b16 %v5201, %v5193
        %v6826 = vpack.c.b16 %v5202, %v5194
        %v6827 = vpack.c.b16 %v5203, %v5195
        %v6828 = vpack.c.b16 %v5204, %v5196
        %v6829 = vpack.c.b16 %v5213, %v5205
        %v6830 = vpack.c.b16 %v5214, %v5206
        %v6831 = vpack.c.b16 %v5215, %v5207
        %v6832 = vpack.c.b16 %v5216, %v5208
        %v6833 = vpack.c.b16 %v5217, %v5209
        %v6834 = vpack.c.b16 %v5218, %v5210
        %v6835 = vpack.c.b16 %v5219, %v5211
        %v6836 = vpack.c.b16 %v5220, %v5212
        %v6837 = vpack.c.b16 %v5229, %v5221
        %v6838 = vpack.c.b16 %v5230, %v5222
        %v6839 = vpack.c.b16 %v5231, %v5223
        %v6840 = vpack.c.b16 %v5232, %v5224
        %v6841 = vpack.c.b16 %v5233, %v5225
        %v6842 = vpack.c.b16 %v5234, %v5226
        %v6843 = vpack.c.b16 %v5235, %v5227
        %v6844 = vpack.c.b16 %v5236, %v5228
        %v6845 = vpack.c.b16 %v5245, %v5237
        %v6846 = vpack.c.b16 %v5246, %v5238
        %v6847 = vpack.c.b16 %v5247, %v5239
        %v6848 = vpack.c.b16 %v5248, %v5240
        %v6849 = vpack.c.b16 %v5249, %v5241
        %v6850 = vpack.c.b16 %v5250, %v5242
        %v6851 = vpack.c.b16 %v5251, %v5243
        %v6852 = vpack.c.b16 %v5252, %v5244
        %v6853 = vpack.c.b16 %v5261, %v5253
        %v6854 = vpack.c.b16 %v5262, %v5254
        %v6855 = vpack.c.b16 %v5263, %v5255
        %v6856 = vpack.c.b16 %v5264, %v5256
        %v6857 = vpack.c.b16 %v5265, %v5257
        %v6858 = vpack.c.b16 %v5266, %v5258
        %v6859 = vpack.c.b16 %v5267, %v5259
        %v6860 = vpack.c.b16 %v5268, %v5260
        %v6861 = vpack.c.b16 %v5277, %v5269
        %v6862 = vpack.c.b16 %v5278, %v5270
        %v6863 = vpack.c.b16 %v5279, %v5271
        %v6864 = vpack.c.b16 %v5280, %v5272
        %v6865 = vpack.c.b16 %v5281, %v5273
        %v6866 = vpack.c.b16 %v5282, %v5274
        %v6867 = vpack.c.b16 %v5283, %v5275
        %v6868 = vpack.c.b16 %v5284, %v5276
        %v6869 = vpack.c.b16 %v5293, %v5285
        %v6870 = vpack.c.b16 %v5294, %v5286
        %v6871 = vpack.c.b16 %v5295, %v5287
        %v6872 = vpack.c.b16 %v5296, %v5288
        %v6873 = vpack.c.b16 %v5297, %v5289
        %v6874 = vpack.c.b16 %v5298, %v5290
        %v6875 = vpack.c.b16 %v5299, %v5291
        %v6876 = vpack.c.b16 %v5300, %v5292
        %v6877 = vpack.c.b16 %v5309, %v5301
        %v6878 = vpack.c.b16 %v5310, %v5302
        %v6879 = vpack.c.b16 %v5311, %v5303
        %v6880 = vpack.c.b16 %v5312, %v5304
        %v6881 = vpack.c.b16 %v5313, %v5305
        %v6882 = vpack.c.b16 %v5314, %v5306
        %v6883 = vpack.c.b16 %v5315, %v5307
        %v6884 = vpack.c.b16 %v5316, %v5308
        %v6885 = vpack.c.b16 %v5325, %v5317
        %v6886 = vpack.c.b16 %v5326, %v5318
        %v6887 = vpack.c.b16 %v5327, %v5319
        %v6888 = vpack.c.b16 %v5328, %v5320
        %v6889 = vpack.c.b16 %v5329, %v5321
        %v6890 = vpack.c.b16 %v5330, %v5322
        %v6891 = vpack.c.b16 %v5331, %v5323
        %v6892 = vpack.c.b16 %v5332, %v5324
        %v6893 = vpack.c.b16 %v5341, %v5333
        %v6894 = vpack.c.b16 %v5342, %v5334
        %v6895 = vpack.c.b16 %v5343, %v5335
        %v6896 = vpack.c.b16 %v5344, %v5336
        %v6897 = vpack.c.b16 %v5345, %v5337
        %v6898 = vpack.c.b16 %v5346, %v5338
        %v6899 = vpack.c.b16 %v5347, %v5339
        %v6900 = vpack.c.b16 %v5348, %v5340
        %v6901 = vpack.c.b16 %v5357, %v5349
        %v6902 = vpack.c.b16 %v5358, %v5350
        %v6903 = vpack.c.b16 %v5359, %v5351
        %v6904 = vpack.c.b16 %v5360, %v5352
        %v6905 = vpack.c.b16 %v5361, %v5353
        %v6906 = vpack.c.b16 %v5362, %v5354
        %v6907 = vpack.c.b16 %v5363, %v5355
        %v6908 = vpack.c.b16 %v5364, %v5356
        %v6909 = vpack.c.b16 %v5373, %v5365
        %v6910 = vpack.c.b16 %v5374, %v5366
        %v6911 = vpack.c.b16 %v5375, %v5367
        %v6912 = vpack.c.b16 %v5376, %v5368
        %v6913 = vpack.c.b16 %v5377, %v5369
        %v6914 = vpack.c.b16 %v5378, %v5370
        %v6915 = vpack.c.b16 %v5379, %v5371
        %v6916 = vpack.c.b16 %v5380, %v5372
        %v6917 = vpack.c.b16 %v5389, %v5381
        %v6918 = vpack.c.b16 %v5390, %v5382
        %v6919 = vpack.c.b16 %v5391, %v5383
        %v6920 = vpack.c.b16 %v5392, %v5384
        %v6921 = vpack.c.b16 %v5393, %v5385
        %v6922 = vpack.c.b16 %v5394, %v5386
        %v6923 = vpack.c.b16 %v5395, %v5387
        %v6924 = vpack.c.b16 %v5396, %v5388
        %v6925 = vpack.c.b16 %v5405, %v5397
        %v6926 = vpack.c.b16 %v5406, %v5398
        %v6927 = vpack.c.b16 %v5407, %v5399
        %v6928 = vpack.c.b16 %v5408, %v5400
        %v6929 = vpack.c.b16 %v5409, %v5401
        %v6930 = vpack.c.b16 %v5410, %v5402
        %v6931 = vpack.c.b16 %v5411, %v5403
        %v6932 = vpack.c.b16 %v5412, %v5404
        %v6933 = vpack.c.b16 %v5421, %v5413
        %v6934 = vpack.c.b16 %v5422, %v5414
        %v6935 = vpack.c.b16 %v5423, %v5415
        %v6936 = vpack.c.b16 %v5424, %v5416
        %v6937 = vpack.c.b16 %v5425, %v5417
        %v6938 = vpack.c.b16 %v5426, %v5418
        %v6939 = vpack.c.b16 %v5427, %v5419
        %v6940 = vpack.c.b16 %v5428, %v5420
        %v6941 = vpack.c.b16 %v5437, %v5429
        %v6942 = vpack.c.b16 %v5438, %v5430
        %v6943 = vpack.c.b16 %v5439, %v5431
        %v6944 = vpack.c.b16 %v5440, %v5432
        %v6945 = vpack.c.b16 %v5441, %v5433
        %v6946 = vpack.c.b16 %v5442, %v5434
        %v6947 = vpack.c.b16 %v5443, %v5435
        %v6948 = vpack.c.b16 %v5444, %v5436
        %v6949 = vpack.c.b16 %v5453, %v5445
        %v6950 = vpack.c.b16 %v5454, %v5446
        %v6951 = vpack.c.b16 %v5455, %v5447
        %v6952 = vpack.c.b16 %v5456, %v5448
        %v6953 = vpack.c.b16 %v5457, %v5449
        %v6954 = vpack.c.b16 %v5458, %v5450
        %v6955 = vpack.c.b16 %v5459, %v5451
        %v6956 = vpack.c.b16 %v5460, %v5452
        %v6957 = vpack.c.b16 %v5469, %v5461
        %v6958 = vpack.c.b16 %v5470, %v5462
        %v6959 = vpack.c.b16 %v5471, %v5463
        %v6960 = vpack.c.b16 %v5472, %v5464
        %v6961 = vpack.c.b16 %v5473, %v5465
        %v6962 = vpack.c.b16 %v5474, %v5466
        %v6963 = vpack.c.b16 %v5475, %v5467
        %v6964 = vpack.c.b16 %v5476, %v5468
        %v6965 = vpack.c.b16 %v5485, %v5477
        %v6966 = vpack.c.b16 %v5486, %v5478
        %v6967 = vpack.c.b16 %v5487, %v5479
        %v6968 = vpack.c.b16 %v5488, %v5480
        %v6969 = vpack.c.b16 %v5489, %v5481
        %v6970 = vpack.c.b16 %v5490, %v5482
        %v6971 = vpack.c.b16 %v5491, %v5483
        %v6972 = vpack.c.b16 %v5492, %v5484
        %v6973 = vpack.c.b16 %v5501, %v5493
        %v6974 = vpack.c.b16 %v5502, %v5494
        %v6975 = vpack.c.b16 %v5503, %v5495
        %v6976 = vpack.c.b16 %v5504, %v5496
        %v6977 = vpack.c.b16 %v5505, %v5497
        %v6978 = vpack.c.b16 %v5506, %v5498
        %v6979 = vpack.c.b16 %v5507, %v5499
        %v6980 = vpack.c.b16 %v5508, %v5500
        %v6981 = vpack.c.b16 %v5517, %v5509
        %v6982 = vpack.c.b16 %v5518, %v5510
        %v6983 = vpack.c.b16 %v5519, %v5511
        %v6984 = vpack.c.b16 %v5520, %v5512
        %v6985 = vpack.c.b16 %v5521, %v5513
        %v6986 = vpack.c.b16 %v5522, %v5514
        %v6987 = vpack.c.b16 %v5523, %v5515
        %v6988 = vpack.c.b16 %v5524, %v5516
        %v6989 = vpack.c.b16 %v5533, %v5525
        %v6990 = vpack.c.b16 %v5534, %v5526
        %v6991 = vpack.c.b16 %v5535, %v5527
        %v6992 = vpack.c.b16 %v5536, %v5528
        %v6993 = vpack.c.b16 %v5537, %v5529
        %v6994 = vpack.c.b16 %v5538, %v5530
        %v6995 = vpack.c.b16 %v5539, %v5531
        %v6996 = vpack.c.b16 %v5540, %v5532
        %v6997 = vpack.c.b16 %v5549, %v5541
        %v6998 = vpack.c.b16 %v5550, %v5542
        %v6999 = vpack.c.b16 %v5551, %v5543
        %v7000 = vpack.c.b16 %v5552, %v5544
        %v7001 = vpack.c.b16 %v5553, %v5545
        %v7002 = vpack.c.b16 %v5554, %v5546
        %v7003 = vpack.c.b16 %v5555, %v5547
        %v7004 = vpack.c.b16 %v5556, %v5548
        %v7005 = vpack.c.b16 %v5565, %v5557
        %v7006 = vpack.c.b16 %v5566, %v5558
        %v7007 = vpack.c.b16 %v5567, %v5559
        %v7008 = vpack.c.b16 %v5568, %v5560
        %v7009 = vpack.c.b16 %v5569, %v5561
        %v7010 = vpack.c.b16 %v5570, %v5562
        %v7011 = vpack.c.b16 %v5571, %v5563
        %v7012 = vpack.c.b16 %v5572, %v5564
        %v7013 = vpack.c.b16 %v5581, %v5573
        %v7014 = vpack.c.b16 %v5582, %v5574
        %v7015 = vpack.c.b16 %v5583, %v5575
        %v7016 = vpack.c.b16 %v5584, %v5576
        %v7017 = vpack.c.b16 %v5585, %v5577
        %v7018 = vpack.c.b16 %v5586, %v5578
        %v7019 = vpack.c.b16 %v5587, %v5579
        %v7020 = vpack.c.b16 %v5588, %v5580
        %v7021 = vpack.c.b16 %v5597, %v5589
        %v7022 = vpack.c.b16 %v5598, %v5590
        %v7023 = vpack.c.b16 %v5599, %v5591
        %v7024 = vpack.c.b16 %v5600, %v5592
        %v7025 = vpack.c.b16 %v5601, %v5593
        %v7026 = vpack.c.b16 %v5602, %v5594
        %v7027 = vpack.c.b16 %v5603, %v5595
        %v7028 = vpack.c.b16 %v5604, %v5596
        %v7029 = vpack.c.b16 %v5613, %v5605
        %v7030 = vpack.c.b16 %v5614, %v5606
        %v7031 = vpack.c.b16 %v5615, %v5607
        %v7032 = vpack.c.b16 %v5616, %v5608
        %v7033 = vpack.c.b16 %v5617, %v5609
        %v7034 = vpack.c.b16 %v5618, %v5610
        %v7035 = vpack.c.b16 %v5619, %v5611
        %v7036 = vpack.c.b16 %v5620, %v5612
        %v7037 = vpack.c.b16 %v5629, %v5621
        %v7038 = vpack.c.b16 %v5630, %v5622
        %v7039 = vpack.c.b16 %v5631, %v5623
        %v7040 = vpack.c.b16 %v5632, %v5624
        %v7041 = vpack.c.b16 %v5633, %v5625
        %v7042 = vpack.c.b16 %v5634, %v5626
        %v7043 = vpack.c.b16 %v5635, %v5627
        %v7044 = vpack.c.b16 %v5636, %v5628
        %v7045 = vpack.c.b16 %v5645, %v5637
        %v7046 = vpack.c.b16 %v5646, %v5638
        %v7047 = vpack.c.b16 %v5647, %v5639
        %v7048 = vpack.c.b16 %v5648, %v5640
        %v7049 = vpack.c.b16 %v5649, %v5641
        %v7050 = vpack.c.b16 %v5650, %v5642
        %v7051 = vpack.c.b16 %v5651, %v5643
        %v7052 = vpack.c.b16 %v5652, %v5644
        %v7053 = vpack.c.b16 %v5661, %v5653
        %v7054 = vpack.c.b16 %v5662, %v5654
        %v7055 = vpack.c.b16 %v5663, %v5655
        %v7056 = vpack.c.b16 %v5664, %v5656
        %v7057 = vpack.c.b16 %v5665, %v5657
        %v7058 = vpack.c.b16 %v5666, %v5658
        %v7059 = vpack.c.b16 %v5667, %v5659
        %v7060 = vpack.c.b16 %v5668, %v5660
        %v7061 = vpack.c.b16 %v5677, %v5669
        %v7062 = vpack.c.b16 %v5678, %v5670
        %v7063 = vpack.c.b16 %v5679, %v5671
        %v7064 = vpack.c.b16 %v5680, %v5672
        %v7065 = vpack.c.b16 %v5681, %v5673
        %v7066 = vpack.c.b16 %v5682, %v5674
        %v7067 = vpack.c.b16 %v5683, %v5675
        %v7068 = vpack.c.b16 %v5684, %v5676
        %v7069 = vpack.c.b16 %v5693, %v5685
        %v7070 = vpack.c.b16 %v5694, %v5686
        %v7071 = vpack.c.b16 %v5695, %v5687
        %v7072 = vpack.c.b16 %v5696, %v5688
        %v7073 = vpack.c.b16 %v5697, %v5689
        %v7074 = vpack.c.b16 %v5698, %v5690
        %v7075 = vpack.c.b16 %v5699, %v5691
        %v7076 = vpack.c.b16 %v5700, %v5692
        %v7077 = vpack.c.b16 %v5709, %v5701
        %v7078 = vpack.c.b16 %v5710, %v5702
        %v7079 = vpack.c.b16 %v5711, %v5703
        %v7080 = vpack.c.b16 %v5712, %v5704
        %v7081 = vpack.c.b16 %v5713, %v5705
        %v7082 = vpack.c.b16 %v5714, %v5706
        %v7083 = vpack.c.b16 %v5715, %v5707
        %v7084 = vpack.c.b16 %v5716, %v5708
        %v7085 = vpack.c.b16 %v5725, %v5717
        %v7086 = vpack.c.b16 %v5726, %v5718
        %v7087 = vpack.c.b16 %v5727, %v5719
        %v7088 = vpack.c.b16 %v5728, %v5720
        %v7089 = vpack.c.b16 %v5729, %v5721
        %v7090 = vpack.c.b16 %v5730, %v5722
        %v7091 = vpack.c.b16 %v5731, %v5723
        %v7092 = vpack.c.b16 %v5732, %v5724
        %v7093 = vpack.c.b16 %v5741, %v5733
        %v7094 = vpack.c.b16 %v5742, %v5734
        %v7095 = vpack.c.b16 %v5743, %v5735
        %v7096 = vpack.c.b16 %v5744, %v5736
        %v7097 = vpack.c.b16 %v5745, %v5737
        %v7098 = vpack.c.b16 %v5746, %v5738
        %v7099 = vpack.c.b16 %v5747, %v5739
        %v7100 = vpack.c.b16 %v5748, %v5740
        %v7101 = vpack.c.b16 %v5757, %v5749
        %v7102 = vpack.c.b16 %v5758, %v5750
        %v7103 = vpack.c.b16 %v5759, %v5751
        %v7104 = vpack.c.b16 %v5760, %v5752
        %v7105 = vpack.c.b16 %v5761, %v5753
        %v7106 = vpack.c.b16 %v5762, %v5754
        %v7107 = vpack.c.b16 %v5763, %v5755
        %v7108 = vpack.c.b16 %v5764, %v5756
        %v7109 = vpack.c.b16 %v5773, %v5765
        %v7110 = vpack.c.b16 %v5774, %v5766
        %v7111 = vpack.c.b16 %v5775, %v5767
        %v7112 = vpack.c.b16 %v5776, %v5768
        %v7113 = vpack.c.b16 %v5777, %v5769
        %v7114 = vpack.c.b16 %v5778, %v5770
        %v7115 = vpack.c.b16 %v5779, %v5771
        %v7116 = vpack.c.b16 %v5780, %v5772
        %v7117 = vpack.c.b16 %v5789, %v5781
        %v7118 = vpack.c.b16 %v5790, %v5782
        %v7119 = vpack.c.b16 %v5791, %v5783
        %v7120 = vpack.c.b16 %v5792, %v5784
        %v7121 = vpack.c.b16 %v5793, %v5785
        %v7122 = vpack.c.b16 %v5794, %v5786
        %v7123 = vpack.c.b16 %v5795, %v5787
        %v7124 = vpack.c.b16 %v5796, %v5788
        %v7125 = vpack.c.b16 %v5805, %v5797
        %v7126 = vpack.c.b16 %v5806, %v5798
        %v7127 = vpack.c.b16 %v5807, %v5799
        %v7128 = vpack.c.b16 %v5808, %v5800
        %v7129 = vpack.c.b16 %v5809, %v5801
        %v7130 = vpack.c.b16 %v5810, %v5802
        %v7131 = vpack.c.b16 %v5811, %v5803
        %v7132 = vpack.c.b16 %v5812, %v5804
        %v7133 = vpack.c.b16 %v5821, %v5813
        %v7134 = vpack.c.b16 %v5822, %v5814
        %v7135 = vpack.c.b16 %v5823, %v5815
        %v7136 = vpack.c.b16 %v5824, %v5816
        %v7137 = vpack.c.b16 %v5825, %v5817
        %v7138 = vpack.c.b16 %v5826, %v5818
        %v7139 = vpack.c.b16 %v5827, %v5819
        %v7140 = vpack.c.b16 %v5828, %v5820
        %v7141 = vpack.c.b16 %v5837, %v5829
        %v7142 = vpack.c.b16 %v5838, %v5830
        %v7143 = vpack.c.b16 %v5839, %v5831
        %v7144 = vpack.c.b16 %v5840, %v5832
        %v7145 = vpack.c.b16 %v5841, %v5833
        %v7146 = vpack.c.b16 %v5842, %v5834
        %v7147 = vpack.c.b16 %v5843, %v5835
        %v7148 = vpack.c.b16 %v5844, %v5836
        %v7149 = vpack.c.b16 %v5853, %v5845
        %v7150 = vpack.c.b16 %v5854, %v5846
        %v7151 = vpack.c.b16 %v5855, %v5847
        %v7152 = vpack.c.b16 %v5856, %v5848
        %v7153 = vpack.c.b16 %v5857, %v5849
        %v7154 = vpack.c.b16 %v5858, %v5850
        %v7155 = vpack.c.b16 %v5859, %v5851
        %v7156 = vpack.c.b16 %v5860, %v5852
        %v7157 = vpack.c.b16 %v5869, %v5861
        %v7158 = vpack.c.b16 %v5870, %v5862
        %v7159 = vpack.c.b16 %v5871, %v5863
        %v7160 = vpack.c.b16 %v5872, %v5864
        %v7161 = vpack.c.b16 %v5873, %v5865
        %v7162 = vpack.c.b16 %v5874, %v5866
        %v7163 = vpack.c.b16 %v5875, %v5867
        %v7164 = vpack.c.b16 %v5876, %v5868
        %v7165 = vpack.c.b16 %v5885, %v5877
        %v7166 = vpack.c.b16 %v5886, %v5878
        %v7167 = vpack.c.b16 %v5887, %v5879
        %v7168 = vpack.c.b16 %v5888, %v5880
        %v7169 = vpack.c.b16 %v5889, %v5881
        %v7170 = vpack.c.b16 %v5890, %v5882
        %v7171 = vpack.c.b16 %v5891, %v5883
        %v7172 = vpack.c.b16 %v5892, %v5884
        %8453 = vmatprep.subr.bf16.mxu0 %v5894
        %8454 = vmatpush1.bf16.msra.mxu0 %v5893
        %8455 = vmatprep.subr.bf16.mxu0 %v5902
        %8456 = vmatpush1.bf16.msra.mxu0 %v5901
        %8457 = vmatprep.subr.bf16.mxu0 %v5910
        %8458 = vmatpush1.bf16.msra.mxu0 %v5909
        %8459 = vmatprep.subr.bf16.mxu0 %v5918
        %8460 = vmatpush1.bf16.msra.mxu0 %v5917
        %8461 = vmatprep.subr.bf16.mxu0 %v5926
        %8462 = vmatpush1.bf16.msra.mxu0 %v5925
        %8463 = vmatprep.subr.bf16.mxu0 %v5934
        %8464 = vmatpush1.bf16.msra.mxu0 %v5933
        %8465 = vmatprep.subr.bf16.mxu0 %v5942
        %8466 = vmatpush1.bf16.msra.mxu0 %v5941
        %8467 = vmatprep.subr.bf16.mxu0 %v5950
        %8468 = vmatpush1.bf16.msra.mxu0 %v5949
        %8469 = vmatprep.subr.bf16.mxu0 %v5958
        %8470 = vmatpush1.bf16.msra.mxu0 %v5957
        %8471 = vmatprep.subr.bf16.mxu0 %v5966
        %8472 = vmatpush1.bf16.msra.mxu0 %v5965
        %8473 = vmatprep.subr.bf16.mxu0 %v5974
        %8474 = vmatpush1.bf16.msra.mxu0 %v5973
        %8475 = vmatprep.subr.bf16.mxu0 %v5982
        %8476 = vmatpush1.bf16.msra.mxu0 %v5981
        %8477 = vmatprep.subr.bf16.mxu0 %v5990
        %8478 = vmatpush1.bf16.msra.mxu0 %v5989
        %8479 = vmatprep.subr.bf16.mxu0 %v5998
        %8480 = vmatpush1.bf16.msra.mxu0 %v5997
        %8481 = vmatprep.subr.bf16.mxu0 %v6006
        %8482 = vmatpush1.bf16.msra.mxu0 %v6005
        %8483 = vmatprep.subr.bf16.mxu0 %v6014
        %8484 = vmatpush1.bf16.msra.mxu0 %v6013
        %8485 = vmatprep.mubr.bf16.mxu0 %v712
        %8486 = vmatmul.mubr.bf16.gmra.mrb[0].mxu0 %v711
        %v8487 = vpop.f32.mrb[0].mxu0
        %v8488 = vadd.f32 %v2016, %v8487
        %v8489 = vpop.f32.mrb[0].mxu0
        %v8490 = vadd.f32 %v2020, %v8489
        %v8491 = vpop.f32.mrb[0].mxu0
        %v8492 = vpop.f32.mrb[0].mxu0
        %8493 = vdwg.mxu0
        %8494 = vmatprep.subr.bf16.mxu0 %v6022
        %8495 = vmatpush1.bf16.msra.mxu0 %v6021
        %8496 = vmatprep.subr.bf16.mxu0 %v6030
        %8497 = vmatpush1.bf16.msra.mxu0 %v6029
        %8498 = vmatprep.subr.bf16.mxu0 %v6038
        %8499 = vmatpush1.bf16.msra.mxu0 %v6037
        %8500 = vmatprep.subr.bf16.mxu0 %v6046
        %8501 = vmatpush1.bf16.msra.mxu0 %v6045
        %8502 = vmatprep.subr.bf16.mxu0 %v6054
        %8503 = vmatpush1.bf16.msra.mxu0 %v6053
        %8504 = vmatprep.subr.bf16.mxu0 %v6062
        %8505 = vmatpush1.bf16.msra.mxu0 %v6061
        %8506 = vmatprep.subr.bf16.mxu0 %v6070
        %8507 = vmatpush1.bf16.msra.mxu0 %v6069
        %8508 = vmatprep.subr.bf16.mxu0 %v6078
        %8509 = vmatpush1.bf16.msra.mxu0 %v6077
        %8510 = vmatprep.subr.bf16.mxu0 %v6086
        %8511 = vmatpush1.bf16.msra.mxu0 %v6085
        %8512 = vmatprep.subr.bf16.mxu0 %v6094
        %8513 = vmatpush1.bf16.msra.mxu0 %v6093
        %8514 = vmatprep.subr.bf16.mxu0 %v6102
        %8515 = vmatpush1.bf16.msra.mxu0 %v6101
        %8516 = vmatprep.subr.bf16.mxu0 %v6110
        %8517 = vmatpush1.bf16.msra.mxu0 %v6109
        %8518 = vmatprep.subr.bf16.mxu0 %v6118
        %8519 = vmatpush1.bf16.msra.mxu0 %v6117
        %8520 = vmatprep.subr.bf16.mxu0 %v6126
        %8521 = vmatpush1.bf16.msra.mxu0 %v6125
        %8522 = vmatprep.subr.bf16.mxu0 %v6134
        %8523 = vmatpush1.bf16.msra.mxu0 %v6133
        %8524 = vmatprep.subr.bf16.mxu0 %v6142
        %8525 = vmatpush1.bf16.msra.mxu0 %v6141
        %8526 = vmatprep.mubr.bf16.mxu0 %v714
        %8527 = vmatmul.mubr.bf16.gmra.mrb[0].mxu0 %v713
        %v8528 = vpop.f32.mrb[0].mxu0
        %v8529 = vadd.f32 %v8488, %v8528
        %v8530 = vpop.f32.mrb[0].mxu0
        %v8531 = vadd.f32 %v8490, %v8530
        %v8532 = vpop.f32.mrb[0].mxu0
        %v8533 = vpop.f32.mrb[0].mxu0
        %8534 = vdwg.mxu0
        %8535 = vmatprep.subr.bf16.mxu0 %v6150
        %8536 = vmatpush1.bf16.msra.mxu0 %v6149
        %8537 = vmatprep.subr.bf16.mxu0 %v6158
        %8538 = vmatpush1.bf16.msra.mxu0 %v6157
        %8539 = vmatprep.subr.bf16.mxu0 %v6166
        %8540 = vmatpush1.bf16.msra.mxu0 %v6165
        %8541 = vmatprep.subr.bf16.mxu0 %v6174
        %8542 = vmatpush1.bf16.msra.mxu0 %v6173
        %8543 = vmatprep.subr.bf16.mxu0 %v6182
        %8544 = vmatpush1.bf16.msra.mxu0 %v6181
        %8545 = vmatprep.subr.bf16.mxu0 %v6190
        %8546 = vmatpush1.bf16.msra.mxu0 %v6189
        %8547 = vmatprep.subr.bf16.mxu0 %v6198
        %8548 = vmatpush1.bf16.msra.mxu0 %v6197
        %8549 = vmatprep.subr.bf16.mxu0 %v6206
        %8550 = vmatpush1.bf16.msra.mxu0 %v6205
        %8551 = vmatprep.subr.bf16.mxu0 %v6214
        %8552 = vmatpush1.bf16.msra.mxu0 %v6213
        %8553 = vmatprep.subr.bf16.mxu0 %v6222
        %8554 = vmatpush1.bf16.msra.mxu0 %v6221
        %8555 = vmatprep.subr.bf16.mxu0 %v6230
        %8556 = vmatpush1.bf16.msra.mxu0 %v6229
        %8557 = vmatprep.subr.bf16.mxu0 %v6238
        %8558 = vmatpush1.bf16.msra.mxu0 %v6237
        %8559 = vmatprep.subr.bf16.mxu0 %v6246
        %8560 = vmatpush1.bf16.msra.mxu0 %v6245
        %8561 = vmatprep.subr.bf16.mxu0 %v6254
        %8562 = vmatpush1.bf16.msra.mxu0 %v6253
        %8563 = vmatprep.subr.bf16.mxu0 %v6262
        %8564 = vmatpush1.bf16.msra.mxu0 %v6261
        %8565 = vmatprep.subr.bf16.mxu0 %v6270
        %8566 = vmatpush1.bf16.msra.mxu0 %v6269
        %8567 = vmatprep.mubr.bf16.mxu0 %v716
        %8568 = vmatmul.mubr.bf16.gmra.mrb[0].mxu0 %v715
        %v8569 = vpop.f32.mrb[0].mxu0
        %v8570 = vadd.f32 %v8529, %v8569
        %v8571 = vpop.f32.mrb[0].mxu0
        %v8572 = vadd.f32 %v8531, %v8571
        %v8573 = vpop.f32.mrb[0].mxu0
        %v8574 = vpop.f32.mrb[0].mxu0
        %8575 = vdwg.mxu0
        %8576 = vmatprep.subr.bf16.mxu0 %v6278
        %8577 = vmatpush1.bf16.msra.mxu0 %v6277
        %8578 = vmatprep.subr.bf16.mxu0 %v6286
        %8579 = vmatpush1.bf16.msra.mxu0 %v6285
        %8580 = vmatprep.subr.bf16.mxu0 %v6294
        %8581 = vmatpush1.bf16.msra.mxu0 %v6293
        %8582 = vmatprep.subr.bf16.mxu0 %v6302
        %8583 = vmatpush1.bf16.msra.mxu0 %v6301
        %8584 = vmatprep.subr.bf16.mxu0 %v6310
        %8585 = vmatpush1.bf16.msra.mxu0 %v6309
        %8586 = vmatprep.subr.bf16.mxu0 %v6318
        %8587 = vmatpush1.bf16.msra.mxu0 %v6317
        %8588 = vmatprep.subr.bf16.mxu0 %v6326
        %8589 = vmatpush1.bf16.msra.mxu0 %v6325
        %8590 = vmatprep.subr.bf16.mxu0 %v6334
        %8591 = vmatpush1.bf16.msra.mxu0 %v6333
        %8592 = vmatprep.subr.bf16.mxu0 %v6342
        %8593 = vmatpush1.bf16.msra.mxu0 %v6341
        %8594 = vmatprep.subr.bf16.mxu0 %v6350
        %8595 = vmatpush1.bf16.msra.mxu0 %v6349
        %8596 = vmatprep.subr.bf16.mxu0 %v6358
        %8597 = vmatpush1.bf16.msra.mxu0 %v6357
        %8598 = vmatprep.subr.bf16.mxu0 %v6366
        %8599 = vmatpush1.bf16.msra.mxu0 %v6365
        %8600 = vmatprep.subr.bf16.mxu0 %v6374
        %8601 = vmatpush1.bf16.msra.mxu0 %v6373
        %8602 = vmatprep.subr.bf16.mxu0 %v6382
        %8603 = vmatpush1.bf16.msra.mxu0 %v6381
        %8604 = vmatprep.subr.bf16.mxu0 %v6390
        %8605 = vmatpush1.bf16.msra.mxu0 %v6389
        %8606 = vmatprep.subr.bf16.mxu0 %v6398
        %8607 = vmatpush1.bf16.msra.mxu0 %v6397
        %8608 = vmatprep.mubr.bf16.mxu0 %v718
        %8609 = vmatmul.mubr.bf16.gmra.mrb[0].mxu0 %v717
        %v8610 = vpop.f32.mrb[0].mxu0
        %v8611 = vadd.f32 %v8570, %v8610
        %v8612 = vpop.f32.mrb[0].mxu0
        %v8613 = vadd.f32 %v8572, %v8612
        %v8614 = vpop.f32.mrb[0].mxu0
        %v8615 = vpop.f32.mrb[0].mxu0
        %8616 = vdwg.mxu0
        %8617 = vmatprep.subr.bf16.mxu0 %v6406
        %8618 = vmatpush1.bf16.msra.mxu0 %v6405
        %8619 = vmatprep.subr.bf16.mxu0 %v6414
        %8620 = vmatpush1.bf16.msra.mxu0 %v6413
        %8621 = vmatprep.subr.bf16.mxu0 %v6422
        %8622 = vmatpush1.bf16.msra.mxu0 %v6421
        %8623 = vmatprep.subr.bf16.mxu0 %v6430
        %8624 = vmatpush1.bf16.msra.mxu0 %v6429
        %8625 = vmatprep.subr.bf16.mxu0 %v6438
        %8626 = vmatpush1.bf16.msra.mxu0 %v6437
        %8627 = vmatprep.subr.bf16.mxu0 %v6446
        %8628 = vmatpush1.bf16.msra.mxu0 %v6445
        %8629 = vmatprep.subr.bf16.mxu0 %v6454
        %8630 = vmatpush1.bf16.msra.mxu0 %v6453
        %8631 = vmatprep.subr.bf16.mxu0 %v6462
        %8632 = vmatpush1.bf16.msra.mxu0 %v6461
        %8633 = vmatprep.subr.bf16.mxu0 %v6470
        %8634 = vmatpush1.bf16.msra.mxu0 %v6469
        %8635 = vmatprep.subr.bf16.mxu0 %v6478
        %8636 = vmatpush1.bf16.msra.mxu0 %v6477
        %8637 = vmatprep.subr.bf16.mxu0 %v6486
        %8638 = vmatpush1.bf16.msra.mxu0 %v6485
        %8639 = vmatprep.subr.bf16.mxu0 %v6494
        %8640 = vmatpush1.bf16.msra.mxu0 %v6493
        %8641 = vmatprep.subr.bf16.mxu0 %v6502
        %8642 = vmatpush1.bf16.msra.mxu0 %v6501
        %8643 = vmatprep.subr.bf16.mxu0 %v6510
        %8644 = vmatpush1.bf16.msra.mxu0 %v6509
        %8645 = vmatprep.subr.bf16.mxu0 %v6518
        %8646 = vmatpush1.bf16.msra.mxu0 %v6517
        %8647 = vmatprep.subr.bf16.mxu0 %v6526
        %8648 = vmatpush1.bf16.msra.mxu0 %v6525
        %8649 = vmatprep.mubr.bf16.mxu0 %v720
        %8650 = vmatmul.mubr.bf16.gmra.mrb[0].mxu0 %v719
        %v8651 = vpop.f32.mrb[0].mxu0
        %v8652 = vadd.f32 %v8611, %v8651
        %v8653 = vpop.f32.mrb[0].mxu0
        %v8654 = vadd.f32 %v8613, %v8653
        %v8655 = vpop.f32.mrb[0].mxu0
        %v8656 = vpop.f32.mrb[0].mxu0
        %8657 = vdwg.mxu0
        %8658 = vmatprep.subr.bf16.mxu0 %v6534
        %8659 = vmatpush1.bf16.msra.mxu0 %v6533
        %8660 = vmatprep.subr.bf16.mxu0 %v6542
        %8661 = vmatpush1.bf16.msra.mxu0 %v6541
        %8662 = vmatprep.subr.bf16.mxu0 %v6550
        %8663 = vmatpush1.bf16.msra.mxu0 %v6549
        %8664 = vmatprep.subr.bf16.mxu0 %v6558
        %8665 = vmatpush1.bf16.msra.mxu0 %v6557
        %8666 = vmatprep.subr.bf16.mxu0 %v6566
        %8667 = vmatpush1.bf16.msra.mxu0 %v6565
        %8668 = vmatprep.subr.bf16.mxu0 %v6574
        %8669 = vmatpush1.bf16.msra.mxu0 %v6573
        %8670 = vmatprep.subr.bf16.mxu0 %v6582
        %8671 = vmatpush1.bf16.msra.mxu0 %v6581
        %8672 = vmatprep.subr.bf16.mxu0 %v6590
        %8673 = vmatpush1.bf16.msra.mxu0 %v6589
        %8674 = vmatprep.subr.bf16.mxu0 %v6598
        %8675 = vmatpush1.bf16.msra.mxu0 %v6597
        %8676 = vmatprep.subr.bf16.mxu0 %v6606
        %8677 = vmatpush1.bf16.msra.mxu0 %v6605
        %8678 = vmatprep.subr.bf16.mxu0 %v6614
        %8679 = vmatpush1.bf16.msra.mxu0 %v6613
        %8680 = vmatprep.subr.bf16.mxu0 %v6622
        %8681 = vmatpush1.bf16.msra.mxu0 %v6621
        %8682 = vmatprep.subr.bf16.mxu0 %v6630
        %8683 = vmatpush1.bf16.msra.mxu0 %v6629
        %8684 = vmatprep.subr.bf16.mxu0 %v6638
        %8685 = vmatpush1.bf16.msra.mxu0 %v6637
        %8686 = vmatprep.subr.bf16.mxu0 %v6646
        %8687 = vmatpush1.bf16.msra.mxu0 %v6645
        %8688 = vmatprep.subr.bf16.mxu0 %v6654
        %8689 = vmatpush1.bf16.msra.mxu0 %v6653
        %8690 = vmatprep.mubr.bf16.mxu0 %v722
        %8691 = vmatmul.mubr.bf16.gmra.mrb[0].mxu0 %v721
        %v8692 = vpop.f32.mrb[0].mxu0
        %v8693 = vadd.f32 %v8652, %v8692
        %v8694 = vpop.f32.mrb[0].mxu0
        %v8695 = vadd.f32 %v8654, %v8694
        %v8696 = vpop.f32.mrb[0].mxu0
        %v8697 = vpop.f32.mrb[0].mxu0
        %8698 = vdwg.mxu0
        %8699 = vmatprep.subr.bf16.mxu0 %v6662
        %8700 = vmatpush1.bf16.msra.mxu0 %v6661
        %8701 = vmatprep.subr.bf16.mxu0 %v6670
        %8702 = vmatpush1.bf16.msra.mxu0 %v6669
        %8703 = vmatprep.subr.bf16.mxu0 %v6678
        %8704 = vmatpush1.bf16.msra.mxu0 %v6677
        %8705 = vmatprep.subr.bf16.mxu0 %v6686
        %8706 = vmatpush1.bf16.msra.mxu0 %v6685
        %8707 = vmatprep.subr.bf16.mxu0 %v6694
        %8708 = vmatpush1.bf16.msra.mxu0 %v6693
        %8709 = vmatprep.subr.bf16.mxu0 %v6702
        %8710 = vmatpush1.bf16.msra.mxu0 %v6701
        %8711 = vmatprep.subr.bf16.mxu0 %v6710
        %8712 = vmatpush1.bf16.msra.mxu0 %v6709
        %8713 = vmatprep.subr.bf16.mxu0 %v6718
        %8714 = vmatpush1.bf16.msra.mxu0 %v6717
        %8715 = vmatprep.subr.bf16.mxu0 %v6726
        %8716 = vmatpush1.bf16.msra.mxu0 %v6725
        %8717 = vmatprep.subr.bf16.mxu0 %v6734
        %8718 = vmatpush1.bf16.msra.mxu0 %v6733
        %8719 = vmatprep.subr.bf16.mxu0 %v6742
        %8720 = vmatpush1.bf16.msra.mxu0 %v6741
        %8721 = vmatprep.subr.bf16.mxu0 %v6750
        %8722 = vmatpush1.bf16.msra.mxu0 %v6749
        %8723 = vmatprep.subr.bf16.mxu0 %v6758
        %8724 = vmatpush1.bf16.msra.mxu0 %v6757
        %8725 = vmatprep.subr.bf16.mxu0 %v6766
        %8726 = vmatpush1.bf16.msra.mxu0 %v6765
        %8727 = vmatprep.subr.bf16.mxu0 %v6774
        %8728 = vmatpush1.bf16.msra.mxu0 %v6773
        %8729 = vmatprep.subr.bf16.mxu0 %v6782
        %8730 = vmatpush1.bf16.msra.mxu0 %v6781
        %8731 = vmatprep.mubr.bf16.mxu0 %v724
        %8732 = vmatmul.mubr.bf16.gmra.mrb[0].mxu0 %v723
        %v8733 = vpop.f32.mrb[0].mxu0
        %v8734 = vadd.f32 %v8693, %v8733
        %v8735 = vpop.f32.mrb[0].mxu0
        %v8736 = vadd.f32 %v8695, %v8735
        %v8737 = vpop.f32.mrb[0].mxu0
        %v8738 = vpop.f32.mrb[0].mxu0
        %8739 = vdwg.mxu0
        %8740 = vmatprep.subr.bf16.mxu0 %v6790
        %8741 = vmatpush1.bf16.msra.mxu0 %v6789
        %8742 = vmatprep.subr.bf16.mxu0 %v6798
        %8743 = vmatpush1.bf16.msra.mxu0 %v6797
        %8744 = vmatprep.subr.bf16.mxu0 %v6806
        %8745 = vmatpush1.bf16.msra.mxu0 %v6805
        %8746 = vmatprep.subr.bf16.mxu0 %v6814
        %8747 = vmatpush1.bf16.msra.mxu0 %v6813
        %8748 = vmatprep.subr.bf16.mxu0 %v6822
        %8749 = vmatpush1.bf16.msra.mxu0 %v6821
        %8750 = vmatprep.subr.bf16.mxu0 %v6830
        %8751 = vmatpush1.bf16.msra.mxu0 %v6829
        %8752 = vmatprep.subr.bf16.mxu0 %v6838
        %8753 = vmatpush1.bf16.msra.mxu0 %v6837
        %8754 = vmatprep.subr.bf16.mxu0 %v6846
        %8755 = vmatpush1.bf16.msra.mxu0 %v6845
        %8756 = vmatprep.subr.bf16.mxu0 %v6854
        %8757 = vmatpush1.bf16.msra.mxu0 %v6853
        %8758 = vmatprep.subr.bf16.mxu0 %v6862
        %8759 = vmatpush1.bf16.msra.mxu0 %v6861
        %8760 = vmatprep.subr.bf16.mxu0 %v6870
        %8761 = vmatpush1.bf16.msra.mxu0 %v6869
        %8762 = vmatprep.subr.bf16.mxu0 %v6878
        %8763 = vmatpush1.bf16.msra.mxu0 %v6877
        %8764 = vmatprep.subr.bf16.mxu0 %v6886
        %8765 = vmatpush1.bf16.msra.mxu0 %v6885
        %8766 = vmatprep.subr.bf16.mxu0 %v6894
        %8767 = vmatpush1.bf16.msra.mxu0 %v6893
        %8768 = vmatprep.subr.bf16.mxu0 %v6902
        %8769 = vmatpush1.bf16.msra.mxu0 %v6901
        %8770 = vmatprep.subr.bf16.mxu0 %v6910
        %8771 = vmatpush1.bf16.msra.mxu0 %v6909
        %8772 = vmatprep.mubr.bf16.mxu0 %v726
        %8773 = vmatmul.mubr.bf16.gmra.mrb[0].mxu0 %v725
        %v8774 = vpop.f32.mrb[0].mxu0
        %v8775 = vadd.f32 %v8734, %v8774
        %v8776 = vpop.f32.mrb[0].mxu0
        %v8777 = vadd.f32 %v8736, %v8776
        %v8778 = vpop.f32.mrb[0].mxu0
        %v8779 = vpop.f32.mrb[0].mxu0
        %8780 = vdwg.mxu0
        %8781 = vmatprep.subr.bf16.mxu0 %v6918
        %8782 = vmatpush1.bf16.msra.mxu0 %v6917
        %8783 = vmatprep.subr.bf16.mxu0 %v6926
        %8784 = vmatpush1.bf16.msra.mxu0 %v6925
        %8785 = vmatprep.subr.bf16.mxu0 %v6934
        %8786 = vmatpush1.bf16.msra.mxu0 %v6933
        %8787 = vmatprep.subr.bf16.mxu0 %v6942
        %8788 = vmatpush1.bf16.msra.mxu0 %v6941
        %8789 = vmatprep.subr.bf16.mxu0 %v6950
        %8790 = vmatpush1.bf16.msra.mxu0 %v6949
        %8791 = vmatprep.subr.bf16.mxu0 %v6958
        %8792 = vmatpush1.bf16.msra.mxu0 %v6957
        %8793 = vmatprep.subr.bf16.mxu0 %v6966
        %8794 = vmatpush1.bf16.msra.mxu0 %v6965
        %8795 = vmatprep.subr.bf16.mxu0 %v6974
        %8796 = vmatpush1.bf16.msra.mxu0 %v6973
        %8797 = vmatprep.subr.bf16.mxu0 %v6982
        %8798 = vmatpush1.bf16.msra.mxu0 %v6981
        %8799 = vmatprep.subr.bf16.mxu0 %v6990
        %8800 = vmatpush1.bf16.msra.mxu0 %v6989
        %8801 = vmatprep.subr.bf16.mxu0 %v6998
        %8802 = vmatpush1.bf16.msra.mxu0 %v6997
        %8803 = vmatprep.subr.bf16.mxu0 %v7006
        %8804 = vmatpush1.bf16.msra.mxu0 %v7005
        %8805 = vmatprep.subr.bf16.mxu0 %v7014
        %8806 = vmatpush1.bf16.msra.mxu0 %v7013
        %8807 = vmatprep.subr.bf16.mxu0 %v7022
        %8808 = vmatpush1.bf16.msra.mxu0 %v7021
        %8809 = vmatprep.subr.bf16.mxu0 %v7030
        %8810 = vmatpush1.bf16.msra.mxu0 %v7029
        %8811 = vmatprep.subr.bf16.mxu0 %v7038
        %8812 = vmatpush1.bf16.msra.mxu0 %v7037
        %8813 = vmatprep.mubr.bf16.mxu0 %v728
        %8814 = vmatmul.mubr.bf16.gmra.mrb[0].mxu0 %v727
        %v8815 = vpop.f32.mrb[0].mxu0
        %v8816 = vadd.f32 %v8775, %v8815
        %v8817 = vpop.f32.mrb[0].mxu0
        %v8818 = vadd.f32 %v8777, %v8817
        %v8819 = vpop.f32.mrb[0].mxu0
        %v8820 = vpop.f32.mrb[0].mxu0
        %8821 = vdwg.mxu0
        %8822 = vmatprep.subr.bf16.mxu0 %v7046
        %8823 = vmatpush1.bf16.msra.mxu0 %v7045
        %8824 = vmatprep.subr.bf16.mxu0 %v7054
        %8825 = vmatpush1.bf16.msra.mxu0 %v7053
        %8826 = vmatprep.subr.bf16.mxu0 %v7062
        %8827 = vmatpush1.bf16.msra.mxu0 %v7061
        %8828 = vmatprep.subr.bf16.mxu0 %v7070
        %8829 = vmatpush1.bf16.msra.mxu0 %v7069
        %8830 = vmatprep.subr.bf16.mxu0 %v7078
        %8831 = vmatpush1.bf16.msra.mxu0 %v7077
        %8832 = vmatprep.subr.bf16.mxu0 %v7086
        %8833 = vmatpush1.bf16.msra.mxu0 %v7085
        %8834 = vmatprep.subr.bf16.mxu0 %v7094
        %8835 = vmatpush1.bf16.msra.mxu0 %v7093
        %8836 = vmatprep.subr.bf16.mxu0 %v7102
        %8837 = vmatpush1.bf16.msra.mxu0 %v7101
        %8838 = vmatprep.subr.bf16.mxu0 %v7110
        %8839 = vmatpush1.bf16.msra.mxu0 %v7109
        %8840 = vmatprep.subr.bf16.mxu0 %v7118
        %8841 = vmatpush1.bf16.msra.mxu0 %v7117
        %8842 = vmatprep.subr.bf16.mxu0 %v7126
        %8843 = vmatpush1.bf16.msra.mxu0 %v7125
        %8844 = vmatprep.subr.bf16.mxu0 %v7134
        %8845 = vmatpush1.bf16.msra.mxu0 %v7133
        %8846 = vmatprep.subr.bf16.mxu0 %v7142
        %8847 = vmatpush1.bf16.msra.mxu0 %v7141
        %8848 = vmatprep.subr.bf16.mxu0 %v7150
        %8849 = vmatpush1.bf16.msra.mxu0 %v7149
        %8850 = vmatprep.subr.bf16.mxu0 %v7158
        %8851 = vmatpush1.bf16.msra.mxu0 %v7157
        %8852 = vmatprep.subr.bf16.mxu0 %v7166
        %8853 = vmatpush1.bf16.msra.mxu0 %v7165
        %8854 = vmatprep.mubr.bf16.mxu0 %v730
        %8855 = vmatmul.mubr.bf16.gmra.mrb[0].mxu0 %v729
        %v8856 = vpop.f32.mrb[0].mxu0
        %v8857 = vadd.f32 %v8816, %v8856
        %v8858 = vpop.f32.mrb[0].mxu0
        %v8859 = vadd.f32 %v8818, %v8858
        %v8860 = vpop.f32.mrb[0].mxu0
        %v8861 = vpop.f32.mrb[0].mxu0
        %8862 = vdwg.mxu0
        %8863 = vmatprep.subr.bf16.mxu0 %v5896
        %8864 = vmatpush1.bf16.msra.mxu0 %v5895
        %8865 = vmatprep.subr.bf16.mxu0 %v5904
        %8866 = vmatpush1.bf16.msra.mxu0 %v5903
        %8867 = vmatprep.subr.bf16.mxu0 %v5912
        %8868 = vmatpush1.bf16.msra.mxu0 %v5911
        %8869 = vmatprep.subr.bf16.mxu0 %v5920
        %8870 = vmatpush1.bf16.msra.mxu0 %v5919
        %8871 = vmatprep.subr.bf16.mxu0 %v5928
        %8872 = vmatpush1.bf16.msra.mxu0 %v5927
        %8873 = vmatprep.subr.bf16.mxu0 %v5936
        %8874 = vmatpush1.bf16.msra.mxu0 %v5935
        %8875 = vmatprep.subr.bf16.mxu0 %v5944
        %8876 = vmatpush1.bf16.msra.mxu0 %v5943
        %8877 = vmatprep.subr.bf16.mxu0 %v5952
        %8878 = vmatpush1.bf16.msra.mxu0 %v5951
        %8879 = vmatprep.subr.bf16.mxu0 %v5960
        %8880 = vmatpush1.bf16.msra.mxu0 %v5959
        %8881 = vmatprep.subr.bf16.mxu0 %v5968
        %8882 = vmatpush1.bf16.msra.mxu0 %v5967
        %8883 = vmatprep.subr.bf16.mxu0 %v5976
        %8884 = vmatpush1.bf16.msra.mxu0 %v5975
        %8885 = vmatprep.subr.bf16.mxu0 %v5984
        %8886 = vmatpush1.bf16.msra.mxu0 %v5983
        %8887 = vmatprep.subr.bf16.mxu0 %v5992
        %8888 = vmatpush1.bf16.msra.mxu0 %v5991
        %8889 = vmatprep.subr.bf16.mxu0 %v6000
        %8890 = vmatpush1.bf16.msra.mxu0 %v5999
        %8891 = vmatprep.subr.bf16.mxu0 %v6008
        %8892 = vmatpush1.bf16.msra.mxu0 %v6007
        %8893 = vmatprep.subr.bf16.mxu0 %v6016
        %8894 = vmatpush1.bf16.msra.mxu0 %v6015
        %8895 = vmatprep.mubr.bf16.mxu0 %v712
        %8896 = vmatmul.mubr.bf16.gmra.mrb[0].mxu0 %v711
        %v8897 = vpop.f32.mrb[0].mxu0
        %v8898 = vadd.f32 %v2024, %v8897
        %v8899 = vpop.f32.mrb[0].mxu0
        %v8900 = vadd.f32 %v2028, %v8899
        %v8901 = vpop.f32.mrb[0].mxu0
        %v8902 = vpop.f32.mrb[0].mxu0
        %8903 = vdwg.mxu0
        %8904 = vmatprep.subr.bf16.mxu0 %v6024
        %8905 = vmatpush1.bf16.msra.mxu0 %v6023
        %8906 = vmatprep.subr.bf16.mxu0 %v6032
        %8907 = vmatpush1.bf16.msra.mxu0 %v6031
        %8908 = vmatprep.subr.bf16.mxu0 %v6040
        %8909 = vmatpush1.bf16.msra.mxu0 %v6039
        %8910 = vmatprep.subr.bf16.mxu0 %v6048
        %8911 = vmatpush1.bf16.msra.mxu0 %v6047
        %8912 = vmatprep.subr.bf16.mxu0 %v6056
        %8913 = vmatpush1.bf16.msra.mxu0 %v6055
        %8914 = vmatprep.subr.bf16.mxu0 %v6064
        %8915 = vmatpush1.bf16.msra.mxu0 %v6063
        %8916 = vmatprep.subr.bf16.mxu0 %v6072
        %8917 = vmatpush1.bf16.msra.mxu0 %v6071
        %8918 = vmatprep.subr.bf16.mxu0 %v6080
        %8919 = vmatpush1.bf16.msra.mxu0 %v6079
        %8920 = vmatprep.subr.bf16.mxu0 %v6088
        %8921 = vmatpush1.bf16.msra.mxu0 %v6087
        %8922 = vmatprep.subr.bf16.mxu0 %v6096
        %8923 = vmatpush1.bf16.msra.mxu0 %v6095
        %8924 = vmatprep.subr.bf16.mxu0 %v6104
        %8925 = vmatpush1.bf16.msra.mxu0 %v6103
        %8926 = vmatprep.subr.bf16.mxu0 %v6112
        %8927 = vmatpush1.bf16.msra.mxu0 %v6111
        %8928 = vmatprep.subr.bf16.mxu0 %v6120
        %8929 = vmatpush1.bf16.msra.mxu0 %v6119
        %8930 = vmatprep.subr.bf16.mxu0 %v6128
        %8931 = vmatpush1.bf16.msra.mxu0 %v6127
        %8932 = vmatprep.subr.bf16.mxu0 %v6136
        %8933 = vmatpush1.bf16.msra.mxu0 %v6135
        %8934 = vmatprep.subr.bf16.mxu0 %v6144
        %8935 = vmatpush1.bf16.msra.mxu0 %v6143
        %8936 = vmatprep.mubr.bf16.mxu0 %v714
        %8937 = vmatmul.mubr.bf16.gmra.mrb[0].mxu0 %v713
        %v8938 = vpop.f32.mrb[0].mxu0
        %v8939 = vadd.f32 %v8898, %v8938
        %v8940 = vpop.f32.mrb[0].mxu0
        %v8941 = vadd.f32 %v8900, %v8940
        %v8942 = vpop.f32.mrb[0].mxu0
        %v8943 = vpop.f32.mrb[0].mxu0
        %8944 = vdwg.mxu0
        %8945 = vmatprep.subr.bf16.mxu0 %v6152
        %8946 = vmatpush1.bf16.msra.mxu0 %v6151
        %8947 = vmatprep.subr.bf16.mxu0 %v6160
        %8948 = vmatpush1.bf16.msra.mxu0 %v6159
        %8949 = vmatprep.subr.bf16.mxu0 %v6168
        %8950 = vmatpush1.bf16.msra.mxu0 %v6167
        %8951 = vmatprep.subr.bf16.mxu0 %v6176
        %8952 = vmatpush1.bf16.msra.mxu0 %v6175
        %8953 = vmatprep.subr.bf16.mxu0 %v6184
        %8954 = vmatpush1.bf16.msra.mxu0 %v6183
        %8955 = vmatprep.subr.bf16.mxu0 %v6192
        %8956 = vmatpush1.bf16.msra.mxu0 %v6191
        %8957 = vmatprep.subr.bf16.mxu0 %v6200
        %8958 = vmatpush1.bf16.msra.mxu0 %v6199
        %8959 = vmatprep.subr.bf16.mxu0 %v6208
        %8960 = vmatpush1.bf16.msra.mxu0 %v6207
        %8961 = vmatprep.subr.bf16.mxu0 %v6216
        %8962 = vmatpush1.bf16.msra.mxu0 %v6215
        %8963 = vmatprep.subr.bf16.mxu0 %v6224
        %8964 = vmatpush1.bf16.msra.mxu0 %v6223
        %8965 = vmatprep.subr.bf16.mxu0 %v6232
        %8966 = vmatpush1.bf16.msra.mxu0 %v6231
        %8967 = vmatprep.subr.bf16.mxu0 %v6240
        %8968 = vmatpush1.bf16.msra.mxu0 %v6239
        %8969 = vmatprep.subr.bf16.mxu0 %v6248
        %8970 = vmatpush1.bf16.msra.mxu0 %v6247
        %8971 = vmatprep.subr.bf16.mxu0 %v6256
        %8972 = vmatpush1.bf16.msra.mxu0 %v6255
        %8973 = vmatprep.subr.bf16.mxu0 %v6264
        %8974 = vmatpush1.bf16.msra.mxu0 %v6263
        %8975 = vmatprep.subr.bf16.mxu0 %v6272
        %8976 = vmatpush1.bf16.msra.mxu0 %v6271
        %8977 = vmatprep.mubr.bf16.mxu0 %v716
        %8978 = vmatmul.mubr.bf16.gmra.mrb[0].mxu0 %v715
        %v8979 = vpop.f32.mrb[0].mxu0
        %v8980 = vadd.f32 %v8939, %v8979
        %v8981 = vpop.f32.mrb[0].mxu0
        %v8982 = vadd.f32 %v8941, %v8981
        %v8983 = vpop.f32.mrb[0].mxu0
        %v8984 = vpop.f32.mrb[0].mxu0
        %8985 = vdwg.mxu0
        %8986 = vmatprep.subr.bf16.mxu0 %v6280
        %8987 = vmatpush1.bf16.msra.mxu0 %v6279
        %8988 = vmatprep.subr.bf16.mxu0 %v6288
        %8989 = vmatpush1.bf16.msra.mxu0 %v6287
        %8990 = vmatprep.subr.bf16.mxu0 %v6296
        %8991 = vmatpush1.bf16.msra.mxu0 %v6295
        %8992 = vmatprep.subr.bf16.mxu0 %v6304
        %8993 = vmatpush1.bf16.msra.mxu0 %v6303
        %8994 = vmatprep.subr.bf16.mxu0 %v6312
        %8995 = vmatpush1.bf16.msra.mxu0 %v6311
        %8996 = vmatprep.subr.bf16.mxu0 %v6320
        %8997 = vmatpush1.bf16.msra.mxu0 %v6319
        %8998 = vmatprep.subr.bf16.mxu0 %v6328
        %8999 = vmatpush1.bf16.msra.mxu0 %v6327
        %9000 = vmatprep.subr.bf16.mxu0 %v6336
        %9001 = vmatpush1.bf16.msra.mxu0 %v6335
        %9002 = vmatprep.subr.bf16.mxu0 %v6344
        %9003 = vmatpush1.bf16.msra.mxu0 %v6343
        %9004 = vmatprep.subr.bf16.mxu0 %v6352
        %9005 = vmatpush1.bf16.msra.mxu0 %v6351
        %9006 = vmatprep.subr.bf16.mxu0 %v6360
        %9007 = vmatpush1.bf16.msra.mxu0 %v6359
        %9008 = vmatprep.subr.bf16.mxu0 %v6368
        %9009 = vmatpush1.bf16.msra.mxu0 %v6367
        %9010 = vmatprep.subr.bf16.mxu0 %v6376
        %9011 = vmatpush1.bf16.msra.mxu0 %v6375
        %9012 = vmatprep.subr.bf16.mxu0 %v6384
        %9013 = vmatpush1.bf16.msra.mxu0 %v6383
        %9014 = vmatprep.subr.bf16.mxu0 %v6392
        %9015 = vmatpush1.bf16.msra.mxu0 %v6391
        %9016 = vmatprep.subr.bf16.mxu0 %v6400
        %9017 = vmatpush1.bf16.msra.mxu0 %v6399
        %9018 = vmatprep.mubr.bf16.mxu0 %v718
        %9019 = vmatmul.mubr.bf16.gmra.mrb[0].mxu0 %v717
        %v9020 = vpop.f32.mrb[0].mxu0
        %v9021 = vadd.f32 %v8980, %v9020
        %v9022 = vpop.f32.mrb[0].mxu0
        %v9023 = vadd.f32 %v8982, %v9022
        %v9024 = vpop.f32.mrb[0].mxu0
        %v9025 = vpop.f32.mrb[0].mxu0
        %9026 = vdwg.mxu0
        %9027 = vmatprep.subr.bf16.mxu0 %v6408
        %9028 = vmatpush1.bf16.msra.mxu0 %v6407
        %9029 = vmatprep.subr.bf16.mxu0 %v6416
        %9030 = vmatpush1.bf16.msra.mxu0 %v6415
        %9031 = vmatprep.subr.bf16.mxu0 %v6424
        %9032 = vmatpush1.bf16.msra.mxu0 %v6423
        %9033 = vmatprep.subr.bf16.mxu0 %v6432
        %9034 = vmatpush1.bf16.msra.mxu0 %v6431
        %9035 = vmatprep.subr.bf16.mxu0 %v6440
        %9036 = vmatpush1.bf16.msra.mxu0 %v6439
        %9037 = vmatprep.subr.bf16.mxu0 %v6448
        %9038 = vmatpush1.bf16.msra.mxu0 %v6447
        %9039 = vmatprep.subr.bf16.mxu0 %v6456
        %9040 = vmatpush1.bf16.msra.mxu0 %v6455
        %9041 = vmatprep.subr.bf16.mxu0 %v6464
        %9042 = vmatpush1.bf16.msra.mxu0 %v6463
        %9043 = vmatprep.subr.bf16.mxu0 %v6472
        %9044 = vmatpush1.bf16.msra.mxu0 %v6471
        %9045 = vmatprep.subr.bf16.mxu0 %v6480
        %9046 = vmatpush1.bf16.msra.mxu0 %v6479
        %9047 = vmatprep.subr.bf16.mxu0 %v6488
        %9048 = vmatpush1.bf16.msra.mxu0 %v6487
        %9049 = vmatprep.subr.bf16.mxu0 %v6496
        %9050 = vmatpush1.bf16.msra.mxu0 %v6495
        %9051 = vmatprep.subr.bf16.mxu0 %v6504
        %9052 = vmatpush1.bf16.msra.mxu0 %v6503
        %9053 = vmatprep.subr.bf16.mxu0 %v6512
        %9054 = vmatpush1.bf16.msra.mxu0 %v6511
        %9055 = vmatprep.subr.bf16.mxu0 %v6520
        %9056 = vmatpush1.bf16.msra.mxu0 %v6519
        %9057 = vmatprep.subr.bf16.mxu0 %v6528
        %9058 = vmatpush1.bf16.msra.mxu0 %v6527
        %9059 = vmatprep.mubr.bf16.mxu0 %v720
        %9060 = vmatmul.mubr.bf16.gmra.mrb[0].mxu0 %v719
        %v9061 = vpop.f32.mrb[0].mxu0
        %v9062 = vadd.f32 %v9021, %v9061
        %v9063 = vpop.f32.mrb[0].mxu0
        %v9064 = vadd.f32 %v9023, %v9063
        %v9065 = vpop.f32.mrb[0].mxu0
        %v9066 = vpop.f32.mrb[0].mxu0
        %9067 = vdwg.mxu0
        %9068 = vmatprep.subr.bf16.mxu0 %v6536
        %9069 = vmatpush1.bf16.msra.mxu0 %v6535
        %9070 = vmatprep.subr.bf16.mxu0 %v6544
        %9071 = vmatpush1.bf16.msra.mxu0 %v6543
        %9072 = vmatprep.subr.bf16.mxu0 %v6552
        %9073 = vmatpush1.bf16.msra.mxu0 %v6551
        %9074 = vmatprep.subr.bf16.mxu0 %v6560
        %9075 = vmatpush1.bf16.msra.mxu0 %v6559
        %9076 = vmatprep.subr.bf16.mxu0 %v6568
        %9077 = vmatpush1.bf16.msra.mxu0 %v6567
        %9078 = vmatprep.subr.bf16.mxu0 %v6576
        %9079 = vmatpush1.bf16.msra.mxu0 %v6575
        %9080 = vmatprep.subr.bf16.mxu0 %v6584
        %9081 = vmatpush1.bf16.msra.mxu0 %v6583
        %9082 = vmatprep.subr.bf16.mxu0 %v6592
        %9083 = vmatpush1.bf16.msra.mxu0 %v6591
        %9084 = vmatprep.subr.bf16.mxu0 %v6600
        %9085 = vmatpush1.bf16.msra.mxu0 %v6599
        %9086 = vmatprep.subr.bf16.mxu0 %v6608
        %9087 = vmatpush1.bf16.msra.mxu0 %v6607
        %9088 = vmatprep.subr.bf16.mxu0 %v6616
        %9089 = vmatpush1.bf16.msra.mxu0 %v6615
        %9090 = vmatprep.subr.bf16.mxu0 %v6624
        %9091 = vmatpush1.bf16.msra.mxu0 %v6623
        %9092 = vmatprep.subr.bf16.mxu0 %v6632
        %9093 = vmatpush1.bf16.msra.mxu0 %v6631
        %9094 = vmatprep.subr.bf16.mxu0 %v6640
        %9095 = vmatpush1.bf16.msra.mxu0 %v6639
        %9096 = vmatprep.subr.bf16.mxu0 %v6648
        %9097 = vmatpush1.bf16.msra.mxu0 %v6647
        %9098 = vmatprep.subr.bf16.mxu0 %v6656
        %9099 = vmatpush1.bf16.msra.mxu0 %v6655
        %9100 = vmatprep.mubr.bf16.mxu0 %v722
        %9101 = vmatmul.mubr.bf16.gmra.mrb[0].mxu0 %v721
        %v9102 = vpop.f32.mrb[0].mxu0
        %v9103 = vadd.f32 %v9062, %v9102
        %v9104 = vpop.f32.mrb[0].mxu0
        %v9105 = vadd.f32 %v9064, %v9104
        %v9106 = vpop.f32.mrb[0].mxu0
        %v9107 = vpop.f32.mrb[0].mxu0
        %9108 = vdwg.mxu0
        %9109 = vmatprep.subr.bf16.mxu0 %v6664
        %9110 = vmatpush1.bf16.msra.mxu0 %v6663
        %9111 = vmatprep.subr.bf16.mxu0 %v6672
        %9112 = vmatpush1.bf16.msra.mxu0 %v6671
        %9113 = vmatprep.subr.bf16.mxu0 %v6680
        %9114 = vmatpush1.bf16.msra.mxu0 %v6679
        %9115 = vmatprep.subr.bf16.mxu0 %v6688
        %9116 = vmatpush1.bf16.msra.mxu0 %v6687
        %9117 = vmatprep.subr.bf16.mxu0 %v6696
        %9118 = vmatpush1.bf16.msra.mxu0 %v6695
        %9119 = vmatprep.subr.bf16.mxu0 %v6704
        %9120 = vmatpush1.bf16.msra.mxu0 %v6703
        %9121 = vmatprep.subr.bf16.mxu0 %v6712
        %9122 = vmatpush1.bf16.msra.mxu0 %v6711
        %9123 = vmatprep.subr.bf16.mxu0 %v6720
        %9124 = vmatpush1.bf16.msra.mxu0 %v6719
        %9125 = vmatprep.subr.bf16.mxu0 %v6728
        %9126 = vmatpush1.bf16.msra.mxu0 %v6727
        %9127 = vmatprep.subr.bf16.mxu0 %v6736
        %9128 = vmatpush1.bf16.msra.mxu0 %v6735
        %9129 = vmatprep.subr.bf16.mxu0 %v6744
        %9130 = vmatpush1.bf16.msra.mxu0 %v6743
        %9131 = vmatprep.subr.bf16.mxu0 %v6752
        %9132 = vmatpush1.bf16.msra.mxu0 %v6751
        %9133 = vmatprep.subr.bf16.mxu0 %v6760
        %9134 = vmatpush1.bf16.msra.mxu0 %v6759
        %9135 = vmatprep.subr.bf16.mxu0 %v6768
        %9136 = vmatpush1.bf16.msra.mxu0 %v6767
        %9137 = vmatprep.subr.bf16.mxu0 %v6776
        %9138 = vmatpush1.bf16.msra.mxu0 %v6775
        %9139 = vmatprep.subr.bf16.mxu0 %v6784
        %9140 = vmatpush1.bf16.msra.mxu0 %v6783
        %9141 = vmatprep.mubr.bf16.mxu0 %v724
        %9142 = vmatmul.mubr.bf16.gmra.mrb[0].mxu0 %v723
        %v9143 = vpop.f32.mrb[0].mxu0
        %v9144 = vadd.f32 %v9103, %v9143
        %v9145 = vpop.f32.mrb[0].mxu0
        %v9146 = vadd.f32 %v9105, %v9145
        %v9147 = vpop.f32.mrb[0].mxu0
        %v9148 = vpop.f32.mrb[0].mxu0
        %9149 = vdwg.mxu0
        %9150 = vmatprep.subr.bf16.mxu0 %v6792
        %9151 = vmatpush1.bf16.msra.mxu0 %v6791
        %9152 = vmatprep.subr.bf16.mxu0 %v6800
        %9153 = vmatpush1.bf16.msra.mxu0 %v6799
        %9154 = vmatprep.subr.bf16.mxu0 %v6808
        %9155 = vmatpush1.bf16.msra.mxu0 %v6807
        %9156 = vmatprep.subr.bf16.mxu0 %v6816
        %9157 = vmatpush1.bf16.msra.mxu0 %v6815
        %9158 = vmatprep.subr.bf16.mxu0 %v6824
        %9159 = vmatpush1.bf16.msra.mxu0 %v6823
        %9160 = vmatprep.subr.bf16.mxu0 %v6832
        %9161 = vmatpush1.bf16.msra.mxu0 %v6831
        %9162 = vmatprep.subr.bf16.mxu0 %v6840
        %9163 = vmatpush1.bf16.msra.mxu0 %v6839
        %9164 = vmatprep.subr.bf16.mxu0 %v6848
        %9165 = vmatpush1.bf16.msra.mxu0 %v6847
        %9166 = vmatprep.subr.bf16.mxu0 %v6856
        %9167 = vmatpush1.bf16.msra.mxu0 %v6855
        %9168 = vmatprep.subr.bf16.mxu0 %v6864
        %9169 = vmatpush1.bf16.msra.mxu0 %v6863
        %9170 = vmatprep.subr.bf16.mxu0 %v6872
        %9171 = vmatpush1.bf16.msra.mxu0 %v6871
        %9172 = vmatprep.subr.bf16.mxu0 %v6880
        %9173 = vmatpush1.bf16.msra.mxu0 %v6879
        %9174 = vmatprep.subr.bf16.mxu0 %v6888
        %9175 = vmatpush1.bf16.msra.mxu0 %v6887
        %9176 = vmatprep.subr.bf16.mxu0 %v6896
        %9177 = vmatpush1.bf16.msra.mxu0 %v6895
        %9178 = vmatprep.subr.bf16.mxu0 %v6904
        %9179 = vmatpush1.bf16.msra.mxu0 %v6903
        %9180 = vmatprep.subr.bf16.mxu0 %v6912
        %9181 = vmatpush1.bf16.msra.mxu0 %v6911
        %9182 = vmatprep.mubr.bf16.mxu0 %v726
        %9183 = vmatmul.mubr.bf16.gmra.mrb[0].mxu0 %v725
        %v9184 = vpop.f32.mrb[0].mxu0
        %v9185 = vadd.f32 %v9144, %v9184
        %v9186 = vpop.f32.mrb[0].mxu0
        %v9187 = vadd.f32 %v9146, %v9186
        %v9188 = vpop.f32.mrb[0].mxu0
        %v9189 = vpop.f32.mrb[0].mxu0
        %9190 = vdwg.mxu0
        %9191 = vmatprep.subr.bf16.mxu0 %v6920
        %9192 = vmatpush1.bf16.msra.mxu0 %v6919
        %9193 = vmatprep.subr.bf16.mxu0 %v6928
        %9194 = vmatpush1.bf16.msra.mxu0 %v6927
        %9195 = vmatprep.subr.bf16.mxu0 %v6936
        %9196 = vmatpush1.bf16.msra.mxu0 %v6935
        %9197 = vmatprep.subr.bf16.mxu0 %v6944
        %9198 = vmatpush1.bf16.msra.mxu0 %v6943
        %9199 = vmatprep.subr.bf16.mxu0 %v6952
        %9200 = vmatpush1.bf16.msra.mxu0 %v6951
        %9201 = vmatprep.subr.bf16.mxu0 %v6960
        %9202 = vmatpush1.bf16.msra.mxu0 %v6959
        %9203 = vmatprep.subr.bf16.mxu0 %v6968
        %9204 = vmatpush1.bf16.msra.mxu0 %v6967
        %9205 = vmatprep.subr.bf16.mxu0 %v6976
        %9206 = vmatpush1.bf16.msra.mxu0 %v6975
        %9207 = vmatprep.subr.bf16.mxu0 %v6984
        %9208 = vmatpush1.bf16.msra.mxu0 %v6983
        %9209 = vmatprep.subr.bf16.mxu0 %v6992
        %9210 = vmatpush1.bf16.msra.mxu0 %v6991
        %9211 = vmatprep.subr.bf16.mxu0 %v7000
        %9212 = vmatpush1.bf16.msra.mxu0 %v6999
        %9213 = vmatprep.subr.bf16.mxu0 %v7008
        %9214 = vmatpush1.bf16.msra.mxu0 %v7007
        %9215 = vmatprep.subr.bf16.mxu0 %v7016
        %9216 = vmatpush1.bf16.msra.mxu0 %v7015
        %9217 = vmatprep.subr.bf16.mxu0 %v7024
        %9218 = vmatpush1.bf16.msra.mxu0 %v7023
        %9219 = vmatprep.subr.bf16.mxu0 %v7032
        %9220 = vmatpush1.bf16.msra.mxu0 %v7031
        %9221 = vmatprep.subr.bf16.mxu0 %v7040
        %9222 = vmatpush1.bf16.msra.mxu0 %v7039
        %9223 = vmatprep.mubr.bf16.mxu0 %v728
        %9224 = vmatmul.mubr.bf16.gmra.mrb[0].mxu0 %v727
        %v9225 = vpop.f32.mrb[0].mxu0
        %v9226 = vadd.f32 %v9185, %v9225
        %v9227 = vpop.f32.mrb[0].mxu0
        %v9228 = vadd.f32 %v9187, %v9227
        %v9229 = vpop.f32.mrb[0].mxu0
        %v9230 = vpop.f32.mrb[0].mxu0
        %9231 = vdwg.mxu0
        %9232 = vmatprep.subr.bf16.mxu0 %v7048
        %9233 = vmatpush1.bf16.msra.mxu0 %v7047
        %9234 = vmatprep.subr.bf16.mxu0 %v7056
        %9235 = vmatpush1.bf16.msra.mxu0 %v7055
        %9236 = vmatprep.subr.bf16.mxu0 %v7064
        %9237 = vmatpush1.bf16.msra.mxu0 %v7063
        %9238 = vmatprep.subr.bf16.mxu0 %v7072
        %9239 = vmatpush1.bf16.msra.mxu0 %v7071
        %9240 = vmatprep.subr.bf16.mxu0 %v7080
        %9241 = vmatpush1.bf16.msra.mxu0 %v7079
        %9242 = vmatprep.subr.bf16.mxu0 %v7088
        %9243 = vmatpush1.bf16.msra.mxu0 %v7087
        %9244 = vmatprep.subr.bf16.mxu0 %v7096
        %9245 = vmatpush1.bf16.msra.mxu0 %v7095
        %9246 = vmatprep.subr.bf16.mxu0 %v7104
        %9247 = vmatpush1.bf16.msra.mxu0 %v7103
        %9248 = vmatprep.subr.bf16.mxu0 %v7112
        %9249 = vmatpush1.bf16.msra.mxu0 %v7111
        %9250 = vmatprep.subr.bf16.mxu0 %v7120
        %9251 = vmatpush1.bf16.msra.mxu0 %v7119
        %9252 = vmatprep.subr.bf16.mxu0 %v7128
        %9253 = vmatpush1.bf16.msra.mxu0 %v7127
        %9254 = vmatprep.subr.bf16.mxu0 %v7136
        %9255 = vmatpush1.bf16.msra.mxu0 %v7135
        %9256 = vmatprep.subr.bf16.mxu0 %v7144
        %9257 = vmatpush1.bf16.msra.mxu0 %v7143
        %9258 = vmatprep.subr.bf16.mxu0 %v7152
        %9259 = vmatpush1.bf16.msra.mxu0 %v7151
        %9260 = vmatprep.subr.bf16.mxu0 %v7160
        %9261 = vmatpush1.bf16.msra.mxu0 %v7159
        %9262 = vmatprep.subr.bf16.mxu0 %v7168
        %9263 = vmatpush1.bf16.msra.mxu0 %v7167
        %9264 = vmatprep.mubr.bf16.mxu0 %v730
        %9265 = vmatmul.mubr.bf16.gmra.mrb[0].mxu0 %v729
        %v9266 = vpop.f32.mrb[0].mxu0
        %v9267 = vadd.f32 %v9226, %v9266
        %v9268 = vpop.f32.mrb[0].mxu0
        %v9269 = vadd.f32 %v9228, %v9268
        %v9270 = vpop.f32.mrb[0].mxu0
        %v9271 = vpop.f32.mrb[0].mxu0
        %9272 = vdwg.mxu0
        %9273 = vmatprep.subr.bf16.mxu0 %v5898
        %9274 = vmatpush1.bf16.msra.mxu0 %v5897
        %9275 = vmatprep.subr.bf16.mxu0 %v5906
        %9276 = vmatpush1.bf16.msra.mxu0 %v5905
        %9277 = vmatprep.subr.bf16.mxu0 %v5914
        %9278 = vmatpush1.bf16.msra.mxu0 %v5913
        %9279 = vmatprep.subr.bf16.mxu0 %v5922
        %9280 = vmatpush1.bf16.msra.mxu0 %v5921
        %9281 = vmatprep.subr.bf16.mxu0 %v5930
        %9282 = vmatpush1.bf16.msra.mxu0 %v5929
        %9283 = vmatprep.subr.bf16.mxu0 %v5938
        %9284 = vmatpush1.bf16.msra.mxu0 %v5937
        %9285 = vmatprep.subr.bf16.mxu0 %v5946
        %9286 = vmatpush1.bf16.msra.mxu0 %v5945
        %9287 = vmatprep.subr.bf16.mxu0 %v5954
        %9288 = vmatpush1.bf16.msra.mxu0 %v5953
        %9289 = vmatprep.subr.bf16.mxu0 %v5962
        %9290 = vmatpush1.bf16.msra.mxu0 %v5961
        %9291 = vmatprep.subr.bf16.mxu0 %v5970
        %9292 = vmatpush1.bf16.msra.mxu0 %v5969
        %9293 = vmatprep.subr.bf16.mxu0 %v5978
        %9294 = vmatpush1.bf16.msra.mxu0 %v5977
        %9295 = vmatprep.subr.bf16.mxu0 %v5986
        %9296 = vmatpush1.bf16.msra.mxu0 %v5985
        %9297 = vmatprep.subr.bf16.mxu0 %v5994
        %9298 = vmatpush1.bf16.msra.mxu0 %v5993
        %9299 = vmatprep.subr.bf16.mxu0 %v6002
        %9300 = vmatpush1.bf16.msra.mxu0 %v6001
        %9301 = vmatprep.subr.bf16.mxu0 %v6010
        %9302 = vmatpush1.bf16.msra.mxu0 %v6009
        %9303 = vmatprep.subr.bf16.mxu0 %v6018
        %9304 = vmatpush1.bf16.msra.mxu0 %v6017
        %9305 = vmatprep.mubr.bf16.mxu0 %v712
        %9306 = vmatmul.mubr.bf16.gmra.mrb[0].mxu0 %v711
        %v9307 = vpop.f32.mrb[0].mxu0
        %v9308 = vadd.f32 %v2032, %v9307
        %v9309 = vpop.f32.mrb[0].mxu0
        %v9310 = vadd.f32 %v2036, %v9309
        %v9311 = vpop.f32.mrb[0].mxu0
        %v9312 = vpop.f32.mrb[0].mxu0
        %9313 = vdwg.mxu0
        %9314 = vmatprep.subr.bf16.mxu0 %v6026
        %9315 = vmatpush1.bf16.msra.mxu0 %v6025
        %9316 = vmatprep.subr.bf16.mxu0 %v6034
        %9317 = vmatpush1.bf16.msra.mxu0 %v6033
        %9318 = vmatprep.subr.bf16.mxu0 %v6042
        %9319 = vmatpush1.bf16.msra.mxu0 %v6041
        %9320 = vmatprep.subr.bf16.mxu0 %v6050
        %9321 = vmatpush1.bf16.msra.mxu0 %v6049
        %9322 = vmatprep.subr.bf16.mxu0 %v6058
        %9323 = vmatpush1.bf16.msra.mxu0 %v6057
        %9324 = vmatprep.subr.bf16.mxu0 %v6066
        %9325 = vmatpush1.bf16.msra.mxu0 %v6065
        %9326 = vmatprep.subr.bf16.mxu0 %v6074
        %9327 = vmatpush1.bf16.msra.mxu0 %v6073
        %9328 = vmatprep.subr.bf16.mxu0 %v6082
        %9329 = vmatpush1.bf16.msra.mxu0 %v6081
        %9330 = vmatprep.subr.bf16.mxu0 %v6090
        %9331 = vmatpush1.bf16.msra.mxu0 %v6089
        %9332 = vmatprep.subr.bf16.mxu0 %v6098
        %9333 = vmatpush1.bf16.msra.mxu0 %v6097
        %9334 = vmatprep.subr.bf16.mxu0 %v6106
        %9335 = vmatpush1.bf16.msra.mxu0 %v6105
        %9336 = vmatprep.subr.bf16.mxu0 %v6114
        %9337 = vmatpush1.bf16.msra.mxu0 %v6113
        %9338 = vmatprep.subr.bf16.mxu0 %v6122
        %9339 = vmatpush1.bf16.msra.mxu0 %v6121
        %9340 = vmatprep.subr.bf16.mxu0 %v6130
        %9341 = vmatpush1.bf16.msra.mxu0 %v6129
        %9342 = vmatprep.subr.bf16.mxu0 %v6138
        %9343 = vmatpush1.bf16.msra.mxu0 %v6137
        %9344 = vmatprep.subr.bf16.mxu0 %v6146
        %9345 = vmatpush1.bf16.msra.mxu0 %v6145
        %9346 = vmatprep.mubr.bf16.mxu0 %v714
        %9347 = vmatmul.mubr.bf16.gmra.mrb[0].mxu0 %v713
        %v9348 = vpop.f32.mrb[0].mxu0
        %v9349 = vadd.f32 %v9308, %v9348
        %v9350 = vpop.f32.mrb[0].mxu0
        %v9351 = vadd.f32 %v9310, %v9350
        %v9352 = vpop.f32.mrb[0].mxu0
        %v9353 = vpop.f32.mrb[0].mxu0
        %9354 = vdwg.mxu0
        %9355 = vmatprep.subr.bf16.mxu0 %v6154
        %9356 = vmatpush1.bf16.msra.mxu0 %v6153
        %9357 = vmatprep.subr.bf16.mxu0 %v6162
        %9358 = vmatpush1.bf16.msra.mxu0 %v6161
        %9359 = vmatprep.subr.bf16.mxu0 %v6170
        %9360 = vmatpush1.bf16.msra.mxu0 %v6169
        %9361 = vmatprep.subr.bf16.mxu0 %v6178
        %9362 = vmatpush1.bf16.msra.mxu0 %v6177
        %9363 = vmatprep.subr.bf16.mxu0 %v6186
        %9364 = vmatpush1.bf16.msra.mxu0 %v6185
        %9365 = vmatprep.subr.bf16.mxu0 %v6194
        %9366 = vmatpush1.bf16.msra.mxu0 %v6193
        %9367 = vmatprep.subr.bf16.mxu0 %v6202
        %9368 = vmatpush1.bf16.msra.mxu0 %v6201
        %9369 = vmatprep.subr.bf16.mxu0 %v6210
        %9370 = vmatpush1.bf16.msra.mxu0 %v6209
        %9371 = vmatprep.subr.bf16.mxu0 %v6218
        %9372 = vmatpush1.bf16.msra.mxu0 %v6217
        %9373 = vmatprep.subr.bf16.mxu0 %v6226
        %9374 = vmatpush1.bf16.msra.mxu0 %v6225
        %9375 = vmatprep.subr.bf16.mxu0 %v6234
        %9376 = vmatpush1.bf16.msra.mxu0 %v6233
        %9377 = vmatprep.subr.bf16.mxu0 %v6242
        %9378 = vmatpush1.bf16.msra.mxu0 %v6241
        %9379 = vmatprep.subr.bf16.mxu0 %v6250
        %9380 = vmatpush1.bf16.msra.mxu0 %v6249
        %9381 = vmatprep.subr.bf16.mxu0 %v6258
        %9382 = vmatpush1.bf16.msra.mxu0 %v6257
        %9383 = vmatprep.subr.bf16.mxu0 %v6266
        %9384 = vmatpush1.bf16.msra.mxu0 %v6265
        %9385 = vmatprep.subr.bf16.mxu0 %v6274
        %9386 = vmatpush1.bf16.msra.mxu0 %v6273
        %9387 = vmatprep.mubr.bf16.mxu0 %v716
        %9388 = vmatmul.mubr.bf16.gmra.mrb[0].mxu0 %v715
        %v9389 = vpop.f32.mrb[0].mxu0
        %v9390 = vadd.f32 %v9349, %v9389
        %v9391 = vpop.f32.mrb[0].mxu0
        %v9392 = vadd.f32 %v9351, %v9391
        %v9393 = vpop.f32.mrb[0].mxu0
        %v9394 = vpop.f32.mrb[0].mxu0
        %9395 = vdwg.mxu0
        %9396 = vmatprep.subr.bf16.mxu0 %v6282
        %9397 = vmatpush1.bf16.msra.mxu0 %v6281
        %9398 = vmatprep.subr.bf16.mxu0 %v6290
        %9399 = vmatpush1.bf16.msra.mxu0 %v6289
        %9400 = vmatprep.subr.bf16.mxu0 %v6298
        %9401 = vmatpush1.bf16.msra.mxu0 %v6297
        %9402 = vmatprep.subr.bf16.mxu0 %v6306
        %9403 = vmatpush1.bf16.msra.mxu0 %v6305
        %9404 = vmatprep.subr.bf16.mxu0 %v6314
        %9405 = vmatpush1.bf16.msra.mxu0 %v6313
        %9406 = vmatprep.subr.bf16.mxu0 %v6322
        %9407 = vmatpush1.bf16.msra.mxu0 %v6321
        %9408 = vmatprep.subr.bf16.mxu0 %v6330
        %9409 = vmatpush1.bf16.msra.mxu0 %v6329
        %9410 = vmatprep.subr.bf16.mxu0 %v6338
        %9411 = vmatpush1.bf16.msra.mxu0 %v6337
        %9412 = vmatprep.subr.bf16.mxu0 %v6346
        %9413 = vmatpush1.bf16.msra.mxu0 %v6345
        %9414 = vmatprep.subr.bf16.mxu0 %v6354
        %9415 = vmatpush1.bf16.msra.mxu0 %v6353
        %9416 = vmatprep.subr.bf16.mxu0 %v6362
        %9417 = vmatpush1.bf16.msra.mxu0 %v6361
        %9418 = vmatprep.subr.bf16.mxu0 %v6370
        %9419 = vmatpush1.bf16.msra.mxu0 %v6369
        %9420 = vmatprep.subr.bf16.mxu0 %v6378
        %9421 = vmatpush1.bf16.msra.mxu0 %v6377
        %9422 = vmatprep.subr.bf16.mxu0 %v6386
        %9423 = vmatpush1.bf16.msra.mxu0 %v6385
        %9424 = vmatprep.subr.bf16.mxu0 %v6394
        %9425 = vmatpush1.bf16.msra.mxu0 %v6393
        %9426 = vmatprep.subr.bf16.mxu0 %v6402
        %9427 = vmatpush1.bf16.msra.mxu0 %v6401
        %9428 = vmatprep.mubr.bf16.mxu0 %v718
        %9429 = vmatmul.mubr.bf16.gmra.mrb[0].mxu0 %v717
        %v9430 = vpop.f32.mrb[0].mxu0
        %v9431 = vadd.f32 %v9390, %v9430
        %v9432 = vpop.f32.mrb[0].mxu0
        %v9433 = vadd.f32 %v9392, %v9432
        %v9434 = vpop.f32.mrb[0].mxu0
        %v9435 = vpop.f32.mrb[0].mxu0
        %9436 = vdwg.mxu0
        %9437 = vmatprep.subr.bf16.mxu0 %v6410
        %9438 = vmatpush1.bf16.msra.mxu0 %v6409
        %9439 = vmatprep.subr.bf16.mxu0 %v6418
        %9440 = vmatpush1.bf16.msra.mxu0 %v6417
        %9441 = vmatprep.subr.bf16.mxu0 %v6426
        %9442 = vmatpush1.bf16.msra.mxu0 %v6425
        %9443 = vmatprep.subr.bf16.mxu0 %v6434
        %9444 = vmatpush1.bf16.msra.mxu0 %v6433
        %9445 = vmatprep.subr.bf16.mxu0 %v6442
        %9446 = vmatpush1.bf16.msra.mxu0 %v6441
        %9447 = vmatprep.subr.bf16.mxu0 %v6450
        %9448 = vmatpush1.bf16.msra.mxu0 %v6449
        %9449 = vmatprep.subr.bf16.mxu0 %v6458
        %9450 = vmatpush1.bf16.msra.mxu0 %v6457
        %9451 = vmatprep.subr.bf16.mxu0 %v6466
        %9452 = vmatpush1.bf16.msra.mxu0 %v6465
        %9453 = vmatprep.subr.bf16.mxu0 %v6474
        %9454 = vmatpush1.bf16.msra.mxu0 %v6473
        %9455 = vmatprep.subr.bf16.mxu0 %v6482
        %9456 = vmatpush1.bf16.msra.mxu0 %v6481
        %9457 = vmatprep.subr.bf16.mxu0 %v6490
        %9458 = vmatpush1.bf16.msra.mxu0 %v6489
        %9459 = vmatprep.subr.bf16.mxu0 %v6498
        %9460 = vmatpush1.bf16.msra.mxu0 %v6497
        %9461 = vmatprep.subr.bf16.mxu0 %v6506
        %9462 = vmatpush1.bf16.msra.mxu0 %v6505
        %9463 = vmatprep.subr.bf16.mxu0 %v6514
        %9464 = vmatpush1.bf16.msra.mxu0 %v6513
        %9465 = vmatprep.subr.bf16.mxu0 %v6522
        %9466 = vmatpush1.bf16.msra.mxu0 %v6521
        %9467 = vmatprep.subr.bf16.mxu0 %v6530
        %9468 = vmatpush1.bf16.msra.mxu0 %v6529
        %9469 = vmatprep.mubr.bf16.mxu0 %v720
        %9470 = vmatmul.mubr.bf16.gmra.mrb[0].mxu0 %v719
        %v9471 = vpop.f32.mrb[0].mxu0
        %v9472 = vadd.f32 %v9431, %v9471
        %v9473 = vpop.f32.mrb[0].mxu0
        %v9474 = vadd.f32 %v9433, %v9473
        %v9475 = vpop.f32.mrb[0].mxu0
        %v9476 = vpop.f32.mrb[0].mxu0
        %9477 = vdwg.mxu0
        %9478 = vmatprep.subr.bf16.mxu0 %v6538
        %9479 = vmatpush1.bf16.msra.mxu0 %v6537
        %9480 = vmatprep.subr.bf16.mxu0 %v6546
        %9481 = vmatpush1.bf16.msra.mxu0 %v6545
        %9482 = vmatprep.subr.bf16.mxu0 %v6554
        %9483 = vmatpush1.bf16.msra.mxu0 %v6553
        %9484 = vmatprep.subr.bf16.mxu0 %v6562
        %9485 = vmatpush1.bf16.msra.mxu0 %v6561
        %9486 = vmatprep.subr.bf16.mxu0 %v6570
        %9487 = vmatpush1.bf16.msra.mxu0 %v6569
        %9488 = vmatprep.subr.bf16.mxu0 %v6578
        %9489 = vmatpush1.bf16.msra.mxu0 %v6577
        %9490 = vmatprep.subr.bf16.mxu0 %v6586
        %9491 = vmatpush1.bf16.msra.mxu0 %v6585
        %9492 = vmatprep.subr.bf16.mxu0 %v6594
        %9493 = vmatpush1.bf16.msra.mxu0 %v6593
        %9494 = vmatprep.subr.bf16.mxu0 %v6602
        %9495 = vmatpush1.bf16.msra.mxu0 %v6601
        %9496 = vmatprep.subr.bf16.mxu0 %v6610
        %9497 = vmatpush1.bf16.msra.mxu0 %v6609
        %9498 = vmatprep.subr.bf16.mxu0 %v6618
        %9499 = vmatpush1.bf16.msra.mxu0 %v6617
        %9500 = vmatprep.subr.bf16.mxu0 %v6626
        %9501 = vmatpush1.bf16.msra.mxu0 %v6625
        %9502 = vmatprep.subr.bf16.mxu0 %v6634
        %9503 = vmatpush1.bf16.msra.mxu0 %v6633
        %9504 = vmatprep.subr.bf16.mxu0 %v6642
        %9505 = vmatpush1.bf16.msra.mxu0 %v6641
        %9506 = vmatprep.subr.bf16.mxu0 %v6650
        %9507 = vmatpush1.bf16.msra.mxu0 %v6649
        %9508 = vmatprep.subr.bf16.mxu0 %v6658
        %9509 = vmatpush1.bf16.msra.mxu0 %v6657
        %9510 = vmatprep.mubr.bf16.mxu0 %v722
        %9511 = vmatmul.mubr.bf16.gmra.mrb[0].mxu0 %v721
        %v9512 = vpop.f32.mrb[0].mxu0
        %v9513 = vadd.f32 %v9472, %v9512
        %v9514 = vpop.f32.mrb[0].mxu0
        %v9515 = vadd.f32 %v9474, %v9514
        %v9516 = vpop.f32.mrb[0].mxu0
        %v9517 = vpop.f32.mrb[0].mxu0
        %9518 = vdwg.mxu0
        %9519 = vmatprep.subr.bf16.mxu0 %v6666
        %9520 = vmatpush1.bf16.msra.mxu0 %v6665
        %9521 = vmatprep.subr.bf16.mxu0 %v6674
        %9522 = vmatpush1.bf16.msra.mxu0 %v6673
        %9523 = vmatprep.subr.bf16.mxu0 %v6682
        %9524 = vmatpush1.bf16.msra.mxu0 %v6681
        %9525 = vmatprep.subr.bf16.mxu0 %v6690
        %9526 = vmatpush1.bf16.msra.mxu0 %v6689
        %9527 = vmatprep.subr.bf16.mxu0 %v6698
        %9528 = vmatpush1.bf16.msra.mxu0 %v6697
        %9529 = vmatprep.subr.bf16.mxu0 %v6706
        %9530 = vmatpush1.bf16.msra.mxu0 %v6705
        %9531 = vmatprep.subr.bf16.mxu0 %v6714
        %9532 = vmatpush1.bf16.msra.mxu0 %v6713
        %9533 = vmatprep.subr.bf16.mxu0 %v6722
        %9534 = vmatpush1.bf16.msra.mxu0 %v6721
        %9535 = vmatprep.subr.bf16.mxu0 %v6730
        %9536 = vmatpush1.bf16.msra.mxu0 %v6729
        %9537 = vmatprep.subr.bf16.mxu0 %v6738
        %9538 = vmatpush1.bf16.msra.mxu0 %v6737
        %9539 = vmatprep.subr.bf16.mxu0 %v6746
        %9540 = vmatpush1.bf16.msra.mxu0 %v6745
        %9541 = vmatprep.subr.bf16.mxu0 %v6754
        %9542 = vmatpush1.bf16.msra.mxu0 %v6753
        %9543 = vmatprep.subr.bf16.mxu0 %v6762
        %9544 = vmatpush1.bf16.msra.mxu0 %v6761
        %9545 = vmatprep.subr.bf16.mxu0 %v6770
        %9546 = vmatpush1.bf16.msra.mxu0 %v6769
        %9547 = vmatprep.subr.bf16.mxu0 %v6778
        %9548 = vmatpush1.bf16.msra.mxu0 %v6777
        %9549 = vmatprep.subr.bf16.mxu0 %v6786
        %9550 = vmatpush1.bf16.msra.mxu0 %v6785
        %9551 = vmatprep.mubr.bf16.mxu0 %v724
        %9552 = vmatmul.mubr.bf16.gmra.mrb[0].mxu0 %v723
        %v9553 = vpop.f32.mrb[0].mxu0
        %v9554 = vadd.f32 %v9513, %v9553
        %v9555 = vpop.f32.mrb[0].mxu0
        %v9556 = vadd.f32 %v9515, %v9555
        %v9557 = vpop.f32.mrb[0].mxu0
        %v9558 = vpop.f32.mrb[0].mxu0
        %9559 = vdwg.mxu0
        %9560 = vmatprep.subr.bf16.mxu0 %v6794
        %9561 = vmatpush1.bf16.msra.mxu0 %v6793
        %9562 = vmatprep.subr.bf16.mxu0 %v6802
        %9563 = vmatpush1.bf16.msra.mxu0 %v6801
        %9564 = vmatprep.subr.bf16.mxu0 %v6810
        %9565 = vmatpush1.bf16.msra.mxu0 %v6809
        %9566 = vmatprep.subr.bf16.mxu0 %v6818
        %9567 = vmatpush1.bf16.msra.mxu0 %v6817
        %9568 = vmatprep.subr.bf16.mxu0 %v6826
        %9569 = vmatpush1.bf16.msra.mxu0 %v6825
        %9570 = vmatprep.subr.bf16.mxu0 %v6834
        %9571 = vmatpush1.bf16.msra.mxu0 %v6833
        %9572 = vmatprep.subr.bf16.mxu0 %v6842
        %9573 = vmatpush1.bf16.msra.mxu0 %v6841
        %9574 = vmatprep.subr.bf16.mxu0 %v6850
        %9575 = vmatpush1.bf16.msra.mxu0 %v6849
        %9576 = vmatprep.subr.bf16.mxu0 %v6858
        %9577 = vmatpush1.bf16.msra.mxu0 %v6857
        %9578 = vmatprep.subr.bf16.mxu0 %v6866
        %9579 = vmatpush1.bf16.msra.mxu0 %v6865
        %9580 = vmatprep.subr.bf16.mxu0 %v6874
        %9581 = vmatpush1.bf16.msra.mxu0 %v6873
        %9582 = vmatprep.subr.bf16.mxu0 %v6882
        %9583 = vmatpush1.bf16.msra.mxu0 %v6881
        %9584 = vmatprep.subr.bf16.mxu0 %v6890
        %9585 = vmatpush1.bf16.msra.mxu0 %v6889
        %9586 = vmatprep.subr.bf16.mxu0 %v6898
        %9587 = vmatpush1.bf16.msra.mxu0 %v6897
        %9588 = vmatprep.subr.bf16.mxu0 %v6906
        %9589 = vmatpush1.bf16.msra.mxu0 %v6905
        %9590 = vmatprep.subr.bf16.mxu0 %v6914
        %9591 = vmatpush1.bf16.msra.mxu0 %v6913
        %9592 = vmatprep.mubr.bf16.mxu0 %v726
        %9593 = vmatmul.mubr.bf16.gmra.mrb[0].mxu0 %v725
        %v9594 = vpop.f32.mrb[0].mxu0
        %v9595 = vadd.f32 %v9554, %v9594
        %v9596 = vpop.f32.mrb[0].mxu0
        %v9597 = vadd.f32 %v9556, %v9596
        %v9598 = vpop.f32.mrb[0].mxu0
        %v9599 = vpop.f32.mrb[0].mxu0
        %9600 = vdwg.mxu0
        %9601 = vmatprep.subr.bf16.mxu0 %v6922
        %9602 = vmatpush1.bf16.msra.mxu0 %v6921
        %9603 = vmatprep.subr.bf16.mxu0 %v6930
        %9604 = vmatpush1.bf16.msra.mxu0 %v6929
        %9605 = vmatprep.subr.bf16.mxu0 %v6938
        %9606 = vmatpush1.bf16.msra.mxu0 %v6937
        %9607 = vmatprep.subr.bf16.mxu0 %v6946
        %9608 = vmatpush1.bf16.msra.mxu0 %v6945
        %9609 = vmatprep.subr.bf16.mxu0 %v6954
        %9610 = vmatpush1.bf16.msra.mxu0 %v6953
        %9611 = vmatprep.subr.bf16.mxu0 %v6962
        %9612 = vmatpush1.bf16.msra.mxu0 %v6961
        %9613 = vmatprep.subr.bf16.mxu0 %v6970
        %9614 = vmatpush1.bf16.msra.mxu0 %v6969
        %9615 = vmatprep.subr.bf16.mxu0 %v6978
        %9616 = vmatpush1.bf16.msra.mxu0 %v6977
        %9617 = vmatprep.subr.bf16.mxu0 %v6986
        %9618 = vmatpush1.bf16.msra.mxu0 %v6985
        %9619 = vmatprep.subr.bf16.mxu0 %v6994
        %9620 = vmatpush1.bf16.msra.mxu0 %v6993
        %9621 = vmatprep.subr.bf16.mxu0 %v7002
        %9622 = vmatpush1.bf16.msra.mxu0 %v7001
        %9623 = vmatprep.subr.bf16.mxu0 %v7010
        %9624 = vmatpush1.bf16.msra.mxu0 %v7009
        %9625 = vmatprep.subr.bf16.mxu0 %v7018
        %9626 = vmatpush1.bf16.msra.mxu0 %v7017
        %9627 = vmatprep.subr.bf16.mxu0 %v7026
        %9628 = vmatpush1.bf16.msra.mxu0 %v7025
        %9629 = vmatprep.subr.bf16.mxu0 %v7034
        %9630 = vmatpush1.bf16.msra.mxu0 %v7033
        %9631 = vmatprep.subr.bf16.mxu0 %v7042
        %9632 = vmatpush1.bf16.msra.mxu0 %v7041
        %9633 = vmatprep.mubr.bf16.mxu0 %v728
        %9634 = vmatmul.mubr.bf16.gmra.mrb[0].mxu0 %v727
        %v9635 = vpop.f32.mrb[0].mxu0
        %v9636 = vadd.f32 %v9595, %v9635
        %v9637 = vpop.f32.mrb[0].mxu0
        %v9638 = vadd.f32 %v9597, %v9637
        %v9639 = vpop.f32.mrb[0].mxu0
        %v9640 = vpop.f32.mrb[0].mxu0
        %9641 = vdwg.mxu0
        %9642 = vmatprep.subr.bf16.mxu0 %v7050
        %9643 = vmatpush1.bf16.msra.mxu0 %v7049
        %9644 = vmatprep.subr.bf16.mxu0 %v7058
        %9645 = vmatpush1.bf16.msra.mxu0 %v7057
        %9646 = vmatprep.subr.bf16.mxu0 %v7066
        %9647 = vmatpush1.bf16.msra.mxu0 %v7065
        %9648 = vmatprep.subr.bf16.mxu0 %v7074
        %9649 = vmatpush1.bf16.msra.mxu0 %v7073
        %9650 = vmatprep.subr.bf16.mxu0 %v7082
        %9651 = vmatpush1.bf16.msra.mxu0 %v7081
        %9652 = vmatprep.subr.bf16.mxu0 %v7090
        %9653 = vmatpush1.bf16.msra.mxu0 %v7089
        %9654 = vmatprep.subr.bf16.mxu0 %v7098
        %9655 = vmatpush1.bf16.msra.mxu0 %v7097
        %9656 = vmatprep.subr.bf16.mxu0 %v7106
        %9657 = vmatpush1.bf16.msra.mxu0 %v7105
        %9658 = vmatprep.subr.bf16.mxu0 %v7114
        %9659 = vmatpush1.bf16.msra.mxu0 %v7113
        %9660 = vmatprep.subr.bf16.mxu0 %v7122
        %9661 = vmatpush1.bf16.msra.mxu0 %v7121
        %9662 = vmatprep.subr.bf16.mxu0 %v7130
        %9663 = vmatpush1.bf16.msra.mxu0 %v7129
        %9664 = vmatprep.subr.bf16.mxu0 %v7138
        %9665 = vmatpush1.bf16.msra.mxu0 %v7137
        %9666 = vmatprep.subr.bf16.mxu0 %v7146
        %9667 = vmatpush1.bf16.msra.mxu0 %v7145
        %9668 = vmatprep.subr.bf16.mxu0 %v7154
        %9669 = vmatpush1.bf16.msra.mxu0 %v7153
        %9670 = vmatprep.subr.bf16.mxu0 %v7162
        %9671 = vmatpush1.bf16.msra.mxu0 %v7161
        %9672 = vmatprep.subr.bf16.mxu0 %v7170
        %9673 = vmatpush1.bf16.msra.mxu0 %v7169
        %9674 = vmatprep.mubr.bf16.mxu0 %v730
        %9675 = vmatmul.mubr.bf16.gmra.mrb[0].mxu0 %v729
        %v9676 = vpop.f32.mrb[0].mxu0
        %v9677 = vadd.f32 %v9636, %v9676
        %v9678 = vpop.f32.mrb[0].mxu0
        %v9679 = vadd.f32 %v9638, %v9678
        %v9680 = vpop.f32.mrb[0].mxu0
        %v9681 = vpop.f32.mrb[0].mxu0
        %9682 = vdwg.mxu0
        %9683 = vmatprep.subr.bf16.mxu0 %v5900
        %9684 = vmatpush1.bf16.msra.mxu0 %v5899
        %9685 = vmatprep.subr.bf16.mxu0 %v5908
        %9686 = vmatpush1.bf16.msra.mxu0 %v5907
        %9687 = vmatprep.subr.bf16.mxu0 %v5916
        %9688 = vmatpush1.bf16.msra.mxu0 %v5915
        %9689 = vmatprep.subr.bf16.mxu0 %v5924
        %9690 = vmatpush1.bf16.msra.mxu0 %v5923
        %9691 = vmatprep.subr.bf16.mxu0 %v5932
        %9692 = vmatpush1.bf16.msra.mxu0 %v5931
        %9693 = vmatprep.subr.bf16.mxu0 %v5940
        %9694 = vmatpush1.bf16.msra.mxu0 %v5939
        %9695 = vmatprep.subr.bf16.mxu0 %v5948
        %9696 = vmatpush1.bf16.msra.mxu0 %v5947
        %9697 = vmatprep.subr.bf16.mxu0 %v5956
        %9698 = vmatpush1.bf16.msra.mxu0 %v5955
        %9699 = vmatprep.subr.bf16.mxu0 %v5964
        %9700 = vmatpush1.bf16.msra.mxu0 %v5963
        %9701 = vmatprep.subr.bf16.mxu0 %v5972
        %9702 = vmatpush1.bf16.msra.mxu0 %v5971
        %9703 = vmatprep.subr.bf16.mxu0 %v5980
        %9704 = vmatpush1.bf16.msra.mxu0 %v5979
        %9705 = vmatprep.subr.bf16.mxu0 %v5988
        %9706 = vmatpush1.bf16.msra.mxu0 %v5987
        %9707 = vmatprep.subr.bf16.mxu0 %v5996
        %9708 = vmatpush1.bf16.msra.mxu0 %v5995
        %9709 = vmatprep.subr.bf16.mxu0 %v6004
        %9710 = vmatpush1.bf16.msra.mxu0 %v6003
        %9711 = vmatprep.subr.bf16.mxu0 %v6012
        %9712 = vmatpush1.bf16.msra.mxu0 %v6011
        %9713 = vmatprep.subr.bf16.mxu0 %v6020
        %9714 = vmatpush1.bf16.msra.mxu0 %v6019
        %9715 = vmatprep.mubr.bf16.mxu0 %v712
        %9716 = vmatmul.mubr.bf16.gmra.mrb[0].mxu0 %v711
        %v9717 = vpop.f32.mrb[0].mxu0
        %v9718 = vadd.f32 %v2040, %v9717
        %v9719 = vpop.f32.mrb[0].mxu0
        %v9720 = vadd.f32 %v2044, %v9719
        %v9721 = vpop.f32.mrb[0].mxu0
        %v9722 = vpop.f32.mrb[0].mxu0
        %9723 = vdwg.mxu0
        %9724 = vmatprep.subr.bf16.mxu0 %v6028
        %9725 = vmatpush1.bf16.msra.mxu0 %v6027
        %9726 = vmatprep.subr.bf16.mxu0 %v6036
        %9727 = vmatpush1.bf16.msra.mxu0 %v6035
        %9728 = vmatprep.subr.bf16.mxu0 %v6044
        %9729 = vmatpush1.bf16.msra.mxu0 %v6043
        %9730 = vmatprep.subr.bf16.mxu0 %v6052
        %9731 = vmatpush1.bf16.msra.mxu0 %v6051
        %9732 = vmatprep.subr.bf16.mxu0 %v6060
        %9733 = vmatpush1.bf16.msra.mxu0 %v6059
        %9734 = vmatprep.subr.bf16.mxu0 %v6068
        %9735 = vmatpush1.bf16.msra.mxu0 %v6067
        %9736 = vmatprep.subr.bf16.mxu0 %v6076
        %9737 = vmatpush1.bf16.msra.mxu0 %v6075
        %9738 = vmatprep.subr.bf16.mxu0 %v6084
        %9739 = vmatpush1.bf16.msra.mxu0 %v6083
        %9740 = vmatprep.subr.bf16.mxu0 %v6092
        %9741 = vmatpush1.bf16.msra.mxu0 %v6091
        %9742 = vmatprep.subr.bf16.mxu0 %v6100
        %9743 = vmatpush1.bf16.msra.mxu0 %v6099
        %9744 = vmatprep.subr.bf16.mxu0 %v6108
        %9745 = vmatpush1.bf16.msra.mxu0 %v6107
        %9746 = vmatprep.subr.bf16.mxu0 %v6116
        %9747 = vmatpush1.bf16.msra.mxu0 %v6115
        %9748 = vmatprep.subr.bf16.mxu0 %v6124
        %9749 = vmatpush1.bf16.msra.mxu0 %v6123
        %9750 = vmatprep.subr.bf16.mxu0 %v6132
        %9751 = vmatpush1.bf16.msra.mxu0 %v6131
        %9752 = vmatprep.subr.bf16.mxu0 %v6140
        %9753 = vmatpush1.bf16.msra.mxu0 %v6139
        %9754 = vmatprep.subr.bf16.mxu0 %v6148
        %9755 = vmatpush1.bf16.msra.mxu0 %v6147
        %9756 = vmatprep.mubr.bf16.mxu0 %v714
        %9757 = vmatmul.mubr.bf16.gmra.mrb[0].mxu0 %v713
        %v9758 = vpop.f32.mrb[0].mxu0
        %v9759 = vadd.f32 %v9718, %v9758
        %v9760 = vpop.f32.mrb[0].mxu0
        %v9761 = vadd.f32 %v9720, %v9760
        %v9762 = vpop.f32.mrb[0].mxu0
        %v9763 = vpop.f32.mrb[0].mxu0
        %9764 = vdwg.mxu0
        %9765 = vmatprep.subr.bf16.mxu0 %v6156
        %9766 = vmatpush1.bf16.msra.mxu0 %v6155
        %9767 = vmatprep.subr.bf16.mxu0 %v6164
        %9768 = vmatpush1.bf16.msra.mxu0 %v6163
        %9769 = vmatprep.subr.bf16.mxu0 %v6172
        %9770 = vmatpush1.bf16.msra.mxu0 %v6171
        %9771 = vmatprep.subr.bf16.mxu0 %v6180
        %9772 = vmatpush1.bf16.msra.mxu0 %v6179
        %9773 = vmatprep.subr.bf16.mxu0 %v6188
        %9774 = vmatpush1.bf16.msra.mxu0 %v6187
        %9775 = vmatprep.subr.bf16.mxu0 %v6196
        %9776 = vmatpush1.bf16.msra.mxu0 %v6195
        %9777 = vmatprep.subr.bf16.mxu0 %v6204
        %9778 = vmatpush1.bf16.msra.mxu0 %v6203
        %9779 = vmatprep.subr.bf16.mxu0 %v6212
        %9780 = vmatpush1.bf16.msra.mxu0 %v6211
        %9781 = vmatprep.subr.bf16.mxu0 %v6220
        %9782 = vmatpush1.bf16.msra.mxu0 %v6219
        %9783 = vmatprep.subr.bf16.mxu0 %v6228
        %9784 = vmatpush1.bf16.msra.mxu0 %v6227
        %9785 = vmatprep.subr.bf16.mxu0 %v6236
        %9786 = vmatpush1.bf16.msra.mxu0 %v6235
        %9787 = vmatprep.subr.bf16.mxu0 %v6244
        %9788 = vmatpush1.bf16.msra.mxu0 %v6243
        %9789 = vmatprep.subr.bf16.mxu0 %v6252
        %9790 = vmatpush1.bf16.msra.mxu0 %v6251
        %9791 = vmatprep.subr.bf16.mxu0 %v6260
        %9792 = vmatpush1.bf16.msra.mxu0 %v6259
        %9793 = vmatprep.subr.bf16.mxu0 %v6268
        %9794 = vmatpush1.bf16.msra.mxu0 %v6267
        %9795 = vmatprep.subr.bf16.mxu0 %v6276
        %9796 = vmatpush1.bf16.msra.mxu0 %v6275
        %9797 = vmatprep.mubr.bf16.mxu0 %v716
        %9798 = vmatmul.mubr.bf16.gmra.mrb[0].mxu0 %v715
        %v9799 = vpop.f32.mrb[0].mxu0
        %v9800 = vadd.f32 %v9759, %v9799
        %v9801 = vpop.f32.mrb[0].mxu0
        %v9802 = vadd.f32 %v9761, %v9801
        %v9803 = vpop.f32.mrb[0].mxu0
        %v9804 = vpop.f32.mrb[0].mxu0
        %9805 = vdwg.mxu0
        %9806 = vmatprep.subr.bf16.mxu0 %v6284
        %9807 = vmatpush1.bf16.msra.mxu0 %v6283
        %9808 = vmatprep.subr.bf16.mxu0 %v6292
        %9809 = vmatpush1.bf16.msra.mxu0 %v6291
        %9810 = vmatprep.subr.bf16.mxu0 %v6300
        %9811 = vmatpush1.bf16.msra.mxu0 %v6299
        %9812 = vmatprep.subr.bf16.mxu0 %v6308
        %9813 = vmatpush1.bf16.msra.mxu0 %v6307
        %9814 = vmatprep.subr.bf16.mxu0 %v6316
        %9815 = vmatpush1.bf16.msra.mxu0 %v6315
        %9816 = vmatprep.subr.bf16.mxu0 %v6324
        %9817 = vmatpush1.bf16.msra.mxu0 %v6323
        %9818 = vmatprep.subr.bf16.mxu0 %v6332
        %9819 = vmatpush1.bf16.msra.mxu0 %v6331
        %9820 = vmatprep.subr.bf16.mxu0 %v6340
        %9821 = vmatpush1.bf16.msra.mxu0 %v6339
        %9822 = vmatprep.subr.bf16.mxu0 %v6348
        %9823 = vmatpush1.bf16.msra.mxu0 %v6347
        %9824 = vmatprep.subr.bf16.mxu0 %v6356
        %9825 = vmatpush1.bf16.msra.mxu0 %v6355
        %9826 = vmatprep.subr.bf16.mxu0 %v6364
        %9827 = vmatpush1.bf16.msra.mxu0 %v6363
        %9828 = vmatprep.subr.bf16.mxu0 %v6372
        %9829 = vmatpush1.bf16.msra.mxu0 %v6371
        %9830 = vmatprep.subr.bf16.mxu0 %v6380
        %9831 = vmatpush1.bf16.msra.mxu0 %v6379
        %9832 = vmatprep.subr.bf16.mxu0 %v6388
        %9833 = vmatpush1.bf16.msra.mxu0 %v6387
        %9834 = vmatprep.subr.bf16.mxu0 %v6396
        %9835 = vmatpush1.bf16.msra.mxu0 %v6395
        %9836 = vmatprep.subr.bf16.mxu0 %v6404
        %9837 = vmatpush1.bf16.msra.mxu0 %v6403
        %9838 = vmatprep.mubr.bf16.mxu0 %v718
        %9839 = vmatmul.mubr.bf16.gmra.mrb[0].mxu0 %v717
        %v9840 = vpop.f32.mrb[0].mxu0
        %v9841 = vadd.f32 %v9800, %v9840
        %v9842 = vpop.f32.mrb[0].mxu0
        %v9843 = vadd.f32 %v9802, %v9842
        %v9844 = vpop.f32.mrb[0].mxu0
        %v9845 = vpop.f32.mrb[0].mxu0
        %9846 = vdwg.mxu0
        %9847 = vmatprep.subr.bf16.mxu0 %v6412
        %9848 = vmatpush1.bf16.msra.mxu0 %v6411
        %9849 = vmatprep.subr.bf16.mxu0 %v6420
        %9850 = vmatpush1.bf16.msra.mxu0 %v6419
        %9851 = vmatprep.subr.bf16.mxu0 %v6428
        %9852 = vmatpush1.bf16.msra.mxu0 %v6427
        %9853 = vmatprep.subr.bf16.mxu0 %v6436
        %9854 = vmatpush1.bf16.msra.mxu0 %v6435
        %9855 = vmatprep.subr.bf16.mxu0 %v6444
        %9856 = vmatpush1.bf16.msra.mxu0 %v6443
        %9857 = vmatprep.subr.bf16.mxu0 %v6452
        %9858 = vmatpush1.bf16.msra.mxu0 %v6451
        %9859 = vmatprep.subr.bf16.mxu0 %v6460
        %9860 = vmatpush1.bf16.msra.mxu0 %v6459
        %9861 = vmatprep.subr.bf16.mxu0 %v6468
        %9862 = vmatpush1.bf16.msra.mxu0 %v6467
        %9863 = vmatprep.subr.bf16.mxu0 %v6476
        %9864 = vmatpush1.bf16.msra.mxu0 %v6475
        %9865 = vmatprep.subr.bf16.mxu0 %v6484
        %9866 = vmatpush1.bf16.msra.mxu0 %v6483
        %9867 = vmatprep.subr.bf16.mxu0 %v6492
        %9868 = vmatpush1.bf16.msra.mxu0 %v6491
        %9869 = vmatprep.subr.bf16.mxu0 %v6500
        %9870 = vmatpush1.bf16.msra.mxu0 %v6499
        %9871 = vmatprep.subr.bf16.mxu0 %v6508
        %9872 = vmatpush1.bf16.msra.mxu0 %v6507
        %9873 = vmatprep.subr.bf16.mxu0 %v6516
        %9874 = vmatpush1.bf16.msra.mxu0 %v6515
        %9875 = vmatprep.subr.bf16.mxu0 %v6524
        %9876 = vmatpush1.bf16.msra.mxu0 %v6523
        %9877 = vmatprep.subr.bf16.mxu0 %v6532
        %9878 = vmatpush1.bf16.msra.mxu0 %v6531
        %9879 = vmatprep.mubr.bf16.mxu0 %v720
        %9880 = vmatmul.mubr.bf16.gmra.mrb[0].mxu0 %v719
        %v9881 = vpop.f32.mrb[0].mxu0
        %v9882 = vadd.f32 %v9841, %v9881
        %v9883 = vpop.f32.mrb[0].mxu0
        %v9884 = vadd.f32 %v9843, %v9883
        %v9885 = vpop.f32.mrb[0].mxu0
        %v9886 = vpop.f32.mrb[0].mxu0
        %9887 = vdwg.mxu0
        %9888 = vmatprep.subr.bf16.mxu0 %v6540
        %9889 = vmatpush1.bf16.msra.mxu0 %v6539
        %9890 = vmatprep.subr.bf16.mxu0 %v6548
        %9891 = vmatpush1.bf16.msra.mxu0 %v6547
        %9892 = vmatprep.subr.bf16.mxu0 %v6556
        %9893 = vmatpush1.bf16.msra.mxu0 %v6555
        %9894 = vmatprep.subr.bf16.mxu0 %v6564
        %9895 = vmatpush1.bf16.msra.mxu0 %v6563
        %9896 = vmatprep.subr.bf16.mxu0 %v6572
        %9897 = vmatpush1.bf16.msra.mxu0 %v6571
        %9898 = vmatprep.subr.bf16.mxu0 %v6580
        %9899 = vmatpush1.bf16.msra.mxu0 %v6579
        %9900 = vmatprep.subr.bf16.mxu0 %v6588
        %9901 = vmatpush1.bf16.msra.mxu0 %v6587
        %9902 = vmatprep.subr.bf16.mxu0 %v6596
        %9903 = vmatpush1.bf16.msra.mxu0 %v6595
        %9904 = vmatprep.subr.bf16.mxu0 %v6604
        %9905 = vmatpush1.bf16.msra.mxu0 %v6603
        %9906 = vmatprep.subr.bf16.mxu0 %v6612
        %9907 = vmatpush1.bf16.msra.mxu0 %v6611
        %9908 = vmatprep.subr.bf16.mxu0 %v6620
        %9909 = vmatpush1.bf16.msra.mxu0 %v6619
        %9910 = vmatprep.subr.bf16.mxu0 %v6628
        %9911 = vmatpush1.bf16.msra.mxu0 %v6627
        %9912 = vmatprep.subr.bf16.mxu0 %v6636
        %9913 = vmatpush1.bf16.msra.mxu0 %v6635
        %9914 = vmatprep.subr.bf16.mxu0 %v6644
        %9915 = vmatpush1.bf16.msra.mxu0 %v6643
        %9916 = vmatprep.subr.bf16.mxu0 %v6652
        %9917 = vmatpush1.bf16.msra.mxu0 %v6651
        %9918 = vmatprep.subr.bf16.mxu0 %v6660
        %9919 = vmatpush1.bf16.msra.mxu0 %v6659
        %9920 = vmatprep.mubr.bf16.mxu0 %v722
        %9921 = vmatmul.mubr.bf16.gmra.mrb[0].mxu0 %v721
        %v9922 = vpop.f32.mrb[0].mxu0
        %v9923 = vadd.f32 %v9882, %v9922
        %v9924 = vpop.f32.mrb[0].mxu0
        %v9925 = vadd.f32 %v9884, %v9924
        %v9926 = vpop.f32.mrb[0].mxu0
        %v9927 = vpop.f32.mrb[0].mxu0
        %9928 = vdwg.mxu0
        %9929 = vmatprep.subr.bf16.mxu0 %v6668
        %9930 = vmatpush1.bf16.msra.mxu0 %v6667
        %9931 = vmatprep.subr.bf16.mxu0 %v6676
        %9932 = vmatpush1.bf16.msra.mxu0 %v6675
        %9933 = vmatprep.subr.bf16.mxu0 %v6684
        %9934 = vmatpush1.bf16.msra.mxu0 %v6683
        %9935 = vmatprep.subr.bf16.mxu0 %v6692
        %9936 = vmatpush1.bf16.msra.mxu0 %v6691
        %9937 = vmatprep.subr.bf16.mxu0 %v6700
        %9938 = vmatpush1.bf16.msra.mxu0 %v6699
        %9939 = vmatprep.subr.bf16.mxu0 %v6708
        %9940 = vmatpush1.bf16.msra.mxu0 %v6707
        %9941 = vmatprep.subr.bf16.mxu0 %v6716
        %9942 = vmatpush1.bf16.msra.mxu0 %v6715
        %9943 = vmatprep.subr.bf16.mxu0 %v6724
        %9944 = vmatpush1.bf16.msra.mxu0 %v6723
        %9945 = vmatprep.subr.bf16.mxu0 %v6732
        %9946 = vmatpush1.bf16.msra.mxu0 %v6731
        %9947 = vmatprep.subr.bf16.mxu0 %v6740
        %9948 = vmatpush1.bf16.msra.mxu0 %v6739
        %9949 = vmatprep.subr.bf16.mxu0 %v6748
        %9950 = vmatpush1.bf16.msra.mxu0 %v6747
        %9951 = vmatprep.subr.bf16.mxu0 %v6756
        %9952 = vmatpush1.bf16.msra.mxu0 %v6755
        %9953 = vmatprep.subr.bf16.mxu0 %v6764
        %9954 = vmatpush1.bf16.msra.mxu0 %v6763
        %9955 = vmatprep.subr.bf16.mxu0 %v6772
        %9956 = vmatpush1.bf16.msra.mxu0 %v6771
        %9957 = vmatprep.subr.bf16.mxu0 %v6780
        %9958 = vmatpush1.bf16.msra.mxu0 %v6779
        %9959 = vmatprep.subr.bf16.mxu0 %v6788
        %9960 = vmatpush1.bf16.msra.mxu0 %v6787
        %9961 = vmatprep.mubr.bf16.mxu0 %v724
        %9962 = vmatmul.mubr.bf16.gmra.mrb[0].mxu0 %v723
        %v9963 = vpop.f32.mrb[0].mxu0
        %v9964 = vadd.f32 %v9923, %v9963
        %v9965 = vpop.f32.mrb[0].mxu0
        %v9966 = vadd.f32 %v9925, %v9965
        %v9967 = vpop.f32.mrb[0].mxu0
        %v9968 = vpop.f32.mrb[0].mxu0
        %9969 = vdwg.mxu0
        %9970 = vmatprep.subr.bf16.mxu0 %v6796
        %9971 = vmatpush1.bf16.msra.mxu0 %v6795
        %9972 = vmatprep.subr.bf16.mxu0 %v6804
        %9973 = vmatpush1.bf16.msra.mxu0 %v6803
        %9974 = vmatprep.subr.bf16.mxu0 %v6812
        %9975 = vmatpush1.bf16.msra.mxu0 %v6811
        %9976 = vmatprep.subr.bf16.mxu0 %v6820
        %9977 = vmatpush1.bf16.msra.mxu0 %v6819
        %9978 = vmatprep.subr.bf16.mxu0 %v6828
        %9979 = vmatpush1.bf16.msra.mxu0 %v6827
        %9980 = vmatprep.subr.bf16.mxu0 %v6836
        %9981 = vmatpush1.bf16.msra.mxu0 %v6835
        %9982 = vmatprep.subr.bf16.mxu0 %v6844
        %9983 = vmatpush1.bf16.msra.mxu0 %v6843
        %9984 = vmatprep.subr.bf16.mxu0 %v6852
        %9985 = vmatpush1.bf16.msra.mxu0 %v6851
        %9986 = vmatprep.subr.bf16.mxu0 %v6860
        %9987 = vmatpush1.bf16.msra.mxu0 %v6859
        %9988 = vmatprep.subr.bf16.mxu0 %v6868
        %9989 = vmatpush1.bf16.msra.mxu0 %v6867
        %9990 = vmatprep.subr.bf16.mxu0 %v6876
        %9991 = vmatpush1.bf16.msra.mxu0 %v6875
        %9992 = vmatprep.subr.bf16.mxu0 %v6884
        %9993 = vmatpush1.bf16.msra.mxu0 %v6883
        %9994 = vmatprep.subr.bf16.mxu0 %v6892
        %9995 = vmatpush1.bf16.msra.mxu0 %v6891
        %9996 = vmatprep.subr.bf16.mxu0 %v6900
        %9997 = vmatpush1.bf16.msra.mxu0 %v6899
        %9998 = vmatprep.subr.bf16.mxu0 %v6908
        %9999 = vmatpush1.bf16.msra.mxu0 %v6907
        %10000 = vmatprep.subr.bf16.mxu0 %v6916
        %10001 = vmatpush1.bf16.msra.mxu0 %v6915
        %10002 = vmatprep.mubr.bf16.mxu0 %v726
        %10003 = vmatmul.mubr.bf16.gmra.mrb[0].mxu0 %v725
        %v10004 = vpop.f32.mrb[0].mxu0
        %v10005 = vadd.f32 %v9964, %v10004
        %v10006 = vpop.f32.mrb[0].mxu0
        %v10007 = vadd.f32 %v9966, %v10006
        %v10008 = vpop.f32.mrb[0].mxu0
        %v10009 = vpop.f32.mrb[0].mxu0
        %10010 = vdwg.mxu0
        %10011 = vmatprep.subr.bf16.mxu0 %v6924
        %10012 = vmatpush1.bf16.msra.mxu0 %v6923
        %10013 = vmatprep.subr.bf16.mxu0 %v6932
        %10014 = vmatpush1.bf16.msra.mxu0 %v6931
        %10015 = vmatprep.subr.bf16.mxu0 %v6940
        %10016 = vmatpush1.bf16.msra.mxu0 %v6939
        %10017 = vmatprep.subr.bf16.mxu0 %v6948
        %10018 = vmatpush1.bf16.msra.mxu0 %v6947
        %10019 = vmatprep.subr.bf16.mxu0 %v6956
        %10020 = vmatpush1.bf16.msra.mxu0 %v6955
        %10021 = vmatprep.subr.bf16.mxu0 %v6964
        %10022 = vmatpush1.bf16.msra.mxu0 %v6963
        %10023 = vmatprep.subr.bf16.mxu0 %v6972
        %10024 = vmatpush1.bf16.msra.mxu0 %v6971
        %10025 = vmatprep.subr.bf16.mxu0 %v6980
        %10026 = vmatpush1.bf16.msra.mxu0 %v6979
        %10027 = vmatprep.subr.bf16.mxu0 %v6988
        %10028 = vmatpush1.bf16.msra.mxu0 %v6987
        %10029 = vmatprep.subr.bf16.mxu0 %v6996
        %10030 = vmatpush1.bf16.msra.mxu0 %v6995
        %10031 = vmatprep.subr.bf16.mxu0 %v7004
        %10032 = vmatpush1.bf16.msra.mxu0 %v7003
        %10033 = vmatprep.subr.bf16.mxu0 %v7012
        %10034 = vmatpush1.bf16.msra.mxu0 %v7011
        %10035 = vmatprep.subr.bf16.mxu0 %v7020
        %10036 = vmatpush1.bf16.msra.mxu0 %v7019
        %10037 = vmatprep.subr.bf16.mxu0 %v7028
        %10038 = vmatpush1.bf16.msra.mxu0 %v7027
        %10039 = vmatprep.subr.bf16.mxu0 %v7036
        %10040 = vmatpush1.bf16.msra.mxu0 %v7035
        %10041 = vmatprep.subr.bf16.mxu0 %v7044
        %10042 = vmatpush1.bf16.msra.mxu0 %v7043
        %10043 = vmatprep.mubr.bf16.mxu0 %v728
        %10044 = vmatmul.mubr.bf16.gmra.mrb[0].mxu0 %v727
        %v10045 = vpop.f32.mrb[0].mxu0
        %v10046 = vadd.f32 %v10005, %v10045
        %v10047 = vpop.f32.mrb[0].mxu0
        %v10048 = vadd.f32 %v10007, %v10047
        %v10049 = vpop.f32.mrb[0].mxu0
        %v10050 = vpop.f32.mrb[0].mxu0
        %10051 = vdwg.mxu0
        %10052 = vmatprep.subr.bf16.mxu0 %v7052
        %10053 = vmatpush1.bf16.msra.mxu0 %v7051
        %10054 = vmatprep.subr.bf16.mxu0 %v7060
        %10055 = vmatpush1.bf16.msra.mxu0 %v7059
        %10056 = vmatprep.subr.bf16.mxu0 %v7068
        %10057 = vmatpush1.bf16.msra.mxu0 %v7067
        %10058 = vmatprep.subr.bf16.mxu0 %v7076
        %10059 = vmatpush1.bf16.msra.mxu0 %v7075
        %10060 = vmatprep.subr.bf16.mxu0 %v7084
        %10061 = vmatpush1.bf16.msra.mxu0 %v7083
        %10062 = vmatprep.subr.bf16.mxu0 %v7092
        %10063 = vmatpush1.bf16.msra.mxu0 %v7091
        %10064 = vmatprep.subr.bf16.mxu0 %v7100
        %10065 = vmatpush1.bf16.msra.mxu0 %v7099
        %10066 = vmatprep.subr.bf16.mxu0 %v7108
        %10067 = vmatpush1.bf16.msra.mxu0 %v7107
        %10068 = vmatprep.subr.bf16.mxu0 %v7116
        %10069 = vmatpush1.bf16.msra.mxu0 %v7115
        %10070 = vmatprep.subr.bf16.mxu0 %v7124
        %10071 = vmatpush1.bf16.msra.mxu0 %v7123
        %10072 = vmatprep.subr.bf16.mxu0 %v7132
        %10073 = vmatpush1.bf16.msra.mxu0 %v7131
        %10074 = vmatprep.subr.bf16.mxu0 %v7140
        %10075 = vmatpush1.bf16.msra.mxu0 %v7139
        %10076 = vmatprep.subr.bf16.mxu0 %v7148
        %10077 = vmatpush1.bf16.msra.mxu0 %v7147
        %10078 = vmatprep.subr.bf16.mxu0 %v7156
        %10079 = vmatpush1.bf16.msra.mxu0 %v7155
        %10080 = vmatprep.subr.bf16.mxu0 %v7164
        %10081 = vmatpush1.bf16.msra.mxu0 %v7163
        %10082 = vmatprep.subr.bf16.mxu0 %v7172
        %10083 = vmatpush1.bf16.msra.mxu0 %v7171
        %10084 = vmatprep.mubr.bf16.mxu0 %v730
        %10085 = vmatmul.mubr.bf16.gmra.mrb[0].mxu0 %v729
        %v10086 = vpop.f32.mrb[0].mxu0
        %v10087 = vadd.f32 %v10046, %v10086
        %v10088 = vpop.f32.mrb[0].mxu0
        %v10089 = vadd.f32 %v10048, %v10088
        %v10090 = vpop.f32.mrb[0].mxu0
        %v10091 = vpop.f32.mrb[0].mxu0
        %10092 = vdwg.mxu0
        %v10093 = vpack.c.bf16 %v8857, %v8857
        %v10094 = vpack.c.bf16 %v8859, %v8859
        %v10095 = vpack.c.bf16 %v9267, %v9267
        %v10096 = vpack.c.bf16 %v9269, %v9269
        %v10097 = vpack.c.bf16 %v9677, %v9677
        %v10098 = vpack.c.bf16 %v9679, %v9679
        %v10099 = vpack.c.bf16 %v10087, %v10087
        %v10100 = vpack.c.bf16 %v10089, %v10089
        %v10101 = vld [vmem:[%s558] sm:$0xff]
        %v10102 = vld [vmem:[%s558 + $0x8] sm:$0xff]
        %v10103 = vld [vmem:[%s558 + $0x10] sm:$0xff]
        %v10104 = vld [vmem:[%s558 + $0x18] sm:$0xff]
        %v10105 = vld [vmem:[%s558 + $0x20] sm:$0xff]
        %v10106 = vld [vmem:[%s558 + $0x28] sm:$0xff]
        %v10107 = vld [vmem:[%s558 + $0x30] sm:$0xff]
        %v10108 = vld [vmem:[%s558 + $0x38] sm:$0xff]
        %v10109 = vld [vmem:[%s558 + $0x40] sm:$0xff]
        %v10110 = vld [vmem:[%s558 + $0x48] sm:$0xff]
        %v10111 = vld [vmem:[%s558 + $0x50] sm:$0xff]
        %v10112 = vld [vmem:[%s558 + $0x58] sm:$0xff]
        %v10113 = vld [vmem:[%s558 + $0x60] sm:$0xff]
        %v10114 = vld [vmem:[%s558 + $0x68] sm:$0xff]
        %v10115 = vld [vmem:[%s558 + $0x70] sm:$0xff]
        %v10116 = vld [vmem:[%s558 + $0x78] sm:$0xff]
        %v10117 = vld [vmem:[%s558 + $0x80] sm:$0xff]
        %v10118 = vld [vmem:[%s558 + $0x88] sm:$0xff]
        %v10119 = vld [vmem:[%s558 + $0x90] sm:$0xff]
        %v10120 = vld [vmem:[%s558 + $0x98] sm:$0xff]
        %v10121 = vld [vmem:[%s558 + $0xa0] sm:$0xff]
        %v10122 = vld [vmem:[%s558 + $0xa8] sm:$0xff]
        %v10123 = vld [vmem:[%s558 + $0xb0] sm:$0xff]
        %v10124 = vld [vmem:[%s558 + $0xb8] sm:$0xff]
        %v10125 = vld [vmem:[%s558 + $0xc0] sm:$0xff]
        %v10126 = vld [vmem:[%s558 + $0xc8] sm:$0xff]
        %v10127 = vld [vmem:[%s558 + $0xd0] sm:$0xff]
        %v10128 = vld [vmem:[%s558 + $0xd8] sm:$0xff]
        %v10129 = vld [vmem:[%s558 + $0xe0] sm:$0xff]
        %v10130 = vld [vmem:[%s558 + $0xe8] sm:$0xff]
        %v10131 = vld [vmem:[%s558 + $0xf0] sm:$0xff]
        %v10132 = vld [vmem:[%s558 + $0xf8] sm:$0xff]
        %v10133 = vld [vmem:[%s558 + $0x100] sm:$0xff]
        %v10134 = vld [vmem:[%s558 + $0x108] sm:$0xff]
        %v10135 = vld [vmem:[%s558 + $0x110] sm:$0xff]
        %v10136 = vld [vmem:[%s558 + $0x118] sm:$0xff]
        %v10137 = vld [vmem:[%s558 + $0x120] sm:$0xff]
        %v10138 = vld [vmem:[%s558 + $0x128] sm:$0xff]
        %v10139 = vld [vmem:[%s558 + $0x130] sm:$0xff]
        %v10140 = vld [vmem:[%s558 + $0x138] sm:$0xff]
        %v10141 = vld [vmem:[%s558 + $0x140] sm:$0xff]
        %v10142 = vld [vmem:[%s558 + $0x148] sm:$0xff]
        %v10143 = vld [vmem:[%s558 + $0x150] sm:$0xff]
        %v10144 = vld [vmem:[%s558 + $0x158] sm:$0xff]
        %v10145 = vld [vmem:[%s558 + $0x160] sm:$0xff]
        %v10146 = vld [vmem:[%s558 + $0x168] sm:$0xff]
        %v10147 = vld [vmem:[%s558 + $0x170] sm:$0xff]
        %v10148 = vld [vmem:[%s558 + $0x178] sm:$0xff]
        %v10149 = vld [vmem:[%s558 + $0x180] sm:$0xff]
        %v10150 = vld [vmem:[%s558 + $0x188] sm:$0xff]
        %v10151 = vld [vmem:[%s558 + $0x190] sm:$0xff]
        %v10152 = vld [vmem:[%s558 + $0x198] sm:$0xff]
        %v10153 = vld [vmem:[%s558 + $0x1a0] sm:$0xff]
        %v10154 = vld [vmem:[%s558 + $0x1a8] sm:$0xff]
        %v10155 = vld [vmem:[%s558 + $0x1b0] sm:$0xff]
        %v10156 = vld [vmem:[%s558 + $0x1b8] sm:$0xff]
        %v10157 = vld [vmem:[%s558 + $0x1c0] sm:$0xff]
        %v10158 = vld [vmem:[%s558 + $0x1c8] sm:$0xff]
        %v10159 = vld [vmem:[%s558 + $0x1d0] sm:$0xff]
        %v10160 = vld [vmem:[%s558 + $0x1d8] sm:$0xff]
        %v10161 = vld [vmem:[%s558 + $0x1e0] sm:$0xff]
        %v10162 = vld [vmem:[%s558 + $0x1e8] sm:$0xff]
        %v10163 = vld [vmem:[%s558 + $0x1f0] sm:$0xff]
        %v10164 = vld [vmem:[%s558 + $0x1f8] sm:$0xff]
        %v10165 = vld [vmem:[%s558 + $0x200] sm:$0xff]
        %v10166 = vld [vmem:[%s558 + $0x208] sm:$0xff]
        %v10167 = vld [vmem:[%s558 + $0x210] sm:$0xff]
        %v10168 = vld [vmem:[%s558 + $0x218] sm:$0xff]
        %v10169 = vld [vmem:[%s558 + $0x220] sm:$0xff]
        %v10170 = vld [vmem:[%s558 + $0x228] sm:$0xff]
        %v10171 = vld [vmem:[%s558 + $0x230] sm:$0xff]
        %v10172 = vld [vmem:[%s558 + $0x238] sm:$0xff]
        %v10173 = vld [vmem:[%s558 + $0x240] sm:$0xff]
        %v10174 = vld [vmem:[%s558 + $0x248] sm:$0xff]
        %v10175 = vld [vmem:[%s558 + $0x250] sm:$0xff]
        %v10176 = vld [vmem:[%s558 + $0x258] sm:$0xff]
        %v10177 = vld [vmem:[%s558 + $0x260] sm:$0xff]
        %v10178 = vld [vmem:[%s558 + $0x268] sm:$0xff]
        %v10179 = vld [vmem:[%s558 + $0x270] sm:$0xff]
        %v10180 = vld [vmem:[%s558 + $0x278] sm:$0xff]
        %v10181 = vld [vmem:[%s558 + $0x280] sm:$0xff]
        %v10182 = vld [vmem:[%s558 + $0x288] sm:$0xff]
        %v10183 = vld [vmem:[%s558 + $0x290] sm:$0xff]
        %v10184 = vld [vmem:[%s558 + $0x298] sm:$0xff]
        %v10185 = vld [vmem:[%s558 + $0x2a0] sm:$0xff]
        %v10186 = vld [vmem:[%s558 + $0x2a8] sm:$0xff]
        %v10187 = vld [vmem:[%s558 + $0x2b0] sm:$0xff]
        %v10188 = vld [vmem:[%s558 + $0x2b8] sm:$0xff]
        %v10189 = vld [vmem:[%s558 + $0x2c0] sm:$0xff]
        %v10190 = vld [vmem:[%s558 + $0x2c8] sm:$0xff]
        %v10191 = vld [vmem:[%s558 + $0x2d0] sm:$0xff]
        %v10192 = vld [vmem:[%s558 + $0x2d8] sm:$0xff]
        %v10193 = vld [vmem:[%s558 + $0x2e0] sm:$0xff]
        %v10194 = vld [vmem:[%s558 + $0x2e8] sm:$0xff]
        %v10195 = vld [vmem:[%s558 + $0x2f0] sm:$0xff]
        %v10196 = vld [vmem:[%s558 + $0x2f8] sm:$0xff]
        %v10197 = vld [vmem:[%s558 + $0x300] sm:$0xff]
        %v10198 = vld [vmem:[%s558 + $0x308] sm:$0xff]
        %v10199 = vld [vmem:[%s558 + $0x310] sm:$0xff]
        %v10200 = vld [vmem:[%s558 + $0x318] sm:$0xff]
        %v10201 = vld [vmem:[%s558 + $0x320] sm:$0xff]
        %v10202 = vld [vmem:[%s558 + $0x328] sm:$0xff]
        %v10203 = vld [vmem:[%s558 + $0x330] sm:$0xff]
        %v10204 = vld [vmem:[%s558 + $0x338] sm:$0xff]
        %v10205 = vld [vmem:[%s558 + $0x340] sm:$0xff]
        %v10206 = vld [vmem:[%s558 + $0x348] sm:$0xff]
        %v10207 = vld [vmem:[%s558 + $0x350] sm:$0xff]
        %v10208 = vld [vmem:[%s558 + $0x358] sm:$0xff]
        %v10209 = vld [vmem:[%s558 + $0x360] sm:$0xff]
        %v10210 = vld [vmem:[%s558 + $0x368] sm:$0xff]
        %v10211 = vld [vmem:[%s558 + $0x370] sm:$0xff]
        %v10212 = vld [vmem:[%s558 + $0x378] sm:$0xff]
        %v10213 = vld [vmem:[%s558 + $0x380] sm:$0xff]
        %v10214 = vld [vmem:[%s558 + $0x388] sm:$0xff]
        %v10215 = vld [vmem:[%s558 + $0x390] sm:$0xff]
        %v10216 = vld [vmem:[%s558 + $0x398] sm:$0xff]
        %v10217 = vld [vmem:[%s558 + $0x3a0] sm:$0xff]
        %v10218 = vld [vmem:[%s558 + $0x3a8] sm:$0xff]
        %v10219 = vld [vmem:[%s558 + $0x3b0] sm:$0xff]
        %v10220 = vld [vmem:[%s558 + $0x3b8] sm:$0xff]
        %v10221 = vld [vmem:[%s558 + $0x3c0] sm:$0xff]
        %v10222 = vld [vmem:[%s558 + $0x3c8] sm:$0xff]
        %v10223 = vld [vmem:[%s558 + $0x3d0] sm:$0xff]
        %v10224 = vld [vmem:[%s558 + $0x3d8] sm:$0xff]
        %v10225 = vld [vmem:[%s558 + $0x3e0] sm:$0xff]
        %v10226 = vld [vmem:[%s558 + $0x3e8] sm:$0xff]
        %v10227 = vld [vmem:[%s558 + $0x3f0] sm:$0xff]
        %v10228 = vld [vmem:[%s558 + $0x3f8] sm:$0xff]
        %v10229 = vld [vmem:[%s558 + $0x400] sm:$0xff]
        %v10230 = vld [vmem:[%s558 + $0x408] sm:$0xff]
        %v10231 = vld [vmem:[%s558 + $0x410] sm:$0xff]
        %v10232 = vld [vmem:[%s558 + $0x418] sm:$0xff]
        %v10233 = vld [vmem:[%s558 + $0x420] sm:$0xff]
        %v10234 = vld [vmem:[%s558 + $0x428] sm:$0xff]
        %v10235 = vld [vmem:[%s558 + $0x430] sm:$0xff]
        %v10236 = vld [vmem:[%s558 + $0x438] sm:$0xff]
        %v10237 = vld [vmem:[%s558 + $0x440] sm:$0xff]
        %v10238 = vld [vmem:[%s558 + $0x448] sm:$0xff]
        %v10239 = vld [vmem:[%s558 + $0x450] sm:$0xff]
        %v10240 = vld [vmem:[%s558 + $0x458] sm:$0xff]
        %v10241 = vld [vmem:[%s558 + $0x460] sm:$0xff]
        %v10242 = vld [vmem:[%s558 + $0x468] sm:$0xff]
        %v10243 = vld [vmem:[%s558 + $0x470] sm:$0xff]
        %v10244 = vld [vmem:[%s558 + $0x478] sm:$0xff]
        %v10245 = vld [vmem:[%s558 + $0x480] sm:$0xff]
        %v10246 = vld [vmem:[%s558 + $0x488] sm:$0xff]
        %v10247 = vld [vmem:[%s558 + $0x490] sm:$0xff]
        %v10248 = vld [vmem:[%s558 + $0x498] sm:$0xff]
        %v10249 = vld [vmem:[%s558 + $0x4a0] sm:$0xff]
        %v10250 = vld [vmem:[%s558 + $0x4a8] sm:$0xff]
        %v10251 = vld [vmem:[%s558 + $0x4b0] sm:$0xff]
        %v10252 = vld [vmem:[%s558 + $0x4b8] sm:$0xff]
        %v10253 = vld [vmem:[%s558 + $0x4c0] sm:$0xff]
        %v10254 = vld [vmem:[%s558 + $0x4c8] sm:$0xff]
        %v10255 = vld [vmem:[%s558 + $0x4d0] sm:$0xff]
        %v10256 = vld [vmem:[%s558 + $0x4d8] sm:$0xff]
        %v10257 = vld [vmem:[%s558 + $0x4e0] sm:$0xff]
        %v10258 = vld [vmem:[%s558 + $0x4e8] sm:$0xff]
        %v10259 = vld [vmem:[%s558 + $0x4f0] sm:$0xff]
        %v10260 = vld [vmem:[%s558 + $0x4f8] sm:$0xff]
        %v10261 = vld [vmem:[%s558 + $0x500] sm:$0xff]
        %v10262 = vld [vmem:[%s558 + $0x508] sm:$0xff]
        %v10263 = vld [vmem:[%s558 + $0x510] sm:$0xff]
        %v10264 = vld [vmem:[%s558 + $0x518] sm:$0xff]
        %v10265 = vld [vmem:[%s558 + $0x520] sm:$0xff]
        %v10266 = vld [vmem:[%s558 + $0x528] sm:$0xff]
        %v10267 = vld [vmem:[%s558 + $0x530] sm:$0xff]
        %v10268 = vld [vmem:[%s558 + $0x538] sm:$0xff]
        %v10269 = vld [vmem:[%s558 + $0x540] sm:$0xff]
        %v10270 = vld [vmem:[%s558 + $0x548] sm:$0xff]
        %v10271 = vld [vmem:[%s558 + $0x550] sm:$0xff]
        %v10272 = vld [vmem:[%s558 + $0x558] sm:$0xff]
        %v10273 = vld [vmem:[%s558 + $0x560] sm:$0xff]
        %v10274 = vld [vmem:[%s558 + $0x568] sm:$0xff]
        %v10275 = vld [vmem:[%s558 + $0x570] sm:$0xff]
        %v10276 = vld [vmem:[%s558 + $0x578] sm:$0xff]
        %v10277 = vld [vmem:[%s558 + $0x580] sm:$0xff]
        %v10278 = vld [vmem:[%s558 + $0x588] sm:$0xff]
        %v10279 = vld [vmem:[%s558 + $0x590] sm:$0xff]
        %v10280 = vld [vmem:[%s558 + $0x598] sm:$0xff]
        %v10281 = vld [vmem:[%s558 + $0x5a0] sm:$0xff]
        %v10282 = vld [vmem:[%s558 + $0x5a8] sm:$0xff]
        %v10283 = vld [vmem:[%s558 + $0x5b0] sm:$0xff]
        %v10284 = vld [vmem:[%s558 + $0x5b8] sm:$0xff]
        %v10285 = vld [vmem:[%s558 + $0x5c0] sm:$0xff]
        %v10286 = vld [vmem:[%s558 + $0x5c8] sm:$0xff]
        %v10287 = vld [vmem:[%s558 + $0x5d0] sm:$0xff]
        %v10288 = vld [vmem:[%s558 + $0x5d8] sm:$0xff]
        %v10289 = vld [vmem:[%s558 + $0x5e0] sm:$0xff]
        %v10290 = vld [vmem:[%s558 + $0x5e8] sm:$0xff]
        %v10291 = vld [vmem:[%s558 + $0x5f0] sm:$0xff]
        %v10292 = vld [vmem:[%s558 + $0x5f8] sm:$0xff]
        %v10293 = vld [vmem:[%s558 + $0x600] sm:$0xff]
        %v10294 = vld [vmem:[%s558 + $0x608] sm:$0xff]
        %v10295 = vld [vmem:[%s558 + $0x610] sm:$0xff]
        %v10296 = vld [vmem:[%s558 + $0x618] sm:$0xff]
        %v10297 = vld [vmem:[%s558 + $0x620] sm:$0xff]
        %v10298 = vld [vmem:[%s558 + $0x628] sm:$0xff]
        %v10299 = vld [vmem:[%s558 + $0x630] sm:$0xff]
        %v10300 = vld [vmem:[%s558 + $0x638] sm:$0xff]
        %v10301 = vld [vmem:[%s558 + $0x640] sm:$0xff]
        %v10302 = vld [vmem:[%s558 + $0x648] sm:$0xff]
        %v10303 = vld [vmem:[%s558 + $0x650] sm:$0xff]
        %v10304 = vld [vmem:[%s558 + $0x658] sm:$0xff]
        %v10305 = vld [vmem:[%s558 + $0x660] sm:$0xff]
        %v10306 = vld [vmem:[%s558 + $0x668] sm:$0xff]
        %v10307 = vld [vmem:[%s558 + $0x670] sm:$0xff]
        %v10308 = vld [vmem:[%s558 + $0x678] sm:$0xff]
        %v10309 = vld [vmem:[%s558 + $0x680] sm:$0xff]
        %v10310 = vld [vmem:[%s558 + $0x688] sm:$0xff]
        %v10311 = vld [vmem:[%s558 + $0x690] sm:$0xff]
        %v10312 = vld [vmem:[%s558 + $0x698] sm:$0xff]
        %v10313 = vld [vmem:[%s558 + $0x6a0] sm:$0xff]
        %v10314 = vld [vmem:[%s558 + $0x6a8] sm:$0xff]
        %v10315 = vld [vmem:[%s558 + $0x6b0] sm:$0xff]
        %v10316 = vld [vmem:[%s558 + $0x6b8] sm:$0xff]
        %v10317 = vld [vmem:[%s558 + $0x6c0] sm:$0xff]
        %v10318 = vld [vmem:[%s558 + $0x6c8] sm:$0xff]
        %v10319 = vld [vmem:[%s558 + $0x6d0] sm:$0xff]
        %v10320 = vld [vmem:[%s558 + $0x6d8] sm:$0xff]
        %v10321 = vld [vmem:[%s558 + $0x6e0] sm:$0xff]
        %v10322 = vld [vmem:[%s558 + $0x6e8] sm:$0xff]
        %v10323 = vld [vmem:[%s558 + $0x6f0] sm:$0xff]
        %v10324 = vld [vmem:[%s558 + $0x6f8] sm:$0xff]
        %v10325 = vld [vmem:[%s558 + $0x700] sm:$0xff]
        %v10326 = vld [vmem:[%s558 + $0x708] sm:$0xff]
        %v10327 = vld [vmem:[%s558 + $0x710] sm:$0xff]
        %v10328 = vld [vmem:[%s558 + $0x718] sm:$0xff]
        %v10329 = vld [vmem:[%s558 + $0x720] sm:$0xff]
        %v10330 = vld [vmem:[%s558 + $0x728] sm:$0xff]
        %v10331 = vld [vmem:[%s558 + $0x730] sm:$0xff]
        %v10332 = vld [vmem:[%s558 + $0x738] sm:$0xff]
        %v10333 = vld [vmem:[%s558 + $0x740] sm:$0xff]
        %v10334 = vld [vmem:[%s558 + $0x748] sm:$0xff]
        %v10335 = vld [vmem:[%s558 + $0x750] sm:$0xff]
        %v10336 = vld [vmem:[%s558 + $0x758] sm:$0xff]
        %v10337 = vld [vmem:[%s558 + $0x760] sm:$0xff]
        %v10338 = vld [vmem:[%s558 + $0x768] sm:$0xff]
        %v10339 = vld [vmem:[%s558 + $0x770] sm:$0xff]
        %v10340 = vld [vmem:[%s558 + $0x778] sm:$0xff]
        %v10341 = vld [vmem:[%s558 + $0x780] sm:$0xff]
        %v10342 = vld [vmem:[%s558 + $0x788] sm:$0xff]
        %v10343 = vld [vmem:[%s558 + $0x790] sm:$0xff]
        %v10344 = vld [vmem:[%s558 + $0x798] sm:$0xff]
        %v10345 = vld [vmem:[%s558 + $0x7a0] sm:$0xff]
        %v10346 = vld [vmem:[%s558 + $0x7a8] sm:$0xff]
        %v10347 = vld [vmem:[%s558 + $0x7b0] sm:$0xff]
        %v10348 = vld [vmem:[%s558 + $0x7b8] sm:$0xff]
        %v10349 = vld [vmem:[%s558 + $0x7c0] sm:$0xff]
        %v10350 = vld [vmem:[%s558 + $0x7c8] sm:$0xff]
        %v10351 = vld [vmem:[%s558 + $0x7d0] sm:$0xff]
        %v10352 = vld [vmem:[%s558 + $0x7d8] sm:$0xff]
        %v10353 = vld [vmem:[%s558 + $0x7e0] sm:$0xff]
        %v10354 = vld [vmem:[%s558 + $0x7e8] sm:$0xff]
        %v10355 = vld [vmem:[%s558 + $0x7f0] sm:$0xff]
        %v10356 = vld [vmem:[%s558 + $0x7f8] sm:$0xff]
        %v10357 = vld [vmem:[%s567] sm:$0xf]
        %v10359 = vlaneseq
        %v10360 = vshrl.u32 %v10359, 7
        %v10361 = vsub.s32 0, %v10360
        %v10362 = vrot.slane %v10357, %v10361
        %v10363 = vlaneseq
        %v10364 = vshrl.u32 %v10363, 7
        %v10365 = vsub.s32 1, %v10364
        %v10366 = vrot.slane %v10357, %v10365
        %v10367 = vlaneseq
        %v10368 = vshrl.u32 %v10367, 7
        %v10369 = vsub.s32 2, %v10368
        %v10370 = vrot.slane %v10357, %v10369
        %v10371 = vlaneseq
        %v10372 = vshrl.u32 %v10371, 7
        %v10373 = vsub.s32 3, %v10372
        %v10374 = vrot.slane %v10357, %v10373
        %v10635 = vunpack.c.l.b16 %v10101
        %v10636 = vunpack.c.h.b16 %v10101
        %v10637 = vunpack.c.l.b16 %v10102
        %v10638 = vunpack.c.h.b16 %v10102
        %v10639 = vunpack.c.l.b16 %v10103
        %v10640 = vunpack.c.h.b16 %v10103
        %v10641 = vunpack.c.l.b16 %v10104
        %v10642 = vunpack.c.h.b16 %v10104
        %v10643 = vunpack.c.l.b16 %v10105
        %v10644 = vunpack.c.h.b16 %v10105
        %v10645 = vunpack.c.l.b16 %v10106
        %v10646 = vunpack.c.h.b16 %v10106
        %v10647 = vunpack.c.l.b16 %v10107
        %v10648 = vunpack.c.h.b16 %v10107
        %v10649 = vunpack.c.l.b16 %v10108
        %v10650 = vunpack.c.h.b16 %v10108
        %v10651 = vunpack.c.l.b16 %v10109
        %v10652 = vunpack.c.h.b16 %v10109
        %v10653 = vunpack.c.l.b16 %v10110
        %v10654 = vunpack.c.h.b16 %v10110
        %v10655 = vunpack.c.l.b16 %v10111
        %v10656 = vunpack.c.h.b16 %v10111
        %v10657 = vunpack.c.l.b16 %v10112
        %v10658 = vunpack.c.h.b16 %v10112
        %v10659 = vunpack.c.l.b16 %v10113
        %v10660 = vunpack.c.h.b16 %v10113
        %v10661 = vunpack.c.l.b16 %v10114
        %v10662 = vunpack.c.h.b16 %v10114
        %v10663 = vunpack.c.l.b16 %v10115
        %v10664 = vunpack.c.h.b16 %v10115
        %v10665 = vunpack.c.l.b16 %v10116
        %v10666 = vunpack.c.h.b16 %v10116
        %v10667 = vunpack.c.l.b16 %v10117
        %v10668 = vunpack.c.h.b16 %v10117
        %v10669 = vunpack.c.l.b16 %v10118
        %v10670 = vunpack.c.h.b16 %v10118
        %v10671 = vunpack.c.l.b16 %v10119
        %v10672 = vunpack.c.h.b16 %v10119
        %v10673 = vunpack.c.l.b16 %v10120
        %v10674 = vunpack.c.h.b16 %v10120
        %v10675 = vunpack.c.l.b16 %v10121
        %v10676 = vunpack.c.h.b16 %v10121
        %v10677 = vunpack.c.l.b16 %v10122
        %v10678 = vunpack.c.h.b16 %v10122
        %v10679 = vunpack.c.l.b16 %v10123
        %v10680 = vunpack.c.h.b16 %v10123
        %v10681 = vunpack.c.l.b16 %v10124
        %v10682 = vunpack.c.h.b16 %v10124
        %v10683 = vunpack.c.l.b16 %v10125
        %v10684 = vunpack.c.h.b16 %v10125
        %v10685 = vunpack.c.l.b16 %v10126
        %v10686 = vunpack.c.h.b16 %v10126
        %v10687 = vunpack.c.l.b16 %v10127
        %v10688 = vunpack.c.h.b16 %v10127
        %v10689 = vunpack.c.l.b16 %v10128
        %v10690 = vunpack.c.h.b16 %v10128
        %v10691 = vunpack.c.l.b16 %v10129
        %v10692 = vunpack.c.h.b16 %v10129
        %v10693 = vunpack.c.l.b16 %v10130
        %v10694 = vunpack.c.h.b16 %v10130
        %v10695 = vunpack.c.l.b16 %v10131
        %v10696 = vunpack.c.h.b16 %v10131
        %v10697 = vunpack.c.l.b16 %v10132
        %v10698 = vunpack.c.h.b16 %v10132
        %v10699 = vunpack.c.l.b16 %v10133
        %v10700 = vunpack.c.h.b16 %v10133
        %v10701 = vunpack.c.l.b16 %v10134
        %v10702 = vunpack.c.h.b16 %v10134
        %v10703 = vunpack.c.l.b16 %v10135
        %v10704 = vunpack.c.h.b16 %v10135
        %v10705 = vunpack.c.l.b16 %v10136
        %v10706 = vunpack.c.h.b16 %v10136
        %v10707 = vunpack.c.l.b16 %v10137
        %v10708 = vunpack.c.h.b16 %v10137
        %v10709 = vunpack.c.l.b16 %v10138
        %v10710 = vunpack.c.h.b16 %v10138
        %v10711 = vunpack.c.l.b16 %v10139
        %v10712 = vunpack.c.h.b16 %v10139
        %v10713 = vunpack.c.l.b16 %v10140
        %v10714 = vunpack.c.h.b16 %v10140
        %v10715 = vunpack.c.l.b16 %v10141
        %v10716 = vunpack.c.h.b16 %v10141
        %v10717 = vunpack.c.l.b16 %v10142
        %v10718 = vunpack.c.h.b16 %v10142
        %v10719 = vunpack.c.l.b16 %v10143
        %v10720 = vunpack.c.h.b16 %v10143
        %v10721 = vunpack.c.l.b16 %v10144
        %v10722 = vunpack.c.h.b16 %v10144
        %v10723 = vunpack.c.l.b16 %v10145
        %v10724 = vunpack.c.h.b16 %v10145
        %v10725 = vunpack.c.l.b16 %v10146
        %v10726 = vunpack.c.h.b16 %v10146
        %v10727 = vunpack.c.l.b16 %v10147
        %v10728 = vunpack.c.h.b16 %v10147
        %v10729 = vunpack.c.l.b16 %v10148
        %v10730 = vunpack.c.h.b16 %v10148
        %v10731 = vunpack.c.l.b16 %v10149
        %v10732 = vunpack.c.h.b16 %v10149
        %v10733 = vunpack.c.l.b16 %v10150
        %v10734 = vunpack.c.h.b16 %v10150
        %v10735 = vunpack.c.l.b16 %v10151
        %v10736 = vunpack.c.h.b16 %v10151
        %v10737 = vunpack.c.l.b16 %v10152
        %v10738 = vunpack.c.h.b16 %v10152
        %v10739 = vunpack.c.l.b16 %v10153
        %v10740 = vunpack.c.h.b16 %v10153
        %v10741 = vunpack.c.l.b16 %v10154
        %v10742 = vunpack.c.h.b16 %v10154
        %v10743 = vunpack.c.l.b16 %v10155
        %v10744 = vunpack.c.h.b16 %v10155
        %v10745 = vunpack.c.l.b16 %v10156
        %v10746 = vunpack.c.h.b16 %v10156
        %v10747 = vunpack.c.l.b16 %v10157
        %v10748 = vunpack.c.h.b16 %v10157
        %v10749 = vunpack.c.l.b16 %v10158
        %v10750 = vunpack.c.h.b16 %v10158
        %v10751 = vunpack.c.l.b16 %v10159
        %v10752 = vunpack.c.h.b16 %v10159
        %v10753 = vunpack.c.l.b16 %v10160
        %v10754 = vunpack.c.h.b16 %v10160
        %v10755 = vunpack.c.l.b16 %v10161
        %v10756 = vunpack.c.h.b16 %v10161
        %v10757 = vunpack.c.l.b16 %v10162
        %v10758 = vunpack.c.h.b16 %v10162
        %v10759 = vunpack.c.l.b16 %v10163
        %v10760 = vunpack.c.h.b16 %v10163
        %v10761 = vunpack.c.l.b16 %v10164
        %v10762 = vunpack.c.h.b16 %v10164
        %v10763 = vunpack.c.l.b16 %v10165
        %v10764 = vunpack.c.h.b16 %v10165
        %v10765 = vunpack.c.l.b16 %v10166
        %v10766 = vunpack.c.h.b16 %v10166
        %v10767 = vunpack.c.l.b16 %v10167
        %v10768 = vunpack.c.h.b16 %v10167
        %v10769 = vunpack.c.l.b16 %v10168
        %v10770 = vunpack.c.h.b16 %v10168
        %v10771 = vunpack.c.l.b16 %v10169
        %v10772 = vunpack.c.h.b16 %v10169
        %v10773 = vunpack.c.l.b16 %v10170
        %v10774 = vunpack.c.h.b16 %v10170
        %v10775 = vunpack.c.l.b16 %v10171
        %v10776 = vunpack.c.h.b16 %v10171
        %v10777 = vunpack.c.l.b16 %v10172
        %v10778 = vunpack.c.h.b16 %v10172
        %v10779 = vunpack.c.l.b16 %v10173
        %v10780 = vunpack.c.h.b16 %v10173
        %v10781 = vunpack.c.l.b16 %v10174
        %v10782 = vunpack.c.h.b16 %v10174
        %v10783 = vunpack.c.l.b16 %v10175
        %v10784 = vunpack.c.h.b16 %v10175
        %v10785 = vunpack.c.l.b16 %v10176
        %v10786 = vunpack.c.h.b16 %v10176
        %v10787 = vunpack.c.l.b16 %v10177
        %v10788 = vunpack.c.h.b16 %v10177
        %v10789 = vunpack.c.l.b16 %v10178
        %v10790 = vunpack.c.h.b16 %v10178
        %v10791 = vunpack.c.l.b16 %v10179
        %v10792 = vunpack.c.h.b16 %v10179
        %v10793 = vunpack.c.l.b16 %v10180
        %v10794 = vunpack.c.h.b16 %v10180
        %v10795 = vunpack.c.l.b16 %v10181
        %v10796 = vunpack.c.h.b16 %v10181
        %v10797 = vunpack.c.l.b16 %v10182
        %v10798 = vunpack.c.h.b16 %v10182
        %v10799 = vunpack.c.l.b16 %v10183
        %v10800 = vunpack.c.h.b16 %v10183
        %v10801 = vunpack.c.l.b16 %v10184
        %v10802 = vunpack.c.h.b16 %v10184
        %v10803 = vunpack.c.l.b16 %v10185
        %v10804 = vunpack.c.h.b16 %v10185
        %v10805 = vunpack.c.l.b16 %v10186
        %v10806 = vunpack.c.h.b16 %v10186
        %v10807 = vunpack.c.l.b16 %v10187
        %v10808 = vunpack.c.h.b16 %v10187
        %v10809 = vunpack.c.l.b16 %v10188
        %v10810 = vunpack.c.h.b16 %v10188
        %v10811 = vunpack.c.l.b16 %v10189
        %v10812 = vunpack.c.h.b16 %v10189
        %v10813 = vunpack.c.l.b16 %v10190
        %v10814 = vunpack.c.h.b16 %v10190
        %v10815 = vunpack.c.l.b16 %v10191
        %v10816 = vunpack.c.h.b16 %v10191
        %v10817 = vunpack.c.l.b16 %v10192
        %v10818 = vunpack.c.h.b16 %v10192
        %v10819 = vunpack.c.l.b16 %v10193
        %v10820 = vunpack.c.h.b16 %v10193
        %v10821 = vunpack.c.l.b16 %v10194
        %v10822 = vunpack.c.h.b16 %v10194
        %v10823 = vunpack.c.l.b16 %v10195
        %v10824 = vunpack.c.h.b16 %v10195
        %v10825 = vunpack.c.l.b16 %v10196
        %v10826 = vunpack.c.h.b16 %v10196
        %v10827 = vunpack.c.l.b16 %v10197
        %v10828 = vunpack.c.h.b16 %v10197
        %v10829 = vunpack.c.l.b16 %v10198
        %v10830 = vunpack.c.h.b16 %v10198
        %v10831 = vunpack.c.l.b16 %v10199
        %v10832 = vunpack.c.h.b16 %v10199
        %v10833 = vunpack.c.l.b16 %v10200
        %v10834 = vunpack.c.h.b16 %v10200
        %v10835 = vunpack.c.l.b16 %v10201
        %v10836 = vunpack.c.h.b16 %v10201
        %v10837 = vunpack.c.l.b16 %v10202
        %v10838 = vunpack.c.h.b16 %v10202
        %v10839 = vunpack.c.l.b16 %v10203
        %v10840 = vunpack.c.h.b16 %v10203
        %v10841 = vunpack.c.l.b16 %v10204
        %v10842 = vunpack.c.h.b16 %v10204
        %v10843 = vunpack.c.l.b16 %v10205
        %v10844 = vunpack.c.h.b16 %v10205
        %v10845 = vunpack.c.l.b16 %v10206
        %v10846 = vunpack.c.h.b16 %v10206
        %v10847 = vunpack.c.l.b16 %v10207
        %v10848 = vunpack.c.h.b16 %v10207
        %v10849 = vunpack.c.l.b16 %v10208
        %v10850 = vunpack.c.h.b16 %v10208
        %v10851 = vunpack.c.l.b16 %v10209
        %v10852 = vunpack.c.h.b16 %v10209
        %v10853 = vunpack.c.l.b16 %v10210
        %v10854 = vunpack.c.h.b16 %v10210
        %v10855 = vunpack.c.l.b16 %v10211
        %v10856 = vunpack.c.h.b16 %v10211
        %v10857 = vunpack.c.l.b16 %v10212
        %v10858 = vunpack.c.h.b16 %v10212
        %v10859 = vunpack.c.l.b16 %v10213
        %v10860 = vunpack.c.h.b16 %v10213
        %v10861 = vunpack.c.l.b16 %v10214
        %v10862 = vunpack.c.h.b16 %v10214
        %v10863 = vunpack.c.l.b16 %v10215
        %v10864 = vunpack.c.h.b16 %v10215
        %v10865 = vunpack.c.l.b16 %v10216
        %v10866 = vunpack.c.h.b16 %v10216
        %v10867 = vunpack.c.l.b16 %v10217
        %v10868 = vunpack.c.h.b16 %v10217
        %v10869 = vunpack.c.l.b16 %v10218
        %v10870 = vunpack.c.h.b16 %v10218
        %v10871 = vunpack.c.l.b16 %v10219
        %v10872 = vunpack.c.h.b16 %v10219
        %v10873 = vunpack.c.l.b16 %v10220
        %v10874 = vunpack.c.h.b16 %v10220
        %v10875 = vunpack.c.l.b16 %v10221
        %v10876 = vunpack.c.h.b16 %v10221
        %v10877 = vunpack.c.l.b16 %v10222
        %v10878 = vunpack.c.h.b16 %v10222
        %v10879 = vunpack.c.l.b16 %v10223
        %v10880 = vunpack.c.h.b16 %v10223
        %v10881 = vunpack.c.l.b16 %v10224
        %v10882 = vunpack.c.h.b16 %v10224
        %v10883 = vunpack.c.l.b16 %v10225
        %v10884 = vunpack.c.h.b16 %v10225
        %v10885 = vunpack.c.l.b16 %v10226
        %v10886 = vunpack.c.h.b16 %v10226
        %v10887 = vunpack.c.l.b16 %v10227
        %v10888 = vunpack.c.h.b16 %v10227
        %v10889 = vunpack.c.l.b16 %v10228
        %v10890 = vunpack.c.h.b16 %v10228
        %v10891 = vunpack.c.l.b16 %v10229
        %v10892 = vunpack.c.h.b16 %v10229
        %v10893 = vunpack.c.l.b16 %v10230
        %v10894 = vunpack.c.h.b16 %v10230
        %v10895 = vunpack.c.l.b16 %v10231
        %v10896 = vunpack.c.h.b16 %v10231
        %v10897 = vunpack.c.l.b16 %v10232
        %v10898 = vunpack.c.h.b16 %v10232
        %v10899 = vunpack.c.l.b16 %v10233
        %v10900 = vunpack.c.h.b16 %v10233
        %v10901 = vunpack.c.l.b16 %v10234
        %v10902 = vunpack.c.h.b16 %v10234
        %v10903 = vunpack.c.l.b16 %v10235
        %v10904 = vunpack.c.h.b16 %v10235
        %v10905 = vunpack.c.l.b16 %v10236
        %v10906 = vunpack.c.h.b16 %v10236
        %v10907 = vunpack.c.l.b16 %v10237
        %v10908 = vunpack.c.h.b16 %v10237
        %v10909 = vunpack.c.l.b16 %v10238
        %v10910 = vunpack.c.h.b16 %v10238
        %v10911 = vunpack.c.l.b16 %v10239
        %v10912 = vunpack.c.h.b16 %v10239
        %v10913 = vunpack.c.l.b16 %v10240
        %v10914 = vunpack.c.h.b16 %v10240
        %v10915 = vunpack.c.l.b16 %v10241
        %v10916 = vunpack.c.h.b16 %v10241
        %v10917 = vunpack.c.l.b16 %v10242
        %v10918 = vunpack.c.h.b16 %v10242
        %v10919 = vunpack.c.l.b16 %v10243
        %v10920 = vunpack.c.h.b16 %v10243
        %v10921 = vunpack.c.l.b16 %v10244
        %v10922 = vunpack.c.h.b16 %v10244
        %v10923 = vunpack.c.l.b16 %v10245
        %v10924 = vunpack.c.h.b16 %v10245
        %v10925 = vunpack.c.l.b16 %v10246
        %v10926 = vunpack.c.h.b16 %v10246
        %v10927 = vunpack.c.l.b16 %v10247
        %v10928 = vunpack.c.h.b16 %v10247
        %v10929 = vunpack.c.l.b16 %v10248
        %v10930 = vunpack.c.h.b16 %v10248
        %v10931 = vunpack.c.l.b16 %v10249
        %v10932 = vunpack.c.h.b16 %v10249
        %v10933 = vunpack.c.l.b16 %v10250
        %v10934 = vunpack.c.h.b16 %v10250
        %v10935 = vunpack.c.l.b16 %v10251
        %v10936 = vunpack.c.h.b16 %v10251
        %v10937 = vunpack.c.l.b16 %v10252
        %v10938 = vunpack.c.h.b16 %v10252
        %v10939 = vunpack.c.l.b16 %v10253
        %v10940 = vunpack.c.h.b16 %v10253
        %v10941 = vunpack.c.l.b16 %v10254
        %v10942 = vunpack.c.h.b16 %v10254
        %v10943 = vunpack.c.l.b16 %v10255
        %v10944 = vunpack.c.h.b16 %v10255
        %v10945 = vunpack.c.l.b16 %v10256
        %v10946 = vunpack.c.h.b16 %v10256
        %v10947 = vunpack.c.l.b16 %v10257
        %v10948 = vunpack.c.h.b16 %v10257
        %v10949 = vunpack.c.l.b16 %v10258
        %v10950 = vunpack.c.h.b16 %v10258
        %v10951 = vunpack.c.l.b16 %v10259
        %v10952 = vunpack.c.h.b16 %v10259
        %v10953 = vunpack.c.l.b16 %v10260
        %v10954 = vunpack.c.h.b16 %v10260
        %v10955 = vunpack.c.l.b16 %v10261
        %v10956 = vunpack.c.h.b16 %v10261
        %v10957 = vunpack.c.l.b16 %v10262
        %v10958 = vunpack.c.h.b16 %v10262
        %v10959 = vunpack.c.l.b16 %v10263
        %v10960 = vunpack.c.h.b16 %v10263
        %v10961 = vunpack.c.l.b16 %v10264
        %v10962 = vunpack.c.h.b16 %v10264
        %v10963 = vunpack.c.l.b16 %v10265
        %v10964 = vunpack.c.h.b16 %v10265
        %v10965 = vunpack.c.l.b16 %v10266
        %v10966 = vunpack.c.h.b16 %v10266
        %v10967 = vunpack.c.l.b16 %v10267
        %v10968 = vunpack.c.h.b16 %v10267
        %v10969 = vunpack.c.l.b16 %v10268
        %v10970 = vunpack.c.h.b16 %v10268
        %v10971 = vunpack.c.l.b16 %v10269
        %v10972 = vunpack.c.h.b16 %v10269
        %v10973 = vunpack.c.l.b16 %v10270
        %v10974 = vunpack.c.h.b16 %v10270
        %v10975 = vunpack.c.l.b16 %v10271
        %v10976 = vunpack.c.h.b16 %v10271
        %v10977 = vunpack.c.l.b16 %v10272
        %v10978 = vunpack.c.h.b16 %v10272
        %v10979 = vunpack.c.l.b16 %v10273
        %v10980 = vunpack.c.h.b16 %v10273
        %v10981 = vunpack.c.l.b16 %v10274
        %v10982 = vunpack.c.h.b16 %v10274
        %v10983 = vunpack.c.l.b16 %v10275
        %v10984 = vunpack.c.h.b16 %v10275
        %v10985 = vunpack.c.l.b16 %v10276
        %v10986 = vunpack.c.h.b16 %v10276
        %v10987 = vunpack.c.l.b16 %v10277
        %v10988 = vunpack.c.h.b16 %v10277
        %v10989 = vunpack.c.l.b16 %v10278
        %v10990 = vunpack.c.h.b16 %v10278
        %v10991 = vunpack.c.l.b16 %v10279
        %v10992 = vunpack.c.h.b16 %v10279
        %v10993 = vunpack.c.l.b16 %v10280
        %v10994 = vunpack.c.h.b16 %v10280
        %v10995 = vunpack.c.l.b16 %v10281
        %v10996 = vunpack.c.h.b16 %v10281
        %v10997 = vunpack.c.l.b16 %v10282
        %v10998 = vunpack.c.h.b16 %v10282
        %v10999 = vunpack.c.l.b16 %v10283
        %v11000 = vunpack.c.h.b16 %v10283
        %v11001 = vunpack.c.l.b16 %v10284
        %v11002 = vunpack.c.h.b16 %v10284
        %v11003 = vunpack.c.l.b16 %v10285
        %v11004 = vunpack.c.h.b16 %v10285
        %v11005 = vunpack.c.l.b16 %v10286
        %v11006 = vunpack.c.h.b16 %v10286
        %v11007 = vunpack.c.l.b16 %v10287
        %v11008 = vunpack.c.h.b16 %v10287
        %v11009 = vunpack.c.l.b16 %v10288
        %v11010 = vunpack.c.h.b16 %v10288
        %v11011 = vunpack.c.l.b16 %v10289
        %v11012 = vunpack.c.h.b16 %v10289
        %v11013 = vunpack.c.l.b16 %v10290
        %v11014 = vunpack.c.h.b16 %v10290
        %v11015 = vunpack.c.l.b16 %v10291
        %v11016 = vunpack.c.h.b16 %v10291
        %v11017 = vunpack.c.l.b16 %v10292
        %v11018 = vunpack.c.h.b16 %v10292
        %v11019 = vunpack.c.l.b16 %v10293
        %v11020 = vunpack.c.h.b16 %v10293
        %v11021 = vunpack.c.l.b16 %v10294
        %v11022 = vunpack.c.h.b16 %v10294
        %v11023 = vunpack.c.l.b16 %v10295
        %v11024 = vunpack.c.h.b16 %v10295
        %v11025 = vunpack.c.l.b16 %v10296
        %v11026 = vunpack.c.h.b16 %v10296
        %v11027 = vunpack.c.l.b16 %v10297
        %v11028 = vunpack.c.h.b16 %v10297
        %v11029 = vunpack.c.l.b16 %v10298
        %v11030 = vunpack.c.h.b16 %v10298
        %v11031 = vunpack.c.l.b16 %v10299
        %v11032 = vunpack.c.h.b16 %v10299
        %v11033 = vunpack.c.l.b16 %v10300
        %v11034 = vunpack.c.h.b16 %v10300
        %v11035 = vunpack.c.l.b16 %v10301
        %v11036 = vunpack.c.h.b16 %v10301
        %v11037 = vunpack.c.l.b16 %v10302
        %v11038 = vunpack.c.h.b16 %v10302
        %v11039 = vunpack.c.l.b16 %v10303
        %v11040 = vunpack.c.h.b16 %v10303
        %v11041 = vunpack.c.l.b16 %v10304
        %v11042 = vunpack.c.h.b16 %v10304
        %v11043 = vunpack.c.l.b16 %v10305
        %v11044 = vunpack.c.h.b16 %v10305
        %v11045 = vunpack.c.l.b16 %v10306
        %v11046 = vunpack.c.h.b16 %v10306
        %v11047 = vunpack.c.l.b16 %v10307
        %v11048 = vunpack.c.h.b16 %v10307
        %v11049 = vunpack.c.l.b16 %v10308
        %v11050 = vunpack.c.h.b16 %v10308
        %v11051 = vunpack.c.l.b16 %v10309
        %v11052 = vunpack.c.h.b16 %v10309
        %v11053 = vunpack.c.l.b16 %v10310
        %v11054 = vunpack.c.h.b16 %v10310
        %v11055 = vunpack.c.l.b16 %v10311
        %v11056 = vunpack.c.h.b16 %v10311
        %v11057 = vunpack.c.l.b16 %v10312
        %v11058 = vunpack.c.h.b16 %v10312
        %v11059 = vunpack.c.l.b16 %v10313
        %v11060 = vunpack.c.h.b16 %v10313
        %v11061 = vunpack.c.l.b16 %v10314
        %v11062 = vunpack.c.h.b16 %v10314
        %v11063 = vunpack.c.l.b16 %v10315
        %v11064 = vunpack.c.h.b16 %v10315
        %v11065 = vunpack.c.l.b16 %v10316
        %v11066 = vunpack.c.h.b16 %v10316
        %v11067 = vunpack.c.l.b16 %v10317
        %v11068 = vunpack.c.h.b16 %v10317
        %v11069 = vunpack.c.l.b16 %v10318
        %v11070 = vunpack.c.h.b16 %v10318
        %v11071 = vunpack.c.l.b16 %v10319
        %v11072 = vunpack.c.h.b16 %v10319
        %v11073 = vunpack.c.l.b16 %v10320
        %v11074 = vunpack.c.h.b16 %v10320
        %v11075 = vunpack.c.l.b16 %v10321
        %v11076 = vunpack.c.h.b16 %v10321
        %v11077 = vunpack.c.l.b16 %v10322
        %v11078 = vunpack.c.h.b16 %v10322
        %v11079 = vunpack.c.l.b16 %v10323
        %v11080 = vunpack.c.h.b16 %v10323
        %v11081 = vunpack.c.l.b16 %v10324
        %v11082 = vunpack.c.h.b16 %v10324
        %v11083 = vunpack.c.l.b16 %v10325
        %v11084 = vunpack.c.h.b16 %v10325
        %v11085 = vunpack.c.l.b16 %v10326
        %v11086 = vunpack.c.h.b16 %v10326
        %v11087 = vunpack.c.l.b16 %v10327
        %v11088 = vunpack.c.h.b16 %v10327
        %v11089 = vunpack.c.l.b16 %v10328
        %v11090 = vunpack.c.h.b16 %v10328
        %v11091 = vunpack.c.l.b16 %v10329
        %v11092 = vunpack.c.h.b16 %v10329
        %v11093 = vunpack.c.l.b16 %v10330
        %v11094 = vunpack.c.h.b16 %v10330
        %v11095 = vunpack.c.l.b16 %v10331
        %v11096 = vunpack.c.h.b16 %v10331
        %v11097 = vunpack.c.l.b16 %v10332
        %v11098 = vunpack.c.h.b16 %v10332
        %v11099 = vunpack.c.l.b16 %v10333
        %v11100 = vunpack.c.h.b16 %v10333
        %v11101 = vunpack.c.l.b16 %v10334
        %v11102 = vunpack.c.h.b16 %v10334
        %v11103 = vunpack.c.l.b16 %v10335
        %v11104 = vunpack.c.h.b16 %v10335
        %v11105 = vunpack.c.l.b16 %v10336
        %v11106 = vunpack.c.h.b16 %v10336
        %v11107 = vunpack.c.l.b16 %v10337
        %v11108 = vunpack.c.h.b16 %v10337
        %v11109 = vunpack.c.l.b16 %v10338
        %v11110 = vunpack.c.h.b16 %v10338
        %v11111 = vunpack.c.l.b16 %v10339
        %v11112 = vunpack.c.h.b16 %v10339
        %v11113 = vunpack.c.l.b16 %v10340
        %v11114 = vunpack.c.h.b16 %v10340
        %v11115 = vunpack.c.l.b16 %v10341
        %v11116 = vunpack.c.h.b16 %v10341
        %v11117 = vunpack.c.l.b16 %v10342
        %v11118 = vunpack.c.h.b16 %v10342
        %v11119 = vunpack.c.l.b16 %v10343
        %v11120 = vunpack.c.h.b16 %v10343
        %v11121 = vunpack.c.l.b16 %v10344
        %v11122 = vunpack.c.h.b16 %v10344
        %v11123 = vunpack.c.l.b16 %v10345
        %v11124 = vunpack.c.h.b16 %v10345
        %v11125 = vunpack.c.l.b16 %v10346
        %v11126 = vunpack.c.h.b16 %v10346
        %v11127 = vunpack.c.l.b16 %v10347
        %v11128 = vunpack.c.h.b16 %v10347
        %v11129 = vunpack.c.l.b16 %v10348
        %v11130 = vunpack.c.h.b16 %v10348
        %v11131 = vunpack.c.l.b16 %v10349
        %v11132 = vunpack.c.h.b16 %v10349
        %v11133 = vunpack.c.l.b16 %v10350
        %v11134 = vunpack.c.h.b16 %v10350
        %v11135 = vunpack.c.l.b16 %v10351
        %v11136 = vunpack.c.h.b16 %v10351
        %v11137 = vunpack.c.l.b16 %v10352
        %v11138 = vunpack.c.h.b16 %v10352
        %v11139 = vunpack.c.l.b16 %v10353
        %v11140 = vunpack.c.h.b16 %v10353
        %v11141 = vunpack.c.l.b16 %v10354
        %v11142 = vunpack.c.h.b16 %v10354
        %v11143 = vunpack.c.l.b16 %v10355
        %v11144 = vunpack.c.h.b16 %v10355
        %v11145 = vunpack.c.l.b16 %v10356
        %v11146 = vunpack.c.h.b16 %v10356
        %v11147 = vpack.c.b16 %v10639, %v10635
        %v11148 = vpack.c.b16 %v10640, %v10636
        %v11149 = vpack.c.b16 %v10641, %v10637
        %v11150 = vpack.c.b16 %v10642, %v10638
        %v11151 = vpack.c.b16 %v10647, %v10643
        %v11152 = vpack.c.b16 %v10648, %v10644
        %v11153 = vpack.c.b16 %v10649, %v10645
        %v11154 = vpack.c.b16 %v10650, %v10646
        %v11155 = vpack.c.b16 %v10655, %v10651
        %v11156 = vpack.c.b16 %v10656, %v10652
        %v11157 = vpack.c.b16 %v10657, %v10653
        %v11158 = vpack.c.b16 %v10658, %v10654
        %v11159 = vpack.c.b16 %v10663, %v10659
        %v11160 = vpack.c.b16 %v10664, %v10660
        %v11161 = vpack.c.b16 %v10665, %v10661
        %v11162 = vpack.c.b16 %v10666, %v10662
        %v11163 = vpack.c.b16 %v10671, %v10667
        %v11164 = vpack.c.b16 %v10672, %v10668
        %v11165 = vpack.c.b16 %v10673, %v10669
        %v11166 = vpack.c.b16 %v10674, %v10670
        %v11167 = vpack.c.b16 %v10679, %v10675
        %v11168 = vpack.c.b16 %v10680, %v10676
        %v11169 = vpack.c.b16 %v10681, %v10677
        %v11170 = vpack.c.b16 %v10682, %v10678
        %v11171 = vpack.c.b16 %v10687, %v10683
        %v11172 = vpack.c.b16 %v10688, %v10684
        %v11173 = vpack.c.b16 %v10689, %v10685
        %v11174 = vpack.c.b16 %v10690, %v10686
        %v11175 = vpack.c.b16 %v10695, %v10691
        %v11176 = vpack.c.b16 %v10696, %v10692
        %v11177 = vpack.c.b16 %v10697, %v10693
        %v11178 = vpack.c.b16 %v10698, %v10694
        %v11179 = vpack.c.b16 %v10703, %v10699
        %v11180 = vpack.c.b16 %v10704, %v10700
        %v11181 = vpack.c.b16 %v10705, %v10701
        %v11182 = vpack.c.b16 %v10706, %v10702
        %v11183 = vpack.c.b16 %v10711, %v10707
        %v11184 = vpack.c.b16 %v10712, %v10708
        %v11185 = vpack.c.b16 %v10713, %v10709
        %v11186 = vpack.c.b16 %v10714, %v10710
        %v11187 = vpack.c.b16 %v10719, %v10715
        %v11188 = vpack.c.b16 %v10720, %v10716
        %v11189 = vpack.c.b16 %v10721, %v10717
        %v11190 = vpack.c.b16 %v10722, %v10718
        %v11191 = vpack.c.b16 %v10727, %v10723
        %v11192 = vpack.c.b16 %v10728, %v10724
        %v11193 = vpack.c.b16 %v10729, %v10725
        %v11194 = vpack.c.b16 %v10730, %v10726
        %v11195 = vpack.c.b16 %v10735, %v10731
        %v11196 = vpack.c.b16 %v10736, %v10732
        %v11197 = vpack.c.b16 %v10737, %v10733
        %v11198 = vpack.c.b16 %v10738, %v10734
        %v11199 = vpack.c.b16 %v10743, %v10739
        %v11200 = vpack.c.b16 %v10744, %v10740
        %v11201 = vpack.c.b16 %v10745, %v10741
        %v11202 = vpack.c.b16 %v10746, %v10742
        %v11203 = vpack.c.b16 %v10751, %v10747
        %v11204 = vpack.c.b16 %v10752, %v10748
        %v11205 = vpack.c.b16 %v10753, %v10749
        %v11206 = vpack.c.b16 %v10754, %v10750
        %v11207 = vpack.c.b16 %v10759, %v10755
        %v11208 = vpack.c.b16 %v10760, %v10756
        %v11209 = vpack.c.b16 %v10761, %v10757
        %v11210 = vpack.c.b16 %v10762, %v10758
        %v11211 = vpack.c.b16 %v10767, %v10763
        %v11212 = vpack.c.b16 %v10768, %v10764
        %v11213 = vpack.c.b16 %v10769, %v10765
        %v11214 = vpack.c.b16 %v10770, %v10766
        %v11215 = vpack.c.b16 %v10775, %v10771
        %v11216 = vpack.c.b16 %v10776, %v10772
        %v11217 = vpack.c.b16 %v10777, %v10773
        %v11218 = vpack.c.b16 %v10778, %v10774
        %v11219 = vpack.c.b16 %v10783, %v10779
        %v11220 = vpack.c.b16 %v10784, %v10780
        %v11221 = vpack.c.b16 %v10785, %v10781
        %v11222 = vpack.c.b16 %v10786, %v10782
        %v11223 = vpack.c.b16 %v10791, %v10787
        %v11224 = vpack.c.b16 %v10792, %v10788
        %v11225 = vpack.c.b16 %v10793, %v10789
        %v11226 = vpack.c.b16 %v10794, %v10790
        %v11227 = vpack.c.b16 %v10799, %v10795
        %v11228 = vpack.c.b16 %v10800, %v10796
        %v11229 = vpack.c.b16 %v10801, %v10797
        %v11230 = vpack.c.b16 %v10802, %v10798
        %v11231 = vpack.c.b16 %v10807, %v10803
        %v11232 = vpack.c.b16 %v10808, %v10804
        %v11233 = vpack.c.b16 %v10809, %v10805
        %v11234 = vpack.c.b16 %v10810, %v10806
        %v11235 = vpack.c.b16 %v10815, %v10811
        %v11236 = vpack.c.b16 %v10816, %v10812
        %v11237 = vpack.c.b16 %v10817, %v10813
        %v11238 = vpack.c.b16 %v10818, %v10814
        %v11239 = vpack.c.b16 %v10823, %v10819
        %v11240 = vpack.c.b16 %v10824, %v10820
        %v11241 = vpack.c.b16 %v10825, %v10821
        %v11242 = vpack.c.b16 %v10826, %v10822
        %v11243 = vpack.c.b16 %v10831, %v10827
        %v11244 = vpack.c.b16 %v10832, %v10828
        %v11245 = vpack.c.b16 %v10833, %v10829
        %v11246 = vpack.c.b16 %v10834, %v10830
        %v11247 = vpack.c.b16 %v10839, %v10835
        %v11248 = vpack.c.b16 %v10840, %v10836
        %v11249 = vpack.c.b16 %v10841, %v10837
        %v11250 = vpack.c.b16 %v10842, %v10838
        %v11251 = vpack.c.b16 %v10847, %v10843
        %v11252 = vpack.c.b16 %v10848, %v10844
        %v11253 = vpack.c.b16 %v10849, %v10845
        %v11254 = vpack.c.b16 %v10850, %v10846
        %v11255 = vpack.c.b16 %v10855, %v10851
        %v11256 = vpack.c.b16 %v10856, %v10852
        %v11257 = vpack.c.b16 %v10857, %v10853
        %v11258 = vpack.c.b16 %v10858, %v10854
        %v11259 = vpack.c.b16 %v10863, %v10859
        %v11260 = vpack.c.b16 %v10864, %v10860
        %v11261 = vpack.c.b16 %v10865, %v10861
        %v11262 = vpack.c.b16 %v10866, %v10862
        %v11263 = vpack.c.b16 %v10871, %v10867
        %v11264 = vpack.c.b16 %v10872, %v10868
        %v11265 = vpack.c.b16 %v10873, %v10869
        %v11266 = vpack.c.b16 %v10874, %v10870
        %v11267 = vpack.c.b16 %v10879, %v10875
        %v11268 = vpack.c.b16 %v10880, %v10876
        %v11269 = vpack.c.b16 %v10881, %v10877
        %v11270 = vpack.c.b16 %v10882, %v10878
        %v11271 = vpack.c.b16 %v10887, %v10883
        %v11272 = vpack.c.b16 %v10888, %v10884
        %v11273 = vpack.c.b16 %v10889, %v10885
        %v11274 = vpack.c.b16 %v10890, %v10886
        %v11275 = vpack.c.b16 %v10895, %v10891
        %v11276 = vpack.c.b16 %v10896, %v10892
        %v11277 = vpack.c.b16 %v10897, %v10893
        %v11278 = vpack.c.b16 %v10898, %v10894
        %v11279 = vpack.c.b16 %v10903, %v10899
        %v11280 = vpack.c.b16 %v10904, %v10900
        %v11281 = vpack.c.b16 %v10905, %v10901
        %v11282 = vpack.c.b16 %v10906, %v10902
        %v11283 = vpack.c.b16 %v10911, %v10907
        %v11284 = vpack.c.b16 %v10912, %v10908
        %v11285 = vpack.c.b16 %v10913, %v10909
        %v11286 = vpack.c.b16 %v10914, %v10910
        %v11287 = vpack.c.b16 %v10919, %v10915
        %v11288 = vpack.c.b16 %v10920, %v10916
        %v11289 = vpack.c.b16 %v10921, %v10917
        %v11290 = vpack.c.b16 %v10922, %v10918
        %v11291 = vpack.c.b16 %v10927, %v10923
        %v11292 = vpack.c.b16 %v10928, %v10924
        %v11293 = vpack.c.b16 %v10929, %v10925
        %v11294 = vpack.c.b16 %v10930, %v10926
        %v11295 = vpack.c.b16 %v10935, %v10931
        %v11296 = vpack.c.b16 %v10936, %v10932
        %v11297 = vpack.c.b16 %v10937, %v10933
        %v11298 = vpack.c.b16 %v10938, %v10934
        %v11299 = vpack.c.b16 %v10943, %v10939
        %v11300 = vpack.c.b16 %v10944, %v10940
        %v11301 = vpack.c.b16 %v10945, %v10941
        %v11302 = vpack.c.b16 %v10946, %v10942
        %v11303 = vpack.c.b16 %v10951, %v10947
        %v11304 = vpack.c.b16 %v10952, %v10948
        %v11305 = vpack.c.b16 %v10953, %v10949
        %v11306 = vpack.c.b16 %v10954, %v10950
        %v11307 = vpack.c.b16 %v10959, %v10955
        %v11308 = vpack.c.b16 %v10960, %v10956
        %v11309 = vpack.c.b16 %v10961, %v10957
        %v11310 = vpack.c.b16 %v10962, %v10958
        %v11311 = vpack.c.b16 %v10967, %v10963
        %v11312 = vpack.c.b16 %v10968, %v10964
        %v11313 = vpack.c.b16 %v10969, %v10965
        %v11314 = vpack.c.b16 %v10970, %v10966
        %v11315 = vpack.c.b16 %v10975, %v10971
        %v11316 = vpack.c.b16 %v10976, %v10972
        %v11317 = vpack.c.b16 %v10977, %v10973
        %v11318 = vpack.c.b16 %v10978, %v10974
        %v11319 = vpack.c.b16 %v10983, %v10979
        %v11320 = vpack.c.b16 %v10984, %v10980
        %v11321 = vpack.c.b16 %v10985, %v10981
        %v11322 = vpack.c.b16 %v10986, %v10982
        %v11323 = vpack.c.b16 %v10991, %v10987
        %v11324 = vpack.c.b16 %v10992, %v10988
        %v11325 = vpack.c.b16 %v10993, %v10989
        %v11326 = vpack.c.b16 %v10994, %v10990
        %v11327 = vpack.c.b16 %v10999, %v10995
        %v11328 = vpack.c.b16 %v11000, %v10996
        %v11329 = vpack.c.b16 %v11001, %v10997
        %v11330 = vpack.c.b16 %v11002, %v10998
        %v11331 = vpack.c.b16 %v11007, %v11003
        %v11332 = vpack.c.b16 %v11008, %v11004
        %v11333 = vpack.c.b16 %v11009, %v11005
        %v11334 = vpack.c.b16 %v11010, %v11006
        %v11335 = vpack.c.b16 %v11015, %v11011
        %v11336 = vpack.c.b16 %v11016, %v11012
        %v11337 = vpack.c.b16 %v11017, %v11013
        %v11338 = vpack.c.b16 %v11018, %v11014
        %v11339 = vpack.c.b16 %v11023, %v11019
        %v11340 = vpack.c.b16 %v11024, %v11020
        %v11341 = vpack.c.b16 %v11025, %v11021
        %v11342 = vpack.c.b16 %v11026, %v11022
        %v11343 = vpack.c.b16 %v11031, %v11027
        %v11344 = vpack.c.b16 %v11032, %v11028
        %v11345 = vpack.c.b16 %v11033, %v11029
        %v11346 = vpack.c.b16 %v11034, %v11030
        %v11347 = vpack.c.b16 %v11039, %v11035
        %v11348 = vpack.c.b16 %v11040, %v11036
        %v11349 = vpack.c.b16 %v11041, %v11037
        %v11350 = vpack.c.b16 %v11042, %v11038
        %v11351 = vpack.c.b16 %v11047, %v11043
        %v11352 = vpack.c.b16 %v11048, %v11044
        %v11353 = vpack.c.b16 %v11049, %v11045
        %v11354 = vpack.c.b16 %v11050, %v11046
        %v11355 = vpack.c.b16 %v11055, %v11051
        %v11356 = vpack.c.b16 %v11056, %v11052
        %v11357 = vpack.c.b16 %v11057, %v11053
        %v11358 = vpack.c.b16 %v11058, %v11054
        %v11359 = vpack.c.b16 %v11063, %v11059
        %v11360 = vpack.c.b16 %v11064, %v11060
        %v11361 = vpack.c.b16 %v11065, %v11061
        %v11362 = vpack.c.b16 %v11066, %v11062
        %v11363 = vpack.c.b16 %v11071, %v11067
        %v11364 = vpack.c.b16 %v11072, %v11068
        %v11365 = vpack.c.b16 %v11073, %v11069
        %v11366 = vpack.c.b16 %v11074, %v11070
        %v11367 = vpack.c.b16 %v11079, %v11075
        %v11368 = vpack.c.b16 %v11080, %v11076
        %v11369 = vpack.c.b16 %v11081, %v11077
        %v11370 = vpack.c.b16 %v11082, %v11078
        %v11371 = vpack.c.b16 %v11087, %v11083
        %v11372 = vpack.c.b16 %v11088, %v11084
        %v11373 = vpack.c.b16 %v11089, %v11085
        %v11374 = vpack.c.b16 %v11090, %v11086
        %v11375 = vpack.c.b16 %v11095, %v11091
        %v11376 = vpack.c.b16 %v11096, %v11092
        %v11377 = vpack.c.b16 %v11097, %v11093
        %v11378 = vpack.c.b16 %v11098, %v11094
        %v11379 = vpack.c.b16 %v11103, %v11099
        %v11380 = vpack.c.b16 %v11104, %v11100
        %v11381 = vpack.c.b16 %v11105, %v11101
        %v11382 = vpack.c.b16 %v11106, %v11102
        %v11383 = vpack.c.b16 %v11111, %v11107
        %v11384 = vpack.c.b16 %v11112, %v11108
        %v11385 = vpack.c.b16 %v11113, %v11109
        %v11386 = vpack.c.b16 %v11114, %v11110
        %v11387 = vpack.c.b16 %v11119, %v11115
        %v11388 = vpack.c.b16 %v11120, %v11116
        %v11389 = vpack.c.b16 %v11121, %v11117
        %v11390 = vpack.c.b16 %v11122, %v11118
        %v11391 = vpack.c.b16 %v11127, %v11123
        %v11392 = vpack.c.b16 %v11128, %v11124
        %v11393 = vpack.c.b16 %v11129, %v11125
        %v11394 = vpack.c.b16 %v11130, %v11126
        %v11395 = vpack.c.b16 %v11135, %v11131
        %v11396 = vpack.c.b16 %v11136, %v11132
        %v11397 = vpack.c.b16 %v11137, %v11133
        %v11398 = vpack.c.b16 %v11138, %v11134
        %v11399 = vpack.c.b16 %v11143, %v11139
        %v11400 = vpack.c.b16 %v11144, %v11140
        %v11401 = vpack.c.b16 %v11145, %v11141
        %v11402 = vpack.c.b16 %v11146, %v11142
        %11659 = vmatprep.subr.bf16.mxu0 %v11148
        %11660 = vmatpush1.bf16.msra.mxu0 %v11147
        %11661 = vmatprep.subr.bf16.mxu0 %v11152
        %11662 = vmatpush1.bf16.msra.mxu0 %v11151
        %11663 = vmatprep.subr.bf16.mxu0 %v11156
        %11664 = vmatpush1.bf16.msra.mxu0 %v11155
        %11665 = vmatprep.subr.bf16.mxu0 %v11160
        %11666 = vmatpush1.bf16.msra.mxu0 %v11159
        %11667 = vmatprep.subr.bf16.mxu0 %v11164
        %11668 = vmatpush1.bf16.msra.mxu0 %v11163
        %11669 = vmatprep.subr.bf16.mxu0 %v11168
        %11670 = vmatpush1.bf16.msra.mxu0 %v11167
        %11671 = vmatprep.subr.bf16.mxu0 %v11172
        %11672 = vmatpush1.bf16.msra.mxu0 %v11171
        %11673 = vmatprep.subr.bf16.mxu0 %v11176
        %11674 = vmatpush1.bf16.msra.mxu0 %v11175
        %11675 = vmatprep.subr.bf16.mxu0 %v11180
        %11676 = vmatpush1.bf16.msra.mxu0 %v11179
        %11677 = vmatprep.subr.bf16.mxu0 %v11184
        %11678 = vmatpush1.bf16.msra.mxu0 %v11183
        %11679 = vmatprep.subr.bf16.mxu0 %v11188
        %11680 = vmatpush1.bf16.msra.mxu0 %v11187
        %11681 = vmatprep.subr.bf16.mxu0 %v11192
        %11682 = vmatpush1.bf16.msra.mxu0 %v11191
        %11683 = vmatprep.subr.bf16.mxu0 %v11196
        %11684 = vmatpush1.bf16.msra.mxu0 %v11195
        %11685 = vmatprep.subr.bf16.mxu0 %v11200
        %11686 = vmatpush1.bf16.msra.mxu0 %v11199
        %11687 = vmatprep.subr.bf16.mxu0 %v11204
        %11688 = vmatpush1.bf16.msra.mxu0 %v11203
        %11689 = vmatprep.subr.bf16.mxu0 %v11208
        %11690 = vmatpush1.bf16.msra.mxu0 %v11207
        %11691 = vmatprep.mubr.bf16.mxu0 %v10094
        %11692 = vmatmul.mubr.bf16.gmra.mrb[0].mxu0 %v10093
        %v11693 = vpop.f32.mrb[0].mxu0
        %v11694 = vadd.f32 %v10362, %v11693
        %v11695 = vpop.f32.mrb[0].mxu0
        %v11696 = vadd.f32 %v10366, %v11695
        %v11697 = vpop.f32.mrb[0].mxu0
        %v11698 = vpop.f32.mrb[0].mxu0
        %11699 = vdwg.mxu0
        %11700 = vmatprep.subr.bf16.mxu0 %v11212
        %11701 = vmatpush1.bf16.msra.mxu0 %v11211
        %11702 = vmatprep.subr.bf16.mxu0 %v11216
        %11703 = vmatpush1.bf16.msra.mxu0 %v11215
        %11704 = vmatprep.subr.bf16.mxu0 %v11220
        %11705 = vmatpush1.bf16.msra.mxu0 %v11219
        %11706 = vmatprep.subr.bf16.mxu0 %v11224
        %11707 = vmatpush1.bf16.msra.mxu0 %v11223
        %11708 = vmatprep.subr.bf16.mxu0 %v11228
        %11709 = vmatpush1.bf16.msra.mxu0 %v11227
        %11710 = vmatprep.subr.bf16.mxu0 %v11232
        %11711 = vmatpush1.bf16.msra.mxu0 %v11231
        %11712 = vmatprep.subr.bf16.mxu0 %v11236
        %11713 = vmatpush1.bf16.msra.mxu0 %v11235
        %11714 = vmatprep.subr.bf16.mxu0 %v11240
        %11715 = vmatpush1.bf16.msra.mxu0 %v11239
        %11716 = vmatprep.subr.bf16.mxu0 %v11244
        %11717 = vmatpush1.bf16.msra.mxu0 %v11243
        %11718 = vmatprep.subr.bf16.mxu0 %v11248
        %11719 = vmatpush1.bf16.msra.mxu0 %v11247
        %11720 = vmatprep.subr.bf16.mxu0 %v11252
        %11721 = vmatpush1.bf16.msra.mxu0 %v11251
        %11722 = vmatprep.subr.bf16.mxu0 %v11256
        %11723 = vmatpush1.bf16.msra.mxu0 %v11255
        %11724 = vmatprep.subr.bf16.mxu0 %v11260
        %11725 = vmatpush1.bf16.msra.mxu0 %v11259
        %11726 = vmatprep.subr.bf16.mxu0 %v11264
        %11727 = vmatpush1.bf16.msra.mxu0 %v11263
        %11728 = vmatprep.subr.bf16.mxu0 %v11268
        %11729 = vmatpush1.bf16.msra.mxu0 %v11267
        %11730 = vmatprep.subr.bf16.mxu0 %v11272
        %11731 = vmatpush1.bf16.msra.mxu0 %v11271
        %11732 = vmatprep.mubr.bf16.mxu0 %v10096
        %11733 = vmatmul.mubr.bf16.gmra.mrb[0].mxu0 %v10095
        %v11734 = vpop.f32.mrb[0].mxu0
        %v11735 = vadd.f32 %v11694, %v11734
        %v11736 = vpop.f32.mrb[0].mxu0
        %v11737 = vadd.f32 %v11696, %v11736
        %v11738 = vpop.f32.mrb[0].mxu0
        %v11739 = vpop.f32.mrb[0].mxu0
        %11740 = vdwg.mxu0
        %11741 = vmatprep.subr.bf16.mxu0 %v11276
        %11742 = vmatpush1.bf16.msra.mxu0 %v11275
        %11743 = vmatprep.subr.bf16.mxu0 %v11280
        %11744 = vmatpush1.bf16.msra.mxu0 %v11279
        %11745 = vmatprep.subr.bf16.mxu0 %v11284
        %11746 = vmatpush1.bf16.msra.mxu0 %v11283
        %11747 = vmatprep.subr.bf16.mxu0 %v11288
        %11748 = vmatpush1.bf16.msra.mxu0 %v11287
        %11749 = vmatprep.subr.bf16.mxu0 %v11292
        %11750 = vmatpush1.bf16.msra.mxu0 %v11291
        %11751 = vmatprep.subr.bf16.mxu0 %v11296
        %11752 = vmatpush1.bf16.msra.mxu0 %v11295
        %11753 = vmatprep.subr.bf16.mxu0 %v11300
        %11754 = vmatpush1.bf16.msra.mxu0 %v11299
        %11755 = vmatprep.subr.bf16.mxu0 %v11304
        %11756 = vmatpush1.bf16.msra.mxu0 %v11303
        %11757 = vmatprep.subr.bf16.mxu0 %v11308
        %11758 = vmatpush1.bf16.msra.mxu0 %v11307
        %11759 = vmatprep.subr.bf16.mxu0 %v11312
        %11760 = vmatpush1.bf16.msra.mxu0 %v11311
        %11761 = vmatprep.subr.bf16.mxu0 %v11316
        %11762 = vmatpush1.bf16.msra.mxu0 %v11315
        %11763 = vmatprep.subr.bf16.mxu0 %v11320
        %11764 = vmatpush1.bf16.msra.mxu0 %v11319
        %11765 = vmatprep.subr.bf16.mxu0 %v11324
        %11766 = vmatpush1.bf16.msra.mxu0 %v11323
        %11767 = vmatprep.subr.bf16.mxu0 %v11328
        %11768 = vmatpush1.bf16.msra.mxu0 %v11327
        %11769 = vmatprep.subr.bf16.mxu0 %v11332
        %11770 = vmatpush1.bf16.msra.mxu0 %v11331
        %11771 = vmatprep.subr.bf16.mxu0 %v11336
        %11772 = vmatpush1.bf16.msra.mxu0 %v11335
        %11773 = vmatprep.mubr.bf16.mxu0 %v10098
        %11774 = vmatmul.mubr.bf16.gmra.mrb[0].mxu0 %v10097
        %v11775 = vpop.f32.mrb[0].mxu0
        %v11776 = vadd.f32 %v11735, %v11775
        %v11777 = vpop.f32.mrb[0].mxu0
        %v11778 = vadd.f32 %v11737, %v11777
        %v11779 = vpop.f32.mrb[0].mxu0
        %v11780 = vpop.f32.mrb[0].mxu0
        %11781 = vdwg.mxu0
        %11782 = vmatprep.subr.bf16.mxu0 %v11340
        %11783 = vmatpush1.bf16.msra.mxu0 %v11339
        %11784 = vmatprep.subr.bf16.mxu0 %v11344
        %11785 = vmatpush1.bf16.msra.mxu0 %v11343
        %11786 = vmatprep.subr.bf16.mxu0 %v11348
        %11787 = vmatpush1.bf16.msra.mxu0 %v11347
        %11788 = vmatprep.subr.bf16.mxu0 %v11352
        %11789 = vmatpush1.bf16.msra.mxu0 %v11351
        %11790 = vmatprep.subr.bf16.mxu0 %v11356
        %11791 = vmatpush1.bf16.msra.mxu0 %v11355
        %11792 = vmatprep.subr.bf16.mxu0 %v11360
        %11793 = vmatpush1.bf16.msra.mxu0 %v11359
        %11794 = vmatprep.subr.bf16.mxu0 %v11364
        %11795 = vmatpush1.bf16.msra.mxu0 %v11363
        %11796 = vmatprep.subr.bf16.mxu0 %v11368
        %11797 = vmatpush1.bf16.msra.mxu0 %v11367
        %11798 = vmatprep.subr.bf16.mxu0 %v11372
        %11799 = vmatpush1.bf16.msra.mxu0 %v11371
        %11800 = vmatprep.subr.bf16.mxu0 %v11376
        %11801 = vmatpush1.bf16.msra.mxu0 %v11375
        %11802 = vmatprep.subr.bf16.mxu0 %v11380
        %11803 = vmatpush1.bf16.msra.mxu0 %v11379
        %11804 = vmatprep.subr.bf16.mxu0 %v11384
        %11805 = vmatpush1.bf16.msra.mxu0 %v11383
        %11806 = vmatprep.subr.bf16.mxu0 %v11388
        %11807 = vmatpush1.bf16.msra.mxu0 %v11387
        %11808 = vmatprep.subr.bf16.mxu0 %v11392
        %11809 = vmatpush1.bf16.msra.mxu0 %v11391
        %11810 = vmatprep.subr.bf16.mxu0 %v11396
        %11811 = vmatpush1.bf16.msra.mxu0 %v11395
        %11812 = vmatprep.subr.bf16.mxu0 %v11400
        %11813 = vmatpush1.bf16.msra.mxu0 %v11399
        %11814 = vmatprep.mubr.bf16.mxu0 %v10100
        %11815 = vmatmul.mubr.bf16.gmra.mrb[0].mxu0 %v10099
        %v11816 = vpop.f32.mrb[0].mxu0
        %v11817 = vadd.f32 %v11776, %v11816
        %v11818 = vpop.f32.mrb[0].mxu0
        %v11819 = vadd.f32 %v11778, %v11818
        %v11820 = vpop.f32.mrb[0].mxu0
        %v11821 = vpop.f32.mrb[0].mxu0
        %11822 = vdwg.mxu0
        %11823 = vmatprep.subr.bf16.mxu0 %v11150
        %11824 = vmatpush1.bf16.msra.mxu0 %v11149
        %11825 = vmatprep.subr.bf16.mxu0 %v11154
        %11826 = vmatpush1.bf16.msra.mxu0 %v11153
        %11827 = vmatprep.subr.bf16.mxu0 %v11158
        %11828 = vmatpush1.bf16.msra.mxu0 %v11157
        %11829 = vmatprep.subr.bf16.mxu0 %v11162
        %11830 = vmatpush1.bf16.msra.mxu0 %v11161
        %11831 = vmatprep.subr.bf16.mxu0 %v11166
        %11832 = vmatpush1.bf16.msra.mxu0 %v11165
        %11833 = vmatprep.subr.bf16.mxu0 %v11170
        %11834 = vmatpush1.bf16.msra.mxu0 %v11169
        %11835 = vmatprep.subr.bf16.mxu0 %v11174
        %11836 = vmatpush1.bf16.msra.mxu0 %v11173
        %11837 = vmatprep.subr.bf16.mxu0 %v11178
        %11838 = vmatpush1.bf16.msra.mxu0 %v11177
        %11839 = vmatprep.subr.bf16.mxu0 %v11182
        %11840 = vmatpush1.bf16.msra.mxu0 %v11181
        %11841 = vmatprep.subr.bf16.mxu0 %v11186
        %11842 = vmatpush1.bf16.msra.mxu0 %v11185
        %11843 = vmatprep.subr.bf16.mxu0 %v11190
        %11844 = vmatpush1.bf16.msra.mxu0 %v11189
        %11845 = vmatprep.subr.bf16.mxu0 %v11194
        %11846 = vmatpush1.bf16.msra.mxu0 %v11193
        %11847 = vmatprep.subr.bf16.mxu0 %v11198
        %11848 = vmatpush1.bf16.msra.mxu0 %v11197
        %11849 = vmatprep.subr.bf16.mxu0 %v11202
        %11850 = vmatpush1.bf16.msra.mxu0 %v11201
        %11851 = vmatprep.subr.bf16.mxu0 %v11206
        %11852 = vmatpush1.bf16.msra.mxu0 %v11205
        %11853 = vmatprep.subr.bf16.mxu0 %v11210
        %11854 = vmatpush1.bf16.msra.mxu0 %v11209
        %11855 = vmatprep.mubr.bf16.mxu0 %v10094
        %11856 = vmatmul.mubr.bf16.gmra.mrb[0].mxu0 %v10093
        %v11857 = vpop.f32.mrb[0].mxu0
        %v11858 = vadd.f32 %v10370, %v11857
        %v11859 = vpop.f32.mrb[0].mxu0
        %v11860 = vadd.f32 %v10374, %v11859
        %v11861 = vpop.f32.mrb[0].mxu0
        %v11862 = vpop.f32.mrb[0].mxu0
        %11863 = vdwg.mxu0
        %11864 = vmatprep.subr.bf16.mxu0 %v11214
        %11865 = vmatpush1.bf16.msra.mxu0 %v11213
        %11866 = vmatprep.subr.bf16.mxu0 %v11218
        %11867 = vmatpush1.bf16.msra.mxu0 %v11217
        %11868 = vmatprep.subr.bf16.mxu0 %v11222
        %11869 = vmatpush1.bf16.msra.mxu0 %v11221
        %11870 = vmatprep.subr.bf16.mxu0 %v11226
        %11871 = vmatpush1.bf16.msra.mxu0 %v11225
        %11872 = vmatprep.subr.bf16.mxu0 %v11230
        %11873 = vmatpush1.bf16.msra.mxu0 %v11229
        %11874 = vmatprep.subr.bf16.mxu0 %v11234
        %11875 = vmatpush1.bf16.msra.mxu0 %v11233
        %11876 = vmatprep.subr.bf16.mxu0 %v11238
        %11877 = vmatpush1.bf16.msra.mxu0 %v11237
        %11878 = vmatprep.subr.bf16.mxu0 %v11242
        %11879 = vmatpush1.bf16.msra.mxu0 %v11241
        %11880 = vmatprep.subr.bf16.mxu0 %v11246
        %11881 = vmatpush1.bf16.msra.mxu0 %v11245
        %11882 = vmatprep.subr.bf16.mxu0 %v11250
        %11883 = vmatpush1.bf16.msra.mxu0 %v11249
        %11884 = vmatprep.subr.bf16.mxu0 %v11254
        %11885 = vmatpush1.bf16.msra.mxu0 %v11253
        %11886 = vmatprep.subr.bf16.mxu0 %v11258
        %11887 = vmatpush1.bf16.msra.mxu0 %v11257
        %11888 = vmatprep.subr.bf16.mxu0 %v11262
        %11889 = vmatpush1.bf16.msra.mxu0 %v11261
        %11890 = vmatprep.subr.bf16.mxu0 %v11266
        %11891 = vmatpush1.bf16.msra.mxu0 %v11265
        %11892 = vmatprep.subr.bf16.mxu0 %v11270
        %11893 = vmatpush1.bf16.msra.mxu0 %v11269
        %11894 = vmatprep.subr.bf16.mxu0 %v11274
        %11895 = vmatpush1.bf16.msra.mxu0 %v11273
        %11896 = vmatprep.mubr.bf16.mxu0 %v10096
        %11897 = vmatmul.mubr.bf16.gmra.mrb[0].mxu0 %v10095
        %v11898 = vpop.f32.mrb[0].mxu0
        %v11899 = vadd.f32 %v11858, %v11898
        %v11900 = vpop.f32.mrb[0].mxu0
        %v11901 = vadd.f32 %v11860, %v11900
        %v11902 = vpop.f32.mrb[0].mxu0
        %v11903 = vpop.f32.mrb[0].mxu0
        %11904 = vdwg.mxu0
        %11905 = vmatprep.subr.bf16.mxu0 %v11278
        %11906 = vmatpush1.bf16.msra.mxu0 %v11277
        %11907 = vmatprep.subr.bf16.mxu0 %v11282
        %11908 = vmatpush1.bf16.msra.mxu0 %v11281
        %11909 = vmatprep.subr.bf16.mxu0 %v11286
        %11910 = vmatpush1.bf16.msra.mxu0 %v11285
        %11911 = vmatprep.subr.bf16.mxu0 %v11290
        %11912 = vmatpush1.bf16.msra.mxu0 %v11289
        %11913 = vmatprep.subr.bf16.mxu0 %v11294
        %11914 = vmatpush1.bf16.msra.mxu0 %v11293
        %11915 = vmatprep.subr.bf16.mxu0 %v11298
        %11916 = vmatpush1.bf16.msra.mxu0 %v11297
        %11917 = vmatprep.subr.bf16.mxu0 %v11302
        %11918 = vmatpush1.bf16.msra.mxu0 %v11301
        %11919 = vmatprep.subr.bf16.mxu0 %v11306
        %11920 = vmatpush1.bf16.msra.mxu0 %v11305
        %11921 = vmatprep.subr.bf16.mxu0 %v11310
        %11922 = vmatpush1.bf16.msra.mxu0 %v11309
        %11923 = vmatprep.subr.bf16.mxu0 %v11314
        %11924 = vmatpush1.bf16.msra.mxu0 %v11313
        %11925 = vmatprep.subr.bf16.mxu0 %v11318
        %11926 = vmatpush1.bf16.msra.mxu0 %v11317
        %11927 = vmatprep.subr.bf16.mxu0 %v11322
        %11928 = vmatpush1.bf16.msra.mxu0 %v11321
        %11929 = vmatprep.subr.bf16.mxu0 %v11326
        %11930 = vmatpush1.bf16.msra.mxu0 %v11325
        %11931 = vmatprep.subr.bf16.mxu0 %v11330
        %11932 = vmatpush1.bf16.msra.mxu0 %v11329
        %11933 = vmatprep.subr.bf16.mxu0 %v11334
        %11934 = vmatpush1.bf16.msra.mxu0 %v11333
        %11935 = vmatprep.subr.bf16.mxu0 %v11338
        %11936 = vmatpush1.bf16.msra.mxu0 %v11337
        %11937 = vmatprep.mubr.bf16.mxu0 %v10098
        %11938 = vmatmul.mubr.bf16.gmra.mrb[0].mxu0 %v10097
        %v11939 = vpop.f32.mrb[0].mxu0
        %v11940 = vadd.f32 %v11899, %v11939
        %v11941 = vpop.f32.mrb[0].mxu0
        %v11942 = vadd.f32 %v11901, %v11941
        %v11943 = vpop.f32.mrb[0].mxu0
        %v11944 = vpop.f32.mrb[0].mxu0
        %11945 = vdwg.mxu0
        %11946 = vmatprep.subr.bf16.mxu0 %v11342
        %11947 = vmatpush1.bf16.msra.mxu0 %v11341
        %11948 = vmatprep.subr.bf16.mxu0 %v11346
        %11949 = vmatpush1.bf16.msra.mxu0 %v11345
        %11950 = vmatprep.subr.bf16.mxu0 %v11350
        %11951 = vmatpush1.bf16.msra.mxu0 %v11349
        %11952 = vmatprep.subr.bf16.mxu0 %v11354
        %11953 = vmatpush1.bf16.msra.mxu0 %v11353
        %11954 = vmatprep.subr.bf16.mxu0 %v11358
        %11955 = vmatpush1.bf16.msra.mxu0 %v11357
        %11956 = vmatprep.subr.bf16.mxu0 %v11362
        %11957 = vmatpush1.bf16.msra.mxu0 %v11361
        %11958 = vmatprep.subr.bf16.mxu0 %v11366
        %11959 = vmatpush1.bf16.msra.mxu0 %v11365
        %11960 = vmatprep.subr.bf16.mxu0 %v11370
        %11961 = vmatpush1.bf16.msra.mxu0 %v11369
        %11962 = vmatprep.subr.bf16.mxu0 %v11374
        %11963 = vmatpush1.bf16.msra.mxu0 %v11373
        %11964 = vmatprep.subr.bf16.mxu0 %v11378
        %11965 = vmatpush1.bf16.msra.mxu0 %v11377
        %11966 = vmatprep.subr.bf16.mxu0 %v11382
        %11967 = vmatpush1.bf16.msra.mxu0 %v11381
        %11968 = vmatprep.subr.bf16.mxu0 %v11386
        %11969 = vmatpush1.bf16.msra.mxu0 %v11385
        %11970 = vmatprep.subr.bf16.mxu0 %v11390
        %11971 = vmatpush1.bf16.msra.mxu0 %v11389
        %11972 = vmatprep.subr.bf16.mxu0 %v11394
        %11973 = vmatpush1.bf16.msra.mxu0 %v11393
        %11974 = vmatprep.subr.bf16.mxu0 %v11398
        %11975 = vmatpush1.bf16.msra.mxu0 %v11397
        %11976 = vmatprep.subr.bf16.mxu0 %v11402
        %11977 = vmatpush1.bf16.msra.mxu0 %v11401
        %11978 = vmatprep.mubr.bf16.mxu0 %v10100
        %11979 = vmatmul.mubr.bf16.gmra.mrb[0].mxu0 %v10099
        %v11980 = vpop.f32.mrb[0].mxu0
        %v11981 = vadd.f32 %v11940, %v11980
        %v11982 = vpop.f32.mrb[0].mxu0
        %v11983 = vadd.f32 %v11942, %v11982
        %v11984 = vpop.f32.mrb[0].mxu0
        %v11985 = vpop.f32.mrb[0].mxu0
        %11986 = vdwg.mxu0
        %v11987 = vpack.c.bf16 %v11817, %v11817
        %v11988 = vpack.c.bf16 %v11819, %v11819
        %v11989 = vpack.c.bf16 %v11981, %v11981
        %v11990 = vpack.c.bf16 %v11983, %v11983
        %v11991 = vld [vmem:[%s576] sm:$0xff]
        %v11992 = vld [vmem:[%s576 + $0x8] sm:$0xff]
        %v11993 = vld [vmem:[%s576 + $0x10] sm:$0xff]
        %v11994 = vld [vmem:[%s576 + $0x18] sm:$0xff]
        %v11995 = vld [vmem:[%s576 + $0x20] sm:$0xff]
        %v11996 = vld [vmem:[%s576 + $0x28] sm:$0xff]
        %v11997 = vld [vmem:[%s576 + $0x30] sm:$0xff]
        %v11998 = vld [vmem:[%s576 + $0x38] sm:$0xff]
        %v11999 = vld [vmem:[%s576 + $0x40] sm:$0xff]
        %v12000 = vld [vmem:[%s576 + $0x48] sm:$0xff]
        %v12001 = vld [vmem:[%s576 + $0x50] sm:$0xff]
        %v12002 = vld [vmem:[%s576 + $0x58] sm:$0xff]
        %v12003 = vld [vmem:[%s576 + $0x60] sm:$0xff]
        %v12004 = vld [vmem:[%s576 + $0x68] sm:$0xff]
        %v12005 = vld [vmem:[%s576 + $0x70] sm:$0xff]
        %v12006 = vld [vmem:[%s576 + $0x78] sm:$0xff]
        %v12007 = vld [vmem:[%s576 + $0x80] sm:$0xff]
        %v12008 = vld [vmem:[%s576 + $0x88] sm:$0xff]
        %v12009 = vld [vmem:[%s576 + $0x90] sm:$0xff]
        %v12010 = vld [vmem:[%s576 + $0x98] sm:$0xff]
        %v12011 = vld [vmem:[%s576 + $0xa0] sm:$0xff]
        %v12012 = vld [vmem:[%s576 + $0xa8] sm:$0xff]
        %v12013 = vld [vmem:[%s576 + $0xb0] sm:$0xff]
        %v12014 = vld [vmem:[%s576 + $0xb8] sm:$0xff]
        %v12015 = vld [vmem:[%s576 + $0xc0] sm:$0xff]
        %v12016 = vld [vmem:[%s576 + $0xc8] sm:$0xff]
        %v12017 = vld [vmem:[%s576 + $0xd0] sm:$0xff]
        %v12018 = vld [vmem:[%s576 + $0xd8] sm:$0xff]
        %v12019 = vld [vmem:[%s576 + $0xe0] sm:$0xff]
        %v12020 = vld [vmem:[%s576 + $0xe8] sm:$0xff]
        %v12021 = vld [vmem:[%s576 + $0xf0] sm:$0xff]
        %v12022 = vld [vmem:[%s576 + $0xf8] sm:$0xff]
        %v12023 = vld [vmem:[%s576 + $0x100] sm:$0xff]
        %v12024 = vld [vmem:[%s576 + $0x108] sm:$0xff]
        %v12025 = vld [vmem:[%s576 + $0x110] sm:$0xff]
        %v12026 = vld [vmem:[%s576 + $0x118] sm:$0xff]
        %v12027 = vld [vmem:[%s576 + $0x120] sm:$0xff]
        %v12028 = vld [vmem:[%s576 + $0x128] sm:$0xff]
        %v12029 = vld [vmem:[%s576 + $0x130] sm:$0xff]
        %v12030 = vld [vmem:[%s576 + $0x138] sm:$0xff]
        %v12031 = vld [vmem:[%s576 + $0x140] sm:$0xff]
        %v12032 = vld [vmem:[%s576 + $0x148] sm:$0xff]
        %v12033 = vld [vmem:[%s576 + $0x150] sm:$0xff]
        %v12034 = vld [vmem:[%s576 + $0x158] sm:$0xff]
        %v12035 = vld [vmem:[%s576 + $0x160] sm:$0xff]
        %v12036 = vld [vmem:[%s576 + $0x168] sm:$0xff]
        %v12037 = vld [vmem:[%s576 + $0x170] sm:$0xff]
        %v12038 = vld [vmem:[%s576 + $0x178] sm:$0xff]
        %v12039 = vld [vmem:[%s576 + $0x180] sm:$0xff]
        %v12040 = vld [vmem:[%s576 + $0x188] sm:$0xff]
        %v12041 = vld [vmem:[%s576 + $0x190] sm:$0xff]
        %v12042 = vld [vmem:[%s576 + $0x198] sm:$0xff]
        %v12043 = vld [vmem:[%s576 + $0x1a0] sm:$0xff]
        %v12044 = vld [vmem:[%s576 + $0x1a8] sm:$0xff]
        %v12045 = vld [vmem:[%s576 + $0x1b0] sm:$0xff]
        %v12046 = vld [vmem:[%s576 + $0x1b8] sm:$0xff]
        %v12047 = vld [vmem:[%s576 + $0x1c0] sm:$0xff]
        %v12048 = vld [vmem:[%s576 + $0x1c8] sm:$0xff]
        %v12049 = vld [vmem:[%s576 + $0x1d0] sm:$0xff]
        %v12050 = vld [vmem:[%s576 + $0x1d8] sm:$0xff]
        %v12051 = vld [vmem:[%s576 + $0x1e0] sm:$0xff]
        %v12052 = vld [vmem:[%s576 + $0x1e8] sm:$0xff]
        %v12053 = vld [vmem:[%s576 + $0x1f0] sm:$0xff]
        %v12054 = vld [vmem:[%s576 + $0x1f8] sm:$0xff]
        %v12055 = vld [vmem:[%s585] sm:$0x3]
        %v12057 = vlaneseq
        %v12058 = vshrl.u32 %v12057, 7
        %v12059 = vsub.s32 0, %v12058
        %v12060 = vrot.slane %v12055, %v12059
        %v12061 = vlaneseq
        %v12062 = vshrl.u32 %v12061, 7
        %v12063 = vsub.s32 1, %v12062
        %v12064 = vrot.slane %v12055, %v12063
        %v12131 = vunpack.c.l.b16 %v11991
        %v12132 = vunpack.c.h.b16 %v11991
        %v12133 = vunpack.c.l.b16 %v11992
        %v12134 = vunpack.c.h.b16 %v11992
        %v12135 = vunpack.c.l.b16 %v11993
        %v12136 = vunpack.c.h.b16 %v11993
        %v12137 = vunpack.c.l.b16 %v11994
        %v12138 = vunpack.c.h.b16 %v11994
        %v12139 = vunpack.c.l.b16 %v11995
        %v12140 = vunpack.c.h.b16 %v11995
        %v12141 = vunpack.c.l.b16 %v11996
        %v12142 = vunpack.c.h.b16 %v11996
        %v12143 = vunpack.c.l.b16 %v11997
        %v12144 = vunpack.c.h.b16 %v11997
        %v12145 = vunpack.c.l.b16 %v11998
        %v12146 = vunpack.c.h.b16 %v11998
        %v12147 = vunpack.c.l.b16 %v11999
        %v12148 = vunpack.c.h.b16 %v11999
        %v12149 = vunpack.c.l.b16 %v12000
        %v12150 = vunpack.c.h.b16 %v12000
        %v12151 = vunpack.c.l.b16 %v12001
        %v12152 = vunpack.c.h.b16 %v12001
        %v12153 = vunpack.c.l.b16 %v12002
        %v12154 = vunpack.c.h.b16 %v12002
        %v12155 = vunpack.c.l.b16 %v12003
        %v12156 = vunpack.c.h.b16 %v12003
        %v12157 = vunpack.c.l.b16 %v12004
        %v12158 = vunpack.c.h.b16 %v12004
        %v12159 = vunpack.c.l.b16 %v12005
        %v12160 = vunpack.c.h.b16 %v12005
        %v12161 = vunpack.c.l.b16 %v12006
        %v12162 = vunpack.c.h.b16 %v12006
        %v12163 = vunpack.c.l.b16 %v12007
        %v12164 = vunpack.c.h.b16 %v12007
        %v12165 = vunpack.c.l.b16 %v12008
        %v12166 = vunpack.c.h.b16 %v12008
        %v12167 = vunpack.c.l.b16 %v12009
        %v12168 = vunpack.c.h.b16 %v12009
        %v12169 = vunpack.c.l.b16 %v12010
        %v12170 = vunpack.c.h.b16 %v12010
        %v12171 = vunpack.c.l.b16 %v12011
        %v12172 = vunpack.c.h.b16 %v12011
        %v12173 = vunpack.c.l.b16 %v12012
        %v12174 = vunpack.c.h.b16 %v12012
        %v12175 = vunpack.c.l.b16 %v12013
        %v12176 = vunpack.c.h.b16 %v12013
        %v12177 = vunpack.c.l.b16 %v12014
        %v12178 = vunpack.c.h.b16 %v12014
        %v12179 = vunpack.c.l.b16 %v12015
        %v12180 = vunpack.c.h.b16 %v12015
        %v12181 = vunpack.c.l.b16 %v12016
        %v12182 = vunpack.c.h.b16 %v12016
        %v12183 = vunpack.c.l.b16 %v12017
        %v12184 = vunpack.c.h.b16 %v12017
        %v12185 = vunpack.c.l.b16 %v12018
        %v12186 = vunpack.c.h.b16 %v12018
        %v12187 = vunpack.c.l.b16 %v12019
        %v12188 = vunpack.c.h.b16 %v12019
        %v12189 = vunpack.c.l.b16 %v12020
        %v12190 = vunpack.c.h.b16 %v12020
        %v12191 = vunpack.c.l.b16 %v12021
        %v12192 = vunpack.c.h.b16 %v12021
        %v12193 = vunpack.c.l.b16 %v12022
        %v12194 = vunpack.c.h.b16 %v12022
        %v12195 = vunpack.c.l.b16 %v12023
        %v12196 = vunpack.c.h.b16 %v12023
        %v12197 = vunpack.c.l.b16 %v12024
        %v12198 = vunpack.c.h.b16 %v12024
        %v12199 = vunpack.c.l.b16 %v12025
        %v12200 = vunpack.c.h.b16 %v12025
        %v12201 = vunpack.c.l.b16 %v12026
        %v12202 = vunpack.c.h.b16 %v12026
        %v12203 = vunpack.c.l.b16 %v12027
        %v12204 = vunpack.c.h.b16 %v12027
        %v12205 = vunpack.c.l.b16 %v12028
        %v12206 = vunpack.c.h.b16 %v12028
        %v12207 = vunpack.c.l.b16 %v12029
        %v12208 = vunpack.c.h.b16 %v12029
        %v12209 = vunpack.c.l.b16 %v12030
        %v12210 = vunpack.c.h.b16 %v12030
        %v12211 = vunpack.c.l.b16 %v12031
        %v12212 = vunpack.c.h.b16 %v12031
        %v12213 = vunpack.c.l.b16 %v12032
        %v12214 = vunpack.c.h.b16 %v12032
        %v12215 = vunpack.c.l.b16 %v12033
        %v12216 = vunpack.c.h.b16 %v12033
        %v12217 = vunpack.c.l.b16 %v12034
        %v12218 = vunpack.c.h.b16 %v12034
        %v12219 = vunpack.c.l.b16 %v12035
        %v12220 = vunpack.c.h.b16 %v12035
        %v12221 = vunpack.c.l.b16 %v12036
        %v12222 = vunpack.c.h.b16 %v12036
        %v12223 = vunpack.c.l.b16 %v12037
        %v12224 = vunpack.c.h.b16 %v12037
        %v12225 = vunpack.c.l.b16 %v12038
        %v12226 = vunpack.c.h.b16 %v12038
        %v12227 = vunpack.c.l.b16 %v12039
        %v12228 = vunpack.c.h.b16 %v12039
        %v12229 = vunpack.c.l.b16 %v12040
        %v12230 = vunpack.c.h.b16 %v12040
        %v12231 = vunpack.c.l.b16 %v12041
        %v12232 = vunpack.c.h.b16 %v12041
        %v12233 = vunpack.c.l.b16 %v12042
        %v12234 = vunpack.c.h.b16 %v12042
        %v12235 = vunpack.c.l.b16 %v12043
        %v12236 = vunpack.c.h.b16 %v12043
        %v12237 = vunpack.c.l.b16 %v12044
        %v12238 = vunpack.c.h.b16 %v12044
        %v12239 = vunpack.c.l.b16 %v12045
        %v12240 = vunpack.c.h.b16 %v12045
        %v12241 = vunpack.c.l.b16 %v12046
        %v12242 = vunpack.c.h.b16 %v12046
        %v12243 = vunpack.c.l.b16 %v12047
        %v12244 = vunpack.c.h.b16 %v12047
        %v12245 = vunpack.c.l.b16 %v12048
        %v12246 = vunpack.c.h.b16 %v12048
        %v12247 = vunpack.c.l.b16 %v12049
        %v12248 = vunpack.c.h.b16 %v12049
        %v12249 = vunpack.c.l.b16 %v12050
        %v12250 = vunpack.c.h.b16 %v12050
        %v12251 = vunpack.c.l.b16 %v12051
        %v12252 = vunpack.c.h.b16 %v12051
        %v12253 = vunpack.c.l.b16 %v12052
        %v12254 = vunpack.c.h.b16 %v12052
        %v12255 = vunpack.c.l.b16 %v12053
        %v12256 = vunpack.c.h.b16 %v12053
        %v12257 = vunpack.c.l.b16 %v12054
        %v12258 = vunpack.c.h.b16 %v12054
        %v12259 = vpack.c.b16 %v12133, %v12131
        %v12260 = vpack.c.b16 %v12134, %v12132
        %v12261 = vpack.c.b16 %v12137, %v12135
        %v12262 = vpack.c.b16 %v12138, %v12136
        %v12263 = vpack.c.b16 %v12141, %v12139
        %v12264 = vpack.c.b16 %v12142, %v12140
        %v12265 = vpack.c.b16 %v12145, %v12143
        %v12266 = vpack.c.b16 %v12146, %v12144
        %v12267 = vpack.c.b16 %v12149, %v12147
        %v12268 = vpack.c.b16 %v12150, %v12148
        %v12269 = vpack.c.b16 %v12153, %v12151
        %v12270 = vpack.c.b16 %v12154, %v12152
        %v12271 = vpack.c.b16 %v12157, %v12155
        %v12272 = vpack.c.b16 %v12158, %v12156
        %v12273 = vpack.c.b16 %v12161, %v12159
        %v12274 = vpack.c.b16 %v12162, %v12160
        %v12275 = vpack.c.b16 %v12165, %v12163
        %v12276 = vpack.c.b16 %v12166, %v12164
        %v12277 = vpack.c.b16 %v12169, %v12167
        %v12278 = vpack.c.b16 %v12170, %v12168
        %v12279 = vpack.c.b16 %v12173, %v12171
        %v12280 = vpack.c.b16 %v12174, %v12172
        %v12281 = vpack.c.b16 %v12177, %v12175
        %v12282 = vpack.c.b16 %v12178, %v12176
        %v12283 = vpack.c.b16 %v12181, %v12179
        %v12284 = vpack.c.b16 %v12182, %v12180
        %v12285 = vpack.c.b16 %v12185, %v12183
        %v12286 = vpack.c.b16 %v12186, %v12184
        %v12287 = vpack.c.b16 %v12189, %v12187
        %v12288 = vpack.c.b16 %v12190, %v12188
        %v12289 = vpack.c.b16 %v12193, %v12191
        %v12290 = vpack.c.b16 %v12194, %v12192
        %v12291 = vpack.c.b16 %v12197, %v12195
        %v12292 = vpack.c.b16 %v12198, %v12196
        %v12293 = vpack.c.b16 %v12201, %v12199
        %v12294 = vpack.c.b16 %v12202, %v12200
        %v12295 = vpack.c.b16 %v12205, %v12203
        %v12296 = vpack.c.b16 %v12206, %v12204
        %v12297 = vpack.c.b16 %v12209, %v12207
        %v12298 = vpack.c.b16 %v12210, %v12208
        %v12299 = vpack.c.b16 %v12213, %v12211
        %v12300 = vpack.c.b16 %v12214, %v12212
        %v12301 = vpack.c.b16 %v12217, %v12215
        %v12302 = vpack.c.b16 %v12218, %v12216
        %v12303 = vpack.c.b16 %v12221, %v12219
        %v12304 = vpack.c.b16 %v12222, %v12220
        %v12305 = vpack.c.b16 %v12225, %v12223
        %v12306 = vpack.c.b16 %v12226, %v12224
        %v12307 = vpack.c.b16 %v12229, %v12227
        %v12308 = vpack.c.b16 %v12230, %v12228
        %v12309 = vpack.c.b16 %v12233, %v12231
        %v12310 = vpack.c.b16 %v12234, %v12232
        %v12311 = vpack.c.b16 %v12237, %v12235
        %v12312 = vpack.c.b16 %v12238, %v12236
        %v12313 = vpack.c.b16 %v12241, %v12239
        %v12314 = vpack.c.b16 %v12242, %v12240
        %v12315 = vpack.c.b16 %v12245, %v12243
        %v12316 = vpack.c.b16 %v12246, %v12244
        %v12317 = vpack.c.b16 %v12249, %v12247
        %v12318 = vpack.c.b16 %v12250, %v12248
        %v12319 = vpack.c.b16 %v12253, %v12251
        %v12320 = vpack.c.b16 %v12254, %v12252
        %v12321 = vpack.c.b16 %v12257, %v12255
        %v12322 = vpack.c.b16 %v12258, %v12256
        %12387 = vmatprep.subr.bf16.mxu0 %v12260
        %12388 = vmatpush1.bf16.msra.mxu0 %v12259
        %12389 = vmatprep.subr.bf16.mxu0 %v12262
        %12390 = vmatpush1.bf16.msra.mxu0 %v12261
        %12391 = vmatprep.subr.bf16.mxu0 %v12264
        %12392 = vmatpush1.bf16.msra.mxu0 %v12263
        %12393 = vmatprep.subr.bf16.mxu0 %v12266
        %12394 = vmatpush1.bf16.msra.mxu0 %v12265
        %12395 = vmatprep.subr.bf16.mxu0 %v12268
        %12396 = vmatpush1.bf16.msra.mxu0 %v12267
        %12397 = vmatprep.subr.bf16.mxu0 %v12270
        %12398 = vmatpush1.bf16.msra.mxu0 %v12269
        %12399 = vmatprep.subr.bf16.mxu0 %v12272
        %12400 = vmatpush1.bf16.msra.mxu0 %v12271
        %12401 = vmatprep.subr.bf16.mxu0 %v12274
        %12402 = vmatpush1.bf16.msra.mxu0 %v12273
        %12403 = vmatprep.subr.bf16.mxu0 %v12276
        %12404 = vmatpush1.bf16.msra.mxu0 %v12275
        %12405 = vmatprep.subr.bf16.mxu0 %v12278
        %12406 = vmatpush1.bf16.msra.mxu0 %v12277
        %12407 = vmatprep.subr.bf16.mxu0 %v12280
        %12408 = vmatpush1.bf16.msra.mxu0 %v12279
        %12409 = vmatprep.subr.bf16.mxu0 %v12282
        %12410 = vmatpush1.bf16.msra.mxu0 %v12281
        %12411 = vmatprep.subr.bf16.mxu0 %v12284
        %12412 = vmatpush1.bf16.msra.mxu0 %v12283
        %12413 = vmatprep.subr.bf16.mxu0 %v12286
        %12414 = vmatpush1.bf16.msra.mxu0 %v12285
        %12415 = vmatprep.subr.bf16.mxu0 %v12288
        %12416 = vmatpush1.bf16.msra.mxu0 %v12287
        %12417 = vmatprep.subr.bf16.mxu0 %v12290
        %12418 = vmatpush1.bf16.msra.mxu0 %v12289
        %12419 = vmatprep.mubr.bf16.mxu0 %v11988
        %12420 = vmatmul.mubr.bf16.gmra.mrb[0].mxu0 %v11987
        %v12421 = vpop.f32.mrb[0].mxu0
        %v12422 = vadd.f32 %v12060, %v12421
        %v12423 = vpop.f32.mrb[0].mxu0
        %v12424 = vadd.f32 %v12064, %v12423
        %v12425 = vpop.f32.mrb[0].mxu0
        %v12426 = vpop.f32.mrb[0].mxu0
        %12427 = vdwg.mxu0
        %12428 = vmatprep.subr.bf16.mxu0 %v12292
        %12429 = vmatpush1.bf16.msra.mxu0 %v12291
        %12430 = vmatprep.subr.bf16.mxu0 %v12294
        %12431 = vmatpush1.bf16.msra.mxu0 %v12293
        %12432 = vmatprep.subr.bf16.mxu0 %v12296
        %12433 = vmatpush1.bf16.msra.mxu0 %v12295
        %12434 = vmatprep.subr.bf16.mxu0 %v12298
        %12435 = vmatpush1.bf16.msra.mxu0 %v12297
        %12436 = vmatprep.subr.bf16.mxu0 %v12300
        %12437 = vmatpush1.bf16.msra.mxu0 %v12299
        %12438 = vmatprep.subr.bf16.mxu0 %v12302
        %12439 = vmatpush1.bf16.msra.mxu0 %v12301
        %12440 = vmatprep.subr.bf16.mxu0 %v12304
        %12441 = vmatpush1.bf16.msra.mxu0 %v12303
        %12442 = vmatprep.subr.bf16.mxu0 %v12306
        %12443 = vmatpush1.bf16.msra.mxu0 %v12305
        %12444 = vmatprep.subr.bf16.mxu0 %v12308
        %12445 = vmatpush1.bf16.msra.mxu0 %v12307
        %12446 = vmatprep.subr.bf16.mxu0 %v12310
        %12447 = vmatpush1.bf16.msra.mxu0 %v12309
        %12448 = vmatprep.subr.bf16.mxu0 %v12312
        %12449 = vmatpush1.bf16.msra.mxu0 %v12311
        %12450 = vmatprep.subr.bf16.mxu0 %v12314
        %12451 = vmatpush1.bf16.msra.mxu0 %v12313
        %12452 = vmatprep.subr.bf16.mxu0 %v12316
        %12453 = vmatpush1.bf16.msra.mxu0 %v12315
        %12454 = vmatprep.subr.bf16.mxu0 %v12318
        %12455 = vmatpush1.bf16.msra.mxu0 %v12317
        %12456 = vmatprep.subr.bf16.mxu0 %v12320
        %12457 = vmatpush1.bf16.msra.mxu0 %v12319
        %12458 = vmatprep.subr.bf16.mxu0 %v12322
        %12459 = vmatpush1.bf16.msra.mxu0 %v12321
        %12460 = vmatprep.mubr.bf16.mxu0 %v11990
        %12461 = vmatmul.mubr.bf16.gmra.mrb[0].mxu0 %v11989
        %v12462 = vpop.f32.mrb[0].mxu0
        %v12463 = vadd.f32 %v12422, %v12462
        %v12464 = vpop.f32.mrb[0].mxu0
        %v12465 = vadd.f32 %v12424, %v12464
        %v12466 = vpop.f32.mrb[0].mxu0
        %v12467 = vpop.f32.mrb[0].mxu0
        %12468 = vdwg.mxu0
        %v12469 = vpack.c.bf16 %v12463, %v12463
        %v12470 = vpack.c.bf16 %v12465, %v12465
        %v12471 = vld [vmem:[%s594] sm:$0xf]
        %v12472 = vld [vmem:[%s594 + $0x4] sm:$0xf]
        %v12473 = vld [vmem:[%s594 + $0x8] sm:$0xf]
        %v12474 = vld [vmem:[%s594 + $0xc] sm:$0xf]
        %v12475 = vld [vmem:[%s594 + $0x10] sm:$0xf]
        %v12476 = vld [vmem:[%s594 + $0x14] sm:$0xf]
        %v12477 = vld [vmem:[%s594 + $0x18] sm:$0xf]
        %v12478 = vld [vmem:[%s594 + $0x1c] sm:$0xf]
        %v12479 = vld [vmem:[%s594 + $0x20] sm:$0xf]
        %v12480 = vld [vmem:[%s594 + $0x24] sm:$0xf]
        %v12481 = vld [vmem:[%s594 + $0x28] sm:$0xf]
        %v12482 = vld [vmem:[%s594 + $0x2c] sm:$0xf]
        %v12483 = vld [vmem:[%s594 + $0x30] sm:$0xf]
        %v12484 = vld [vmem:[%s594 + $0x34] sm:$0xf]
        %v12485 = vld [vmem:[%s594 + $0x38] sm:$0xf]
        %v12486 = vld [vmem:[%s594 + $0x3c] sm:$0xf]
        %v12487 = vld [vmem:[%s594 + $0x40] sm:$0xf]
        %v12488 = vld [vmem:[%s594 + $0x44] sm:$0xf]
        %v12489 = vld [vmem:[%s594 + $0x48] sm:$0xf]
        %v12490 = vld [vmem:[%s594 + $0x4c] sm:$0xf]
        %v12491 = vld [vmem:[%s594 + $0x50] sm:$0xf]
        %v12492 = vld [vmem:[%s594 + $0x54] sm:$0xf]
        %v12493 = vld [vmem:[%s594 + $0x58] sm:$0xf]
        %v12494 = vld [vmem:[%s594 + $0x5c] sm:$0xf]
        %v12495 = vld [vmem:[%s594 + $0x60] sm:$0xf]
        %v12496 = vld [vmem:[%s594 + $0x64] sm:$0xf]
        %v12497 = vld [vmem:[%s594 + $0x68] sm:$0xf]
        %v12498 = vld [vmem:[%s594 + $0x6c] sm:$0xf]
        %v12499 = vld [vmem:[%s594 + $0x70] sm:$0xf]
        %v12500 = vld [vmem:[%s594 + $0x74] sm:$0xf]
        %v12501 = vld [vmem:[%s594 + $0x78] sm:$0xf]
        %v12502 = vld [vmem:[%s594 + $0x7c] sm:$0xf]
        %v12503 = vld [vmem:[%s602] sm:$0x1]
        %v12505 = vlaneseq
        %v12506 = vshrl.u32 %v12505, 7
        %v12507 = vsub.s32 0, %v12506
        %v12508 = vrot.slane %v12503, %v12507
        %v12542 = vunpack.c.l.b16 %v12471
        %v12543 = vunpack.c.l.b16 %v12472
        %v12544 = vunpack.c.l.b16 %v12473
        %v12545 = vunpack.c.l.b16 %v12474
        %v12546 = vunpack.c.l.b16 %v12475
        %v12547 = vunpack.c.l.b16 %v12476
        %v12548 = vunpack.c.l.b16 %v12477
        %v12549 = vunpack.c.l.b16 %v12478
        %v12550 = vunpack.c.l.b16 %v12479
        %v12551 = vunpack.c.l.b16 %v12480
        %v12552 = vunpack.c.l.b16 %v12481
        %v12553 = vunpack.c.l.b16 %v12482
        %v12554 = vunpack.c.l.b16 %v12483
        %v12555 = vunpack.c.l.b16 %v12484
        %v12556 = vunpack.c.l.b16 %v12485
        %v12557 = vunpack.c.l.b16 %v12486
        %v12558 = vunpack.c.l.b16 %v12487
        %v12559 = vunpack.c.l.b16 %v12488
        %v12560 = vunpack.c.l.b16 %v12489
        %v12561 = vunpack.c.l.b16 %v12490
        %v12562 = vunpack.c.l.b16 %v12491
        %v12563 = vunpack.c.l.b16 %v12492
        %v12564 = vunpack.c.l.b16 %v12493
        %v12565 = vunpack.c.l.b16 %v12494
        %v12566 = vunpack.c.l.b16 %v12495
        %v12567 = vunpack.c.l.b16 %v12496
        %v12568 = vunpack.c.l.b16 %v12497
        %v12569 = vunpack.c.l.b16 %v12498
        %v12570 = vunpack.c.l.b16 %v12499
        %v12571 = vunpack.c.l.b16 %v12500
        %v12572 = vunpack.c.l.b16 %v12501
        %v12573 = vunpack.c.l.b16 %v12502
        %v12574 = vpack.c.b16 %v12543, %v12542
        %v12575 = vpack.c.b16 %v12545, %v12544
        %v12576 = vpack.c.b16 %v12547, %v12546
        %v12577 = vpack.c.b16 %v12549, %v12548
        %v12578 = vpack.c.b16 %v12551, %v12550
        %v12579 = vpack.c.b16 %v12553, %v12552
        %v12580 = vpack.c.b16 %v12555, %v12554
        %v12581 = vpack.c.b16 %v12557, %v12556
        %v12582 = vpack.c.b16 %v12559, %v12558
        %v12583 = vpack.c.b16 %v12561, %v12560
        %v12584 = vpack.c.b16 %v12563, %v12562
        %v12585 = vpack.c.b16 %v12565, %v12564
        %v12586 = vpack.c.b16 %v12567, %v12566
        %v12587 = vpack.c.b16 %v12569, %v12568
        %v12588 = vpack.c.b16 %v12571, %v12570
        %v12589 = vpack.c.b16 %v12573, %v12572
        %12606 = vmatprep.subr.bf16.mxu0 0
        %12607 = vmatpush1.bf16.msra.mxu0 %v12574
        %12608 = vmatprep.subr.bf16.mxu0 0
        %12609 = vmatpush1.bf16.msra.mxu0 %v12575
        %12610 = vmatprep.subr.bf16.mxu0 0
        %12611 = vmatpush1.bf16.msra.mxu0 %v12576
        %12612 = vmatprep.subr.bf16.mxu0 0
        %12613 = vmatpush1.bf16.msra.mxu0 %v12577
        %12614 = vmatprep.subr.bf16.mxu0 0
        %12615 = vmatpush1.bf16.msra.mxu0 %v12578
        %12616 = vmatprep.subr.bf16.mxu0 0
        %12617 = vmatpush1.bf16.msra.mxu0 %v12579
        %12618 = vmatprep.subr.bf16.mxu0 0
        %12619 = vmatpush1.bf16.msra.mxu0 %v12580
        %12620 = vmatprep.subr.bf16.mxu0 0
        %12621 = vmatpush1.bf16.msra.mxu0 %v12581
        %12622 = vmatprep.subr.bf16.mxu0 0
        %12623 = vmatpush1.bf16.msra.mxu0 %v12582
        %12624 = vmatprep.subr.bf16.mxu0 0
        %12625 = vmatpush1.bf16.msra.mxu0 %v12583
        %12626 = vmatprep.subr.bf16.mxu0 0
        %12627 = vmatpush1.bf16.msra.mxu0 %v12584
        %12628 = vmatprep.subr.bf16.mxu0 0
        %12629 = vmatpush1.bf16.msra.mxu0 %v12585
        %12630 = vmatprep.subr.bf16.mxu0 0
        %12631 = vmatpush1.bf16.msra.mxu0 %v12586
        %12632 = vmatprep.subr.bf16.mxu0 0
        %12633 = vmatpush1.bf16.msra.mxu0 %v12587
        %12634 = vmatprep.subr.bf16.mxu0 0
        %12635 = vmatpush1.bf16.msra.mxu0 %v12588
        %12636 = vmatprep.subr.bf16.mxu0 0
        %12637 = vmatpush1.bf16.msra.mxu0 %v12589
        %12638 = vmatprep.mubr.bf16.mxu0 %v12470
        %12639 = vmatmul.mubr.bf16.gmra.mrb[0].mxu0 %v12469
        %v12640 = vpop.f32.mrb[0].mxu0
        %v12641 = vadd.f32 %v12508, %v12640
        %v12642 = vpop.f32.mrb[0].mxu0
        %v12643 = vpop.f32.mrb[0].mxu0
        %v12644 = vpop.f32.mrb[0].mxu0
        %12645 = vdwg.mxu0
        %v12646 = vld [vmem:[#allocation17] sm:$0xff]
        %v12647 = vpack.c.bf16 %v12641, %v12641
        %v12648 = vld [vmem:[%s683] sm:$0xf]
        %v12649 = vld [vmem:[%s683 + $0x4] sm:$0xf]
        %v12650 = vld [vmem:[%s683 + $0x8] sm:$0xf]
        %v12651 = vld [vmem:[%s683 + $0xc] sm:$0xf]
        %v12652 = vld [vmem:[%s683 + $0x10] sm:$0xf]
        %v12653 = vld [vmem:[%s683 + $0x14] sm:$0xf]
        %v12654 = vld [vmem:[%s683 + $0x18] sm:$0xf]
        %v12655 = vld [vmem:[%s683 + $0x1c] sm:$0xf]
        %v12656 = vld [vmem:[%s683 + $0x20] sm:$0xf]
        %v12657 = vld [vmem:[%s683 + $0x24] sm:$0xf]
        %v12658 = vld [vmem:[%s683 + $0x28] sm:$0xf]
        %v12659 = vld [vmem:[%s683 + $0x2c] sm:$0xf]
        %v12660 = vld [vmem:[%s683 + $0x30] sm:$0xf]
        %v12661 = vld [vmem:[%s683 + $0x34] sm:$0xf]
        %v12662 = vld [vmem:[%s683 + $0x38] sm:$0xf]
        %v12663 = vld [vmem:[%s683 + $0x3c] sm:$0xf]
        %v12680 = vunpack.c.l.b16 %v12648
        %v12681 = vunpack.c.l.b16 %v12649
        %v12682 = vunpack.c.l.b16 %v12650
        %v12683 = vunpack.c.l.b16 %v12651
        %v12684 = vunpack.c.l.b16 %v12652
        %v12685 = vunpack.c.l.b16 %v12653
        %v12686 = vunpack.c.l.b16 %v12654
        %v12687 = vunpack.c.l.b16 %v12655
        %v12688 = vunpack.c.l.b16 %v12656
        %v12689 = vunpack.c.l.b16 %v12657
        %v12690 = vunpack.c.l.b16 %v12658
        %v12691 = vunpack.c.l.b16 %v12659
        %v12692 = vunpack.c.l.b16 %v12660
        %v12693 = vunpack.c.l.b16 %v12661
        %v12694 = vunpack.c.l.b16 %v12662
        %v12695 = vunpack.c.l.b16 %v12663
        %v12696 = vpack.c.b16 %v12681, %v12680
        %v12697 = vpack.c.b16 %v12683, %v12682
        %v12698 = vpack.c.b16 %v12685, %v12684
        %v12699 = vpack.c.b16 %v12687, %v12686
        %v12700 = vpack.c.b16 %v12689, %v12688
        %v12701 = vpack.c.b16 %v12691, %v12690
        %v12702 = vpack.c.b16 %v12693, %v12692
        %v12703 = vpack.c.b16 %v12695, %v12694
        %12712 = vmatprep.subr.bf16.mxu0 0
        %12713 = vmatpush1.bf16.msra.mxu0 %v12696
        %12714 = vmatprep.subr.bf16.mxu0 0
        %12715 = vmatpush1.bf16.msra.mxu0 %v12697
        %12716 = vmatprep.subr.bf16.mxu0 0
        %12717 = vmatpush1.bf16.msra.mxu0 %v12698
        %12718 = vmatprep.subr.bf16.mxu0 0
        %12719 = vmatpush1.bf16.msra.mxu0 %v12699
        %12720 = vmatprep.subr.bf16.mxu0 0
        %12721 = vmatpush1.bf16.msra.mxu0 %v12700
        %12722 = vmatprep.subr.bf16.mxu0 0
        %12723 = vmatpush1.bf16.msra.mxu0 %v12701
        %12724 = vmatprep.subr.bf16.mxu0 0
        %12725 = vmatpush1.bf16.msra.mxu0 %v12702
        %12726 = vmatprep.subr.bf16.mxu0 0
        %12727 = vmatpush1.bf16.msra.mxu0 %v12703
        %12728 = vmatprep.subr.bf16.mxu0 0
        %12729 = vmatpush1.bf16.msra.mxu0 0
        %12730 = vmatprep.subr.bf16.mxu0 0
        %12731 = vmatpush1.bf16.msra.mxu0 0
        %12732 = vmatprep.subr.bf16.mxu0 0
        %12733 = vmatpush1.bf16.msra.mxu0 0
        %12734 = vmatprep.subr.bf16.mxu0 0
        %12735 = vmatpush1.bf16.msra.mxu0 0
        %12736 = vmatprep.subr.bf16.mxu0 0
        %12737 = vmatpush1.bf16.msra.mxu0 0
        %12738 = vmatprep.subr.bf16.mxu0 0
        %12739 = vmatpush1.bf16.msra.mxu0 0
        %12740 = vmatprep.subr.bf16.mxu0 0
        %12741 = vmatpush1.bf16.msra.mxu0 0
        %12742 = vmatprep.subr.bf16.mxu0 0
        %12743 = vmatpush1.bf16.msra.mxu0 0
        %12744 = vmatprep.mubr.bf16.mxu0 0
        %12745 = vmatmul.mubr.bf16.gmra.mrb[0].mxu0 %v12647
        %v12746 = vpop.f32.mrb[0].mxu0
        %v12747 = vadd.f32 0.0, %v12746
        %v12748 = vpop.f32.mrb[0].mxu0
        %v12749 = vpop.f32.mrb[0].mxu0
        %v12750 = vpop.f32.mrb[0].mxu0
        %12751 = vdwg.mxu0
        %v12752 = vadd.f32 %v12646, %v12747
        %vm12753 = vcmask 39936
        %12754 = vst.msk [vmem:[#allocation17] sm:$0xff] %vm12753, %v12752
        %p12755 = scmp.eq.s32.totalorder %s38, 2
        // Predicated region
        $region105: #{vqa_forward.1} parent=63 // pred_check
          %p12756 = pneg %p12755
        $region106: #{vqa_forward.1} parent=63 // pred_check_branch
          %12758 = sbr.rel (%p12756) target = $region108
        $region107: #{vqa_forward.1} parent=63 // pred_region
          %v12759 = vld [vmem:[#allocation17] sm:$0xff]
          %v12760 = vld [vmem:[#allocation16] sm:$0x1]
          %v12762 = vlaneseq
          %v12763 = vshrl.u32 %v12762, 7
          %v12764 = vsub.s32 0, %v12763
          %v12765 = vrot.slane %v12760, %v12764
          %v12767 = vadd.f32 %v12759, %v12765
          %12768 = vst.msk [vmem:[#allocation17] sm:$0xff] %vm12753, %v12767
        $region108: #{vqa_forward.1} parent=63 // pred_fallthru
          _
        // Predicated region
        $region109: #{vqa_forward.1} parent=63 // pred_check
          %p12769 = pneg %p327
        $region110: #{vqa_forward.1} parent=63 // pred_check_branch
          %12771 = sbr.rel (%p12769) target = $region112
        $region111: #{vqa_forward.1} parent=63 // pred_region
          %s12773 = ssub.s32 128, 128
          %12774 = vsyncadd [#allocation4], %s12773
          %s12776 = sshll.u32 [#allocation17], 4
          %s12777 = int_to_ptr.vmem [resolvable:$true] %s12776
          %12779 = dma.vmem_to_hbm [thread:$0]  %s12777, 128, %s11, [#allocation4]
        $region112: #{vqa_forward.1} parent=63 // pred_fallthru
          _
        // Predicated region
        $region113: #{vqa_forward.1} parent=63 // pred_check
          %p12780 = pneg %p327
        $region114: #{vqa_forward.1} parent=63 // pred_check_branch
          %12782 = sbr.rel (%p12780) target = $region116
        $region115: #{vqa_forward.1} parent=63 // pred_region
          %12783 = dma.done [#allocation4], 128
        $region116: #{vqa_forward.1} parent=63 // pred_fallthru
          _
      $region64: #{vqa_forward.1} parent=5 // pred_fallthru
        _
      %p12784 = scmp.le.s32.totalorder 2, %s33
      // Predicated region
      $region117: #{vqa_forward.1} parent=5 // pred_check
        %p12785 = pneg %p12784
      $region118: #{vqa_forward.1} parent=5 // pred_check_branch
        %12787 = sbr.rel (%p12785) target = $region120
      $region119: #{vqa_forward.1} parent=5 // pred_region
        %s12788 = ssub.s32 %s33, 2
      $region120: #{vqa_forward.1} parent=5 // pred_fallthru
        _
    $region6: #{vqa_forward.1} parent=1 // loop_footer
      %s37 = sadd.s32 1, %s33
    $region7: #{vqa_forward.1} parent=1 // loop_footer_branch
      %32 = sbr.rel target = $region3
    $region8: #{vqa_forward.1} parent=1 // loop_exit
      _
    %12789 = vsyncpa [#allocation3], 1
    %s12790 = scalar_lea.sflag [#allocation3], 1
    %12791 = vsyncpa %s12790, 1
    %12792 = vsyncpa [#allocation6], 1
    %s12793 = scalar_lea.sflag [#allocation6], 1
    %12794 = vsyncpa %s12793, 1
    %12795 = vsyncpa [#allocation9], 1
    %s12796 = scalar_lea.sflag [#allocation9], 1
    %12797 = vsyncpa %s12796, 1
    %12798 = vsyncpa [#allocation12], 1
    %s12799 = scalar_lea.sflag [#allocation12], 1
    %12800 = vsyncpa %s12799, 1
    %12801 = vsyncpa [#allocation15], 1
    %s12802 = scalar_lea.sflag [#allocation15], 1
    %12803 = vsyncpa %s12802, 1
    %12804 = vsyncpa [#allocation4], 1
    %s12805 = scalar_lea.sflag [#allocation4], 1
    %12806 = vsyncpa %s12805, 1

</llo_original>
